<compile_context>
chip_gen: v7x
topology: tpu7x:2x2x1
jax: 0.10.0
libtpu: 0.0.40
codegen_flags: <defaults>
</compile_context>

<pallas_src>
import functools
from collections import namedtuple

import jax
import jax.numpy as jnp
from jax.experimental import pallas as pl
from jax.experimental.pallas import tpu as pltpu


@functools.lru_cache(maxsize=None)
def _vmem_limit_bytes():
    """~3/4 of per-core VMEM: 48 MiB on v7x (64 MiB), 96 MiB on v5e/v6e (128 MiB)."""
    cap = 64 * 1024 * 1024  # conservative (v7x) fallback
    try:
        cap = int(pltpu.get_tpu_info().vmem_capacity_bytes)
    except Exception:
        pass
    return max(32 * 1024 * 1024, min((cap * 3) // 4, 112 * 1024 * 1024))


# Flipped off at runtime if this JAX build rejects single-buffered weight BlockSpecs.
_WEIGHT_SINGLE_BUFFER = True


# ----------------------------- Pallas conv kernel ---------------------------


def _conv3x3_relu_kernel(x_ref, w_ref, b_ref, *refs, TH, W, Wp, pool):
    """3x3 same-pad conv + bias + ReLU (+ optional fused 2x2/2 max-pool) for one H-band.

    x_ref  : (1, (TH+3)*Wp, Cin) bf16  zero-padded band, rows flattened row-major
                                       (Wp = W + 2; 1 top + 2 bottom pad rows keep all
                                       shifted-window reads in bounds).
    w_ref  : (9, Cin, Cout)      bf16  tap-major weights, t = ky*3 + kx (single-buffered).
    b_ref  : (1, Cout)           f32   (single-buffered).
    o_ref  : (1, TH, W, Cout)    bf16  dense NHWC band (pad columns stripped in-kernel).
    p_ref  : (1, TH//2, W//2, Cout) bf16  fused 2x2 max-pool of the band (pool=True only).
    acc_ref: (TH*Wp, Cout)       f32   VMEM scratch staging the activated band.
    """
    if pool:
        o_ref, p_ref, acc_ref = refs
    else:
        o_ref, acc_ref = refs
        p_ref = None

    cout = w_ref.shape[-1]
    M = TH * Wp
    # 9 MXU matmuls with M = TH*Wp rows, accumulated in f32.
    # TODO(synk): widen K (fold kx taps / im2col) for Cin<=64 layers to raise MXU
    # contraction-depth utilization on the 256-deep v6e/v7x MXU.
    acc = jnp.zeros((M, cout), jnp.float32)
    for t in range(9):
        ky, kx = divmod(t, 3)
        off = ky * Wp + kx
        acc += jnp.dot(x_ref[0, off:off + M, :], w_ref[t],
                       preferred_element_type=jnp.float32)
    # Single fused bias + ReLU epilogue, staged once through VMEM scratch.
    acc_ref[...] = jnp.maximum(acc + b_ref[...], 0.0)

    # Strip the two don't-care pad columns per image row in-kernel and emit bf16.
    for r in range(TH):
        o_ref[0, r] = acc_ref[r * Wp:r * Wp + W, :].astype(o_ref.dtype)

    if pool:
        # Fused 2x2 / stride-2 max-pool straight out of the f32 scratch: saves a full
        # HBM round trip of the largest activations on every scale.
        Wo = W // 2
        for r in range(0, TH, 2):
            te = acc_ref[pl.ds(r * Wp, Wo, stride=2), :]
            to = acc_ref[pl.ds(r * Wp + 1, Wo, stride=2), :]
            be = acc_ref[pl.ds((r + 1) * Wp, Wo, stride=2), :]
            bo = acc_ref[pl.ds((r + 1) * Wp + 1, Wo, stride=2), :]
            p_ref[0, r // 2] = jnp.maximum(jnp.maximum(te, to),
                                           jnp.maximum(be, bo)).astype(p_ref.dtype)


# ------------------------------ kernel wrapper -------------------------------


def _pick_band_rows(H, Wp, Cin, Cout, pool):
    """Largest divisor of H (even if pooling) whose f32 band accumulator stays ~2 MiB."""
    budget_rows = max(1, (2 * 1024 * 1024) // (Wp * max(Cin, Cout) * 4))
    cands = [d for d in range(1, H + 1)
             if H % d == 0 and (not pool or d % 2 == 0)]
    under = [d for d in cands if d <= budget_rows]
    return under[-1] if under else cands[0]


def conv3x3_relu(x_nhwc, w, b, *, pool=False):
    """3x3 same-pad conv + bias + ReLU (NHWC, bf16 in/out, f32 accumulation).

    pool=True additionally returns the fused 2x2/stride-2 max-pooled activation.
    Work is tiled over (batch x H-bands) so VMEM footprint is independent of image size.
    """
    global _WEIGHT_SINGLE_BUFFER
    N, H, W, Cin = x_nhwc.shape
    Cout = w.shape[-1]
    Wp = W + 2
    if pool:
        assert H % 2 == 0 and W % 2 == 0, (H, W)
    TH = _pick_band_rows(H, Wp, Cin, Cout, pool)
    nb = H // TH
    G = N * nb

    # Pad (top=1, bottom=2, left/right=1); the extra bottom row keeps the shifted flat
    # windows of each band's trailing (don't-care) positions in bounds.
    xp = jnp.pad(x_nhwc.astype(jnp.bfloat16), ((0, 0), (1, 2), (1, 1), (0, 0)))
    if nb == 1:
        xb = xp.reshape(N, (H + 3) * Wp, Cin)
    else:
        # Gather each band's TH+3 padded rows (cheap halo duplication of 3/TH rows).
        rows = jnp.arange(nb)[:, None] * TH + jnp.arange(TH + 3)[None, :]
        xb = xp[:, rows].reshape(G, (TH + 3) * Wp, Cin)

    wf = w.astype(jnp.bfloat16).reshape(9, Cin, Cout)
    bf = b.astype(jnp.float32).reshape(1, Cout)

    kernel = functools.partial(_conv3x3_relu_kernel, TH=TH, W=W, Wp=Wp, pool=pool)

    if pool:
        out_shape = (jax.ShapeDtypeStruct((G, TH, W, Cout), jnp.bfloat16),
                     jax.ShapeDtypeStruct((G, TH // 2, W // 2, Cout), jnp.bfloat16))
        out_specs = (pl.BlockSpec((1, TH, W, Cout), lambda g: (g, 0, 0, 0)),
                     pl.BlockSpec((1, TH // 2, W // 2, Cout), lambda g: (g, 0, 0, 0)))
    else:
        out_shape = jax.ShapeDtypeStruct((G, TH, W, Cout), jnp.bfloat16)
        out_specs = pl.BlockSpec((1, TH, W, Cout), lambda g: (g, 0, 0, 0))

    def run(single_buffer_weights):
        sb = single_buffer_weights and hasattr(pl, "Buffered")
        wkw = dict(pipeline_mode=pl.Buffered(1)) if sb else {}
        in_specs = [
            pl.BlockSpec((1, (TH + 3) * Wp, Cin), lambda g: (g, 0, 0)),
            pl.BlockSpec((9, Cin, Cout), lambda g: (0, 0, 0), **wkw),
            pl.BlockSpec((1, Cout), lambda g: (0, 0), **wkw),
        ]
        return pl.pallas_call(
            kernel,
            out_shape=out_shape,
            grid_spec=pltpu.PrefetchScalarGridSpec(
                num_scalar_prefetch=0,
                grid=(G,),
                in_specs=in_specs,
                out_specs=out_specs,
                scratch_shapes=[pltpu.VMEM((TH * Wp, Cout), jnp.float32)],
            ),
            compiler_params=pltpu.CompilerParams(
                dimension_semantics=("parallel",),
                vmem_limit_bytes=_vmem_limit_bytes(),
            ),
        )(xb, wf, bf)

    if _WEIGHT_SINGLE_BUFFER:
        try:
            res = run(True)
        except Exception:
            # Single-buffered (Buffered(1)) weight specs unsupported on this build.
            _WEIGHT_SINGLE_BUFFER = False
            res = run(False)
    else:
        res = run(False)

    if pool:
        y, yp = res
        return y.reshape(N, H, W, Cout), yp.reshape(N, H // 2, W // 2, Cout)
    return res.reshape(N, H, W, Cout)


# ----------------------------- VGG16 definition -----------------------------

# Conv layer (Cin, Cout) configs for torchvision vgg16.features[0:23]
_VGG_CONV_CFG = [
    (3, 64), (64, 64),                      # slice1 -> relu1_2
    (64, 128), (128, 128),                  # slice2 -> relu2_2
    (128, 256), (256, 256), (256, 256),     # slice3 -> relu3_3
    (256, 512), (512, 512), (512, 512),     # slice4 -> relu4_3
]

VggOutputs = namedtuple("VggOutputs", ["relu1_2", "relu2_2", "relu3_3", "relu4_3"])


def init_vgg16_params(key):
    # TODO(synk): pretrained torchvision weights replaced by deterministic He-style init
    # (no checkpoint loading / network access allowed in this script).
    params = []
    for cin, cout in _VGG_CONV_CFG:
        key, kw, kb = jax.random.split(key, 3)
        std = (2.0 / (9.0 * cin)) ** 0.5
        w = (jax.random.normal(kw, (3, 3, cin, cout), jnp.float32) * std).astype(jnp.bfloat16)
        b = jax.random.normal(kb, (cout,), jnp.float32) * 0.01
        params.append((w, b))
    return params


def vgg16_forward(x_nchw, params):
    """Pallas VGG16.forward (returns NCHW tensors like the PyTorch module, bf16)."""
    h = jnp.transpose(x_nchw.astype(jnp.float32), (0, 2, 3, 1))  # NCHW -> NHWC

    h = conv3x3_relu(h, *params[0])
    relu1_2, h = conv3x3_relu(h, *params[1], pool=True)    # conv1_2 + fused pool1
    h = conv3x3_relu(h, *params[2])
    relu2_2, h = conv3x3_relu(h, *params[3], pool=True)    # conv2_2 + fused pool2
    h = conv3x3_relu(h, *params[4])
    h = conv3x3_relu(h, *params[5])
    relu3_3, h = conv3x3_relu(h, *params[6], pool=True)    # conv3_3 + fused pool3
    h = conv3x3_relu(h, *params[7])
    h = conv3x3_relu(h, *params[8])
    relu4_3 = conv3x3_relu(h, *params[9])

    to_nchw = lambda t: jnp.transpose(t, (0, 3, 1, 2))
    return VggOutputs(to_nchw(relu1_2), to_nchw(relu2_2),
                      to_nchw(relu3_3), to_nchw(relu4_3))


# ------------------------------- pure-JAX ref --------------------------------


def _vgg16_forward_ref(x_nchw, params):
    x = jnp.transpose(x_nchw.astype(jnp.float32), (0, 2, 3, 1))

    def conv(x, w, b):
        # Match the kernel's bf16 operand + bf16 output rounding; accumulate in f32.
        x32 = x.astype(jnp.bfloat16).astype(jnp.float32)
        y = jax.lax.conv_general_dilated(
            x32, w.astype(jnp.float32), window_strides=(1, 1), padding="SAME",
            dimension_numbers=("NHWC", "HWIO", "NHWC"))
        y = jax.nn.relu(y + b.astype(jnp.float32))
        return y.astype(jnp.bfloat16).astype(jnp.float32)

    def pool(x):
        return jax.lax.reduce_window(x, -jnp.inf, jax.lax.max,
                                     (1, 2, 2, 1), (1, 2, 2, 1), "VALID")

    h = conv(x, *params[0]); h = conv(h, *params[1]); r1 = h
    h = pool(h); h = conv(h, *params[2]); h = conv(h, *params[3]); r2 = h
    h = pool(h); h = conv(h, *params[4]); h = conv(h, *params[5]); h = conv(h, *params[6]); r3 = h
    h = pool(h); h = conv(h, *params[7]); h = conv(h, *params[8]); h = conv(h, *params[9]); r4 = h
    to_nchw = lambda t: jnp.transpose(t, (0, 3, 1, 2))
    return VggOutputs(to_nchw(r1), to_nchw(r2), to_nchw(r3), to_nchw(r4))


# ----------------------- InpaintingLoss (plain-JAX glue) ---------------------


def gram_matrix(y):
    b, ch, h, w = y.shape
    f = y.astype(jnp.float32).reshape(b, ch, h * w)
    return jnp.einsum("bik,bjk->bij", f, f) / (ch * h * w)


def total_variation_loss(y):
    y = y.astype(jnp.float32)
    return (jnp.mean(jnp.abs(y[:, :, :, :-1] - y[:, :, :, 1:])) +
            jnp.mean(jnp.abs(y[:, :, :-1, :] - y[:, :, 1:, :])))


def resize_like(x, target):
    # TODO(synk): the original `resize_like` util's interpolation mode is unspecified;
    # bilinear resize is assumed here.
    _, _, h, w = target.shape
    if x.shape[2:] == (h, w):
        return x
    return jax.image.resize(x, (x.shape[0], x.shape[1], h, w), method="bilinear")


def _l1(a, b):
    return jnp.mean(jnp.abs(a.astype(jnp.float32) - b.astype(jnp.float32)))


def inpainting_loss(inputs, gt, params,
                    p=(0, 1, 2, 3, 4, 5), q=(0, 1, 2),
                    w=(6.0, 0.1, 240.0, 0.1)):
    # Structural multi-scale L1.
    loss_struct = 0.0
    for i in p:
        out = inputs[i]
        gt_res = resize_like(gt, out)
        _, ch, h, wd = out.shape
        loss_struct += w[0] * (_l1(out, gt_res) / (ch * h * wd))

    # Perceptual + style + TV.  q-levels with the same spatial shape share ONE batched
    # VGG pass over [x_0; ...; x_{k-1}; gt_res]: gt features are computed once per shape
    # and the batch-grid trip count rises (k+1)x (pipeline / megacore win).
    loss_text = 0.0
    groups = {}
    for i in q:
        groups.setdefault(inputs[i].shape, []).append(i)
    for idxs in groups.values():
        gt_res = resize_like(gt, inputs[idxs[0]])
        n = gt_res.shape[0]
        batch = jnp.concatenate([inputs[i] for i in idxs] + [gt_res], axis=0)
        feats = vgg16_forward(batch, params)
        for f in feats:
            gt_f = f[len(idxs) * n:]
            gt_gram = gram_matrix(gt_f)
            for k, i in enumerate(idxs):
                x_f = f[k * n:(k + 1) * n]
                loss_text += w[1] * _l1(x_f, gt_f)                  # perceptual
                loss_text += w[2] * _l1(gram_matrix(x_f), gt_gram)  # style
        for i in idxs:
            loss_text += w[3] * total_variation_loss(inputs[i])

    return loss_struct + loss_text


# ----------------------------------- main ------------------------------------

if __name__ == "__main__":
    kparam, kgt, kpyr = jax.random.split(jax.random.PRNGKey(0), 3)
    params = init_vgg16_params(kparam)

    # Ground truth and a small multi-scale prediction pyramid (6 levels; the first
    # q-levels go through the VGG perceptual / style losses).
    gt = jax.random.normal(kgt, (2, 3, 16, 16), jnp.float32)
    pyr_sizes = (16, 16, 16, 8, 8, 4)
    pyr_keys = jax.random.split(kpyr, len(pyr_sizes))
    inputs = [jax.random.normal(k, (2, 3, s, s), jnp.float32)
              for k, s in zip(pyr_keys, pyr_sizes)]

    # 1) Validate the Pallas VGG backbone against the XLA reference (same bf16
    #    activation quantization in both; tolerance scaled to feature magnitude).
    out = jax.block_until_ready(vgg16_forward(gt, params))
    ref = jax.block_until_ready(_vgg16_forward_ref(gt, params))
    expected_shapes = [(2, 64, 16, 16), (2, 128, 8, 8), (2, 256, 4, 4), (2, 512, 2, 2)]
    for got, want, shape in zip(out, ref, expected_shapes):
        assert got.shape == shape, (got.shape, shape)
        err = float(jnp.max(jnp.abs(got.astype(jnp.float32) - want)))
        scale = float(jnp.max(jnp.abs(want)))
        assert err <= 5e-2 * scale + 1e-3, (err, scale)

    # 2) Full InpaintingLoss forward pass.
    loss = jax.block_until_ready(jax.jit(inpainting_loss)(inputs, gt, params))
    assert bool(jnp.isfinite(loss)), float(loss)

    print("KERNEL_OK")
</pallas_src>

<mosaic_0001>
module attributes {stable_mosaic.version = 11 : i64} {
  func.func @_conv3x3_relu_kernel(%arg0: i32, %arg1: memref<1x342x3xbf16, #tpu.memory_space<vmem>>, %arg2: memref<9x3x64xbf16, #tpu.memory_space<vmem>>, %arg3: memref<1x64xf32, #tpu.memory_space<vmem>>, %arg4: memref<1x16x16x64xbf16, #tpu.memory_space<vmem>>, %arg5: memref<288x64xf32, #tpu.memory_space<vmem>>) attributes {dimension_semantics = [#tpu.dimension_semantics<parallel>], iteration_bounds = array<i64: 2>, scalar_prefetch = 0 : i64, scratch_operands = 1 : i64, tpu.core_type = #tpu.core_type<tc>, window_params = [{transform_indices = @transform_0, window_bounds = array<i64: 1, 342, 3>}, {pipeline_mode = #tpu.pipeline_mode<synchronous>, transform_indices = @transform_1, window_bounds = array<i64: 9, 3, 64>}, {pipeline_mode = #tpu.pipeline_mode<synchronous>, transform_indices = @transform_2, window_bounds = array<i64: 1, 64>}, {transform_indices = @transform_3, window_bounds = array<i64: 1, 16, 16, 64>}]} {
    %cst = arith.constant 0.000000e+00 : f32
    %0 = vector.broadcast %cst : f32 to vector<288x64xf32>
    %c0 = arith.constant 0 : index
    %c0_0 = arith.constant 0 : index
    %c0_1 = arith.constant 0 : index
    %1 = vector.load %arg1[%c0, %c0_0, %c0_1] : memref<1x342x3xbf16, #tpu.memory_space<vmem>>, vector<1x288x3xbf16>
    %2 = vector.shape_cast %1 : vector<1x288x3xbf16> to vector<288x3xbf16>
    %c0_2 = arith.constant 0 : index
    %c0_3 = arith.constant 0 : index
    %c0_4 = arith.constant 0 : index
    %3 = vector.load %arg2[%c0_2, %c0_3, %c0_4] : memref<9x3x64xbf16, #tpu.memory_space<vmem>>, vector<1x3x64xbf16>
    %4 = vector.shape_cast %3 : vector<1x3x64xbf16> to vector<3x64xbf16>
    %cst_5 = arith.constant dense<0.000000e+00> : vector<288x64xf32>
    %5 = tpu.matmul %2, %4, %cst_5 {dimension_numbers = #tpu.dot_dimension_numbers<[1], [0], [0], [1], [0, 0, 1, 1], [], []>} : vector<288x3xbf16>, vector<3x64xbf16>, vector<288x64xf32> -> vector<288x64xf32>
    %6 = arith.addf %0, %5 : vector<288x64xf32>
    %c0_6 = arith.constant 0 : index
    %c1 = arith.constant 1 : index
    %c0_7 = arith.constant 0 : index
    %7 = vector.load %arg1[%c0_6, %c1, %c0_7] : memref<1x342x3xbf16, #tpu.memory_space<vmem>>, vector<1x288x3xbf16>
    %8 = vector.shape_cast %7 : vector<1x288x3xbf16> to vector<288x3xbf16>
    %c1_8 = arith.constant 1 : index
    %c0_9 = arith.constant 0 : index
    %c0_10 = arith.constant 0 : index
    %9 = vector.load %arg2[%c1_8, %c0_9, %c0_10] : memref<9x3x64xbf16, #tpu.memory_space<vmem>>, vector<1x3x64xbf16>
    %10 = vector.shape_cast %9 : vector<1x3x64xbf16> to vector<3x64xbf16>
    %cst_11 = arith.constant dense<0.000000e+00> : vector<288x64xf32>
    %11 = tpu.matmul %8, %10, %cst_11 {dimension_numbers = #tpu.dot_dimension_numbers<[1], [0], [0], [1], [0, 0, 1, 1], [], []>} : vector<288x3xbf16>, vector<3x64xbf16>, vector<288x64xf32> -> vector<288x64xf32>
    %12 = arith.addf %6, %11 : vector<288x64xf32>
    %c0_12 = arith.constant 0 : index
    %c2 = arith.constant 2 : index
    %c0_13 = arith.constant 0 : index
    %13 = vector.load %arg1[%c0_12, %c2, %c0_13] : memref<1x342x3xbf16, #tpu.memory_space<vmem>>, vector<1x288x3xbf16>
    %14 = vector.shape_cast %13 : vector<1x288x3xbf16> to vector<288x3xbf16>
    %c2_14 = arith.constant 2 : index
    %c0_15 = arith.constant 0 : index
    %c0_16 = arith.constant 0 : index
    %15 = vector.load %arg2[%c2_14, %c0_15, %c0_16] : memref<9x3x64xbf16, #tpu.memory_space<vmem>>, vector<1x3x64xbf16>
    %16 = vector.shape_cast %15 : vector<1x3x64xbf16> to vector<3x64xbf16>
    %cst_17 = arith.constant dense<0.000000e+00> : vector<288x64xf32>
    %17 = tpu.matmul %14, %16, %cst_17 {dimension_numbers = #tpu.dot_dimension_numbers<[1], [0], [0], [1], [0, 0, 1, 1], [], []>} : vector<288x3xbf16>, vector<3x64xbf16>, vector<288x64xf32> -> vector<288x64xf32>
    %18 = arith.addf %12, %17 : vector<288x64xf32>
    %c0_18 = arith.constant 0 : index
    %c18 = arith.constant 18 : index
    %c0_19 = arith.constant 0 : index
    %19 = vector.load %arg1[%c0_18, %c18, %c0_19] : memref<1x342x3xbf16, #tpu.memory_space<vmem>>, vector<1x288x3xbf16>
    %20 = vector.shape_cast %19 : vector<1x288x3xbf16> to vector<288x3xbf16>
    %c3 = arith.constant 3 : index
    %c0_20 = arith.constant 0 : index
    %c0_21 = arith.constant 0 : index
    %21 = vector.load %arg2[%c3, %c0_20, %c0_21] : memref<9x3x64xbf16, #tpu.memory_space<vmem>>, vector<1x3x64xbf16>
    %22 = vector.shape_cast %21 : vector<1x3x64xbf16> to vector<3x64xbf16>
    %cst_22 = arith.constant dense<0.000000e+00> : vector<288x64xf32>
    %23 = tpu.matmul %20, %22, %cst_22 {dimension_numbers = #tpu.dot_dimension_numbers<[1], [0], [0], [1], [0, 0, 1, 1], [], []>} : vector<288x3xbf16>, vector<3x64xbf16>, vector<288x64xf32> -> vector<288x64xf32>
    %24 = arith.addf %18, %23 : vector<288x64xf32>
    %c0_23 = arith.constant 0 : index
    %c19 = arith.constant 19 : index
    %c0_24 = arith.constant 0 : index
    %25 = vector.load %arg1[%c0_23, %c19, %c0_24] : memref<1x342x3xbf16, #tpu.memory_space<vmem>>, vector<1x288x3xbf16>
    %26 = vector.shape_cast %25 : vector<1x288x3xbf16> to vector<288x3xbf16>
    %c4 = arith.constant 4 : index
    %c0_25 = arith.constant 0 : index
    %c0_26 = arith.constant 0 : index
    %27 = vector.load %arg2[%c4, %c0_25, %c0_26] : memref<9x3x64xbf16, #tpu.memory_space<vmem>>, vector<1x3x64xbf16>
    %28 = vector.shape_cast %27 : vector<1x3x64xbf16> to vector<3x64xbf16>
    %cst_27 = arith.constant dense<0.000000e+00> : vector<288x64xf32>
    %29 = tpu.matmul %26, %28, %cst_27 {dimension_numbers = #tpu.dot_dimension_numbers<[1], [0], [0], [1], [0, 0, 1, 1], [], []>} : vector<288x3xbf16>, vector<3x64xbf16>, vector<288x64xf32> -> vector<288x64xf32>
    %30 = arith.addf %24, %29 : vector<288x64xf32>
    %c0_28 = arith.constant 0 : index
    %c20 = arith.constant 20 : index
    %c0_29 = arith.constant 0 : index
    %31 = vector.load %arg1[%c0_28, %c20, %c0_29] : memref<1x342x3xbf16, #tpu.memory_space<vmem>>, vector<1x288x3xbf16>
    %32 = vector.shape_cast %31 : vector<1x288x3xbf16> to vector<288x3xbf16>
    %c5 = arith.constant 5 : index
    %c0_30 = arith.constant 0 : index
    %c0_31 = arith.constant 0 : index
    %33 = vector.load %arg2[%c5, %c0_30, %c0_31] : memref<9x3x64xbf16, #tpu.memory_space<vmem>>, vector<1x3x64xbf16>
    %34 = vector.shape_cast %33 : vector<1x3x64xbf16> to vector<3x64xbf16>
    %cst_32 = arith.constant dense<0.000000e+00> : vector<288x64xf32>
    %35 = tpu.matmul %32, %34, %cst_32 {dimension_numbers = #tpu.dot_dimension_numbers<[1], [0], [0], [1], [0, 0, 1, 1], [], []>} : vector<288x3xbf16>, vector<3x64xbf16>, vector<288x64xf32> -> vector<288x64xf32>
    %36 = arith.addf %30, %35 : vector<288x64xf32>
    %c0_33 = arith.constant 0 : index
    %c36 = arith.constant 36 : index
    %c0_34 = arith.constant 0 : index
    %37 = vector.load %arg1[%c0_33, %c36, %c0_34] : memref<1x342x3xbf16, #tpu.memory_space<vmem>>, vector<1x288x3xbf16>
    %38 = vector.shape_cast %37 : vector<1x288x3xbf16> to vector<288x3xbf16>
    %c6 = arith.constant 6 : index
    %c0_35 = arith.constant 0 : index
    %c0_36 = arith.constant 0 : index
    %39 = vector.load %arg2[%c6, %c0_35, %c0_36] : memref<9x3x64xbf16, #tpu.memory_space<vmem>>, vector<1x3x64xbf16>
    %40 = vector.shape_cast %39 : vector<1x3x64xbf16> to vector<3x64xbf16>
    %cst_37 = arith.constant dense<0.000000e+00> : vector<288x64xf32>
    %41 = tpu.matmul %38, %40, %cst_37 {dimension_numbers = #tpu.dot_dimension_numbers<[1], [0], [0], [1], [0, 0, 1, 1], [], []>} : vector<288x3xbf16>, vector<3x64xbf16>, vector<288x64xf32> -> vector<288x64xf32>
    %42 = arith.addf %36, %41 : vector<288x64xf32>
    %c0_38 = arith.constant 0 : index
    %c37 = arith.constant 37 : index
    %c0_39 = arith.constant 0 : index
    %43 = vector.load %arg1[%c0_38, %c37, %c0_39] : memref<1x342x3xbf16, #tpu.memory_space<vmem>>, vector<1x288x3xbf16>
    %44 = vector.shape_cast %43 : vector<1x288x3xbf16> to vector<288x3xbf16>
    %c7 = arith.constant 7 : index
    %c0_40 = arith.constant 0 : index
    %c0_41 = arith.constant 0 : index
    %45 = vector.load %arg2[%c7, %c0_40, %c0_41] : memref<9x3x64xbf16, #tpu.memory_space<vmem>>, vector<1x3x64xbf16>
    %46 = vector.shape_cast %45 : vector<1x3x64xbf16> to vector<3x64xbf16>
    %cst_42 = arith.constant dense<0.000000e+00> : vector<288x64xf32>
    %47 = tpu.matmul %44, %46, %cst_42 {dimension_numbers = #tpu.dot_dimension_numbers<[1], [0], [0], [1], [0, 0, 1, 1], [], []>} : vector<288x3xbf16>, vector<3x64xbf16>, vector<288x64xf32> -> vector<288x64xf32>
    %48 = arith.addf %42, %47 : vector<288x64xf32>
    %c0_43 = arith.constant 0 : index
    %c38 = arith.constant 38 : index
    %c0_44 = arith.constant 0 : index
    %49 = vector.load %arg1[%c0_43, %c38, %c0_44] : memref<1x342x3xbf16, #tpu.memory_space<vmem>>, vector<1x288x3xbf16>
    %50 = vector.shape_cast %49 : vector<1x288x3xbf16> to vector<288x3xbf16>
    %c8 = arith.constant 8 : index
    %c0_45 = arith.constant 0 : index
    %c0_46 = arith.constant 0 : index
    %51 = vector.load %arg2[%c8, %c0_45, %c0_46] : memref<9x3x64xbf16, #tpu.memory_space<vmem>>, vector<1x3x64xbf16>
    %52 = vector.shape_cast %51 : vector<1x3x64xbf16> to vector<3x64xbf16>
    %cst_47 = arith.constant dense<0.000000e+00> : vector<288x64xf32>
    %53 = tpu.matmul %50, %52, %cst_47 {dimension_numbers = #tpu.dot_dimension_numbers<[1], [0], [0], [1], [0, 0, 1, 1], [], []>} : vector<288x3xbf16>, vector<3x64xbf16>, vector<288x64xf32> -> vector<288x64xf32>
    %54 = arith.addf %48, %53 : vector<288x64xf32>
    %c0_48 = arith.constant 0 : index
    %c0_49 = arith.constant 0 : index
    %55 = vector.load %arg3[%c0_48, %c0_49] : memref<1x64xf32, #tpu.memory_space<vmem>>, vector<1x64xf32>
    %56 = vector.broadcast %55 : vector<1x64xf32> to vector<288x64xf32>
    %57 = arith.addf %54, %56 : vector<288x64xf32>
    %cst_50 = arith.constant 0.000000e+00 : f32
    %58 = vector.broadcast %cst_50 : f32 to vector<288x64xf32>
    %59 = arith.maximumf %57, %58 : vector<288x64xf32>
    %c0_51 = arith.constant 0 : index
    %c0_52 = arith.constant 0 : index
    %60 = vector.load %arg5[%c0_51, %c0_52] : memref<288x64xf32, #tpu.memory_space<vmem>>, vector<288x64xf32>
    tpu.vector_store %arg5[%c0_51, %c0_52], %59 {strides = array<i32>} : memref<288x64xf32, #tpu.memory_space<vmem>>, vector<288x64xf32>,
    %c0_53 = arith.constant 0 : index
    %c0_54 = arith.constant 0 : index
    %61 = vector.load %arg5[%c0_53, %c0_54] : memref<288x64xf32, #tpu.memory_space<vmem>>, vector<16x64xf32>
    %62 = arith.truncf %61 : vector<16x64xf32> to vector<16x64xbf16>
    %c0_55 = arith.constant 0 : index
    %c0_56 = arith.constant 0 : index
    %c0_57 = arith.constant 0 : index
    %c0_58 = arith.constant 0 : index
    %63 = vector.load %arg4[%c0_55, %c0_56, %c0_57, %c0_58] : memref<1x16x16x64xbf16, #tpu.memory_space<vmem>>, vector<1x1x16x64xbf16>
    %64 = vector.shape_cast %63 : vector<1x1x16x64xbf16> to vector<16x64xbf16>
    %65 = vector.shape_cast %62 : vector<16x64xbf16> to vector<1x1x16x64xbf16>
    tpu.vector_store %arg4[%c0_55, %c0_56, %c0_57, %c0_58], %65 {strides = array<i32>} : memref<1x16x16x64xbf16, #tpu.memory_space<vmem>>, vector<1x1x16x64xbf16>,
    %c18_59 = arith.constant 18 : index
    %c0_60 = arith.constant 0 : index
    %66 = vector.load %arg5[%c18_59, %c0_60] : memref<288x64xf32, #tpu.memory_space<vmem>>, vector<16x64xf32>
    %67 = arith.truncf %66 : vector<16x64xf32> to vector<16x64xbf16>
    %c0_61 = arith.constant 0 : index
    %c1_62 = arith.constant 1 : index
    %c0_63 = arith.constant 0 : index
    %c0_64 = arith.constant 0 : index
    %68 = vector.load %arg4[%c0_61, %c1_62, %c0_63, %c0_64] : memref<1x16x16x64xbf16, #tpu.memory_space<vmem>>, vector<1x1x16x64xbf16>
    %69 = vector.shape_cast %68 : vector<1x1x16x64xbf16> to vector<16x64xbf16>
    %70 = vector.shape_cast %67 : vector<16x64xbf16> to vector<1x1x16x64xbf16>
    tpu.vector_store %arg4[%c0_61, %c1_62, %c0_63, %c0_64], %70 {strides = array<i32>} : memref<1x16x16x64xbf16, #tpu.memory_space<vmem>>, vector<1x1x16x64xbf16>,
    %c36_65 = arith.constant 36 : index
    %c0_66 = arith.constant 0 : index
    %71 = vector.load %arg5[%c36_65, %c0_66] : memref<288x64xf32, #tpu.memory_space<vmem>>, vector<16x64xf32>
    %72 = arith.truncf %71 : vector<16x64xf32> to vector<16x64xbf16>
    %c0_67 = arith.constant 0 : index
    %c2_68 = arith.constant 2 : index
    %c0_69 = arith.constant 0 : index
    %c0_70 = arith.constant 0 : index
    %73 = vector.load %arg4[%c0_67, %c2_68, %c0_69, %c0_70] : memref<1x16x16x64xbf16, #tpu.memory_space<vmem>>, vector<1x1x16x64xbf16>
    %74 = vector.shape_cast %73 : vector<1x1x16x64xbf16> to vector<16x64xbf16>
    %75 = vector.shape_cast %72 : vector<16x64xbf16> to vector<1x1x16x64xbf16>
    tpu.vector_store %arg4[%c0_67, %c2_68, %c0_69, %c0_70], %75 {strides = array<i32>} : memref<1x16x16x64xbf16, #tpu.memory_space<vmem>>, vector<1x1x16x64xbf16>,
    %c54 = arith.constant 54 : index
    %c0_71 = arith.constant 0 : index
    %76 = vector.load %arg5[%c54, %c0_71] : memref<288x64xf32, #tpu.memory_space<vmem>>, vector<16x64xf32>
    %77 = arith.truncf %76 : vector<16x64xf32> to vector<16x64xbf16>
    %c0_72 = arith.constant 0 : index
    %c3_73 = arith.constant 3 : index
    %c0_74 = arith.constant 0 : index
    %c0_75 = arith.constant 0 : index
    %78 = vector.load %arg4[%c0_72, %c3_73, %c0_74, %c0_75] : memref<1x16x16x64xbf16, #tpu.memory_space<vmem>>, vector<1x1x16x64xbf16>
    %79 = vector.shape_cast %78 : vector<1x1x16x64xbf16> to vector<16x64xbf16>
    %80 = vector.shape_cast %77 : vector<16x64xbf16> to vector<1x1x16x64xbf16>
    tpu.vector_store %arg4[%c0_72, %c3_73, %c0_74, %c0_75], %80 {strides = array<i32>} : memref<1x16x16x64xbf16, #tpu.memory_space<vmem>>, vector<1x1x16x64xbf16>,
    %c72 = arith.constant 72 : index
    %c0_76 = arith.constant 0 : index
    %81 = vector.load %arg5[%c72, %c0_76] : memref<288x64xf32, #tpu.memory_space<vmem>>, vector<16x64xf32>
    %82 = arith.truncf %81 : vector<16x64xf32> to vector<16x64xbf16>
    %c0_77 = arith.constant 0 : index
    %c4_78 = arith.constant 4 : index
    %c0_79 = arith.constant 0 : index
    %c0_80 = arith.constant 0 : index
    %83 = vector.load %arg4[%c0_77, %c4_78, %c0_79, %c0_80] : memref<1x16x16x64xbf16, #tpu.memory_space<vmem>>, vector<1x1x16x64xbf16>
    %84 = vector.shape_cast %83 : vector<1x1x16x64xbf16> to vector<16x64xbf16>
    %85 = vector.shape_cast %82 : vector<16x64xbf16> to vector<1x1x16x64xbf16>
    tpu.vector_store %arg4[%c0_77, %c4_78, %c0_79, %c0_80], %85 {strides = array<i32>} : memref<1x16x16x64xbf16, #tpu.memory_space<vmem>>, vector<1x1x16x64xbf16>,
    %c90 = arith.constant 90 : index
    %c0_81 = arith.constant 0 : index
    %86 = vector.load %arg5[%c90, %c0_81] : memref<288x64xf32, #tpu.memory_space<vmem>>, vector<16x64xf32>
    %87 = arith.truncf %86 : vector<16x64xf32> to vector<16x64xbf16>
    %c0_82 = arith.constant 0 : index
    %c5_83 = arith.constant 5 : index
    %c0_84 = arith.constant 0 : index
    %c0_85 = arith.constant 0 : index
    %88 = vector.load %arg4[%c0_82, %c5_83, %c0_84, %c0_85] : memref<1x16x16x64xbf16, #tpu.memory_space<vmem>>, vector<1x1x16x64xbf16>
    %89 = vector.shape_cast %88 : vector<1x1x16x64xbf16> to vector<16x64xbf16>
    %90 = vector.shape_cast %87 : vector<16x64xbf16> to vector<1x1x16x64xbf16>
    tpu.vector_store %arg4[%c0_82, %c5_83, %c0_84, %c0_85], %90 {strides = array<i32>} : memref<1x16x16x64xbf16, #tpu.memory_space<vmem>>, vector<1x1x16x64xbf16>,
    %c108 = arith.constant 108 : index
    %c0_86 = arith.constant 0 : index
    %91 = vector.load %arg5[%c108, %c0_86] : memref<288x64xf32, #tpu.memory_space<vmem>>, vector<16x64xf32>
    %92 = arith.truncf %91 : vector<16x64xf32> to vector<16x64xbf16>
    %c0_87 = arith.constant 0 : index
    %c6_88 = arith.constant 6 : index
    %c0_89 = arith.constant 0 : index
    %c0_90 = arith.constant 0 : index
    %93 = vector.load %arg4[%c0_87, %c6_88, %c0_89, %c0_90] : memref<1x16x16x64xbf16, #tpu.memory_space<vmem>>, vector<1x1x16x64xbf16>
    %94 = vector.shape_cast %93 : vector<1x1x16x64xbf16> to vector<16x64xbf16>
    %95 = vector.shape_cast %92 : vector<16x64xbf16> to vector<1x1x16x64xbf16>
    tpu.vector_store %arg4[%c0_87, %c6_88, %c0_89, %c0_90], %95 {strides = array<i32>} : memref<1x16x16x64xbf16, #tpu.memory_space<vmem>>, vector<1x1x16x64xbf16>,
    %c126 = arith.constant 126 : index
    %c0_91 = arith.constant 0 : index
    %96 = vector.load %arg5[%c126, %c0_91] : memref<288x64xf32, #tpu.memory_space<vmem>>, vector<16x64xf32>
    %97 = arith.truncf %96 : vector<16x64xf32> to vector<16x64xbf16>
    %c0_92 = arith.constant 0 : index
    %c7_93 = arith.constant 7 : index
    %c0_94 = arith.constant 0 : index
    %c0_95 = arith.constant 0 : index
    %98 = vector.load %arg4[%c0_92, %c7_93, %c0_94, %c0_95] : memref<1x16x16x64xbf16, #tpu.memory_space<vmem>>, vector<1x1x16x64xbf16>
    %99 = vector.shape_cast %98 : vector<1x1x16x64xbf16> to vector<16x64xbf16>
    %100 = vector.shape_cast %97 : vector<16x64xbf16> to vector<1x1x16x64xbf16>
    tpu.vector_store %arg4[%c0_92, %c7_93, %c0_94, %c0_95], %100 {strides = array<i32>} : memref<1x16x16x64xbf16, #tpu.memory_space<vmem>>, vector<1x1x16x64xbf16>,
    %c144 = arith.constant 144 : index
    %c0_96 = arith.constant 0 : index
    %101 = vector.load %arg5[%c144, %c0_96] : memref<288x64xf32, #tpu.memory_space<vmem>>, vector<16x64xf32>
    %102 = arith.truncf %101 : vector<16x64xf32> to vector<16x64xbf16>
    %c0_97 = arith.constant 0 : index
    %c8_98 = arith.constant 8 : index
    %c0_99 = arith.constant 0 : index
    %c0_100 = arith.constant 0 : index
    %103 = vector.load %arg4[%c0_97, %c8_98, %c0_99, %c0_100] : memref<1x16x16x64xbf16, #tpu.memory_space<vmem>>, vector<1x1x16x64xbf16>
    %104 = vector.shape_cast %103 : vector<1x1x16x64xbf16> to vector<16x64xbf16>
    %105 = vector.shape_cast %102 : vector<16x64xbf16> to vector<1x1x16x64xbf16>
    tpu.vector_store %arg4[%c0_97, %c8_98, %c0_99, %c0_100], %105 {strides = array<i32>} : memref<1x16x16x64xbf16, #tpu.memory_space<vmem>>, vector<1x1x16x64xbf16>,
    %c162 = arith.constant 162 : index
    %c0_101 = arith.constant 0 : index
    %106 = vector.load %arg5[%c162, %c0_101] : memref<288x64xf32, #tpu.memory_space<vmem>>, vector<16x64xf32>
    %107 = arith.truncf %106 : vector<16x64xf32> to vector<16x64xbf16>
    %c0_102 = arith.constant 0 : index
    %c9 = arith.constant 9 : index
    %c0_103 = arith.constant 0 : index
    %c0_104 = arith.constant 0 : index
    %108 = vector.load %arg4[%c0_102, %c9, %c0_103, %c0_104] : memref<1x16x16x64xbf16, #tpu.memory_space<vmem>>, vector<1x1x16x64xbf16>
    %109 = vector.shape_cast %108 : vector<1x1x16x64xbf16> to vector<16x64xbf16>
    %110 = vector.shape_cast %107 : vector<16x64xbf16> to vector<1x1x16x64xbf16>
    tpu.vector_store %arg4[%c0_102, %c9, %c0_103, %c0_104], %110 {strides = array<i32>} : memref<1x16x16x64xbf16, #tpu.memory_space<vmem>>, vector<1x1x16x64xbf16>,
    %c180 = arith.constant 180 : index
    %c0_105 = arith.constant 0 : index
    %111 = vector.load %arg5[%c180, %c0_105] : memref<288x64xf32, #tpu.memory_space<vmem>>, vector<16x64xf32>
    %112 = arith.truncf %111 : vector<16x64xf32> to vector<16x64xbf16>
    %c0_106 = arith.constant 0 : index
    %c10 = arith.constant 10 : index
    %c0_107 = arith.constant 0 : index
    %c0_108 = arith.constant 0 : index
    %113 = vector.load %arg4[%c0_106, %c10, %c0_107, %c0_108] : memref<1x16x16x64xbf16, #tpu.memory_space<vmem>>, vector<1x1x16x64xbf16>
    %114 = vector.shape_cast %113 : vector<1x1x16x64xbf16> to vector<16x64xbf16>
    %115 = vector.shape_cast %112 : vector<16x64xbf16> to vector<1x1x16x64xbf16>
    tpu.vector_store %arg4[%c0_106, %c10, %c0_107, %c0_108], %115 {strides = array<i32>} : memref<1x16x16x64xbf16, #tpu.memory_space<vmem>>, vector<1x1x16x64xbf16>,
    %c198 = arith.constant 198 : index
    %c0_109 = arith.constant 0 : index
    %116 = vector.load %arg5[%c198, %c0_109] : memref<288x64xf32, #tpu.memory_space<vmem>>, vector<16x64xf32>
    %117 = arith.truncf %116 : vector<16x64xf32> to vector<16x64xbf16>
    %c0_110 = arith.constant 0 : index
    %c11 = arith.constant 11 : index
    %c0_111 = arith.constant 0 : index
    %c0_112 = arith.constant 0 : index
    %118 = vector.load %arg4[%c0_110, %c11, %c0_111, %c0_112] : memref<1x16x16x64xbf16, #tpu.memory_space<vmem>>, vector<1x1x16x64xbf16>
    %119 = vector.shape_cast %118 : vector<1x1x16x64xbf16> to vector<16x64xbf16>
    %120 = vector.shape_cast %117 : vector<16x64xbf16> to vector<1x1x16x64xbf16>
    tpu.vector_store %arg4[%c0_110, %c11, %c0_111, %c0_112], %120 {strides = array<i32>} : memref<1x16x16x64xbf16, #tpu.memory_space<vmem>>, vector<1x1x16x64xbf16>,
    %c216 = arith.constant 216 : index
    %c0_113 = arith.constant 0 : index
    %121 = vector.load %arg5[%c216, %c0_113] : memref<288x64xf32, #tpu.memory_space<vmem>>, vector<16x64xf32>
    %122 = arith.truncf %121 : vector<16x64xf32> to vector<16x64xbf16>
    %c0_114 = arith.constant 0 : index
    %c12 = arith.constant 12 : index
    %c0_115 = arith.constant 0 : index
    %c0_116 = arith.constant 0 : index
    %123 = vector.load %arg4[%c0_114, %c12, %c0_115, %c0_116] : memref<1x16x16x64xbf16, #tpu.memory_space<vmem>>, vector<1x1x16x64xbf16>
    %124 = vector.shape_cast %123 : vector<1x1x16x64xbf16> to vector<16x64xbf16>
    %125 = vector.shape_cast %122 : vector<16x64xbf16> to vector<1x1x16x64xbf16>
    tpu.vector_store %arg4[%c0_114, %c12, %c0_115, %c0_116], %125 {strides = array<i32>} : memref<1x16x16x64xbf16, #tpu.memory_space<vmem>>, vector<1x1x16x64xbf16>,
    %c234 = arith.constant 234 : index
    %c0_117 = arith.constant 0 : index
    %126 = vector.load %arg5[%c234, %c0_117] : memref<288x64xf32, #tpu.memory_space<vmem>>, vector<16x64xf32>
    %127 = arith.truncf %126 : vector<16x64xf32> to vector<16x64xbf16>
    %c0_118 = arith.constant 0 : index
    %c13 = arith.constant 13 : index
    %c0_119 = arith.constant 0 : index
    %c0_120 = arith.constant 0 : index
    %128 = vector.load %arg4[%c0_118, %c13, %c0_119, %c0_120] : memref<1x16x16x64xbf16, #tpu.memory_space<vmem>>, vector<1x1x16x64xbf16>
    %129 = vector.shape_cast %128 : vector<1x1x16x64xbf16> to vector<16x64xbf16>
    %130 = vector.shape_cast %127 : vector<16x64xbf16> to vector<1x1x16x64xbf16>
    tpu.vector_store %arg4[%c0_118, %c13, %c0_119, %c0_120], %130 {strides = array<i32>} : memref<1x16x16x64xbf16, #tpu.memory_space<vmem>>, vector<1x1x16x64xbf16>,
    %c252 = arith.constant 252 : index
    %c0_121 = arith.constant 0 : index
    %131 = vector.load %arg5[%c252, %c0_121] : memref<288x64xf32, #tpu.memory_space<vmem>>, vector<16x64xf32>
    %132 = arith.truncf %131 : vector<16x64xf32> to vector<16x64xbf16>
    %c0_122 = arith.constant 0 : index
    %c14 = arith.constant 14 : index
    %c0_123 = arith.constant 0 : index
    %c0_124 = arith.constant 0 : index
    %133 = vector.load %arg4[%c0_122, %c14, %c0_123, %c0_124] : memref<1x16x16x64xbf16, #tpu.memory_space<vmem>>, vector<1x1x16x64xbf16>
    %134 = vector.shape_cast %133 : vector<1x1x16x64xbf16> to vector<16x64xbf16>
    %135 = vector.shape_cast %132 : vector<16x64xbf16> to vector<1x1x16x64xbf16>
    tpu.vector_store %arg4[%c0_122, %c14, %c0_123, %c0_124], %135 {strides = array<i32>} : memref<1x16x16x64xbf16, #tpu.memory_space<vmem>>, vector<1x1x16x64xbf16>,
    %c270 = arith.constant 270 : index
    %c0_125 = arith.constant 0 : index
    %136 = vector.load %arg5[%c270, %c0_125] : memref<288x64xf32, #tpu.memory_space<vmem>>, vector<16x64xf32>
    %137 = arith.truncf %136 : vector<16x64xf32> to vector<16x64xbf16>
    %c0_126 = arith.constant 0 : index
    %c15 = arith.constant 15 : index
    %c0_127 = arith.constant 0 : index
    %c0_128 = arith.constant 0 : index
    %138 = vector.load %arg4[%c0_126, %c15, %c0_127, %c0_128] : memref<1x16x16x64xbf16, #tpu.memory_space<vmem>>, vector<1x1x16x64xbf16>
    %139 = vector.shape_cast %138 : vector<1x1x16x64xbf16> to vector<16x64xbf16>
    %140 = vector.shape_cast %137 : vector<16x64xbf16> to vector<1x1x16x64xbf16>
    tpu.vector_store %arg4[%c0_126, %c15, %c0_127, %c0_128], %140 {strides = array<i32>} : memref<1x16x16x64xbf16, #tpu.memory_space<vmem>>, vector<1x1x16x64xbf16>,
    return
  }
  func.func @transform_0(%arg0: i32) -> (i32, i32, i32) {
    %c0_i32 = arith.constant 0 : i32
    %c0_i32_0 = arith.constant 0 : i32
    %c0_i32_1 = arith.constant 0 : i32
    return %arg0, %c0_i32, %c0_i32_0 : i32, i32, i32
  }
  func.func @transform_1(%arg0: i32) -> (i32, i32, i32) {
    %c0_i32 = arith.constant 0 : i32
    %c0_i32_0 = arith.constant 0 : i32
    %c0_i32_1 = arith.constant 0 : i32
    %c0_i32_2 = arith.constant 0 : i32
    return %c0_i32, %c0_i32_0, %c0_i32_1 : i32, i32, i32
  }
  func.func @transform_2(%arg0: i32) -> (i32, i32) {
    %c0_i32 = arith.constant 0 : i32
    %c0_i32_0 = arith.constant 0 : i32
    %c0_i32_1 = arith.constant 0 : i32
    return %c0_i32, %c0_i32_0 : i32, i32
  }
  func.func @transform_3(%arg0: i32) -> (i32, i32, i32, i32) {
    %c0_i32 = arith.constant 0 : i32
    %c0_i32_0 = arith.constant 0 : i32
    %c0_i32_1 = arith.constant 0 : i32
    %c0_i32_2 = arith.constant 0 : i32
    return %arg0, %c0_i32, %c0_i32_0, %c0_i32_1 : i32, i32, i32, i32
  }
}

module attributes {stable_mosaic.version = 11 : i64} {
  func.func @_conv3x3_relu_kernel(%arg0: i32, %arg1: memref<1x342x3xbf16, #tpu.memory_space<vmem>>, %arg2: memref<9x3x64xbf16, #tpu.memory_space<vmem>>, %arg3: memref<1x64xf32, #tpu.memory_space<vmem>>, %arg4: memref<1x16x16x64xbf16, #tpu.memory_space<vmem>>, %arg5: memref<288x64xf32, #tpu.memory_space<vmem>>) attributes {dimension_semantics = [#tpu.dimension_semantics<parallel>], iteration_bounds = array<i64: 2>, scalar_prefetch = 0 : i64, scratch_operands = 1 : i64, tpu.core_type = #tpu.core_type<tc>, window_params = [{transform_indices = @transform_0, window_bounds = array<i64: 1, 342, 3>}, {pipeline_mode = #tpu.pipeline_mode<synchronous>, transform_indices = @transform_1, window_bounds = array<i64: 9, 3, 64>}, {pipeline_mode = #tpu.pipeline_mode<synchronous>, transform_indices = @transform_2, window_bounds = array<i64: 1, 64>}, {transform_indices = @transform_3, window_bounds = array<i64: 1, 16, 16, 64>}]} {
    %cst = arith.constant 0.000000e+00 : f32
    %0 = vector.broadcast %cst : f32 to vector<288x64xf32>
    %c0 = arith.constant 0 : index
    %c0_0 = arith.constant 0 : index
    %c0_1 = arith.constant 0 : index
    %1 = vector.load %arg1[%c0, %c0_0, %c0_1] : memref<1x342x3xbf16, #tpu.memory_space<vmem>>, vector<1x288x3xbf16>
    %2 = vector.shape_cast %1 : vector<1x288x3xbf16> to vector<288x3xbf16>
    %c0_2 = arith.constant 0 : index
    %c0_3 = arith.constant 0 : index
    %c0_4 = arith.constant 0 : index
    %3 = vector.load %arg2[%c0_2, %c0_3, %c0_4] : memref<9x3x64xbf16, #tpu.memory_space<vmem>>, vector<1x3x64xbf16>
    %4 = vector.shape_cast %3 : vector<1x3x64xbf16> to vector<3x64xbf16>
    %cst_5 = arith.constant dense<0.000000e+00> : vector<288x64xf32>
    %5 = tpu.matmul %2, %4, %cst_5 {dimension_numbers = #tpu.dot_dimension_numbers<[1], [0], [0], [1], [0, 0, 1, 1], [], []>} : vector<288x3xbf16>, vector<3x64xbf16>, vector<288x64xf32> -> vector<288x64xf32>
    %6 = arith.addf %0, %5 : vector<288x64xf32>
    %c0_6 = arith.constant 0 : index
    %c1 = arith.constant 1 : index
    %c0_7 = arith.constant 0 : index
    %7 = vector.load %arg1[%c0_6, %c1, %c0_7] : memref<1x342x3xbf16, #tpu.memory_space<vmem>>, vector<1x288x3xbf16>
    %8 = vector.shape_cast %7 : vector<1x288x3xbf16> to vector<288x3xbf16>
    %c1_8 = arith.constant 1 : index
    %c0_9 = arith.constant 0 : index
    %c0_10 = arith.constant 0 : index
    %9 = vector.load %arg2[%c1_8, %c0_9, %c0_10] : memref<9x3x64xbf16, #tpu.memory_space<vmem>>, vector<1x3x64xbf16>
    %10 = vector.shape_cast %9 : vector<1x3x64xbf16> to vector<3x64xbf16>
    %cst_11 = arith.constant dense<0.000000e+00> : vector<288x64xf32>
    %11 = tpu.matmul %8, %10, %cst_11 {dimension_numbers = #tpu.dot_dimension_numbers<[1], [0], [0], [1], [0, 0, 1, 1], [], []>} : vector<288x3xbf16>, vector<3x64xbf16>, vector<288x64xf32> -> vector<288x64xf32>
    %12 = arith.addf %6, %11 : vector<288x64xf32>
    %c0_12 = arith.constant 0 : index
    %c2 = arith.constant 2 : index
    %c0_13 = arith.constant 0 : index
    %13 = vector.load %arg1[%c0_12, %c2, %c0_13] : memref<1x342x3xbf16, #tpu.memory_space<vmem>>, vector<1x288x3xbf16>
    %14 = vector.shape_cast %13 : vector<1x288x3xbf16> to vector<288x3xbf16>
    %c2_14 = arith.constant 2 : index
    %c0_15 = arith.constant 0 : index
    %c0_16 = arith.constant 0 : index
    %15 = vector.load %arg2[%c2_14, %c0_15, %c0_16] : memref<9x3x64xbf16, #tpu.memory_space<vmem>>, vector<1x3x64xbf16>
    %16 = vector.shape_cast %15 : vector<1x3x64xbf16> to vector<3x64xbf16>
    %cst_17 = arith.constant dense<0.000000e+00> : vector<288x64xf32>
    %17 = tpu.matmul %14, %16, %cst_17 {dimension_numbers = #tpu.dot_dimension_numbers<[1], [0], [0], [1], [0, 0, 1, 1], [], []>} : vector<288x3xbf16>, vector<3x64xbf16>, vector<288x64xf32> -> vector<288x64xf32>
    %18 = arith.addf %12, %17 : vector<288x64xf32>
    %c0_18 = arith.constant 0 : index
    %c18 = arith.constant 18 : index
    %c0_19 = arith.constant 0 : index
    %19 = vector.load %arg1[%c0_18, %c18, %c0_19] : memref<1x342x3xbf16, #tpu.memory_space<vmem>>, vector<1x288x3xbf16>
    %20 = vector.shape_cast %19 : vector<1x288x3xbf16> to vector<288x3xbf16>
    %c3 = arith.constant 3 : index
    %c0_20 = arith.constant 0 : index
    %c0_21 = arith.constant 0 : index
    %21 = vector.load %arg2[%c3, %c0_20, %c0_21] : memref<9x3x64xbf16, #tpu.memory_space<vmem>>, vector<1x3x64xbf16>
    %22 = vector.shape_cast %21 : vector<1x3x64xbf16> to vector<3x64xbf16>
    %cst_22 = arith.constant dense<0.000000e+00> : vector<288x64xf32>
    %23 = tpu.matmul %20, %22, %cst_22 {dimension_numbers = #tpu.dot_dimension_numbers<[1], [0], [0], [1], [0, 0, 1, 1], [], []>} : vector<288x3xbf16>, vector<3x64xbf16>, vector<288x64xf32> -> vector<288x64xf32>
    %24 = arith.addf %18, %23 : vector<288x64xf32>
    %c0_23 = arith.constant 0 : index
    %c19 = arith.constant 19 : index
    %c0_24 = arith.constant 0 : index
    %25 = vector.load %arg1[%c0_23, %c19, %c0_24] : memref<1x342x3xbf16, #tpu.memory_space<vmem>>, vector<1x288x3xbf16>
    %26 = vector.shape_cast %25 : vector<1x288x3xbf16> to vector<288x3xbf16>
    %c4 = arith.constant 4 : index
    %c0_25 = arith.constant 0 : index
    %c0_26 = arith.constant 0 : index
    %27 = vector.load %arg2[%c4, %c0_25, %c0_26] : memref<9x3x64xbf16, #tpu.memory_space<vmem>>, vector<1x3x64xbf16>
    %28 = vector.shape_cast %27 : vector<1x3x64xbf16> to vector<3x64xbf16>
    %cst_27 = arith.constant dense<0.000000e+00> : vector<288x64xf32>
    %29 = tpu.matmul %26, %28, %cst_27 {dimension_numbers = #tpu.dot_dimension_numbers<[1], [0], [0], [1], [0, 0, 1, 1], [], []>} : vector<288x3xbf16>, vector<3x64xbf16>, vector<288x64xf32> -> vector<288x64xf32>
    %30 = arith.addf %24, %29 : vector<288x64xf32>
    %c0_28 = arith.constant 0 : index
    %c20 = arith.constant 20 : index
    %c0_29 = arith.constant 0 : index
    %31 = vector.load %arg1[%c0_28, %c20, %c0_29] : memref<1x342x3xbf16, #tpu.memory_space<vmem>>, vector<1x288x3xbf16>
    %32 = vector.shape_cast %31 : vector<1x288x3xbf16> to vector<288x3xbf16>
    %c5 = arith.constant 5 : index
    %c0_30 = arith.constant 0 : index
    %c0_31 = arith.constant 0 : index
    %33 = vector.load %arg2[%c5, %c0_30, %c0_31] : memref<9x3x64xbf16, #tpu.memory_space<vmem>>, vector<1x3x64xbf16>
    %34 = vector.shape_cast %33 : vector<1x3x64xbf16> to vector<3x64xbf16>
    %cst_32 = arith.constant dense<0.000000e+00> : vector<288x64xf32>
    %35 = tpu.matmul %32, %34, %cst_32 {dimension_numbers = #tpu.dot_dimension_numbers<[1], [0], [0], [1], [0, 0, 1, 1], [], []>} : vector<288x3xbf16>, vector<3x64xbf16>, vector<288x64xf32> -> vector<288x64xf32>
    %36 = arith.addf %30, %35 : vector<288x64xf32>
    %c0_33 = arith.constant 0 : index
    %c36 = arith.constant 36 : index
    %c0_34 = arith.constant 0 : index
    %37 = vector.load %arg1[%c0_33, %c36, %c0_34] : memref<1x342x3xbf16, #tpu.memory_space<vmem>>, vector<1x288x3xbf16>
    %38 = vector.shape_cast %37 : vector<1x288x3xbf16> to vector<288x3xbf16>
    %c6 = arith.constant 6 : index
    %c0_35 = arith.constant 0 : index
    %c0_36 = arith.constant 0 : index
    %39 = vector.load %arg2[%c6, %c0_35, %c0_36] : memref<9x3x64xbf16, #tpu.memory_space<vmem>>, vector<1x3x64xbf16>
    %40 = vector.shape_cast %39 : vector<1x3x64xbf16> to vector<3x64xbf16>
    %cst_37 = arith.constant dense<0.000000e+00> : vector<288x64xf32>
    %41 = tpu.matmul %38, %40, %cst_37 {dimension_numbers = #tpu.dot_dimension_numbers<[1], [0], [0], [1], [0, 0, 1, 1], [], []>} : vector<288x3xbf16>, vector<3x64xbf16>, vector<288x64xf32> -> vector<288x64xf32>
    %42 = arith.addf %36, %41 : vector<288x64xf32>
    %c0_38 = arith.constant 0 : index
    %c37 = arith.constant 37 : index
    %c0_39 = arith.constant 0 : index
    %43 = vector.load %arg1[%c0_38, %c37, %c0_39] : memref<1x342x3xbf16, #tpu.memory_space<vmem>>, vector<1x288x3xbf16>
    %44 = vector.shape_cast %43 : vector<1x288x3xbf16> to vector<288x3xbf16>
    %c7 = arith.constant 7 : index
    %c0_40 = arith.constant 0 : index
    %c0_41 = arith.constant 0 : index
    %45 = vector.load %arg2[%c7, %c0_40, %c0_41] : memref<9x3x64xbf16, #tpu.memory_space<vmem>>, vector<1x3x64xbf16>
    %46 = vector.shape_cast %45 : vector<1x3x64xbf16> to vector<3x64xbf16>
    %cst_42 = arith.constant dense<0.000000e+00> : vector<288x64xf32>
    %47 = tpu.matmul %44, %46, %cst_42 {dimension_numbers = #tpu.dot_dimension_numbers<[1], [0], [0], [1], [0, 0, 1, 1], [], []>} : vector<288x3xbf16>, vector<3x64xbf16>, vector<288x64xf32> -> vector<288x64xf32>
    %48 = arith.addf %42, %47 : vector<288x64xf32>
    %c0_43 = arith.constant 0 : index
    %c38 = arith.constant 38 : index
    %c0_44 = arith.constant 0 : index
    %49 = vector.load %arg1[%c0_43, %c38, %c0_44] : memref<1x342x3xbf16, #tpu.memory_space<vmem>>, vector<1x288x3xbf16>
    %50 = vector.shape_cast %49 : vector<1x288x3xbf16> to vector<288x3xbf16>
    %c8 = arith.constant 8 : index
    %c0_45 = arith.constant 0 : index
    %c0_46 = arith.constant 0 : index
    %51 = vector.load %arg2[%c8, %c0_45, %c0_46] : memref<9x3x64xbf16, #tpu.memory_space<vmem>>, vector<1x3x64xbf16>
    %52 = vector.shape_cast %51 : vector<1x3x64xbf16> to vector<3x64xbf16>
    %cst_47 = arith.constant dense<0.000000e+00> : vector<288x64xf32>
    %53 = tpu.matmul %50, %52, %cst_47 {dimension_numbers = #tpu.dot_dimension_numbers<[1], [0], [0], [1], [0, 0, 1, 1], [], []>} : vector<288x3xbf16>, vector<3x64xbf16>, vector<288x64xf32> -> vector<288x64xf32>
    %54 = arith.addf %48, %53 : vector<288x64xf32>
    %c0_48 = arith.constant 0 : index
    %c0_49 = arith.constant 0 : index
    %55 = vector.load %arg3[%c0_48, %c0_49] : memref<1x64xf32, #tpu.memory_space<vmem>>, vector<1x64xf32>
    %56 = vector.broadcast %55 : vector<1x64xf32> to vector<288x64xf32>
    %57 = arith.addf %54, %56 : vector<288x64xf32>
    %cst_50 = arith.constant 0.000000e+00 : f32
    %58 = vector.broadcast %cst_50 : f32 to vector<288x64xf32>
    %59 = arith.maximumf %57, %58 : vector<288x64xf32>
    %c0_51 = arith.constant 0 : index
    %c0_52 = arith.constant 0 : index
    %60 = vector.load %arg5[%c0_51, %c0_52] : memref<288x64xf32, #tpu.memory_space<vmem>>, vector<288x64xf32>
    tpu.vector_store %arg5[%c0_51, %c0_52], %59 {strides = array<i32>} : memref<288x64xf32, #tpu.memory_space<vmem>>, vector<288x64xf32>,
    %c0_53 = arith.constant 0 : index
    %c0_54 = arith.constant 0 : index
    %61 = vector.load %arg5[%c0_53, %c0_54] : memref<288x64xf32, #tpu.memory_space<vmem>>, vector<16x64xf32>
    %62 = arith.truncf %61 : vector<16x64xf32> to vector<16x64xbf16>
    %c0_55 = arith.constant 0 : index
    %c0_56 = arith.constant 0 : index
    %c0_57 = arith.constant 0 : index
    %c0_58 = arith.constant 0 : index
    %63 = vector.load %arg4[%c0_55, %c0_56, %c0_57, %c0_58] : memref<1x16x16x64xbf16, #tpu.memory_space<vmem>>, vector<1x1x16x64xbf16>
    %64 = vector.shape_cast %63 : vector<1x1x16x64xbf16> to vector<16x64xbf16>
    %65 = vector.shape_cast %62 : vector<16x64xbf16> to vector<1x1x16x64xbf16>
    tpu.vector_store %arg4[%c0_55, %c0_56, %c0_57, %c0_58], %65 {strides = array<i32>} : memref<1x16x16x64xbf16, #tpu.memory_space<vmem>>, vector<1x1x16x64xbf16>,
    %c18_59 = arith.constant 18 : index
    %c0_60 = arith.constant 0 : index
    %66 = vector.load %arg5[%c18_59, %c0_60] : memref<288x64xf32, #tpu.memory_space<vmem>>, vector<16x64xf32>
    %67 = arith.truncf %66 : vector<16x64xf32> to vector<16x64xbf16>
    %c0_61 = arith.constant 0 : index
    %c1_62 = arith.constant 1 : index
    %c0_63 = arith.constant 0 : index
    %c0_64 = arith.constant 0 : index
    %68 = vector.load %arg4[%c0_61, %c1_62, %c0_63, %c0_64] : memref<1x16x16x64xbf16, #tpu.memory_space<vmem>>, vector<1x1x16x64xbf16>
    %69 = vector.shape_cast %68 : vector<1x1x16x64xbf16> to vector<16x64xbf16>
    %70 = vector.shape_cast %67 : vector<16x64xbf16> to vector<1x1x16x64xbf16>
    tpu.vector_store %arg4[%c0_61, %c1_62, %c0_63, %c0_64], %70 {strides = array<i32>} : memref<1x16x16x64xbf16, #tpu.memory_space<vmem>>, vector<1x1x16x64xbf16>,
    %c36_65 = arith.constant 36 : index
    %c0_66 = arith.constant 0 : index
    %71 = vector.load %arg5[%c36_65, %c0_66] : memref<288x64xf32, #tpu.memory_space<vmem>>, vector<16x64xf32>
    %72 = arith.truncf %71 : vector<16x64xf32> to vector<16x64xbf16>
    %c0_67 = arith.constant 0 : index
    %c2_68 = arith.constant 2 : index
    %c0_69 = arith.constant 0 : index
    %c0_70 = arith.constant 0 : index
    %73 = vector.load %arg4[%c0_67, %c2_68, %c0_69, %c0_70] : memref<1x16x16x64xbf16, #tpu.memory_space<vmem>>, vector<1x1x16x64xbf16>
    %74 = vector.shape_cast %73 : vector<1x1x16x64xbf16> to vector<16x64xbf16>
    %75 = vector.shape_cast %72 : vector<16x64xbf16> to vector<1x1x16x64xbf16>
    tpu.vector_store %arg4[%c0_67, %c2_68, %c0_69, %c0_70], %75 {strides = array<i32>} : memref<1x16x16x64xbf16, #tpu.memory_space<vmem>>, vector<1x1x16x64xbf16>,
    %c54 = arith.constant 54 : index
    %c0_71 = arith.constant 0 : index
    %76 = vector.load %arg5[%c54, %c0_71] : memref<288x64xf32, #tpu.memory_space<vmem>>, vector<16x64xf32>
    %77 = arith.truncf %76 : vector<16x64xf32> to vector<16x64xbf16>
    %c0_72 = arith.constant 0 : index
    %c3_73 = arith.constant 3 : index
    %c0_74 = arith.constant 0 : index
    %c0_75 = arith.constant 0 : index
    %78 = vector.load %arg4[%c0_72, %c3_73, %c0_74, %c0_75] : memref<1x16x16x64xbf16, #tpu.memory_space<vmem>>, vector<1x1x16x64xbf16>
    %79 = vector.shape_cast %78 : vector<1x1x16x64xbf16> to vector<16x64xbf16>
    %80 = vector.shape_cast %77 : vector<16x64xbf16> to vector<1x1x16x64xbf16>
    tpu.vector_store %arg4[%c0_72, %c3_73, %c0_74, %c0_75], %80 {strides = array<i32>} : memref<1x16x16x64xbf16, #tpu.memory_space<vmem>>, vector<1x1x16x64xbf16>,
    %c72 = arith.constant 72 : index
    %c0_76 = arith.constant 0 : index
    %81 = vector.load %arg5[%c72, %c0_76] : memref<288x64xf32, #tpu.memory_space<vmem>>, vector<16x64xf32>
    %82 = arith.truncf %81 : vector<16x64xf32> to vector<16x64xbf16>
    %c0_77 = arith.constant 0 : index
    %c4_78 = arith.constant 4 : index
    %c0_79 = arith.constant 0 : index
    %c0_80 = arith.constant 0 : index
    %83 = vector.load %arg4[%c0_77, %c4_78, %c0_79, %c0_80] : memref<1x16x16x64xbf16, #tpu.memory_space<vmem>>, vector<1x1x16x64xbf16>
    %84 = vector.shape_cast %83 : vector<1x1x16x64xbf16> to vector<16x64xbf16>
    %85 = vector.shape_cast %82 : vector<16x64xbf16> to vector<1x1x16x64xbf16>
    tpu.vector_store %arg4[%c0_77, %c4_78, %c0_79, %c0_80], %85 {strides = array<i32>} : memref<1x16x16x64xbf16, #tpu.memory_space<vmem>>, vector<1x1x16x64xbf16>,
    %c90 = arith.constant 90 : index
    %c0_81 = arith.constant 0 : index
    %86 = vector.load %arg5[%c90, %c0_81] : memref<288x64xf32, #tpu.memory_space<vmem>>, vector<16x64xf32>
    %87 = arith.truncf %86 : vector<16x64xf32> to vector<16x64xbf16>
    %c0_82 = arith.constant 0 : index
    %c5_83 = arith.constant 5 : index
    %c0_84 = arith.constant 0 : index
    %c0_85 = arith.constant 0 : index
    %88 = vector.load %arg4[%c0_82, %c5_83, %c0_84, %c0_85] : memref<1x16x16x64xbf16, #tpu.memory_space<vmem>>, vector<1x1x16x64xbf16>
    %89 = vector.shape_cast %88 : vector<1x1x16x64xbf16> to vector<16x64xbf16>
    %90 = vector.shape_cast %87 : vector<16x64xbf16> to vector<1x1x16x64xbf16>
    tpu.vector_store %arg4[%c0_82, %c5_83, %c0_84, %c0_85], %90 {strides = array<i32>} : memref<1x16x16x64xbf16, #tpu.memory_space<vmem>>, vector<1x1x16x64xbf16>,
    %c108 = arith.constant 108 : index
    %c0_86 = arith.constant 0 : index
    %91 = vector.load %arg5[%c108, %c0_86] : memref<288x64xf32, #tpu.memory_space<vmem>>, vector<16x64xf32>
    %92 = arith.truncf %91 : vector<16x64xf32> to vector<16x64xbf16>
    %c0_87 = arith.constant 0 : index
    %c6_88 = arith.constant 6 : index
    %c0_89 = arith.constant 0 : index
    %c0_90 = arith.constant 0 : index
    %93 = vector.load %arg4[%c0_87, %c6_88, %c0_89, %c0_90] : memref<1x16x16x64xbf16, #tpu.memory_space<vmem>>, vector<1x1x16x64xbf16>
    %94 = vector.shape_cast %93 : vector<1x1x16x64xbf16> to vector<16x64xbf16>
    %95 = vector.shape_cast %92 : vector<16x64xbf16> to vector<1x1x16x64xbf16>
    tpu.vector_store %arg4[%c0_87, %c6_88, %c0_89, %c0_90], %95 {strides = array<i32>} : memref<1x16x16x64xbf16, #tpu.memory_space<vmem>>, vector<1x1x16x64xbf16>,
    %c126 = arith.constant 126 : index
    %c0_91 = arith.constant 0 : index
    %96 = vector.load %arg5[%c126, %c0_91] : memref<288x64xf32, #tpu.memory_space<vmem>>, vector<16x64xf32>
    %97 = arith.truncf %96 : vector<16x64xf32> to vector<16x64xbf16>
    %c0_92 = arith.constant 0 : index
    %c7_93 = arith.constant 7 : index
    %c0_94 = arith.constant 0 : index
    %c0_95 = arith.constant 0 : index
    %98 = vector.load %arg4[%c0_92, %c7_93, %c0_94, %c0_95] : memref<1x16x16x64xbf16, #tpu.memory_space<vmem>>, vector<1x1x16x64xbf16>
    %99 = vector.shape_cast %98 : vector<1x1x16x64xbf16> to vector<16x64xbf16>
    %100 = vector.shape_cast %97 : vector<16x64xbf16> to vector<1x1x16x64xbf16>
    tpu.vector_store %arg4[%c0_92, %c7_93, %c0_94, %c0_95], %100 {strides = array<i32>} : memref<1x16x16x64xbf16, #tpu.memory_space<vmem>>, vector<1x1x16x64xbf16>,
    %c144 = arith.constant 144 : index
    %c0_96 = arith.constant 0 : index
    %101 = vector.load %arg5[%c144, %c0_96] : memref<288x64xf32, #tpu.memory_space<vmem>>, vector<16x64xf32>
    %102 = arith.truncf %101 : vector<16x64xf32> to vector<16x64xbf16>
    %c0_97 = arith.constant 0 : index
    %c8_98 = arith.constant 8 : index
    %c0_99 = arith.constant 0 : index
    %c0_100 = arith.constant 0 : index
    %103 = vector.load %arg4[%c0_97, %c8_98, %c0_99, %c0_100] : memref<1x16x16x64xbf16, #tpu.memory_space<vmem>>, vector<1x1x16x64xbf16>
    %104 = vector.shape_cast %103 : vector<1x1x16x64xbf16> to vector<16x64xbf16>
    %105 = vector.shape_cast %102 : vector<16x64xbf16> to vector<1x1x16x64xbf16>
    tpu.vector_store %arg4[%c0_97, %c8_98, %c0_99, %c0_100], %105 {strides = array<i32>} : memref<1x16x16x64xbf16, #tpu.memory_space<vmem>>, vector<1x1x16x64xbf16>,
    %c162 = arith.constant 162 : index
    %c0_101 = arith.constant 0 : index
    %106 = vector.load %arg5[%c162, %c0_101] : memref<288x64xf32, #tpu.memory_space<vmem>>, vector<16x64xf32>
    %107 = arith.truncf %106 : vector<16x64xf32> to vector<16x64xbf16>
    %c0_102 = arith.constant 0 : index
    %c9 = arith.constant 9 : index
    %c0_103 = arith.constant 0 : index
    %c0_104 = arith.constant 0 : index
    %108 = vector.load %arg4[%c0_102, %c9, %c0_103, %c0_104] : memref<1x16x16x64xbf16, #tpu.memory_space<vmem>>, vector<1x1x16x64xbf16>
    %109 = vector.shape_cast %108 : vector<1x1x16x64xbf16> to vector<16x64xbf16>
    %110 = vector.shape_cast %107 : vector<16x64xbf16> to vector<1x1x16x64xbf16>
    tpu.vector_store %arg4[%c0_102, %c9, %c0_103, %c0_104], %110 {strides = array<i32>} : memref<1x16x16x64xbf16, #tpu.memory_space<vmem>>, vector<1x1x16x64xbf16>,
    %c180 = arith.constant 180 : index
    %c0_105 = arith.constant 0 : index
    %111 = vector.load %arg5[%c180, %c0_105] : memref<288x64xf32, #tpu.memory_space<vmem>>, vector<16x64xf32>
    %112 = arith.truncf %111 : vector<16x64xf32> to vector<16x64xbf16>
    %c0_106 = arith.constant 0 : index
    %c10 = arith.constant 10 : index
    %c0_107 = arith.constant 0 : index
    %c0_108 = arith.constant 0 : index
    %113 = vector.load %arg4[%c0_106, %c10, %c0_107, %c0_108] : memref<1x16x16x64xbf16, #tpu.memory_space<vmem>>, vector<1x1x16x64xbf16>
    %114 = vector.shape_cast %113 : vector<1x1x16x64xbf16> to vector<16x64xbf16>
    %115 = vector.shape_cast %112 : vector<16x64xbf16> to vector<1x1x16x64xbf16>
    tpu.vector_store %arg4[%c0_106, %c10, %c0_107, %c0_108], %115 {strides = array<i32>} : memref<1x16x16x64xbf16, #tpu.memory_space<vmem>>, vector<1x1x16x64xbf16>,
    %c198 = arith.constant 198 : index
    %c0_109 = arith.constant 0 : index
    %116 = vector.load %arg5[%c198, %c0_109] : memref<288x64xf32, #tpu.memory_space<vmem>>, vector<16x64xf32>
    %117 = arith.truncf %116 : vector<16x64xf32> to vector<16x64xbf16>
    %c0_110 = arith.constant 0 : index
    %c11 = arith.constant 11 : index
    %c0_111 = arith.constant 0 : index
    %c0_112 = arith.constant 0 : index
    %118 = vector.load %arg4[%c0_110, %c11, %c0_111, %c0_112] : memref<1x16x16x64xbf16, #tpu.memory_space<vmem>>, vector<1x1x16x64xbf16>
    %119 = vector.shape_cast %118 : vector<1x1x16x64xbf16> to vector<16x64xbf16>
    %120 = vector.shape_cast %117 : vector<16x64xbf16> to vector<1x1x16x64xbf16>
    tpu.vector_store %arg4[%c0_110, %c11, %c0_111, %c0_112], %120 {strides = array<i32>} : memref<1x16x16x64xbf16, #tpu.memory_space<vmem>>, vector<1x1x16x64xbf16>,
    %c216 = arith.constant 216 : index
    %c0_113 = arith.constant 0 : index
    %121 = vector.load %arg5[%c216, %c0_113] : memref<288x64xf32, #tpu.memory_space<vmem>>, vector<16x64xf32>
    %122 = arith.truncf %121 : vector<16x64xf32> to vector<16x64xbf16>
    %c0_114 = arith.constant 0 : index
    %c12 = arith.constant 12 : index
    %c0_115 = arith.constant 0 : index
    %c0_116 = arith.constant 0 : index
    %123 = vector.load %arg4[%c0_114, %c12, %c0_115, %c0_116] : memref<1x16x16x64xbf16, #tpu.memory_space<vmem>>, vector<1x1x16x64xbf16>
    %124 = vector.shape_cast %123 : vector<1x1x16x64xbf16> to vector<16x64xbf16>
    %125 = vector.shape_cast %122 : vector<16x64xbf16> to vector<1x1x16x64xbf16>
    tpu.vector_store %arg4[%c0_114, %c12, %c0_115, %c0_116], %125 {strides = array<i32>} : memref<1x16x16x64xbf16, #tpu.memory_space<vmem>>, vector<1x1x16x64xbf16>,
    %c234 = arith.constant 234 : index
    %c0_117 = arith.constant 0 : index
    %126 = vector.load %arg5[%c234, %c0_117] : memref<288x64xf32, #tpu.memory_space<vmem>>, vector<16x64xf32>
    %127 = arith.truncf %126 : vector<16x64xf32> to vector<16x64xbf16>
    %c0_118 = arith.constant 0 : index
    %c13 = arith.constant 13 : index
    %c0_119 = arith.constant 0 : index
    %c0_120 = arith.constant 0 : index
    %128 = vector.load %arg4[%c0_118, %c13, %c0_119, %c0_120] : memref<1x16x16x64xbf16, #tpu.memory_space<vmem>>, vector<1x1x16x64xbf16>
    %129 = vector.shape_cast %128 : vector<1x1x16x64xbf16> to vector<16x64xbf16>
    %130 = vector.shape_cast %127 : vector<16x64xbf16> to vector<1x1x16x64xbf16>
    tpu.vector_store %arg4[%c0_118, %c13, %c0_119, %c0_120], %130 {strides = array<i32>} : memref<1x16x16x64xbf16, #tpu.memory_space<vmem>>, vector<1x1x16x64xbf16>,
    %c252 = arith.constant 252 : index
    %c0_121 = arith.constant 0 : index
    %131 = vector.load %arg5[%c252, %c0_121] : memref<288x64xf32, #tpu.memory_space<vmem>>, vector<16x64xf32>
    %132 = arith.truncf %131 : vector<16x64xf32> to vector<16x64xbf16>
    %c0_122 = arith.constant 0 : index
    %c14 = arith.constant 14 : index
    %c0_123 = arith.constant 0 : index
    %c0_124 = arith.constant 0 : index
    %133 = vector.load %arg4[%c0_122, %c14, %c0_123, %c0_124] : memref<1x16x16x64xbf16, #tpu.memory_space<vmem>>, vector<1x1x16x64xbf16>
    %134 = vector.shape_cast %133 : vector<1x1x16x64xbf16> to vector<16x64xbf16>
    %135 = vector.shape_cast %132 : vector<16x64xbf16> to vector<1x1x16x64xbf16>
    tpu.vector_store %arg4[%c0_122, %c14, %c0_123, %c0_124], %135 {strides = array<i32>} : memref<1x16x16x64xbf16, #tpu.memory_space<vmem>>, vector<1x1x16x64xbf16>,
    %c270 = arith.constant 270 : index
    %c0_125 = arith.constant 0 : index
    %136 = vector.load %arg5[%c270, %c0_125] : memref<288x64xf32, #tpu.memory_space<vmem>>, vector<16x64xf32>
    %137 = arith.truncf %136 : vector<16x64xf32> to vector<16x64xbf16>
    %c0_126 = arith.constant 0 : index
    %c15 = arith.constant 15 : index
    %c0_127 = arith.constant 0 : index
    %c0_128 = arith.constant 0 : index
    %138 = vector.load %arg4[%c0_126, %c15, %c0_127, %c0_128] : memref<1x16x16x64xbf16, #tpu.memory_space<vmem>>, vector<1x1x16x64xbf16>
    %139 = vector.shape_cast %138 : vector<1x1x16x64xbf16> to vector<16x64xbf16>
    %140 = vector.shape_cast %137 : vector<16x64xbf16> to vector<1x1x16x64xbf16>
    tpu.vector_store %arg4[%c0_126, %c15, %c0_127, %c0_128], %140 {strides = array<i32>} : memref<1x16x16x64xbf16, #tpu.memory_space<vmem>>, vector<1x1x16x64xbf16>,
    return
  }
  func.func @transform_0(%arg0: i32) -> (i32, i32, i32) {
    %c0_i32 = arith.constant 0 : i32
    %c0_i32_0 = arith.constant 0 : i32
    %c0_i32_1 = arith.constant 0 : i32
    return %arg0, %c0_i32, %c0_i32_0 : i32, i32, i32
  }
  func.func @transform_1(%arg0: i32) -> (i32, i32, i32) {
    %c0_i32 = arith.constant 0 : i32
    %c0_i32_0 = arith.constant 0 : i32
    %c0_i32_1 = arith.constant 0 : i32
    %c0_i32_2 = arith.constant 0 : i32
    return %c0_i32, %c0_i32_0, %c0_i32_1 : i32, i32, i32
  }
  func.func @transform_2(%arg0: i32) -> (i32, i32) {
    %c0_i32 = arith.constant 0 : i32
    %c0_i32_0 = arith.constant 0 : i32
    %c0_i32_1 = arith.constant 0 : i32
    return %c0_i32, %c0_i32_0 : i32, i32
  }
  func.func @transform_3(%arg0: i32) -> (i32, i32, i32, i32) {
    %c0_i32 = arith.constant 0 : i32
    %c0_i32_0 = arith.constant 0 : i32
    %c0_i32_1 = arith.constant 0 : i32
    %c0_i32_2 = arith.constant 0 : i32
    return %arg0, %c0_i32, %c0_i32_0, %c0_i32_1 : i32, i32, i32, i32
  }
}

</mosaic_0001>

<llo_original>
// kernel: tpu_custom_call.1
$region0: #{tpu_custom_call.1}
  #allocation0 [shape = 'u32[]', space=smem, size = 0x4, offset = 0x4, fixed_abs, tag = 'smem constant byte address 0x4 - core index']
  #allocation1 [shape = 'u32[144,128]{1,0:T(1,128)}', space=vmem, size = 0x12000, scoped, tag = 'internal scratch']
  #allocation2 [shape = 'f32[288,64]{1,0:T(8,128)}', space=vmem, size = 0x24000, scoped, tag = 'scratch operand']
  %s0 = inlined_call_operand.vmem [shape: bf16[2,342,3], index: 0, kind: input, shape index: {}]
  %s1 = inlined_call_operand.vmem [shape: bf16[9,3,64], index: 1, kind: input, shape index: {}]
  %s2 = inlined_call_operand.vmem [shape: f32[1,64], index: 2, kind: input, shape index: {}]
  %s3 = inlined_call_operand.hbm [shape: bf16[2,16,16,64], index: 3, kind: output, shape index: {}]
  %s4 = sld [smem:[#allocation0]]
  $region45: #{tpu_custom_call.1} parent=0
    _
  %s6 = ssub.s32 1, %s4
  %s7 = scalar_select 0, %s6, %s4
  $region1: #{tpu_custom_call.1} parent=0
    #allocation3 [shape = 'u8[131072]{0}', space=vmem, size = 0x20000, scoped, tag = 'output window, operand 0']
    #allocation4 [shape = 's32[2]{0}', space=sflag, size = 0x8, scoped, tag = 'scoped memory for tpu_custom_call.1']
    %8 = vsyncpa [#allocation4], 0
    %s9 = scalar_lea.sflag [#allocation4], 1
    %10 = vsyncpa %s9, 0
    loop: start=0, step=1, limit=4
    $region2: #{tpu_custom_call.1} parent=1 // loop_pre_header
      _
    $region3: #{tpu_custom_call.1} parent=1 // loop_header
      %s12 = sphi 0, %s16
      %p13 = scmp.ge.s32.totalorder %s12, 4
      %s22 = sphi 0, %s24
      %s25 = sphi 0, %s22
      %s26 = sphi 0, %s25
      %s42 = sphi 0, %s26
      %s46 = sphi 0, %s46
      %s48 = sphi 0, %s46
      %s49 = sphi 0, %s48
      %s63 = sphi 0, %s49
      %s67 = sphi 0, %s67
      %s69 = sphi 0, %s67
      %s70 = sphi 0, %s69
      %s84 = sphi 0, %s70
      %s90 = sphi 0, %s92
      %s93 = sphi 0, %s90
      %s94 = sphi 0, %s93
      %s110 = sphi 0, %s94
    $region4: #{tpu_custom_call.1} parent=1 // loop_header_branch
      %15 = sbr.rel (%p13) target = $region8
    $region5: #{tpu_custom_call.1} parent=1 // loop_body
      %s17 = ssub.s32 %s12, 1
      %s18 = ssub.s32 %s12, 2
      %s19 = sadd.s32 %s12, 1
      %s20 = ssub.s32 %s12, %s19
      %p21 = scmp.eq.s32.totalorder %s20, 0
      %s23 = sadd.s32 %s22, 1
      %s24 = scalar_select %p21, %s22, %s23
      %p27 = pneg %p21
      %p28 = scmp.eq.s32.totalorder %s12, 1
      %p29 = por %p27, %p28
      %p30 = scmp.ne.s32.totalorder %s22, %s25
      %p31 = scmp.eq.s32.totalorder %s12, 0
      %p32 = por %p30, %p31
      %p33 = scmp.ne.s32.totalorder %s22, %s25
      %p34 = scmp.eq.s32.totalorder %s17, 1
      %p35 = por %p33, %p34
      %p36 = scmp.ne.s32.totalorder %s25, %s26
      %p37 = scmp.eq.s32.totalorder %s17, 0
      %p38 = por %p36, %p37
      %p39 = scmp.ne.s32.totalorder %s25, %s26
      %p40 = scmp.eq.s32.totalorder %s18, 1
      %p41 = por %p39, %p40
      %p43 = scmp.ne.s32.totalorder %s26, %s42
      %p44 = scmp.eq.s32.totalorder %s18, 0
      %p45 = por %p43, %p44
      %s47 = sadd.s32 %s46, 1
      %p50 = scmp.eq.s32.totalorder %s12, 1
      %p51 = scmp.ne.s32.totalorder %s46, %s48
      %p52 = scmp.eq.s32.totalorder %s12, 0
      %p53 = por %p51, %p52
      %p54 = scmp.ne.s32.totalorder %s46, %s48
      %p55 = scmp.eq.s32.totalorder %s17, 1
      %p56 = por %p54, %p55
      %p57 = scmp.ne.s32.totalorder %s48, %s49
      %p58 = scmp.eq.s32.totalorder %s17, 0
      %p59 = por %p57, %p58
      %p60 = scmp.ne.s32.totalorder %s48, %s49
      %p61 = scmp.eq.s32.totalorder %s18, 1
      %p62 = por %p60, %p61
      %p64 = scmp.ne.s32.totalorder %s49, %s63
      %p65 = scmp.eq.s32.totalorder %s18, 0
      %p66 = por %p64, %p65
      %s68 = sadd.s32 %s67, 1
      %p71 = scmp.eq.s32.totalorder %s12, 1
      %p72 = scmp.ne.s32.totalorder %s67, %s69
      %p73 = scmp.eq.s32.totalorder %s12, 0
      %p74 = por %p72, %p73
      %p75 = scmp.ne.s32.totalorder %s67, %s69
      %p76 = scmp.eq.s32.totalorder %s17, 1
      %p77 = por %p75, %p76
      %p78 = scmp.ne.s32.totalorder %s69, %s70
      %p79 = scmp.eq.s32.totalorder %s17, 0
      %p80 = por %p78, %p79
      %p81 = scmp.ne.s32.totalorder %s69, %s70
      %p82 = scmp.eq.s32.totalorder %s18, 1
      %p83 = por %p81, %p82
      %p85 = scmp.ne.s32.totalorder %s70, %s84
      %p86 = scmp.eq.s32.totalorder %s18, 0
      %p87 = por %p85, %p86
      %s88 = ssub.s32 %s12, %s19
      %p89 = scmp.eq.s32.totalorder %s88, 0
      %s91 = sadd.s32 %s90, 1
      %s92 = scalar_select %p89, %s90, %s91
      %p95 = pneg %p89
      %p96 = scmp.eq.s32.totalorder %s12, 1
      %p97 = por %p95, %p96
      %p98 = scmp.ne.s32.totalorder %s90, %s93
      %p99 = scmp.eq.s32.totalorder %s12, 0
      %p100 = por %p98, %p99
      %p101 = scmp.ne.s32.totalorder %s90, %s93
      %p102 = scmp.eq.s32.totalorder %s17, 1
      %p103 = por %p101, %p102
      %p104 = scmp.ne.s32.totalorder %s93, %s94
      %p105 = scmp.eq.s32.totalorder %s17, 0
      %p106 = por %p104, %p105
      %p107 = scmp.ne.s32.totalorder %s93, %s94
      %p108 = scmp.eq.s32.totalorder %s18, 1
      %p109 = por %p107, %p108
      %p111 = scmp.ne.s32.totalorder %s94, %s110
      %p112 = scmp.eq.s32.totalorder %s18, 0
      %p113 = por %p111, %p112
      %p114 = scmp.le.s32.totalorder 1, %s12
      %p115 = scmp.lt.s32.totalorder %s12, 3
      %p116 = pnand %p114, %p115
      %p117 = pneg %p116
      // Predicated region
      $region9: #{tpu_custom_call.1} parent=5 // pred_check
        _
      $region10: #{tpu_custom_call.1} parent=5 // pred_check_branch
        %119 = sbr.rel (%p116) target = $region12
      $region11: #{tpu_custom_call.1} parent=5 // pred_region
        %s120 = ssub.s32 %s12, 1
        // Predicated region
        $region13: #{tpu_custom_call.1} parent=11 // pred_check
          %p121 = pneg %p59
        $region14: #{tpu_custom_call.1} parent=11 // pred_check_branch
          %123 = sbr.rel (%p121) target = $region16
        $region15: #{tpu_custom_call.1} parent=11 // pred_region
          _
        $region16: #{tpu_custom_call.1} parent=11 // pred_fallthru
          _
        // Predicated region
        $region17: #{tpu_custom_call.1} parent=11 // pred_check
          %p124 = pneg %p80
        $region18: #{tpu_custom_call.1} parent=11 // pred_check_branch
          %126 = sbr.rel (%p124) target = $region20
        $region19: #{tpu_custom_call.1} parent=11 // pred_region
          _
        $region20: #{tpu_custom_call.1} parent=11 // pred_fallthru
          _
      $region12: #{tpu_custom_call.1} parent=5 // pred_fallthru
        _
      %p127 = scmp.lt.s32.totalorder %s12, 2
      // Predicated region
      $region21: #{tpu_custom_call.1} parent=5 // pred_check
        %p128 = pneg %p127
      $region22: #{tpu_custom_call.1} parent=5 // pred_check_branch
        %130 = sbr.rel (%p128) target = $region24
      $region23: #{tpu_custom_call.1} parent=5 // pred_region
        // Predicated region
        $region25: #{tpu_custom_call.1} parent=23 // pred_check
          %p131 = pneg %p32
        $region26: #{tpu_custom_call.1} parent=23 // pred_check_branch
          %133 = sbr.rel (%p131) target = $region28
        $region27: #{tpu_custom_call.1} parent=23 // pred_region
          %p134 = scmp.lt.s32.totalorder %s12, 1
          %s135 = scalar_select %p134, %s12, 1
          %s136 = smul.addr %s135, 43
          %s137 = smul.addr %s136, 4
          %s138 = scalar_lea.vmem %s0, %s137
        $region28: #{tpu_custom_call.1} parent=23 // pred_fallthru
          _
      $region24: #{tpu_custom_call.1} parent=5 // pred_fallthru
        _
      %p139 = scmp.le.s32.totalorder 1, %s12
      %p140 = scmp.lt.s32.totalorder %s12, 3
      %p141 = pnand %p139, %p140
      %p142 = pneg %p141
      // Predicated region
      $region29: #{tpu_custom_call.1} parent=5 // pred_check
        _
      $region30: #{tpu_custom_call.1} parent=5 // pred_check_branch
        %144 = sbr.rel (%p141) target = $region32
      $region31: #{tpu_custom_call.1} parent=5 // pred_region
        %s145 = ssub.s32 %s12, 1
        %p146 = scmp.lt.s32.totalorder %s17, 1
        %s147 = scalar_select %p146, %s17, 1
        %s148 = smul.addr %s147, 43
        %s149 = smul.addr %s148, 4
        %s150 = scalar_lea.vmem %s0, %s149
        %p151 = pneg %p38
        %p152 = pneg %p35
        %p153 = pneg %p59
        %p154 = pneg %p56
        %p155 = pneg %p80
        %p156 = pneg %p77
        %p157 = pneg %p106
        %p158 = pneg %p103
        %s159 = sand.u32 %s93, 1
        %s160 = scalar_lea.sflag [#allocation4], %s159
        %s161 = sand.u32 %s93, 1
        %s162 = smul.addr %s161, 128
        %s163 = scalar_lea.vmem [#allocation3], %s162
        %p164 = scmp.lt.s32.totalorder %s17, 1
        %s165 = scalar_select %p164, %s17, 1
        %s166 = smul.addr %s165, 43
        %s167 = smul.addr %s166, 4
        %s168 = scalar_lea.vmem %s0, %s167
        %v170 = vld [vmem:[%s168] sm:$0xf]
        %v171 = vld [vmem:[%s168 + $0x4] sm:$0xf]
        %v172 = vld [vmem:[%s168 + $0x8] sm:$0xf]
        %v173 = vld [vmem:[%s168 + $0xc] sm:$0xf]
        %v174 = vld [vmem:[%s168 + $0x10] sm:$0xf]
        %v175 = vld [vmem:[%s168 + $0x14] sm:$0xf]
        %v176 = vld [vmem:[%s168 + $0x18] sm:$0xf]
        %v177 = vld [vmem:[%s168 + $0x1c] sm:$0xf]
        %v178 = vld [vmem:[%s168 + $0x20] sm:$0xf]
        %v179 = vld [vmem:[%s168 + $0x24] sm:$0xf]
        %v180 = vld [vmem:[%s168 + $0x28] sm:$0xf]
        %v181 = vld [vmem:[%s168 + $0x2c] sm:$0xf]
        %v182 = vld [vmem:[%s168 + $0x30] sm:$0xf]
        %v183 = vld [vmem:[%s168 + $0x34] sm:$0xf]
        %v184 = vld [vmem:[%s168 + $0x38] sm:$0xf]
        %v185 = vld [vmem:[%s168 + $0x3c] sm:$0xf]
        %v186 = vld [vmem:[%s168 + $0x40] sm:$0xf]
        %v187 = vld [vmem:[%s168 + $0x44] sm:$0xf]
        %v188 = vld [vmem:[%s168 + $0x48] sm:$0xf]
        %v189 = vld [vmem:[%s168 + $0x4c] sm:$0xf]
        %v190 = vld [vmem:[%s168 + $0x50] sm:$0xf]
        %v191 = vld [vmem:[%s168 + $0x54] sm:$0xf]
        %v192 = vld [vmem:[%s168 + $0x58] sm:$0xf]
        %v193 = vld [vmem:[%s168 + $0x5c] sm:$0xf]
        %v194 = vld [vmem:[%s168 + $0x60] sm:$0xf]
        %v195 = vld [vmem:[%s168 + $0x64] sm:$0xf]
        %v196 = vld [vmem:[%s168 + $0x68] sm:$0xf]
        %v197 = vld [vmem:[%s168 + $0x6c] sm:$0xf]
        %v198 = vld [vmem:[%s168 + $0x70] sm:$0xf]
        %v199 = vld [vmem:[%s168 + $0x74] sm:$0xf]
        %v200 = vld [vmem:[%s168 + $0x78] sm:$0xf]
        %v201 = vld [vmem:[%s168 + $0x7c] sm:$0xf]
        %v202 = vld [vmem:[%s168 + $0x80] sm:$0xf]
        %v203 = vld [vmem:[%s168 + $0x84] sm:$0xf]
        %v204 = vld [vmem:[%s168 + $0x88] sm:$0xf]
        %v205 = vld [vmem:[%s168 + $0x8c] sm:$0xf]
        %v206 = vld [vmem:[%s1] sm:$0x3]
        %v207 = vld [vmem:[%s168 + $0x90] sm:$0x1]
        %s208 = scalar_lea.vmem %s1, 2
        %v209 = vld [vmem:[%s208] sm:$0x3]
        %v247 = vunpack.c.l.b16 %v170
        %v248 = vunpack.c.l.b16 %v171
        %v249 = vunpack.c.l.b16 %v172
        %v250 = vunpack.c.l.b16 %v173
        %v251 = vunpack.c.l.b16 %v174
        %v252 = vunpack.c.l.b16 %v175
        %v253 = vunpack.c.l.b16 %v176
        %v254 = vunpack.c.l.b16 %v177
        %v255 = vunpack.c.l.b16 %v178
        %v256 = vunpack.c.l.b16 %v179
        %v257 = vunpack.c.l.b16 %v180
        %v258 = vunpack.c.l.b16 %v181
        %v259 = vunpack.c.l.b16 %v182
        %v260 = vunpack.c.l.b16 %v183
        %v261 = vunpack.c.l.b16 %v184
        %v262 = vunpack.c.l.b16 %v185
        %v263 = vunpack.c.l.b16 %v186
        %v264 = vunpack.c.l.b16 %v187
        %v265 = vunpack.c.l.b16 %v188
        %v266 = vunpack.c.l.b16 %v189
        %v267 = vunpack.c.l.b16 %v190
        %v268 = vunpack.c.l.b16 %v191
        %v269 = vunpack.c.l.b16 %v192
        %v270 = vunpack.c.l.b16 %v193
        %v271 = vunpack.c.l.b16 %v194
        %v272 = vunpack.c.l.b16 %v195
        %v273 = vunpack.c.l.b16 %v196
        %v274 = vunpack.c.l.b16 %v197
        %v275 = vunpack.c.l.b16 %v198
        %v276 = vunpack.c.l.b16 %v199
        %v277 = vunpack.c.l.b16 %v200
        %v278 = vunpack.c.l.b16 %v201
        %v279 = vunpack.c.l.b16 %v202
        %v280 = vunpack.c.l.b16 %v203
        %v281 = vunpack.c.l.b16 %v204
        %v282 = vunpack.c.l.b16 %v205
        %v283 = vunpack.c.l.b16 %v207
        %v284 = vpack.c.b16 %v248, %v247
        %v285 = vpack.c.b16 %v250, %v249
        %v286 = vpack.c.b16 %v252, %v251
        %v287 = vpack.c.b16 %v254, %v253
        %v288 = vpack.c.b16 %v256, %v255
        %v289 = vpack.c.b16 %v258, %v257
        %v290 = vpack.c.b16 %v260, %v259
        %v291 = vpack.c.b16 %v262, %v261
        %v292 = vpack.c.b16 %v264, %v263
        %v293 = vpack.c.b16 %v266, %v265
        %v294 = vpack.c.b16 %v268, %v267
        %v295 = vpack.c.b16 %v270, %v269
        %v296 = vpack.c.b16 %v272, %v271
        %v297 = vpack.c.b16 %v274, %v273
        %v298 = vpack.c.b16 %v276, %v275
        %v299 = vpack.c.b16 %v278, %v277
        %v300 = vpack.c.b16 %v280, %v279
        %v301 = vpack.c.b16 %v282, %v281
        %v302 = vpack.c.b16 %v283, %v283
        %vm303 = vsmask.f32 7424
        %v305 = vshrl.u32 %v284, 16
        %v307 = vshll.u32 %v284, 16
        %v309 = vrot.slane %v307, 1
        %v310 = vor.u32 %v305, %v309
        %v312 = vshll.u32 %v285, 16
        %v314 = vrot.slane %v312, 1
        %v315 = vsel %vm303, %v310, %v314
        %v316 = vshrl.u32 %v285, 16
        %v318 = vor.u32 %v316, %v314
        %v320 = vshll.u32 %v286, 16
        %v322 = vrot.slane %v320, 1
        %v323 = vsel %vm303, %v318, %v322
        %v324 = vshrl.u32 %v286, 16
        %v326 = vor.u32 %v324, %v322
        %v328 = vshll.u32 %v287, 16
        %v330 = vrot.slane %v328, 1
        %v331 = vsel %vm303, %v326, %v330
        %v332 = vshrl.u32 %v287, 16
        %v334 = vor.u32 %v332, %v330
        %v336 = vshll.u32 %v288, 16
        %v338 = vrot.slane %v336, 1
        %v339 = vsel %vm303, %v334, %v338
        %v340 = vshrl.u32 %v288, 16
        %v342 = vor.u32 %v340, %v338
        %v344 = vshll.u32 %v289, 16
        %v346 = vrot.slane %v344, 1
        %v347 = vsel %vm303, %v342, %v346
        %v348 = vshrl.u32 %v289, 16
        %v350 = vor.u32 %v348, %v346
        %v352 = vshll.u32 %v290, 16
        %v354 = vrot.slane %v352, 1
        %v355 = vsel %vm303, %v350, %v354
        %v356 = vshrl.u32 %v290, 16
        %v358 = vor.u32 %v356, %v354
        %v360 = vshll.u32 %v291, 16
        %v362 = vrot.slane %v360, 1
        %v363 = vsel %vm303, %v358, %v362
        %v364 = vshrl.u32 %v291, 16
        %v366 = vor.u32 %v364, %v362
        %v368 = vshll.u32 %v292, 16
        %v370 = vrot.slane %v368, 1
        %v371 = vsel %vm303, %v366, %v370
        %v372 = vshrl.u32 %v292, 16
        %v374 = vor.u32 %v372, %v370
        %v376 = vshll.u32 %v293, 16
        %v378 = vrot.slane %v376, 1
        %v379 = vsel %vm303, %v374, %v378
        %v380 = vshrl.u32 %v293, 16
        %v382 = vor.u32 %v380, %v378
        %v384 = vshll.u32 %v294, 16
        %v386 = vrot.slane %v384, 1
        %v387 = vsel %vm303, %v382, %v386
        %v388 = vshrl.u32 %v294, 16
        %v390 = vor.u32 %v388, %v386
        %v392 = vshll.u32 %v295, 16
        %v394 = vrot.slane %v392, 1
        %v395 = vsel %vm303, %v390, %v394
        %v396 = vshrl.u32 %v295, 16
        %v398 = vor.u32 %v396, %v394
        %v400 = vshll.u32 %v296, 16
        %v402 = vrot.slane %v400, 1
        %v403 = vsel %vm303, %v398, %v402
        %v404 = vshrl.u32 %v296, 16
        %v406 = vor.u32 %v404, %v402
        %v408 = vshll.u32 %v297, 16
        %v410 = vrot.slane %v408, 1
        %v411 = vsel %vm303, %v406, %v410
        %v412 = vshrl.u32 %v297, 16
        %v414 = vor.u32 %v412, %v410
        %v416 = vshll.u32 %v298, 16
        %v418 = vrot.slane %v416, 1
        %v419 = vsel %vm303, %v414, %v418
        %v420 = vshrl.u32 %v298, 16
        %v422 = vor.u32 %v420, %v418
        %v424 = vshll.u32 %v299, 16
        %v426 = vrot.slane %v424, 1
        %v427 = vsel %vm303, %v422, %v426
        %v428 = vshrl.u32 %v299, 16
        %v430 = vor.u32 %v428, %v426
        %v432 = vshll.u32 %v300, 16
        %v434 = vrot.slane %v432, 1
        %v435 = vsel %vm303, %v430, %v434
        %v436 = vshrl.u32 %v300, 16
        %v438 = vor.u32 %v436, %v434
        %v440 = vshll.u32 %v301, 16
        %v442 = vrot.slane %v440, 1
        %v443 = vsel %vm303, %v438, %v442
        %v444 = vshrl.u32 %v301, 16
        %v446 = vor.u32 %v444, %v442
        %v448 = vshll.u32 %v302, 16
        %v450 = vrot.slane %v448, 1
        %v451 = vsel %vm303, %v446, %v450
        %vm452 = vcmask 23552
        %v454 = vsel %vm452, %v315, 0
        %v457 = vsel %vm452, %v323, 0
        %v460 = vsel %vm452, %v331, 0
        %v463 = vsel %vm452, %v339, 0
        %v466 = vsel %vm452, %v347, 0
        %v469 = vsel %vm452, %v355, 0
        %v472 = vsel %vm452, %v363, 0
        %v475 = vsel %vm452, %v371, 0
        %v478 = vsel %vm452, %v379, 0
        %v481 = vsel %vm452, %v387, 0
        %v484 = vsel %vm452, %v395, 0
        %v487 = vsel %vm452, %v403, 0
        %v490 = vsel %vm452, %v411, 0
        %v493 = vsel %vm452, %v419, 0
        %v496 = vsel %vm452, %v427, 0
        %v499 = vsel %vm452, %v435, 0
        %v502 = vsel %vm452, %v443, 0
        %v505 = vsel %vm452, %v451, 0
        %vm507 = vcmask 1040384
        %vm508 = vcmask 1041408
        %v509 = vsel %vm507, 4294967295, 65535
        %v510 = vsel %vm508, %v509, 0
        %v512 = vand.u32 %v209, %v510
        %514 = vmatprep.subr.bf16.mxu0 0
        %515 = vmatpush1.bf16.msra.mxu0 %v512
        %516 = vmatprep.subr.bf16.mxu0 0
        %517 = vmatpush1.bf16.msra.mxu0 0
        %518 = vmatprep.subr.bf16.mxu0 0
        %519 = vmatpush1.bf16.msra.mxu0 0
        %520 = vmatprep.subr.bf16.mxu0 0
        %521 = vmatpush1.bf16.msra.mxu0 0
        %522 = vmatprep.subr.bf16.mxu0 0
        %523 = vmatpush1.bf16.msra.mxu0 0
        %524 = vmatprep.subr.bf16.mxu0 0
        %525 = vmatpush1.bf16.msra.mxu0 0
        %526 = vmatprep.subr.bf16.mxu0 0
        %527 = vmatpush1.bf16.msra.mxu0 0
        %528 = vmatprep.subr.bf16.mxu0 0
        %529 = vmatpush1.bf16.msra.mxu0 0
        %530 = vmatprep.subr.bf16.mxu0 0
        %531 = vmatpush1.bf16.msra.mxu0 0
        %532 = vmatprep.subr.bf16.mxu0 0
        %533 = vmatpush1.bf16.msra.mxu0 0
        %534 = vmatprep.subr.bf16.mxu0 0
        %535 = vmatpush1.bf16.msra.mxu0 0
        %536 = vmatprep.subr.bf16.mxu0 0
        %537 = vmatpush1.bf16.msra.mxu0 0
        %538 = vmatprep.subr.bf16.mxu0 0
        %539 = vmatpush1.bf16.msra.mxu0 0
        %540 = vmatprep.subr.bf16.mxu0 0
        %541 = vmatpush1.bf16.msra.mxu0 0
        %542 = vmatprep.subr.bf16.mxu0 0
        %543 = vmatpush1.bf16.msra.mxu0 0
        %544 = vmatprep.subr.bf16.mxu0 0
        %545 = vmatpush1.bf16.msra.mxu0 0
        %546 = vmatprep.mubr.bf16.mxu0 0
        %547 = vmatmul.mubr.bf16.gmra.mrb[0].mxu0 %v454
        %v548 = vpop.f32.mrb[0].mxu0
        %v549 = vadd.f32 0.0, %v548
        %v550 = vpop.f32.mrb[0].mxu0
        %v551 = vpop.f32.mrb[0].mxu0
        %v552 = vadd.f32 0.0, %v551
        %v553 = vpop.f32.mrb[0].mxu0
        %554 = vmatprep.mubr.bf16.mxu0 0
        %555 = vmatmul.mubr.bf16.gmra.mrb[0].mxu0 %v457
        %v556 = vpop.f32.mrb[0].mxu0
        %v557 = vadd.f32 0.0, %v556
        %v558 = vpop.f32.mrb[0].mxu0
        %v559 = vpop.f32.mrb[0].mxu0
        %v560 = vadd.f32 0.0, %v559
        %v561 = vpop.f32.mrb[0].mxu0
        %562 = vmatprep.mubr.bf16.mxu0 0
        %563 = vmatmul.mubr.bf16.gmra.mrb[0].mxu0 %v460
        %v564 = vpop.f32.mrb[0].mxu0
        %v565 = vadd.f32 0.0, %v564
        %v566 = vpop.f32.mrb[0].mxu0
        %v567 = vpop.f32.mrb[0].mxu0
        %v568 = vadd.f32 0.0, %v567
        %v569 = vpop.f32.mrb[0].mxu0
        %570 = vmatprep.mubr.bf16.mxu0 0
        %571 = vmatmul.mubr.bf16.gmra.mrb[0].mxu0 %v463
        %v572 = vpop.f32.mrb[0].mxu0
        %v573 = vadd.f32 0.0, %v572
        %v574 = vpop.f32.mrb[0].mxu0
        %v575 = vpop.f32.mrb[0].mxu0
        %v576 = vadd.f32 0.0, %v575
        %v577 = vpop.f32.mrb[0].mxu0
        %578 = vmatprep.mubr.bf16.mxu0 0
        %579 = vmatmul.mubr.bf16.gmra.mrb[0].mxu0 %v466
        %v580 = vpop.f32.mrb[0].mxu0
        %v581 = vadd.f32 0.0, %v580
        %v582 = vpop.f32.mrb[0].mxu0
        %v583 = vpop.f32.mrb[0].mxu0
        %v584 = vadd.f32 0.0, %v583
        %v585 = vpop.f32.mrb[0].mxu0
        %586 = vmatprep.mubr.bf16.mxu0 0
        %587 = vmatmul.mubr.bf16.gmra.mrb[0].mxu0 %v469
        %v588 = vpop.f32.mrb[0].mxu0
        %v589 = vadd.f32 0.0, %v588
        %v590 = vpop.f32.mrb[0].mxu0
        %v591 = vpop.f32.mrb[0].mxu0
        %v592 = vadd.f32 0.0, %v591
        %v593 = vpop.f32.mrb[0].mxu0
        %594 = vmatprep.mubr.bf16.mxu0 0
        %595 = vmatmul.mubr.bf16.gmra.mrb[0].mxu0 %v472
        %v596 = vpop.f32.mrb[0].mxu0
        %v597 = vadd.f32 0.0, %v596
        %v598 = vpop.f32.mrb[0].mxu0
        %v599 = vpop.f32.mrb[0].mxu0
        %v600 = vadd.f32 0.0, %v599
        %v601 = vpop.f32.mrb[0].mxu0
        %602 = vmatprep.mubr.bf16.mxu0 0
        %603 = vmatmul.mubr.bf16.gmra.mrb[0].mxu0 %v475
        %v604 = vpop.f32.mrb[0].mxu0
        %v605 = vadd.f32 0.0, %v604
        %v606 = vpop.f32.mrb[0].mxu0
        %v607 = vpop.f32.mrb[0].mxu0
        %v608 = vadd.f32 0.0, %v607
        %v609 = vpop.f32.mrb[0].mxu0
        %610 = vmatprep.mubr.bf16.mxu0 0
        %611 = vmatmul.mubr.bf16.gmra.mrb[0].mxu0 %v478
        %v612 = vpop.f32.mrb[0].mxu0
        %v613 = vadd.f32 0.0, %v612
        %v614 = vpop.f32.mrb[0].mxu0
        %v615 = vpop.f32.mrb[0].mxu0
        %v616 = vadd.f32 0.0, %v615
        %v617 = vpop.f32.mrb[0].mxu0
        %618 = vmatprep.mubr.bf16.mxu0 0
        %619 = vmatmul.mubr.bf16.gmra.mrb[0].mxu0 %v481
        %v620 = vpop.f32.mrb[0].mxu0
        %v621 = vadd.f32 0.0, %v620
        %v622 = vpop.f32.mrb[0].mxu0
        %v623 = vpop.f32.mrb[0].mxu0
        %v624 = vadd.f32 0.0, %v623
        %v625 = vpop.f32.mrb[0].mxu0
        %626 = vmatprep.mubr.bf16.mxu0 0
        %627 = vmatmul.mubr.bf16.gmra.mrb[0].mxu0 %v484
        %v628 = vpop.f32.mrb[0].mxu0
        %v629 = vadd.f32 0.0, %v628
        %v630 = vpop.f32.mrb[0].mxu0
        %v631 = vpop.f32.mrb[0].mxu0
        %v632 = vadd.f32 0.0, %v631
        %v633 = vpop.f32.mrb[0].mxu0
        %634 = vmatprep.mubr.bf16.mxu0 0
        %635 = vmatmul.mubr.bf16.gmra.mrb[0].mxu0 %v487
        %v636 = vpop.f32.mrb[0].mxu0
        %v637 = vadd.f32 0.0, %v636
        %v638 = vpop.f32.mrb[0].mxu0
        %v639 = vpop.f32.mrb[0].mxu0
        %v640 = vadd.f32 0.0, %v639
        %v641 = vpop.f32.mrb[0].mxu0
        %642 = vmatprep.mubr.bf16.mxu0 0
        %643 = vmatmul.mubr.bf16.gmra.mrb[0].mxu0 %v490
        %v644 = vpop.f32.mrb[0].mxu0
        %v645 = vadd.f32 0.0, %v644
        %v646 = vpop.f32.mrb[0].mxu0
        %v647 = vpop.f32.mrb[0].mxu0
        %v648 = vadd.f32 0.0, %v647
        %v649 = vpop.f32.mrb[0].mxu0
        %650 = vmatprep.mubr.bf16.mxu0 0
        %651 = vmatmul.mubr.bf16.gmra.mrb[0].mxu0 %v493
        %v652 = vpop.f32.mrb[0].mxu0
        %v653 = vadd.f32 0.0, %v652
        %v654 = vpop.f32.mrb[0].mxu0
        %v655 = vpop.f32.mrb[0].mxu0
        %v656 = vadd.f32 0.0, %v655
        %v657 = vpop.f32.mrb[0].mxu0
        %658 = vmatprep.mubr.bf16.mxu0 0
        %659 = vmatmul.mubr.bf16.gmra.mrb[0].mxu0 %v496
        %v660 = vpop.f32.mrb[0].mxu0
        %v661 = vadd.f32 0.0, %v660
        %v662 = vpop.f32.mrb[0].mxu0
        %v663 = vpop.f32.mrb[0].mxu0
        %v664 = vadd.f32 0.0, %v663
        %v665 = vpop.f32.mrb[0].mxu0
        %666 = vmatprep.mubr.bf16.mxu0 0
        %667 = vmatmul.mubr.bf16.gmra.mrb[0].mxu0 %v499
        %v668 = vpop.f32.mrb[0].mxu0
        %v669 = vadd.f32 0.0, %v668
        %v670 = vpop.f32.mrb[0].mxu0
        %v671 = vpop.f32.mrb[0].mxu0
        %v672 = vadd.f32 0.0, %v671
        %v673 = vpop.f32.mrb[0].mxu0
        %674 = vmatprep.mubr.bf16.mxu0 0
        %675 = vmatmul.mubr.bf16.gmra.mrb[0].mxu0 %v502
        %v676 = vpop.f32.mrb[0].mxu0
        %v677 = vadd.f32 0.0, %v676
        %v678 = vpop.f32.mrb[0].mxu0
        %v679 = vpop.f32.mrb[0].mxu0
        %v680 = vadd.f32 0.0, %v679
        %v681 = vpop.f32.mrb[0].mxu0
        %682 = vmatprep.mubr.bf16.mxu0 0
        %683 = vmatmul.mubr.bf16.gmra.mrb[0].mxu0 %v505
        %v684 = vpop.f32.mrb[0].mxu0
        %v685 = vadd.f32 0.0, %v684
        %v686 = vpop.f32.mrb[0].mxu0
        %v687 = vpop.f32.mrb[0].mxu0
        %v688 = vadd.f32 0.0, %v687
        %v689 = vpop.f32.mrb[0].mxu0
        %690 = vdwg.mxu0
        %v691 = vsel %vm452, %v284, 0
        %v693 = vsel %vm452, %v285, 0
        %v695 = vsel %vm452, %v286, 0
        %v697 = vsel %vm452, %v287, 0
        %v699 = vsel %vm452, %v288, 0
        %v701 = vsel %vm452, %v289, 0
        %v703 = vsel %vm452, %v290, 0
        %v705 = vsel %vm452, %v291, 0
        %v707 = vsel %vm452, %v292, 0
        %v709 = vsel %vm452, %v293, 0
        %v711 = vsel %vm452, %v294, 0
        %v713 = vsel %vm452, %v295, 0
        %v715 = vsel %vm452, %v296, 0
        %v717 = vsel %vm452, %v297, 0
        %v719 = vsel %vm452, %v298, 0
        %v721 = vsel %vm452, %v299, 0
        %v723 = vsel %vm452, %v300, 0
        %v725 = vsel %vm452, %v301, 0
        %v728 = vand.u32 %v206, %v510
        %730 = vmatprep.subr.bf16.mxu0 0
        %731 = vmatpush1.bf16.msra.mxu0 %v728
        %732 = vmatprep.subr.bf16.mxu0 0
        %733 = vmatpush1.bf16.msra.mxu0 0
        %734 = vmatprep.subr.bf16.mxu0 0
        %735 = vmatpush1.bf16.msra.mxu0 0
        %736 = vmatprep.subr.bf16.mxu0 0
        %737 = vmatpush1.bf16.msra.mxu0 0
        %738 = vmatprep.subr.bf16.mxu0 0
        %739 = vmatpush1.bf16.msra.mxu0 0
        %740 = vmatprep.subr.bf16.mxu0 0
        %741 = vmatpush1.bf16.msra.mxu0 0
        %742 = vmatprep.subr.bf16.mxu0 0
        %743 = vmatpush1.bf16.msra.mxu0 0
        %744 = vmatprep.subr.bf16.mxu0 0
        %745 = vmatpush1.bf16.msra.mxu0 0
        %746 = vmatprep.subr.bf16.mxu0 0
        %747 = vmatpush1.bf16.msra.mxu0 0
        %748 = vmatprep.subr.bf16.mxu0 0
        %749 = vmatpush1.bf16.msra.mxu0 0
        %750 = vmatprep.subr.bf16.mxu0 0
        %751 = vmatpush1.bf16.msra.mxu0 0
        %752 = vmatprep.subr.bf16.mxu0 0
        %753 = vmatpush1.bf16.msra.mxu0 0
        %754 = vmatprep.subr.bf16.mxu0 0
        %755 = vmatpush1.bf16.msra.mxu0 0
        %756 = vmatprep.subr.bf16.mxu0 0
        %757 = vmatpush1.bf16.msra.mxu0 0
        %758 = vmatprep.subr.bf16.mxu0 0
        %759 = vmatpush1.bf16.msra.mxu0 0
        %760 = vmatprep.subr.bf16.mxu0 0
        %761 = vmatpush1.bf16.msra.mxu0 0
        %762 = vmatprep.mubr.bf16.mxu0 0
        %763 = vmatmul.mubr.bf16.gmra.mrb[0].mxu0 %v691
        %v764 = vpop.f32.mrb[0].mxu0
        %v765 = vadd.f32 %v549, %v764
        %v766 = vpop.f32.mrb[0].mxu0
        %v767 = vpop.f32.mrb[0].mxu0
        %v768 = vadd.f32 %v552, %v767
        %v769 = vpop.f32.mrb[0].mxu0
        %770 = vmatprep.mubr.bf16.mxu0 0
        %771 = vmatmul.mubr.bf16.gmra.mrb[0].mxu0 %v693
        %v772 = vpop.f32.mrb[0].mxu0
        %v773 = vadd.f32 %v557, %v772
        %v774 = vpop.f32.mrb[0].mxu0
        %v775 = vpop.f32.mrb[0].mxu0
        %v776 = vadd.f32 %v560, %v775
        %v777 = vpop.f32.mrb[0].mxu0
        %778 = vmatprep.mubr.bf16.mxu0 0
        %779 = vmatmul.mubr.bf16.gmra.mrb[0].mxu0 %v695
        %v780 = vpop.f32.mrb[0].mxu0
        %v781 = vadd.f32 %v565, %v780
        %v782 = vpop.f32.mrb[0].mxu0
        %v783 = vpop.f32.mrb[0].mxu0
        %v784 = vadd.f32 %v568, %v783
        %v785 = vpop.f32.mrb[0].mxu0
        %786 = vmatprep.mubr.bf16.mxu0 0
        %787 = vmatmul.mubr.bf16.gmra.mrb[0].mxu0 %v697
        %v788 = vpop.f32.mrb[0].mxu0
        %v789 = vadd.f32 %v573, %v788
        %v790 = vpop.f32.mrb[0].mxu0
        %v791 = vpop.f32.mrb[0].mxu0
        %v792 = vadd.f32 %v576, %v791
        %v793 = vpop.f32.mrb[0].mxu0
        %794 = vmatprep.mubr.bf16.mxu0 0
        %795 = vmatmul.mubr.bf16.gmra.mrb[0].mxu0 %v699
        %v796 = vpop.f32.mrb[0].mxu0
        %v797 = vadd.f32 %v581, %v796
        %v798 = vpop.f32.mrb[0].mxu0
        %v799 = vpop.f32.mrb[0].mxu0
        %v800 = vadd.f32 %v584, %v799
        %v801 = vpop.f32.mrb[0].mxu0
        %802 = vmatprep.mubr.bf16.mxu0 0
        %803 = vmatmul.mubr.bf16.gmra.mrb[0].mxu0 %v701
        %v804 = vpop.f32.mrb[0].mxu0
        %v805 = vadd.f32 %v589, %v804
        %v806 = vpop.f32.mrb[0].mxu0
        %v807 = vpop.f32.mrb[0].mxu0
        %v808 = vadd.f32 %v592, %v807
        %v809 = vpop.f32.mrb[0].mxu0
        %810 = vmatprep.mubr.bf16.mxu0 0
        %811 = vmatmul.mubr.bf16.gmra.mrb[0].mxu0 %v703
        %v812 = vpop.f32.mrb[0].mxu0
        %v813 = vadd.f32 %v597, %v812
        %v814 = vpop.f32.mrb[0].mxu0
        %v815 = vpop.f32.mrb[0].mxu0
        %v816 = vadd.f32 %v600, %v815
        %v817 = vpop.f32.mrb[0].mxu0
        %818 = vmatprep.mubr.bf16.mxu0 0
        %819 = vmatmul.mubr.bf16.gmra.mrb[0].mxu0 %v705
        %v820 = vpop.f32.mrb[0].mxu0
        %v821 = vadd.f32 %v605, %v820
        %v822 = vpop.f32.mrb[0].mxu0
        %v823 = vpop.f32.mrb[0].mxu0
        %v824 = vadd.f32 %v608, %v823
        %v825 = vpop.f32.mrb[0].mxu0
        %826 = vmatprep.mubr.bf16.mxu0 0
        %827 = vmatmul.mubr.bf16.gmra.mrb[0].mxu0 %v707
        %v828 = vpop.f32.mrb[0].mxu0
        %v829 = vadd.f32 %v613, %v828
        %v830 = vpop.f32.mrb[0].mxu0
        %v831 = vpop.f32.mrb[0].mxu0
        %v832 = vadd.f32 %v616, %v831
        %v833 = vpop.f32.mrb[0].mxu0
        %834 = vmatprep.mubr.bf16.mxu0 0
        %835 = vmatmul.mubr.bf16.gmra.mrb[0].mxu0 %v709
        %v836 = vpop.f32.mrb[0].mxu0
        %v837 = vadd.f32 %v621, %v836
        %v838 = vpop.f32.mrb[0].mxu0
        %v839 = vpop.f32.mrb[0].mxu0
        %v840 = vadd.f32 %v624, %v839
        %v841 = vpop.f32.mrb[0].mxu0
        %842 = vmatprep.mubr.bf16.mxu0 0
        %843 = vmatmul.mubr.bf16.gmra.mrb[0].mxu0 %v711
        %v844 = vpop.f32.mrb[0].mxu0
        %v845 = vadd.f32 %v629, %v844
        %v846 = vpop.f32.mrb[0].mxu0
        %v847 = vpop.f32.mrb[0].mxu0
        %v848 = vadd.f32 %v632, %v847
        %v849 = vpop.f32.mrb[0].mxu0
        %850 = vmatprep.mubr.bf16.mxu0 0
        %851 = vmatmul.mubr.bf16.gmra.mrb[0].mxu0 %v713
        %v852 = vpop.f32.mrb[0].mxu0
        %v853 = vadd.f32 %v637, %v852
        %v854 = vpop.f32.mrb[0].mxu0
        %v855 = vpop.f32.mrb[0].mxu0
        %v856 = vadd.f32 %v640, %v855
        %v857 = vpop.f32.mrb[0].mxu0
        %858 = vmatprep.mubr.bf16.mxu0 0
        %859 = vmatmul.mubr.bf16.gmra.mrb[0].mxu0 %v715
        %v860 = vpop.f32.mrb[0].mxu0
        %v861 = vadd.f32 %v645, %v860
        %v862 = vpop.f32.mrb[0].mxu0
        %v863 = vpop.f32.mrb[0].mxu0
        %v864 = vadd.f32 %v648, %v863
        %v865 = vpop.f32.mrb[0].mxu0
        %866 = vmatprep.mubr.bf16.mxu0 0
        %867 = vmatmul.mubr.bf16.gmra.mrb[0].mxu0 %v717
        %v868 = vpop.f32.mrb[0].mxu0
        %v869 = vadd.f32 %v653, %v868
        %v870 = vpop.f32.mrb[0].mxu0
        %v871 = vpop.f32.mrb[0].mxu0
        %v872 = vadd.f32 %v656, %v871
        %v873 = vpop.f32.mrb[0].mxu0
        %874 = vmatprep.mubr.bf16.mxu0 0
        %875 = vmatmul.mubr.bf16.gmra.mrb[0].mxu0 %v719
        %v876 = vpop.f32.mrb[0].mxu0
        %v877 = vadd.f32 %v661, %v876
        %v878 = vpop.f32.mrb[0].mxu0
        %v879 = vpop.f32.mrb[0].mxu0
        %v880 = vadd.f32 %v664, %v879
        %v881 = vpop.f32.mrb[0].mxu0
        %882 = vmatprep.mubr.bf16.mxu0 0
        %883 = vmatmul.mubr.bf16.gmra.mrb[0].mxu0 %v721
        %v884 = vpop.f32.mrb[0].mxu0
        %v885 = vadd.f32 %v669, %v884
        %v886 = vpop.f32.mrb[0].mxu0
        %v887 = vpop.f32.mrb[0].mxu0
        %v888 = vadd.f32 %v672, %v887
        %v889 = vpop.f32.mrb[0].mxu0
        %890 = vmatprep.mubr.bf16.mxu0 0
        %891 = vmatmul.mubr.bf16.gmra.mrb[0].mxu0 %v723
        %v892 = vpop.f32.mrb[0].mxu0
        %v893 = vadd.f32 %v677, %v892
        %v894 = vpop.f32.mrb[0].mxu0
        %v895 = vpop.f32.mrb[0].mxu0
        %v896 = vadd.f32 %v680, %v895
        %v897 = vpop.f32.mrb[0].mxu0
        %898 = vmatprep.mubr.bf16.mxu0 0
        %899 = vmatmul.mubr.bf16.gmra.mrb[0].mxu0 %v725
        %v900 = vpop.f32.mrb[0].mxu0
        %v901 = vadd.f32 %v685, %v900
        %v902 = vpop.f32.mrb[0].mxu0
        %v903 = vpop.f32.mrb[0].mxu0
        %v904 = vadd.f32 %v688, %v903
        %v905 = vpop.f32.mrb[0].mxu0
        %906 = vdwg.mxu0
        %v907 = vld [vmem:[%s168] sm:$0xe]
        %s908 = scalar_lea.vmem %s1, 4
        %v909 = vld [vmem:[%s908] sm:$0x3]
        %v911 = vunpack.c.l.b16 %v907
        %v912 = vpack.c.b16 %v248, %v911
        %vm913 = vcmask 1046528
        %v914 = vrot.slane %v912, 1
        %v915 = vrot.slane %v285, 1
        %v916 = vsel %vm913, %v914, %v915
        %v917 = vrot.slane %v286, 1
        %v918 = vsel %vm913, %v915, %v917
        %v919 = vrot.slane %v287, 1
        %v920 = vsel %vm913, %v917, %v919
        %v921 = vrot.slane %v288, 1
        %v922 = vsel %vm913, %v919, %v921
        %v923 = vrot.slane %v289, 1
        %v924 = vsel %vm913, %v921, %v923
        %v925 = vrot.slane %v290, 1
        %v926 = vsel %vm913, %v923, %v925
        %v927 = vrot.slane %v291, 1
        %v928 = vsel %vm913, %v925, %v927
        %v929 = vrot.slane %v292, 1
        %v930 = vsel %vm913, %v927, %v929
        %v931 = vrot.slane %v293, 1
        %v932 = vsel %vm913, %v929, %v931
        %v933 = vrot.slane %v294, 1
        %v934 = vsel %vm913, %v931, %v933
        %v935 = vrot.slane %v295, 1
        %v936 = vsel %vm913, %v933, %v935
        %v937 = vrot.slane %v296, 1
        %v938 = vsel %vm913, %v935, %v937
        %v939 = vrot.slane %v297, 1
        %v940 = vsel %vm913, %v937, %v939
        %v941 = vrot.slane %v298, 1
        %v942 = vsel %vm913, %v939, %v941
        %v943 = vrot.slane %v299, 1
        %v944 = vsel %vm913, %v941, %v943
        %v945 = vrot.slane %v300, 1
        %v946 = vsel %vm913, %v943, %v945
        %v947 = vrot.slane %v301, 1
        %v948 = vsel %vm913, %v945, %v947
        %v949 = vrot.slane %v302, 1
        %v950 = vsel %vm913, %v947, %v949
        %v952 = vsel %vm452, %v916, 0
        %v955 = vsel %vm452, %v918, 0
        %v958 = vsel %vm452, %v920, 0
        %v961 = vsel %vm452, %v922, 0
        %v964 = vsel %vm452, %v924, 0
        %v967 = vsel %vm452, %v926, 0
        %v970 = vsel %vm452, %v928, 0
        %v973 = vsel %vm452, %v930, 0
        %v976 = vsel %vm452, %v932, 0
        %v979 = vsel %vm452, %v934, 0
        %v982 = vsel %vm452, %v936, 0
        %v985 = vsel %vm452, %v938, 0
        %v988 = vsel %vm452, %v940, 0
        %v991 = vsel %vm452, %v942, 0
        %v994 = vsel %vm452, %v944, 0
        %v997 = vsel %vm452, %v946, 0
        %v1000 = vsel %vm452, %v948, 0
        %v1003 = vsel %vm452, %v950, 0
        %v1006 = vand.u32 %v909, %v510
        %1008 = vmatprep.subr.bf16.mxu0 0
        %1009 = vmatpush1.bf16.msra.mxu0 %v1006
        %1010 = vmatprep.subr.bf16.mxu0 0
        %1011 = vmatpush1.bf16.msra.mxu0 0
        %1012 = vmatprep.subr.bf16.mxu0 0
        %1013 = vmatpush1.bf16.msra.mxu0 0
        %1014 = vmatprep.subr.bf16.mxu0 0
        %1015 = vmatpush1.bf16.msra.mxu0 0
        %1016 = vmatprep.subr.bf16.mxu0 0
        %1017 = vmatpush1.bf16.msra.mxu0 0
        %1018 = vmatprep.subr.bf16.mxu0 0
        %1019 = vmatpush1.bf16.msra.mxu0 0
        %1020 = vmatprep.subr.bf16.mxu0 0
        %1021 = vmatpush1.bf16.msra.mxu0 0
        %1022 = vmatprep.subr.bf16.mxu0 0
        %1023 = vmatpush1.bf16.msra.mxu0 0
        %1024 = vmatprep.subr.bf16.mxu0 0
        %1025 = vmatpush1.bf16.msra.mxu0 0
        %1026 = vmatprep.subr.bf16.mxu0 0
        %1027 = vmatpush1.bf16.msra.mxu0 0
        %1028 = vmatprep.subr.bf16.mxu0 0
        %1029 = vmatpush1.bf16.msra.mxu0 0
        %1030 = vmatprep.subr.bf16.mxu0 0
        %1031 = vmatpush1.bf16.msra.mxu0 0
        %1032 = vmatprep.subr.bf16.mxu0 0
        %1033 = vmatpush1.bf16.msra.mxu0 0
        %1034 = vmatprep.subr.bf16.mxu0 0
        %1035 = vmatpush1.bf16.msra.mxu0 0
        %1036 = vmatprep.subr.bf16.mxu0 0
        %1037 = vmatpush1.bf16.msra.mxu0 0
        %1038 = vmatprep.subr.bf16.mxu0 0
        %1039 = vmatpush1.bf16.msra.mxu0 0
        %1040 = vmatprep.mubr.bf16.mxu0 0
        %1041 = vmatmul.mubr.bf16.gmra.mrb[0].mxu0 %v952
        %v1042 = vpop.f32.mrb[0].mxu0
        %v1043 = vadd.f32 0.0, %v1042
        %v1044 = vpop.f32.mrb[0].mxu0
        %v1045 = vpop.f32.mrb[0].mxu0
        %v1046 = vadd.f32 0.0, %v1045
        %v1047 = vpop.f32.mrb[0].mxu0
        %1048 = vmatprep.mubr.bf16.mxu0 0
        %1049 = vmatmul.mubr.bf16.gmra.mrb[0].mxu0 %v955
        %v1050 = vpop.f32.mrb[0].mxu0
        %v1051 = vadd.f32 0.0, %v1050
        %v1052 = vpop.f32.mrb[0].mxu0
        %v1053 = vpop.f32.mrb[0].mxu0
        %v1054 = vadd.f32 0.0, %v1053
        %v1055 = vpop.f32.mrb[0].mxu0
        %1056 = vmatprep.mubr.bf16.mxu0 0
        %1057 = vmatmul.mubr.bf16.gmra.mrb[0].mxu0 %v958
        %v1058 = vpop.f32.mrb[0].mxu0
        %v1059 = vadd.f32 0.0, %v1058
        %v1060 = vpop.f32.mrb[0].mxu0
        %v1061 = vpop.f32.mrb[0].mxu0
        %v1062 = vadd.f32 0.0, %v1061
        %v1063 = vpop.f32.mrb[0].mxu0
        %1064 = vmatprep.mubr.bf16.mxu0 0
        %1065 = vmatmul.mubr.bf16.gmra.mrb[0].mxu0 %v961
        %v1066 = vpop.f32.mrb[0].mxu0
        %v1067 = vadd.f32 0.0, %v1066
        %v1068 = vpop.f32.mrb[0].mxu0
        %v1069 = vpop.f32.mrb[0].mxu0
        %v1070 = vadd.f32 0.0, %v1069
        %v1071 = vpop.f32.mrb[0].mxu0
        %1072 = vmatprep.mubr.bf16.mxu0 0
        %1073 = vmatmul.mubr.bf16.gmra.mrb[0].mxu0 %v964
        %v1074 = vpop.f32.mrb[0].mxu0
        %v1075 = vadd.f32 0.0, %v1074
        %v1076 = vpop.f32.mrb[0].mxu0
        %v1077 = vpop.f32.mrb[0].mxu0
        %v1078 = vadd.f32 0.0, %v1077
        %v1079 = vpop.f32.mrb[0].mxu0
        %1080 = vmatprep.mubr.bf16.mxu0 0
        %1081 = vmatmul.mubr.bf16.gmra.mrb[0].mxu0 %v967
        %v1082 = vpop.f32.mrb[0].mxu0
        %v1083 = vadd.f32 0.0, %v1082
        %v1084 = vpop.f32.mrb[0].mxu0
        %v1085 = vpop.f32.mrb[0].mxu0
        %v1086 = vadd.f32 0.0, %v1085
        %v1087 = vpop.f32.mrb[0].mxu0
        %1088 = vmatprep.mubr.bf16.mxu0 0
        %1089 = vmatmul.mubr.bf16.gmra.mrb[0].mxu0 %v970
        %v1090 = vpop.f32.mrb[0].mxu0
        %v1091 = vadd.f32 0.0, %v1090
        %v1092 = vpop.f32.mrb[0].mxu0
        %v1093 = vpop.f32.mrb[0].mxu0
        %v1094 = vadd.f32 0.0, %v1093
        %v1095 = vpop.f32.mrb[0].mxu0
        %1096 = vmatprep.mubr.bf16.mxu0 0
        %1097 = vmatmul.mubr.bf16.gmra.mrb[0].mxu0 %v973
        %v1098 = vpop.f32.mrb[0].mxu0
        %v1099 = vadd.f32 0.0, %v1098
        %v1100 = vpop.f32.mrb[0].mxu0
        %v1101 = vpop.f32.mrb[0].mxu0
        %v1102 = vadd.f32 0.0, %v1101
        %v1103 = vpop.f32.mrb[0].mxu0
        %1104 = vmatprep.mubr.bf16.mxu0 0
        %1105 = vmatmul.mubr.bf16.gmra.mrb[0].mxu0 %v976
        %v1106 = vpop.f32.mrb[0].mxu0
        %v1107 = vadd.f32 0.0, %v1106
        %v1108 = vpop.f32.mrb[0].mxu0
        %v1109 = vpop.f32.mrb[0].mxu0
        %v1110 = vadd.f32 0.0, %v1109
        %v1111 = vpop.f32.mrb[0].mxu0
        %1112 = vmatprep.mubr.bf16.mxu0 0
        %1113 = vmatmul.mubr.bf16.gmra.mrb[0].mxu0 %v979
        %v1114 = vpop.f32.mrb[0].mxu0
        %v1115 = vadd.f32 0.0, %v1114
        %v1116 = vpop.f32.mrb[0].mxu0
        %v1117 = vpop.f32.mrb[0].mxu0
        %v1118 = vadd.f32 0.0, %v1117
        %v1119 = vpop.f32.mrb[0].mxu0
        %1120 = vmatprep.mubr.bf16.mxu0 0
        %1121 = vmatmul.mubr.bf16.gmra.mrb[0].mxu0 %v982
        %v1122 = vpop.f32.mrb[0].mxu0
        %v1123 = vadd.f32 0.0, %v1122
        %v1124 = vpop.f32.mrb[0].mxu0
        %v1125 = vpop.f32.mrb[0].mxu0
        %v1126 = vadd.f32 0.0, %v1125
        %v1127 = vpop.f32.mrb[0].mxu0
        %1128 = vmatprep.mubr.bf16.mxu0 0
        %1129 = vmatmul.mubr.bf16.gmra.mrb[0].mxu0 %v985
        %v1130 = vpop.f32.mrb[0].mxu0
        %v1131 = vadd.f32 0.0, %v1130
        %v1132 = vpop.f32.mrb[0].mxu0
        %v1133 = vpop.f32.mrb[0].mxu0
        %v1134 = vadd.f32 0.0, %v1133
        %v1135 = vpop.f32.mrb[0].mxu0
        %1136 = vmatprep.mubr.bf16.mxu0 0
        %1137 = vmatmul.mubr.bf16.gmra.mrb[0].mxu0 %v988
        %v1138 = vpop.f32.mrb[0].mxu0
        %v1139 = vadd.f32 0.0, %v1138
        %v1140 = vpop.f32.mrb[0].mxu0
        %v1141 = vpop.f32.mrb[0].mxu0
        %v1142 = vadd.f32 0.0, %v1141
        %v1143 = vpop.f32.mrb[0].mxu0
        %1144 = vmatprep.mubr.bf16.mxu0 0
        %1145 = vmatmul.mubr.bf16.gmra.mrb[0].mxu0 %v991
        %v1146 = vpop.f32.mrb[0].mxu0
        %v1147 = vadd.f32 0.0, %v1146
        %v1148 = vpop.f32.mrb[0].mxu0
        %v1149 = vpop.f32.mrb[0].mxu0
        %v1150 = vadd.f32 0.0, %v1149
        %v1151 = vpop.f32.mrb[0].mxu0
        %1152 = vmatprep.mubr.bf16.mxu0 0
        %1153 = vmatmul.mubr.bf16.gmra.mrb[0].mxu0 %v994
        %v1154 = vpop.f32.mrb[0].mxu0
        %v1155 = vadd.f32 0.0, %v1154
        %v1156 = vpop.f32.mrb[0].mxu0
        %v1157 = vpop.f32.mrb[0].mxu0
        %v1158 = vadd.f32 0.0, %v1157
        %v1159 = vpop.f32.mrb[0].mxu0
        %1160 = vmatprep.mubr.bf16.mxu0 0
        %1161 = vmatmul.mubr.bf16.gmra.mrb[0].mxu0 %v997
        %v1162 = vpop.f32.mrb[0].mxu0
        %v1163 = vadd.f32 0.0, %v1162
        %v1164 = vpop.f32.mrb[0].mxu0
        %v1165 = vpop.f32.mrb[0].mxu0
        %v1166 = vadd.f32 0.0, %v1165
        %v1167 = vpop.f32.mrb[0].mxu0
        %1168 = vmatprep.mubr.bf16.mxu0 0
        %1169 = vmatmul.mubr.bf16.gmra.mrb[0].mxu0 %v1000
        %v1170 = vpop.f32.mrb[0].mxu0
        %v1171 = vadd.f32 0.0, %v1170
        %v1172 = vpop.f32.mrb[0].mxu0
        %v1173 = vpop.f32.mrb[0].mxu0
        %v1174 = vadd.f32 0.0, %v1173
        %v1175 = vpop.f32.mrb[0].mxu0
        %1176 = vmatprep.mubr.bf16.mxu0 0
        %1177 = vmatmul.mubr.bf16.gmra.mrb[0].mxu0 %v1003
        %v1178 = vpop.f32.mrb[0].mxu0
        %v1179 = vadd.f32 0.0, %v1178
        %v1180 = vpop.f32.mrb[0].mxu0
        %v1181 = vpop.f32.mrb[0].mxu0
        %v1182 = vadd.f32 0.0, %v1181
        %v1183 = vpop.f32.mrb[0].mxu0
        %1184 = vdwg.mxu0
        %v1185 = vadd.f32 %v765, %v1043
        %v1186 = vadd.f32 %v768, %v1046
        %v1187 = vadd.f32 %v773, %v1051
        %v1188 = vadd.f32 %v776, %v1054
        %v1189 = vadd.f32 %v781, %v1059
        %v1190 = vadd.f32 %v784, %v1062
        %v1191 = vadd.f32 %v789, %v1067
        %v1192 = vadd.f32 %v792, %v1070
        %v1193 = vadd.f32 %v797, %v1075
        %v1194 = vadd.f32 %v800, %v1078
        %v1195 = vadd.f32 %v805, %v1083
        %v1196 = vadd.f32 %v808, %v1086
        %v1197 = vadd.f32 %v813, %v1091
        %v1198 = vadd.f32 %v816, %v1094
        %v1199 = vadd.f32 %v821, %v1099
        %v1200 = vadd.f32 %v824, %v1102
        %v1201 = vadd.f32 %v829, %v1107
        %v1202 = vadd.f32 %v832, %v1110
        %v1203 = vadd.f32 %v837, %v1115
        %v1204 = vadd.f32 %v840, %v1118
        %v1205 = vadd.f32 %v845, %v1123
        %v1206 = vadd.f32 %v848, %v1126
        %v1207 = vadd.f32 %v853, %v1131
        %v1208 = vadd.f32 %v856, %v1134
        %v1209 = vadd.f32 %v861, %v1139
        %v1210 = vadd.f32 %v864, %v1142
        %v1211 = vadd.f32 %v869, %v1147
        %v1212 = vadd.f32 %v872, %v1150
        %v1213 = vadd.f32 %v877, %v1155
        %v1214 = vadd.f32 %v880, %v1158
        %v1215 = vadd.f32 %v885, %v1163
        %v1216 = vadd.f32 %v888, %v1166
        %v1217 = vadd.f32 %v893, %v1171
        %v1218 = vadd.f32 %v896, %v1174
        %v1219 = vadd.f32 %v901, %v1179
        %v1220 = vadd.f32 %v904, %v1182
        %v1221 = vld [vmem:[%s168 + $0x8] sm:$0xe]
        %v1222 = vld [vmem:[%s168 + $0xc] sm:$0xf]
        %v1223 = vld [vmem:[%s168 + $0x10] sm:$0xf]
        %v1224 = vld [vmem:[%s168 + $0x14] sm:$0xf]
        %v1225 = vld [vmem:[%s168 + $0x18] sm:$0xf]
        %v1226 = vld [vmem:[%s168 + $0x1c] sm:$0xf]
        %v1227 = vld [vmem:[%s168 + $0x20] sm:$0xf]
        %v1228 = vld [vmem:[%s168 + $0x24] sm:$0xf]
        %v1229 = vld [vmem:[%s168 + $0x28] sm:$0xf]
        %v1230 = vld [vmem:[%s168 + $0x2c] sm:$0xf]
        %v1231 = vld [vmem:[%s168 + $0x30] sm:$0xf]
        %v1232 = vld [vmem:[%s168 + $0x34] sm:$0xf]
        %v1233 = vld [vmem:[%s168 + $0x38] sm:$0xf]
        %v1234 = vld [vmem:[%s168 + $0x3c] sm:$0xf]
        %v1235 = vld [vmem:[%s168 + $0x40] sm:$0xf]
        %v1236 = vld [vmem:[%s168 + $0x44] sm:$0xf]
        %v1237 = vld [vmem:[%s168 + $0x48] sm:$0xf]
        %v1238 = vld [vmem:[%s168 + $0x4c] sm:$0xf]
        %v1239 = vld [vmem:[%s168 + $0x50] sm:$0xf]
        %v1240 = vld [vmem:[%s168 + $0x54] sm:$0xf]
        %v1241 = vld [vmem:[%s168 + $0x58] sm:$0xf]
        %v1242 = vld [vmem:[%s168 + $0x5c] sm:$0xf]
        %v1243 = vld [vmem:[%s168 + $0x60] sm:$0xf]
        %v1244 = vld [vmem:[%s168 + $0x64] sm:$0xf]
        %v1245 = vld [vmem:[%s168 + $0x68] sm:$0xf]
        %v1246 = vld [vmem:[%s168 + $0x6c] sm:$0xf]
        %v1247 = vld [vmem:[%s168 + $0x70] sm:$0xf]
        %v1248 = vld [vmem:[%s168 + $0x74] sm:$0xf]
        %v1249 = vld [vmem:[%s168 + $0x78] sm:$0xf]
        %v1250 = vld [vmem:[%s168 + $0x7c] sm:$0xf]
        %v1251 = vld [vmem:[%s168 + $0x80] sm:$0xf]
        %v1252 = vld [vmem:[%s168 + $0x84] sm:$0xf]
        %v1253 = vld [vmem:[%s168 + $0x88] sm:$0xf]
        %v1254 = vld [vmem:[%s168 + $0x8c] sm:$0xf]
        %v1255 = vld [vmem:[%s168 + $0x90] sm:$0xf]
        %v1256 = vld [vmem:[%s168 + $0x94] sm:$0xf]
        %v1257 = vld [vmem:[%s168 + $0x98] sm:$0x1]
        %s1258 = scalar_lea.vmem %s1, 6
        %v1259 = vld [vmem:[%s1258] sm:$0x3]
        %v1297 = vunpack.c.l.b16 %v1221
        %v1298 = vunpack.c.l.b16 %v1222
        %v1299 = vunpack.c.l.b16 %v1223
        %v1300 = vunpack.c.l.b16 %v1224
        %v1301 = vunpack.c.l.b16 %v1225
        %v1302 = vunpack.c.l.b16 %v1226
        %v1303 = vunpack.c.l.b16 %v1227
        %v1304 = vunpack.c.l.b16 %v1228
        %v1305 = vunpack.c.l.b16 %v1229
        %v1306 = vunpack.c.l.b16 %v1230
        %v1307 = vunpack.c.l.b16 %v1231
        %v1308 = vunpack.c.l.b16 %v1232
        %v1309 = vunpack.c.l.b16 %v1233
        %v1310 = vunpack.c.l.b16 %v1234
        %v1311 = vunpack.c.l.b16 %v1235
        %v1312 = vunpack.c.l.b16 %v1236
        %v1313 = vunpack.c.l.b16 %v1237
        %v1314 = vunpack.c.l.b16 %v1238
        %v1315 = vunpack.c.l.b16 %v1239
        %v1316 = vunpack.c.l.b16 %v1240
        %v1317 = vunpack.c.l.b16 %v1241
        %v1318 = vunpack.c.l.b16 %v1242
        %v1319 = vunpack.c.l.b16 %v1243
        %v1320 = vunpack.c.l.b16 %v1244
        %v1321 = vunpack.c.l.b16 %v1245
        %v1322 = vunpack.c.l.b16 %v1246
        %v1323 = vunpack.c.l.b16 %v1247
        %v1324 = vunpack.c.l.b16 %v1248
        %v1325 = vunpack.c.l.b16 %v1249
        %v1326 = vunpack.c.l.b16 %v1250
        %v1327 = vunpack.c.l.b16 %v1251
        %v1328 = vunpack.c.l.b16 %v1252
        %v1329 = vunpack.c.l.b16 %v1253
        %v1330 = vunpack.c.l.b16 %v1254
        %v1331 = vunpack.c.l.b16 %v1255
        %v1332 = vunpack.c.l.b16 %v1256
        %v1333 = vunpack.c.l.b16 %v1257
        %v1334 = vpack.c.b16 %v1298, %v1297
        %v1335 = vpack.c.b16 %v1300, %v1299
        %v1336 = vpack.c.b16 %v1302, %v1301
        %v1337 = vpack.c.b16 %v1304, %v1303
        %v1338 = vpack.c.b16 %v1306, %v1305
        %v1339 = vpack.c.b16 %v1308, %v1307
        %v1340 = vpack.c.b16 %v1310, %v1309
        %v1341 = vpack.c.b16 %v1312, %v1311
        %v1342 = vpack.c.b16 %v1314, %v1313
        %v1343 = vpack.c.b16 %v1316, %v1315
        %v1344 = vpack.c.b16 %v1318, %v1317
        %v1345 = vpack.c.b16 %v1320, %v1319
        %v1346 = vpack.c.b16 %v1322, %v1321
        %v1347 = vpack.c.b16 %v1324, %v1323
        %v1348 = vpack.c.b16 %v1326, %v1325
        %v1349 = vpack.c.b16 %v1328, %v1327
        %v1350 = vpack.c.b16 %v1330, %v1329
        %v1351 = vpack.c.b16 %v1332, %v1331
        %v1352 = vpack.c.b16 %v1333, %v1333
        %v1353 = vrot.slane %v1334, 1
        %v1354 = vrot.slane %v1335, 1
        %v1355 = vsel %vm913, %v1353, %v1354
        %v1356 = vrot.slane %v1336, 1
        %v1357 = vsel %vm913, %v1354, %v1356
        %v1358 = vrot.slane %v1337, 1
        %v1359 = vsel %vm913, %v1356, %v1358
        %v1360 = vrot.slane %v1338, 1
        %v1361 = vsel %vm913, %v1358, %v1360
        %v1362 = vrot.slane %v1339, 1
        %v1363 = vsel %vm913, %v1360, %v1362
        %v1364 = vrot.slane %v1340, 1
        %v1365 = vsel %vm913, %v1362, %v1364
        %v1366 = vrot.slane %v1341, 1
        %v1367 = vsel %vm913, %v1364, %v1366
        %v1368 = vrot.slane %v1342, 1
        %v1369 = vsel %vm913, %v1366, %v1368
        %v1370 = vrot.slane %v1343, 1
        %v1371 = vsel %vm913, %v1368, %v1370
        %v1372 = vrot.slane %v1344, 1
        %v1373 = vsel %vm913, %v1370, %v1372
        %v1374 = vrot.slane %v1345, 1
        %v1375 = vsel %vm913, %v1372, %v1374
        %v1376 = vrot.slane %v1346, 1
        %v1377 = vsel %vm913, %v1374, %v1376
        %v1378 = vrot.slane %v1347, 1
        %v1379 = vsel %vm913, %v1376, %v1378
        %v1380 = vrot.slane %v1348, 1
        %v1381 = vsel %vm913, %v1378, %v1380
        %v1382 = vrot.slane %v1349, 1
        %v1383 = vsel %vm913, %v1380, %v1382
        %v1384 = vrot.slane %v1350, 1
        %v1385 = vsel %vm913, %v1382, %v1384
        %v1386 = vrot.slane %v1351, 1
        %v1387 = vsel %vm913, %v1384, %v1386
        %v1388 = vrot.slane %v1352, 1
        %v1389 = vsel %vm913, %v1386, %v1388
        %v1391 = vsel %vm452, %v1355, 0
        %v1394 = vsel %vm452, %v1357, 0
        %v1397 = vsel %vm452, %v1359, 0
        %v1400 = vsel %vm452, %v1361, 0
        %v1403 = vsel %vm452, %v1363, 0
        %v1406 = vsel %vm452, %v1365, 0
        %v1409 = vsel %vm452, %v1367, 0
        %v1412 = vsel %vm452, %v1369, 0
        %v1415 = vsel %vm452, %v1371, 0
        %v1418 = vsel %vm452, %v1373, 0
        %v1421 = vsel %vm452, %v1375, 0
        %v1424 = vsel %vm452, %v1377, 0
        %v1427 = vsel %vm452, %v1379, 0
        %v1430 = vsel %vm452, %v1381, 0
        %v1433 = vsel %vm452, %v1383, 0
        %v1436 = vsel %vm452, %v1385, 0
        %v1439 = vsel %vm452, %v1387, 0
        %v1442 = vsel %vm452, %v1389, 0
        %v1445 = vand.u32 %v1259, %v510
        %1447 = vmatprep.subr.bf16.mxu0 0
        %1448 = vmatpush1.bf16.msra.mxu0 %v1445
        %1449 = vmatprep.subr.bf16.mxu0 0
        %1450 = vmatpush1.bf16.msra.mxu0 0
        %1451 = vmatprep.subr.bf16.mxu0 0
        %1452 = vmatpush1.bf16.msra.mxu0 0
        %1453 = vmatprep.subr.bf16.mxu0 0
        %1454 = vmatpush1.bf16.msra.mxu0 0
        %1455 = vmatprep.subr.bf16.mxu0 0
        %1456 = vmatpush1.bf16.msra.mxu0 0
        %1457 = vmatprep.subr.bf16.mxu0 0
        %1458 = vmatpush1.bf16.msra.mxu0 0
        %1459 = vmatprep.subr.bf16.mxu0 0
        %1460 = vmatpush1.bf16.msra.mxu0 0
        %1461 = vmatprep.subr.bf16.mxu0 0
        %1462 = vmatpush1.bf16.msra.mxu0 0
        %1463 = vmatprep.subr.bf16.mxu0 0
        %1464 = vmatpush1.bf16.msra.mxu0 0
        %1465 = vmatprep.subr.bf16.mxu0 0
        %1466 = vmatpush1.bf16.msra.mxu0 0
        %1467 = vmatprep.subr.bf16.mxu0 0
        %1468 = vmatpush1.bf16.msra.mxu0 0
        %1469 = vmatprep.subr.bf16.mxu0 0
        %1470 = vmatpush1.bf16.msra.mxu0 0
        %1471 = vmatprep.subr.bf16.mxu0 0
        %1472 = vmatpush1.bf16.msra.mxu0 0
        %1473 = vmatprep.subr.bf16.mxu0 0
        %1474 = vmatpush1.bf16.msra.mxu0 0
        %1475 = vmatprep.subr.bf16.mxu0 0
        %1476 = vmatpush1.bf16.msra.mxu0 0
        %1477 = vmatprep.subr.bf16.mxu0 0
        %1478 = vmatpush1.bf16.msra.mxu0 0
        %1479 = vmatprep.mubr.bf16.mxu0 0
        %1480 = vmatmul.mubr.bf16.gmra.mrb[0].mxu0 %v1391
        %v1481 = vpop.f32.mrb[0].mxu0
        %v1482 = vadd.f32 0.0, %v1481
        %v1483 = vpop.f32.mrb[0].mxu0
        %v1484 = vpop.f32.mrb[0].mxu0
        %v1485 = vadd.f32 0.0, %v1484
        %v1486 = vpop.f32.mrb[0].mxu0
        %1487 = vmatprep.mubr.bf16.mxu0 0
        %1488 = vmatmul.mubr.bf16.gmra.mrb[0].mxu0 %v1394
        %v1489 = vpop.f32.mrb[0].mxu0
        %v1490 = vadd.f32 0.0, %v1489
        %v1491 = vpop.f32.mrb[0].mxu0
        %v1492 = vpop.f32.mrb[0].mxu0
        %v1493 = vadd.f32 0.0, %v1492
        %v1494 = vpop.f32.mrb[0].mxu0
        %1495 = vmatprep.mubr.bf16.mxu0 0
        %1496 = vmatmul.mubr.bf16.gmra.mrb[0].mxu0 %v1397
        %v1497 = vpop.f32.mrb[0].mxu0
        %v1498 = vadd.f32 0.0, %v1497
        %v1499 = vpop.f32.mrb[0].mxu0
        %v1500 = vpop.f32.mrb[0].mxu0
        %v1501 = vadd.f32 0.0, %v1500
        %v1502 = vpop.f32.mrb[0].mxu0
        %1503 = vmatprep.mubr.bf16.mxu0 0
        %1504 = vmatmul.mubr.bf16.gmra.mrb[0].mxu0 %v1400
        %v1505 = vpop.f32.mrb[0].mxu0
        %v1506 = vadd.f32 0.0, %v1505
        %v1507 = vpop.f32.mrb[0].mxu0
        %v1508 = vpop.f32.mrb[0].mxu0
        %v1509 = vadd.f32 0.0, %v1508
        %v1510 = vpop.f32.mrb[0].mxu0
        %1511 = vmatprep.mubr.bf16.mxu0 0
        %1512 = vmatmul.mubr.bf16.gmra.mrb[0].mxu0 %v1403
        %v1513 = vpop.f32.mrb[0].mxu0
        %v1514 = vadd.f32 0.0, %v1513
        %v1515 = vpop.f32.mrb[0].mxu0
        %v1516 = vpop.f32.mrb[0].mxu0
        %v1517 = vadd.f32 0.0, %v1516
        %v1518 = vpop.f32.mrb[0].mxu0
        %1519 = vmatprep.mubr.bf16.mxu0 0
        %1520 = vmatmul.mubr.bf16.gmra.mrb[0].mxu0 %v1406
        %v1521 = vpop.f32.mrb[0].mxu0
        %v1522 = vadd.f32 0.0, %v1521
        %v1523 = vpop.f32.mrb[0].mxu0
        %v1524 = vpop.f32.mrb[0].mxu0
        %v1525 = vadd.f32 0.0, %v1524
        %v1526 = vpop.f32.mrb[0].mxu0
        %1527 = vmatprep.mubr.bf16.mxu0 0
        %1528 = vmatmul.mubr.bf16.gmra.mrb[0].mxu0 %v1409
        %v1529 = vpop.f32.mrb[0].mxu0
        %v1530 = vadd.f32 0.0, %v1529
        %v1531 = vpop.f32.mrb[0].mxu0
        %v1532 = vpop.f32.mrb[0].mxu0
        %v1533 = vadd.f32 0.0, %v1532
        %v1534 = vpop.f32.mrb[0].mxu0
        %1535 = vmatprep.mubr.bf16.mxu0 0
        %1536 = vmatmul.mubr.bf16.gmra.mrb[0].mxu0 %v1412
        %v1537 = vpop.f32.mrb[0].mxu0
        %v1538 = vadd.f32 0.0, %v1537
        %v1539 = vpop.f32.mrb[0].mxu0
        %v1540 = vpop.f32.mrb[0].mxu0
        %v1541 = vadd.f32 0.0, %v1540
        %v1542 = vpop.f32.mrb[0].mxu0
        %1543 = vmatprep.mubr.bf16.mxu0 0
        %1544 = vmatmul.mubr.bf16.gmra.mrb[0].mxu0 %v1415
        %v1545 = vpop.f32.mrb[0].mxu0
        %v1546 = vadd.f32 0.0, %v1545
        %v1547 = vpop.f32.mrb[0].mxu0
        %v1548 = vpop.f32.mrb[0].mxu0
        %v1549 = vadd.f32 0.0, %v1548
        %v1550 = vpop.f32.mrb[0].mxu0
        %1551 = vmatprep.mubr.bf16.mxu0 0
        %1552 = vmatmul.mubr.bf16.gmra.mrb[0].mxu0 %v1418
        %v1553 = vpop.f32.mrb[0].mxu0
        %v1554 = vadd.f32 0.0, %v1553
        %v1555 = vpop.f32.mrb[0].mxu0
        %v1556 = vpop.f32.mrb[0].mxu0
        %v1557 = vadd.f32 0.0, %v1556
        %v1558 = vpop.f32.mrb[0].mxu0
        %1559 = vmatprep.mubr.bf16.mxu0 0
        %1560 = vmatmul.mubr.bf16.gmra.mrb[0].mxu0 %v1421
        %v1561 = vpop.f32.mrb[0].mxu0
        %v1562 = vadd.f32 0.0, %v1561
        %v1563 = vpop.f32.mrb[0].mxu0
        %v1564 = vpop.f32.mrb[0].mxu0
        %v1565 = vadd.f32 0.0, %v1564
        %v1566 = vpop.f32.mrb[0].mxu0
        %1567 = vmatprep.mubr.bf16.mxu0 0
        %1568 = vmatmul.mubr.bf16.gmra.mrb[0].mxu0 %v1424
        %v1569 = vpop.f32.mrb[0].mxu0
        %v1570 = vadd.f32 0.0, %v1569
        %v1571 = vpop.f32.mrb[0].mxu0
        %v1572 = vpop.f32.mrb[0].mxu0
        %v1573 = vadd.f32 0.0, %v1572
        %v1574 = vpop.f32.mrb[0].mxu0
        %1575 = vmatprep.mubr.bf16.mxu0 0
        %1576 = vmatmul.mubr.bf16.gmra.mrb[0].mxu0 %v1427
        %v1577 = vpop.f32.mrb[0].mxu0
        %v1578 = vadd.f32 0.0, %v1577
        %v1579 = vpop.f32.mrb[0].mxu0
        %v1580 = vpop.f32.mrb[0].mxu0
        %v1581 = vadd.f32 0.0, %v1580
        %v1582 = vpop.f32.mrb[0].mxu0
        %1583 = vmatprep.mubr.bf16.mxu0 0
        %1584 = vmatmul.mubr.bf16.gmra.mrb[0].mxu0 %v1430
        %v1585 = vpop.f32.mrb[0].mxu0
        %v1586 = vadd.f32 0.0, %v1585
        %v1587 = vpop.f32.mrb[0].mxu0
        %v1588 = vpop.f32.mrb[0].mxu0
        %v1589 = vadd.f32 0.0, %v1588
        %v1590 = vpop.f32.mrb[0].mxu0
        %1591 = vmatprep.mubr.bf16.mxu0 0
        %1592 = vmatmul.mubr.bf16.gmra.mrb[0].mxu0 %v1433
        %v1593 = vpop.f32.mrb[0].mxu0
        %v1594 = vadd.f32 0.0, %v1593
        %v1595 = vpop.f32.mrb[0].mxu0
        %v1596 = vpop.f32.mrb[0].mxu0
        %v1597 = vadd.f32 0.0, %v1596
        %v1598 = vpop.f32.mrb[0].mxu0
        %1599 = vmatprep.mubr.bf16.mxu0 0
        %1600 = vmatmul.mubr.bf16.gmra.mrb[0].mxu0 %v1436
        %v1601 = vpop.f32.mrb[0].mxu0
        %v1602 = vadd.f32 0.0, %v1601
        %v1603 = vpop.f32.mrb[0].mxu0
        %v1604 = vpop.f32.mrb[0].mxu0
        %v1605 = vadd.f32 0.0, %v1604
        %v1606 = vpop.f32.mrb[0].mxu0
        %1607 = vmatprep.mubr.bf16.mxu0 0
        %1608 = vmatmul.mubr.bf16.gmra.mrb[0].mxu0 %v1439
        %v1609 = vpop.f32.mrb[0].mxu0
        %v1610 = vadd.f32 0.0, %v1609
        %v1611 = vpop.f32.mrb[0].mxu0
        %v1612 = vpop.f32.mrb[0].mxu0
        %v1613 = vadd.f32 0.0, %v1612
        %v1614 = vpop.f32.mrb[0].mxu0
        %1615 = vmatprep.mubr.bf16.mxu0 0
        %1616 = vmatmul.mubr.bf16.gmra.mrb[0].mxu0 %v1442
        %v1617 = vpop.f32.mrb[0].mxu0
        %v1618 = vadd.f32 0.0, %v1617
        %v1619 = vpop.f32.mrb[0].mxu0
        %v1620 = vpop.f32.mrb[0].mxu0
        %v1621 = vadd.f32 0.0, %v1620
        %v1622 = vpop.f32.mrb[0].mxu0
        %1623 = vdwg.mxu0
        %v1624 = vadd.f32 %v1185, %v1482
        %v1625 = vadd.f32 %v1186, %v1485
        %v1626 = vadd.f32 %v1187, %v1490
        %v1627 = vadd.f32 %v1188, %v1493
        %v1628 = vadd.f32 %v1189, %v1498
        %v1629 = vadd.f32 %v1190, %v1501
        %v1630 = vadd.f32 %v1191, %v1506
        %v1631 = vadd.f32 %v1192, %v1509
        %v1632 = vadd.f32 %v1193, %v1514
        %v1633 = vadd.f32 %v1194, %v1517
        %v1634 = vadd.f32 %v1195, %v1522
        %v1635 = vadd.f32 %v1196, %v1525
        %v1636 = vadd.f32 %v1197, %v1530
        %v1637 = vadd.f32 %v1198, %v1533
        %v1638 = vadd.f32 %v1199, %v1538
        %v1639 = vadd.f32 %v1200, %v1541
        %v1640 = vadd.f32 %v1201, %v1546
        %v1641 = vadd.f32 %v1202, %v1549
        %v1642 = vadd.f32 %v1203, %v1554
        %v1643 = vadd.f32 %v1204, %v1557
        %v1644 = vadd.f32 %v1205, %v1562
        %v1645 = vadd.f32 %v1206, %v1565
        %v1646 = vadd.f32 %v1207, %v1570
        %v1647 = vadd.f32 %v1208, %v1573
        %v1648 = vadd.f32 %v1209, %v1578
        %v1649 = vadd.f32 %v1210, %v1581
        %v1650 = vadd.f32 %v1211, %v1586
        %v1651 = vadd.f32 %v1212, %v1589
        %v1652 = vadd.f32 %v1213, %v1594
        %v1653 = vadd.f32 %v1214, %v1597
        %v1654 = vadd.f32 %v1215, %v1602
        %v1655 = vadd.f32 %v1216, %v1605
        %v1656 = vadd.f32 %v1217, %v1610
        %v1657 = vadd.f32 %v1218, %v1613
        %v1658 = vadd.f32 %v1219, %v1618
        %v1659 = vadd.f32 %v1220, %v1621
        %v1660 = vld [vmem:[%s168 + $0x98] sm:$0x3]
        %s1661 = scalar_lea.vmem %s1, 8
        %v1662 = vld [vmem:[%s1661] sm:$0x3]
        %v1664 = vunpack.c.l.b16 %v1660
        %v1665 = vpack.c.b16 %v1664, %v1664
        %vm1666 = vsmask.f32 6400
        %v1668 = vshrl.u32 %v1334, 16
        %v1670 = vrot.slane %v1668, 1
        %v1671 = vshll.u32 %v1334, 16
        %v1673 = vrot.slane %v1671, 2
        %v1674 = vor.u32 %v1670, %v1673
        %v1676 = vshrl.u32 %v1335, 16
        %v1678 = vrot.slane %v1676, 1
        %v1679 = vshll.u32 %v1335, 16
        %v1681 = vrot.slane %v1679, 2
        %v1682 = vor.u32 %v1678, %v1681
        %v1683 = vsel %vm1666, %v1674, %v1682
        %v1685 = vshrl.u32 %v1336, 16
        %v1687 = vrot.slane %v1685, 1
        %v1688 = vshll.u32 %v1336, 16
        %v1690 = vrot.slane %v1688, 2
        %v1691 = vor.u32 %v1687, %v1690
        %v1692 = vsel %vm1666, %v1682, %v1691
        %v1694 = vshrl.u32 %v1337, 16
        %v1696 = vrot.slane %v1694, 1
        %v1697 = vshll.u32 %v1337, 16
        %v1699 = vrot.slane %v1697, 2
        %v1700 = vor.u32 %v1696, %v1699
        %v1701 = vsel %vm1666, %v1691, %v1700
        %v1703 = vshrl.u32 %v1338, 16
        %v1705 = vrot.slane %v1703, 1
        %v1706 = vshll.u32 %v1338, 16
        %v1708 = vrot.slane %v1706, 2
        %v1709 = vor.u32 %v1705, %v1708
        %v1710 = vsel %vm1666, %v1700, %v1709
        %v1712 = vshrl.u32 %v1339, 16
        %v1714 = vrot.slane %v1712, 1
        %v1715 = vshll.u32 %v1339, 16
        %v1717 = vrot.slane %v1715, 2
        %v1718 = vor.u32 %v1714, %v1717
        %v1719 = vsel %vm1666, %v1709, %v1718
        %v1721 = vshrl.u32 %v1340, 16
        %v1723 = vrot.slane %v1721, 1
        %v1724 = vshll.u32 %v1340, 16
        %v1726 = vrot.slane %v1724, 2
        %v1727 = vor.u32 %v1723, %v1726
        %v1728 = vsel %vm1666, %v1718, %v1727
        %v1730 = vshrl.u32 %v1341, 16
        %v1732 = vrot.slane %v1730, 1
        %v1733 = vshll.u32 %v1341, 16
        %v1735 = vrot.slane %v1733, 2
        %v1736 = vor.u32 %v1732, %v1735
        %v1737 = vsel %vm1666, %v1727, %v1736
        %v1739 = vshrl.u32 %v1342, 16
        %v1741 = vrot.slane %v1739, 1
        %v1742 = vshll.u32 %v1342, 16
        %v1744 = vrot.slane %v1742, 2
        %v1745 = vor.u32 %v1741, %v1744
        %v1746 = vsel %vm1666, %v1736, %v1745
        %v1748 = vshrl.u32 %v1343, 16
        %v1750 = vrot.slane %v1748, 1
        %v1751 = vshll.u32 %v1343, 16
        %v1753 = vrot.slane %v1751, 2
        %v1754 = vor.u32 %v1750, %v1753
        %v1755 = vsel %vm1666, %v1745, %v1754
        %v1757 = vshrl.u32 %v1344, 16
        %v1759 = vrot.slane %v1757, 1
        %v1760 = vshll.u32 %v1344, 16
        %v1762 = vrot.slane %v1760, 2
        %v1763 = vor.u32 %v1759, %v1762
        %v1764 = vsel %vm1666, %v1754, %v1763
        %v1766 = vshrl.u32 %v1345, 16
        %v1768 = vrot.slane %v1766, 1
        %v1769 = vshll.u32 %v1345, 16
        %v1771 = vrot.slane %v1769, 2
        %v1772 = vor.u32 %v1768, %v1771
        %v1773 = vsel %vm1666, %v1763, %v1772
        %v1775 = vshrl.u32 %v1346, 16
        %v1777 = vrot.slane %v1775, 1
        %v1778 = vshll.u32 %v1346, 16
        %v1780 = vrot.slane %v1778, 2
        %v1781 = vor.u32 %v1777, %v1780
        %v1782 = vsel %vm1666, %v1772, %v1781
        %v1784 = vshrl.u32 %v1347, 16
        %v1786 = vrot.slane %v1784, 1
        %v1787 = vshll.u32 %v1347, 16
        %v1789 = vrot.slane %v1787, 2
        %v1790 = vor.u32 %v1786, %v1789
        %v1791 = vsel %vm1666, %v1781, %v1790
        %v1793 = vshrl.u32 %v1348, 16
        %v1795 = vrot.slane %v1793, 1
        %v1796 = vshll.u32 %v1348, 16
        %v1798 = vrot.slane %v1796, 2
        %v1799 = vor.u32 %v1795, %v1798
        %v1800 = vsel %vm1666, %v1790, %v1799
        %v1802 = vshrl.u32 %v1349, 16
        %v1804 = vrot.slane %v1802, 1
        %v1805 = vshll.u32 %v1349, 16
        %v1807 = vrot.slane %v1805, 2
        %v1808 = vor.u32 %v1804, %v1807
        %v1809 = vsel %vm1666, %v1799, %v1808
        %v1811 = vshrl.u32 %v1350, 16
        %v1813 = vrot.slane %v1811, 1
        %v1814 = vshll.u32 %v1350, 16
        %v1816 = vrot.slane %v1814, 2
        %v1817 = vor.u32 %v1813, %v1816
        %v1818 = vsel %vm1666, %v1808, %v1817
        %v1820 = vshrl.u32 %v1351, 16
        %v1822 = vrot.slane %v1820, 1
        %v1823 = vshll.u32 %v1351, 16
        %v1825 = vrot.slane %v1823, 2
        %v1826 = vor.u32 %v1822, %v1825
        %v1827 = vsel %vm1666, %v1817, %v1826
        %v1829 = vshrl.u32 %v1665, 16
        %v1831 = vrot.slane %v1829, 1
        %v1832 = vshll.u32 %v1665, 16
        %v1834 = vrot.slane %v1832, 2
        %v1835 = vor.u32 %v1831, %v1834
        %v1836 = vsel %vm1666, %v1826, %v1835
        %v1838 = vsel %vm452, %v1683, 0
        %v1841 = vsel %vm452, %v1692, 0
        %v1844 = vsel %vm452, %v1701, 0
        %v1847 = vsel %vm452, %v1710, 0
        %v1850 = vsel %vm452, %v1719, 0
        %v1853 = vsel %vm452, %v1728, 0
        %v1856 = vsel %vm452, %v1737, 0
        %v1859 = vsel %vm452, %v1746, 0
        %v1862 = vsel %vm452, %v1755, 0
        %v1865 = vsel %vm452, %v1764, 0
        %v1868 = vsel %vm452, %v1773, 0
        %v1871 = vsel %vm452, %v1782, 0
        %v1874 = vsel %vm452, %v1791, 0
        %v1877 = vsel %vm452, %v1800, 0
        %v1880 = vsel %vm452, %v1809, 0
        %v1883 = vsel %vm452, %v1818, 0
        %v1886 = vsel %vm452, %v1827, 0
        %v1889 = vsel %vm452, %v1836, 0
        %v1892 = vand.u32 %v1662, %v510
        %1894 = vmatprep.subr.bf16.mxu0 0
        %1895 = vmatpush1.bf16.msra.mxu0 %v1892
        %1896 = vmatprep.subr.bf16.mxu0 0
        %1897 = vmatpush1.bf16.msra.mxu0 0
        %1898 = vmatprep.subr.bf16.mxu0 0
        %1899 = vmatpush1.bf16.msra.mxu0 0
        %1900 = vmatprep.subr.bf16.mxu0 0
        %1901 = vmatpush1.bf16.msra.mxu0 0
        %1902 = vmatprep.subr.bf16.mxu0 0
        %1903 = vmatpush1.bf16.msra.mxu0 0
        %1904 = vmatprep.subr.bf16.mxu0 0
        %1905 = vmatpush1.bf16.msra.mxu0 0
        %1906 = vmatprep.subr.bf16.mxu0 0
        %1907 = vmatpush1.bf16.msra.mxu0 0
        %1908 = vmatprep.subr.bf16.mxu0 0
        %1909 = vmatpush1.bf16.msra.mxu0 0
        %1910 = vmatprep.subr.bf16.mxu0 0
        %1911 = vmatpush1.bf16.msra.mxu0 0
        %1912 = vmatprep.subr.bf16.mxu0 0
        %1913 = vmatpush1.bf16.msra.mxu0 0
        %1914 = vmatprep.subr.bf16.mxu0 0
        %1915 = vmatpush1.bf16.msra.mxu0 0
        %1916 = vmatprep.subr.bf16.mxu0 0
        %1917 = vmatpush1.bf16.msra.mxu0 0
        %1918 = vmatprep.subr.bf16.mxu0 0
        %1919 = vmatpush1.bf16.msra.mxu0 0
        %1920 = vmatprep.subr.bf16.mxu0 0
        %1921 = vmatpush1.bf16.msra.mxu0 0
        %1922 = vmatprep.subr.bf16.mxu0 0
        %1923 = vmatpush1.bf16.msra.mxu0 0
        %1924 = vmatprep.subr.bf16.mxu0 0
        %1925 = vmatpush1.bf16.msra.mxu0 0
        %1926 = vmatprep.mubr.bf16.mxu0 0
        %1927 = vmatmul.mubr.bf16.gmra.mrb[0].mxu0 %v1838
        %v1928 = vpop.f32.mrb[0].mxu0
        %v1929 = vadd.f32 0.0, %v1928
        %v1930 = vpop.f32.mrb[0].mxu0
        %v1931 = vpop.f32.mrb[0].mxu0
        %v1932 = vadd.f32 0.0, %v1931
        %v1933 = vpop.f32.mrb[0].mxu0
        %1934 = vmatprep.mubr.bf16.mxu0 0
        %1935 = vmatmul.mubr.bf16.gmra.mrb[0].mxu0 %v1841
        %v1936 = vpop.f32.mrb[0].mxu0
        %v1937 = vadd.f32 0.0, %v1936
        %v1938 = vpop.f32.mrb[0].mxu0
        %v1939 = vpop.f32.mrb[0].mxu0
        %v1940 = vadd.f32 0.0, %v1939
        %v1941 = vpop.f32.mrb[0].mxu0
        %1942 = vmatprep.mubr.bf16.mxu0 0
        %1943 = vmatmul.mubr.bf16.gmra.mrb[0].mxu0 %v1844
        %v1944 = vpop.f32.mrb[0].mxu0
        %v1945 = vadd.f32 0.0, %v1944
        %v1946 = vpop.f32.mrb[0].mxu0
        %v1947 = vpop.f32.mrb[0].mxu0
        %v1948 = vadd.f32 0.0, %v1947
        %v1949 = vpop.f32.mrb[0].mxu0
        %1950 = vmatprep.mubr.bf16.mxu0 0
        %1951 = vmatmul.mubr.bf16.gmra.mrb[0].mxu0 %v1847
        %v1952 = vpop.f32.mrb[0].mxu0
        %v1953 = vadd.f32 0.0, %v1952
        %v1954 = vpop.f32.mrb[0].mxu0
        %v1955 = vpop.f32.mrb[0].mxu0
        %v1956 = vadd.f32 0.0, %v1955
        %v1957 = vpop.f32.mrb[0].mxu0
        %1958 = vmatprep.mubr.bf16.mxu0 0
        %1959 = vmatmul.mubr.bf16.gmra.mrb[0].mxu0 %v1850
        %v1960 = vpop.f32.mrb[0].mxu0
        %v1961 = vadd.f32 0.0, %v1960
        %v1962 = vpop.f32.mrb[0].mxu0
        %v1963 = vpop.f32.mrb[0].mxu0
        %v1964 = vadd.f32 0.0, %v1963
        %v1965 = vpop.f32.mrb[0].mxu0
        %1966 = vmatprep.mubr.bf16.mxu0 0
        %1967 = vmatmul.mubr.bf16.gmra.mrb[0].mxu0 %v1853
        %v1968 = vpop.f32.mrb[0].mxu0
        %v1969 = vadd.f32 0.0, %v1968
        %v1970 = vpop.f32.mrb[0].mxu0
        %v1971 = vpop.f32.mrb[0].mxu0
        %v1972 = vadd.f32 0.0, %v1971
        %v1973 = vpop.f32.mrb[0].mxu0
        %1974 = vmatprep.mubr.bf16.mxu0 0
        %1975 = vmatmul.mubr.bf16.gmra.mrb[0].mxu0 %v1856
        %v1976 = vpop.f32.mrb[0].mxu0
        %v1977 = vadd.f32 0.0, %v1976
        %v1978 = vpop.f32.mrb[0].mxu0
        %v1979 = vpop.f32.mrb[0].mxu0
        %v1980 = vadd.f32 0.0, %v1979
        %v1981 = vpop.f32.mrb[0].mxu0
        %1982 = vmatprep.mubr.bf16.mxu0 0
        %1983 = vmatmul.mubr.bf16.gmra.mrb[0].mxu0 %v1859
        %v1984 = vpop.f32.mrb[0].mxu0
        %v1985 = vadd.f32 0.0, %v1984
        %v1986 = vpop.f32.mrb[0].mxu0
        %v1987 = vpop.f32.mrb[0].mxu0
        %v1988 = vadd.f32 0.0, %v1987
        %v1989 = vpop.f32.mrb[0].mxu0
        %1990 = vmatprep.mubr.bf16.mxu0 0
        %1991 = vmatmul.mubr.bf16.gmra.mrb[0].mxu0 %v1862
        %v1992 = vpop.f32.mrb[0].mxu0
        %v1993 = vadd.f32 0.0, %v1992
        %v1994 = vpop.f32.mrb[0].mxu0
        %v1995 = vpop.f32.mrb[0].mxu0
        %v1996 = vadd.f32 0.0, %v1995
        %v1997 = vpop.f32.mrb[0].mxu0
        %1998 = vmatprep.mubr.bf16.mxu0 0
        %1999 = vmatmul.mubr.bf16.gmra.mrb[0].mxu0 %v1865
        %v2000 = vpop.f32.mrb[0].mxu0
        %v2001 = vadd.f32 0.0, %v2000
        %v2002 = vpop.f32.mrb[0].mxu0
        %v2003 = vpop.f32.mrb[0].mxu0
        %v2004 = vadd.f32 0.0, %v2003
        %v2005 = vpop.f32.mrb[0].mxu0
        %2006 = vmatprep.mubr.bf16.mxu0 0
        %2007 = vmatmul.mubr.bf16.gmra.mrb[0].mxu0 %v1868
        %v2008 = vpop.f32.mrb[0].mxu0
        %v2009 = vadd.f32 0.0, %v2008
        %v2010 = vpop.f32.mrb[0].mxu0
        %v2011 = vpop.f32.mrb[0].mxu0
        %v2012 = vadd.f32 0.0, %v2011
        %v2013 = vpop.f32.mrb[0].mxu0
        %2014 = vmatprep.mubr.bf16.mxu0 0
        %2015 = vmatmul.mubr.bf16.gmra.mrb[0].mxu0 %v1871
        %v2016 = vpop.f32.mrb[0].mxu0
        %v2017 = vadd.f32 0.0, %v2016
        %v2018 = vpop.f32.mrb[0].mxu0
        %v2019 = vpop.f32.mrb[0].mxu0
        %v2020 = vadd.f32 0.0, %v2019
        %v2021 = vpop.f32.mrb[0].mxu0
        %2022 = vmatprep.mubr.bf16.mxu0 0
        %2023 = vmatmul.mubr.bf16.gmra.mrb[0].mxu0 %v1874
        %v2024 = vpop.f32.mrb[0].mxu0
        %v2025 = vadd.f32 0.0, %v2024
        %v2026 = vpop.f32.mrb[0].mxu0
        %v2027 = vpop.f32.mrb[0].mxu0
        %v2028 = vadd.f32 0.0, %v2027
        %v2029 = vpop.f32.mrb[0].mxu0
        %2030 = vmatprep.mubr.bf16.mxu0 0
        %2031 = vmatmul.mubr.bf16.gmra.mrb[0].mxu0 %v1877
        %v2032 = vpop.f32.mrb[0].mxu0
        %v2033 = vadd.f32 0.0, %v2032
        %v2034 = vpop.f32.mrb[0].mxu0
        %v2035 = vpop.f32.mrb[0].mxu0
        %v2036 = vadd.f32 0.0, %v2035
        %v2037 = vpop.f32.mrb[0].mxu0
        %2038 = vmatprep.mubr.bf16.mxu0 0
        %2039 = vmatmul.mubr.bf16.gmra.mrb[0].mxu0 %v1880
        %v2040 = vpop.f32.mrb[0].mxu0
        %v2041 = vadd.f32 0.0, %v2040
        %v2042 = vpop.f32.mrb[0].mxu0
        %v2043 = vpop.f32.mrb[0].mxu0
        %v2044 = vadd.f32 0.0, %v2043
        %v2045 = vpop.f32.mrb[0].mxu0
        %2046 = vmatprep.mubr.bf16.mxu0 0
        %2047 = vmatmul.mubr.bf16.gmra.mrb[0].mxu0 %v1883
        %v2048 = vpop.f32.mrb[0].mxu0
        %v2049 = vadd.f32 0.0, %v2048
        %v2050 = vpop.f32.mrb[0].mxu0
        %v2051 = vpop.f32.mrb[0].mxu0
        %v2052 = vadd.f32 0.0, %v2051
        %v2053 = vpop.f32.mrb[0].mxu0
        %2054 = vmatprep.mubr.bf16.mxu0 0
        %2055 = vmatmul.mubr.bf16.gmra.mrb[0].mxu0 %v1886
        %v2056 = vpop.f32.mrb[0].mxu0
        %v2057 = vadd.f32 0.0, %v2056
        %v2058 = vpop.f32.mrb[0].mxu0
        %v2059 = vpop.f32.mrb[0].mxu0
        %v2060 = vadd.f32 0.0, %v2059
        %v2061 = vpop.f32.mrb[0].mxu0
        %2062 = vmatprep.mubr.bf16.mxu0 0
        %2063 = vmatmul.mubr.bf16.gmra.mrb[0].mxu0 %v1889
        %v2064 = vpop.f32.mrb[0].mxu0
        %v2065 = vadd.f32 0.0, %v2064
        %v2066 = vpop.f32.mrb[0].mxu0
        %v2067 = vpop.f32.mrb[0].mxu0
        %v2068 = vadd.f32 0.0, %v2067
        %v2069 = vpop.f32.mrb[0].mxu0
        %2070 = vdwg.mxu0
        %v2071 = vadd.f32 %v1624, %v1929
        %v2072 = vadd.f32 %v1625, %v1932
        %v2073 = vadd.f32 %v1626, %v1937
        %v2074 = vadd.f32 %v1627, %v1940
        %v2075 = vadd.f32 %v1628, %v1945
        %v2076 = vadd.f32 %v1629, %v1948
        %v2077 = vadd.f32 %v1630, %v1953
        %v2078 = vadd.f32 %v1631, %v1956
        %v2079 = vadd.f32 %v1632, %v1961
        %v2080 = vadd.f32 %v1633, %v1964
        %v2081 = vadd.f32 %v1634, %v1969
        %v2082 = vadd.f32 %v1635, %v1972
        %v2083 = vadd.f32 %v1636, %v1977
        %v2084 = vadd.f32 %v1637, %v1980
        %v2085 = vadd.f32 %v1638, %v1985
        %v2086 = vadd.f32 %v1639, %v1988
        %v2087 = vadd.f32 %v1640, %v1993
        %v2088 = vadd.f32 %v1641, %v1996
        %v2089 = vadd.f32 %v1642, %v2001
        %v2090 = vadd.f32 %v1643, %v2004
        %v2091 = vadd.f32 %v1644, %v2009
        %v2092 = vadd.f32 %v1645, %v2012
        %v2093 = vadd.f32 %v1646, %v2017
        %v2094 = vadd.f32 %v1647, %v2020
        %v2095 = vadd.f32 %v1648, %v2025
        %v2096 = vadd.f32 %v1649, %v2028
        %v2097 = vadd.f32 %v1650, %v2033
        %v2098 = vadd.f32 %v1651, %v2036
        %v2099 = vadd.f32 %v1652, %v2041
        %v2100 = vadd.f32 %v1653, %v2044
        %v2101 = vadd.f32 %v1654, %v2049
        %v2102 = vadd.f32 %v1655, %v2052
        %v2103 = vadd.f32 %v1656, %v2057
        %v2104 = vadd.f32 %v1657, %v2060
        %v2105 = vadd.f32 %v1658, %v2065
        %v2106 = vadd.f32 %v1659, %v2068
        %v2107 = vld [vmem:[%s168 + $0x8] sm:$0xc]
        %s2108 = scalar_lea.vmem %s1, 10
        %v2109 = vld [vmem:[%s2108] sm:$0x3]
        %v2111 = vunpack.c.l.b16 %v2107
        %v2112 = vpack.c.b16 %v1298, %v2111
        %vm2113 = vcmask 1045504
        %v2114 = vrot.slane %v2112, 2
        %v2115 = vrot.slane %v1335, 2
        %v2116 = vsel %vm2113, %v2114, %v2115
        %v2117 = vrot.slane %v1336, 2
        %v2118 = vsel %vm2113, %v2115, %v2117
        %v2119 = vrot.slane %v1337, 2
        %v2120 = vsel %vm2113, %v2117, %v2119
        %v2121 = vrot.slane %v1338, 2
        %v2122 = vsel %vm2113, %v2119, %v2121
        %v2123 = vrot.slane %v1339, 2
        %v2124 = vsel %vm2113, %v2121, %v2123
        %v2125 = vrot.slane %v1340, 2
        %v2126 = vsel %vm2113, %v2123, %v2125
        %v2127 = vrot.slane %v1341, 2
        %v2128 = vsel %vm2113, %v2125, %v2127
        %v2129 = vrot.slane %v1342, 2
        %v2130 = vsel %vm2113, %v2127, %v2129
        %v2131 = vrot.slane %v1343, 2
        %v2132 = vsel %vm2113, %v2129, %v2131
        %v2133 = vrot.slane %v1344, 2
        %v2134 = vsel %vm2113, %v2131, %v2133
        %v2135 = vrot.slane %v1345, 2
        %v2136 = vsel %vm2113, %v2133, %v2135
        %v2137 = vrot.slane %v1346, 2
        %v2138 = vsel %vm2113, %v2135, %v2137
        %v2139 = vrot.slane %v1347, 2
        %v2140 = vsel %vm2113, %v2137, %v2139
        %v2141 = vrot.slane %v1348, 2
        %v2142 = vsel %vm2113, %v2139, %v2141
        %v2143 = vrot.slane %v1349, 2
        %v2144 = vsel %vm2113, %v2141, %v2143
        %v2145 = vrot.slane %v1350, 2
        %v2146 = vsel %vm2113, %v2143, %v2145
        %v2147 = vrot.slane %v1351, 2
        %v2148 = vsel %vm2113, %v2145, %v2147
        %v2149 = vrot.slane %v1665, 2
        %v2150 = vsel %vm2113, %v2147, %v2149
        %v2152 = vsel %vm452, %v2116, 0
        %v2155 = vsel %vm452, %v2118, 0
        %v2158 = vsel %vm452, %v2120, 0
        %v2161 = vsel %vm452, %v2122, 0
        %v2164 = vsel %vm452, %v2124, 0
        %v2167 = vsel %vm452, %v2126, 0
        %v2170 = vsel %vm452, %v2128, 0
        %v2173 = vsel %vm452, %v2130, 0
        %v2176 = vsel %vm452, %v2132, 0
        %v2179 = vsel %vm452, %v2134, 0
        %v2182 = vsel %vm452, %v2136, 0
        %v2185 = vsel %vm452, %v2138, 0
        %v2188 = vsel %vm452, %v2140, 0
        %v2191 = vsel %vm452, %v2142, 0
        %v2194 = vsel %vm452, %v2144, 0
        %v2197 = vsel %vm452, %v2146, 0
        %v2200 = vsel %vm452, %v2148, 0
        %v2203 = vsel %vm452, %v2150, 0
        %v2206 = vand.u32 %v2109, %v510
        %2208 = vmatprep.subr.bf16.mxu0 0
        %2209 = vmatpush1.bf16.msra.mxu0 %v2206
        %2210 = vmatprep.subr.bf16.mxu0 0
        %2211 = vmatpush1.bf16.msra.mxu0 0
        %2212 = vmatprep.subr.bf16.mxu0 0
        %2213 = vmatpush1.bf16.msra.mxu0 0
        %2214 = vmatprep.subr.bf16.mxu0 0
        %2215 = vmatpush1.bf16.msra.mxu0 0
        %2216 = vmatprep.subr.bf16.mxu0 0
        %2217 = vmatpush1.bf16.msra.mxu0 0
        %2218 = vmatprep.subr.bf16.mxu0 0
        %2219 = vmatpush1.bf16.msra.mxu0 0
        %2220 = vmatprep.subr.bf16.mxu0 0
        %2221 = vmatpush1.bf16.msra.mxu0 0
        %2222 = vmatprep.subr.bf16.mxu0 0
        %2223 = vmatpush1.bf16.msra.mxu0 0
        %2224 = vmatprep.subr.bf16.mxu0 0
        %2225 = vmatpush1.bf16.msra.mxu0 0
        %2226 = vmatprep.subr.bf16.mxu0 0
        %2227 = vmatpush1.bf16.msra.mxu0 0
        %2228 = vmatprep.subr.bf16.mxu0 0
        %2229 = vmatpush1.bf16.msra.mxu0 0
        %2230 = vmatprep.subr.bf16.mxu0 0
        %2231 = vmatpush1.bf16.msra.mxu0 0
        %2232 = vmatprep.subr.bf16.mxu0 0
        %2233 = vmatpush1.bf16.msra.mxu0 0
        %2234 = vmatprep.subr.bf16.mxu0 0
        %2235 = vmatpush1.bf16.msra.mxu0 0
        %2236 = vmatprep.subr.bf16.mxu0 0
        %2237 = vmatpush1.bf16.msra.mxu0 0
        %2238 = vmatprep.subr.bf16.mxu0 0
        %2239 = vmatpush1.bf16.msra.mxu0 0
        %2240 = vmatprep.mubr.bf16.mxu0 0
        %2241 = vmatmul.mubr.bf16.gmra.mrb[0].mxu0 %v2152
        %v2242 = vpop.f32.mrb[0].mxu0
        %v2243 = vadd.f32 0.0, %v2242
        %v2244 = vpop.f32.mrb[0].mxu0
        %v2245 = vpop.f32.mrb[0].mxu0
        %v2246 = vadd.f32 0.0, %v2245
        %v2247 = vpop.f32.mrb[0].mxu0
        %2248 = vmatprep.mubr.bf16.mxu0 0
        %2249 = vmatmul.mubr.bf16.gmra.mrb[0].mxu0 %v2155
        %v2250 = vpop.f32.mrb[0].mxu0
        %v2251 = vadd.f32 0.0, %v2250
        %v2252 = vpop.f32.mrb[0].mxu0
        %v2253 = vpop.f32.mrb[0].mxu0
        %v2254 = vadd.f32 0.0, %v2253
        %v2255 = vpop.f32.mrb[0].mxu0
        %2256 = vmatprep.mubr.bf16.mxu0 0
        %2257 = vmatmul.mubr.bf16.gmra.mrb[0].mxu0 %v2158
        %v2258 = vpop.f32.mrb[0].mxu0
        %v2259 = vadd.f32 0.0, %v2258
        %v2260 = vpop.f32.mrb[0].mxu0
        %v2261 = vpop.f32.mrb[0].mxu0
        %v2262 = vadd.f32 0.0, %v2261
        %v2263 = vpop.f32.mrb[0].mxu0
        %2264 = vmatprep.mubr.bf16.mxu0 0
        %2265 = vmatmul.mubr.bf16.gmra.mrb[0].mxu0 %v2161
        %v2266 = vpop.f32.mrb[0].mxu0
        %v2267 = vadd.f32 0.0, %v2266
        %v2268 = vpop.f32.mrb[0].mxu0
        %v2269 = vpop.f32.mrb[0].mxu0
        %v2270 = vadd.f32 0.0, %v2269
        %v2271 = vpop.f32.mrb[0].mxu0
        %2272 = vmatprep.mubr.bf16.mxu0 0
        %2273 = vmatmul.mubr.bf16.gmra.mrb[0].mxu0 %v2164
        %v2274 = vpop.f32.mrb[0].mxu0
        %v2275 = vadd.f32 0.0, %v2274
        %v2276 = vpop.f32.mrb[0].mxu0
        %v2277 = vpop.f32.mrb[0].mxu0
        %v2278 = vadd.f32 0.0, %v2277
        %v2279 = vpop.f32.mrb[0].mxu0
        %2280 = vmatprep.mubr.bf16.mxu0 0
        %2281 = vmatmul.mubr.bf16.gmra.mrb[0].mxu0 %v2167
        %v2282 = vpop.f32.mrb[0].mxu0
        %v2283 = vadd.f32 0.0, %v2282
        %v2284 = vpop.f32.mrb[0].mxu0
        %v2285 = vpop.f32.mrb[0].mxu0
        %v2286 = vadd.f32 0.0, %v2285
        %v2287 = vpop.f32.mrb[0].mxu0
        %2288 = vmatprep.mubr.bf16.mxu0 0
        %2289 = vmatmul.mubr.bf16.gmra.mrb[0].mxu0 %v2170
        %v2290 = vpop.f32.mrb[0].mxu0
        %v2291 = vadd.f32 0.0, %v2290
        %v2292 = vpop.f32.mrb[0].mxu0
        %v2293 = vpop.f32.mrb[0].mxu0
        %v2294 = vadd.f32 0.0, %v2293
        %v2295 = vpop.f32.mrb[0].mxu0
        %2296 = vmatprep.mubr.bf16.mxu0 0
        %2297 = vmatmul.mubr.bf16.gmra.mrb[0].mxu0 %v2173
        %v2298 = vpop.f32.mrb[0].mxu0
        %v2299 = vadd.f32 0.0, %v2298
        %v2300 = vpop.f32.mrb[0].mxu0
        %v2301 = vpop.f32.mrb[0].mxu0
        %v2302 = vadd.f32 0.0, %v2301
        %v2303 = vpop.f32.mrb[0].mxu0
        %2304 = vmatprep.mubr.bf16.mxu0 0
        %2305 = vmatmul.mubr.bf16.gmra.mrb[0].mxu0 %v2176
        %v2306 = vpop.f32.mrb[0].mxu0
        %v2307 = vadd.f32 0.0, %v2306
        %v2308 = vpop.f32.mrb[0].mxu0
        %v2309 = vpop.f32.mrb[0].mxu0
        %v2310 = vadd.f32 0.0, %v2309
        %v2311 = vpop.f32.mrb[0].mxu0
        %2312 = vmatprep.mubr.bf16.mxu0 0
        %2313 = vmatmul.mubr.bf16.gmra.mrb[0].mxu0 %v2179
        %v2314 = vpop.f32.mrb[0].mxu0
        %v2315 = vadd.f32 0.0, %v2314
        %v2316 = vpop.f32.mrb[0].mxu0
        %v2317 = vpop.f32.mrb[0].mxu0
        %v2318 = vadd.f32 0.0, %v2317
        %v2319 = vpop.f32.mrb[0].mxu0
        %2320 = vmatprep.mubr.bf16.mxu0 0
        %2321 = vmatmul.mubr.bf16.gmra.mrb[0].mxu0 %v2182
        %v2322 = vpop.f32.mrb[0].mxu0
        %v2323 = vadd.f32 0.0, %v2322
        %v2324 = vpop.f32.mrb[0].mxu0
        %v2325 = vpop.f32.mrb[0].mxu0
        %v2326 = vadd.f32 0.0, %v2325
        %v2327 = vpop.f32.mrb[0].mxu0
        %2328 = vmatprep.mubr.bf16.mxu0 0
        %2329 = vmatmul.mubr.bf16.gmra.mrb[0].mxu0 %v2185
        %v2330 = vpop.f32.mrb[0].mxu0
        %v2331 = vadd.f32 0.0, %v2330
        %v2332 = vpop.f32.mrb[0].mxu0
        %v2333 = vpop.f32.mrb[0].mxu0
        %v2334 = vadd.f32 0.0, %v2333
        %v2335 = vpop.f32.mrb[0].mxu0
        %2336 = vmatprep.mubr.bf16.mxu0 0
        %2337 = vmatmul.mubr.bf16.gmra.mrb[0].mxu0 %v2188
        %v2338 = vpop.f32.mrb[0].mxu0
        %v2339 = vadd.f32 0.0, %v2338
        %v2340 = vpop.f32.mrb[0].mxu0
        %v2341 = vpop.f32.mrb[0].mxu0
        %v2342 = vadd.f32 0.0, %v2341
        %v2343 = vpop.f32.mrb[0].mxu0
        %2344 = vmatprep.mubr.bf16.mxu0 0
        %2345 = vmatmul.mubr.bf16.gmra.mrb[0].mxu0 %v2191
        %v2346 = vpop.f32.mrb[0].mxu0
        %v2347 = vadd.f32 0.0, %v2346
        %v2348 = vpop.f32.mrb[0].mxu0
        %v2349 = vpop.f32.mrb[0].mxu0
        %v2350 = vadd.f32 0.0, %v2349
        %v2351 = vpop.f32.mrb[0].mxu0
        %2352 = vmatprep.mubr.bf16.mxu0 0
        %2353 = vmatmul.mubr.bf16.gmra.mrb[0].mxu0 %v2194
        %v2354 = vpop.f32.mrb[0].mxu0
        %v2355 = vadd.f32 0.0, %v2354
        %v2356 = vpop.f32.mrb[0].mxu0
        %v2357 = vpop.f32.mrb[0].mxu0
        %v2358 = vadd.f32 0.0, %v2357
        %v2359 = vpop.f32.mrb[0].mxu0
        %2360 = vmatprep.mubr.bf16.mxu0 0
        %2361 = vmatmul.mubr.bf16.gmra.mrb[0].mxu0 %v2197
        %v2362 = vpop.f32.mrb[0].mxu0
        %v2363 = vadd.f32 0.0, %v2362
        %v2364 = vpop.f32.mrb[0].mxu0
        %v2365 = vpop.f32.mrb[0].mxu0
        %v2366 = vadd.f32 0.0, %v2365
        %v2367 = vpop.f32.mrb[0].mxu0
        %2368 = vmatprep.mubr.bf16.mxu0 0
        %2369 = vmatmul.mubr.bf16.gmra.mrb[0].mxu0 %v2200
        %v2370 = vpop.f32.mrb[0].mxu0
        %v2371 = vadd.f32 0.0, %v2370
        %v2372 = vpop.f32.mrb[0].mxu0
        %v2373 = vpop.f32.mrb[0].mxu0
        %v2374 = vadd.f32 0.0, %v2373
        %v2375 = vpop.f32.mrb[0].mxu0
        %2376 = vmatprep.mubr.bf16.mxu0 0
        %2377 = vmatmul.mubr.bf16.gmra.mrb[0].mxu0 %v2203
        %v2378 = vpop.f32.mrb[0].mxu0
        %v2379 = vadd.f32 0.0, %v2378
        %v2380 = vpop.f32.mrb[0].mxu0
        %v2381 = vpop.f32.mrb[0].mxu0
        %v2382 = vadd.f32 0.0, %v2381
        %v2383 = vpop.f32.mrb[0].mxu0
        %2384 = vdwg.mxu0
        %v2385 = vadd.f32 %v2071, %v2243
        %v2386 = vadd.f32 %v2072, %v2246
        %v2387 = vadd.f32 %v2073, %v2251
        %v2388 = vadd.f32 %v2074, %v2254
        %v2389 = vadd.f32 %v2075, %v2259
        %v2390 = vadd.f32 %v2076, %v2262
        %v2391 = vadd.f32 %v2077, %v2267
        %v2392 = vadd.f32 %v2078, %v2270
        %v2393 = vadd.f32 %v2079, %v2275
        %v2394 = vadd.f32 %v2080, %v2278
        %v2395 = vadd.f32 %v2081, %v2283
        %v2396 = vadd.f32 %v2082, %v2286
        %v2397 = vadd.f32 %v2083, %v2291
        %v2398 = vadd.f32 %v2084, %v2294
        %v2399 = vadd.f32 %v2085, %v2299
        %v2400 = vadd.f32 %v2086, %v2302
        %v2401 = vadd.f32 %v2087, %v2307
        %v2402 = vadd.f32 %v2088, %v2310
        %v2403 = vadd.f32 %v2089, %v2315
        %v2404 = vadd.f32 %v2090, %v2318
        %v2405 = vadd.f32 %v2091, %v2323
        %v2406 = vadd.f32 %v2092, %v2326
        %v2407 = vadd.f32 %v2093, %v2331
        %v2408 = vadd.f32 %v2094, %v2334
        %v2409 = vadd.f32 %v2095, %v2339
        %v2410 = vadd.f32 %v2096, %v2342
        %v2411 = vadd.f32 %v2097, %v2347
        %v2412 = vadd.f32 %v2098, %v2350
        %v2413 = vadd.f32 %v2099, %v2355
        %v2414 = vadd.f32 %v2100, %v2358
        %v2415 = vadd.f32 %v2101, %v2363
        %v2416 = vadd.f32 %v2102, %v2366
        %v2417 = vadd.f32 %v2103, %v2371
        %v2418 = vadd.f32 %v2104, %v2374
        %v2419 = vadd.f32 %v2105, %v2379
        %v2420 = vadd.f32 %v2106, %v2382
        %v2421 = vld [vmem:[%s168 + $0x10] sm:$0xc]
        %v2422 = vld [vmem:[%s168 + $0x14] sm:$0xf]
        %v2423 = vld [vmem:[%s168 + $0x18] sm:$0xf]
        %v2424 = vld [vmem:[%s168 + $0x1c] sm:$0xf]
        %v2425 = vld [vmem:[%s168 + $0x20] sm:$0xf]
        %v2426 = vld [vmem:[%s168 + $0x24] sm:$0xf]
        %v2427 = vld [vmem:[%s168 + $0x28] sm:$0xf]
        %v2428 = vld [vmem:[%s168 + $0x2c] sm:$0xf]
        %v2429 = vld [vmem:[%s168 + $0x30] sm:$0xf]
        %v2430 = vld [vmem:[%s168 + $0x34] sm:$0xf]
        %v2431 = vld [vmem:[%s168 + $0x38] sm:$0xf]
        %v2432 = vld [vmem:[%s168 + $0x3c] sm:$0xf]
        %v2433 = vld [vmem:[%s168 + $0x40] sm:$0xf]
        %v2434 = vld [vmem:[%s168 + $0x44] sm:$0xf]
        %v2435 = vld [vmem:[%s168 + $0x48] sm:$0xf]
        %v2436 = vld [vmem:[%s168 + $0x4c] sm:$0xf]
        %v2437 = vld [vmem:[%s168 + $0x50] sm:$0xf]
        %v2438 = vld [vmem:[%s168 + $0x54] sm:$0xf]
        %v2439 = vld [vmem:[%s168 + $0x58] sm:$0xf]
        %v2440 = vld [vmem:[%s168 + $0x5c] sm:$0xf]
        %v2441 = vld [vmem:[%s168 + $0x60] sm:$0xf]
        %v2442 = vld [vmem:[%s168 + $0x64] sm:$0xf]
        %v2443 = vld [vmem:[%s168 + $0x68] sm:$0xf]
        %v2444 = vld [vmem:[%s168 + $0x6c] sm:$0xf]
        %v2445 = vld [vmem:[%s168 + $0x70] sm:$0xf]
        %v2446 = vld [vmem:[%s168 + $0x74] sm:$0xf]
        %v2447 = vld [vmem:[%s168 + $0x78] sm:$0xf]
        %v2448 = vld [vmem:[%s168 + $0x7c] sm:$0xf]
        %v2449 = vld [vmem:[%s168 + $0x80] sm:$0xf]
        %v2450 = vld [vmem:[%s168 + $0x84] sm:$0xf]
        %v2451 = vld [vmem:[%s168 + $0x88] sm:$0xf]
        %v2452 = vld [vmem:[%s168 + $0x8c] sm:$0xf]
        %v2453 = vld [vmem:[%s168 + $0x90] sm:$0xf]
        %v2454 = vld [vmem:[%s168 + $0x94] sm:$0xf]
        %v2455 = vld [vmem:[%s168 + $0x98] sm:$0xf]
        %v2456 = vld [vmem:[%s168 + $0x9c] sm:$0xf]
        %v2457 = vld [vmem:[%s168 + $0xa0] sm:$0x3]
        %s2458 = scalar_lea.vmem %s1, 12
        %v2459 = vld [vmem:[%s2458] sm:$0x3]
        %v2497 = vunpack.c.l.b16 %v2421
        %v2498 = vunpack.c.l.b16 %v2422
        %v2499 = vunpack.c.l.b16 %v2423
        %v2500 = vunpack.c.l.b16 %v2424
        %v2501 = vunpack.c.l.b16 %v2425
        %v2502 = vunpack.c.l.b16 %v2426
        %v2503 = vunpack.c.l.b16 %v2427
        %v2504 = vunpack.c.l.b16 %v2428
        %v2505 = vunpack.c.l.b16 %v2429
        %v2506 = vunpack.c.l.b16 %v2430
        %v2507 = vunpack.c.l.b16 %v2431
        %v2508 = vunpack.c.l.b16 %v2432
        %v2509 = vunpack.c.l.b16 %v2433
        %v2510 = vunpack.c.l.b16 %v2434
        %v2511 = vunpack.c.l.b16 %v2435
        %v2512 = vunpack.c.l.b16 %v2436
        %v2513 = vunpack.c.l.b16 %v2437
        %v2514 = vunpack.c.l.b16 %v2438
        %v2515 = vunpack.c.l.b16 %v2439
        %v2516 = vunpack.c.l.b16 %v2440
        %v2517 = vunpack.c.l.b16 %v2441
        %v2518 = vunpack.c.l.b16 %v2442
        %v2519 = vunpack.c.l.b16 %v2443
        %v2520 = vunpack.c.l.b16 %v2444
        %v2521 = vunpack.c.l.b16 %v2445
        %v2522 = vunpack.c.l.b16 %v2446
        %v2523 = vunpack.c.l.b16 %v2447
        %v2524 = vunpack.c.l.b16 %v2448
        %v2525 = vunpack.c.l.b16 %v2449
        %v2526 = vunpack.c.l.b16 %v2450
        %v2527 = vunpack.c.l.b16 %v2451
        %v2528 = vunpack.c.l.b16 %v2452
        %v2529 = vunpack.c.l.b16 %v2453
        %v2530 = vunpack.c.l.b16 %v2454
        %v2531 = vunpack.c.l.b16 %v2455
        %v2532 = vunpack.c.l.b16 %v2456
        %v2533 = vunpack.c.l.b16 %v2457
        %v2534 = vpack.c.b16 %v2498, %v2497
        %v2535 = vpack.c.b16 %v2500, %v2499
        %v2536 = vpack.c.b16 %v2502, %v2501
        %v2537 = vpack.c.b16 %v2504, %v2503
        %v2538 = vpack.c.b16 %v2506, %v2505
        %v2539 = vpack.c.b16 %v2508, %v2507
        %v2540 = vpack.c.b16 %v2510, %v2509
        %v2541 = vpack.c.b16 %v2512, %v2511
        %v2542 = vpack.c.b16 %v2514, %v2513
        %v2543 = vpack.c.b16 %v2516, %v2515
        %v2544 = vpack.c.b16 %v2518, %v2517
        %v2545 = vpack.c.b16 %v2520, %v2519
        %v2546 = vpack.c.b16 %v2522, %v2521
        %v2547 = vpack.c.b16 %v2524, %v2523
        %v2548 = vpack.c.b16 %v2526, %v2525
        %v2549 = vpack.c.b16 %v2528, %v2527
        %v2550 = vpack.c.b16 %v2530, %v2529
        %v2551 = vpack.c.b16 %v2532, %v2531
        %v2552 = vpack.c.b16 %v2533, %v2533
        %v2553 = vrot.slane %v2534, 2
        %v2554 = vrot.slane %v2535, 2
        %v2555 = vsel %vm2113, %v2553, %v2554
        %v2556 = vrot.slane %v2536, 2
        %v2557 = vsel %vm2113, %v2554, %v2556
        %v2558 = vrot.slane %v2537, 2
        %v2559 = vsel %vm2113, %v2556, %v2558
        %v2560 = vrot.slane %v2538, 2
        %v2561 = vsel %vm2113, %v2558, %v2560
        %v2562 = vrot.slane %v2539, 2
        %v2563 = vsel %vm2113, %v2560, %v2562
        %v2564 = vrot.slane %v2540, 2
        %v2565 = vsel %vm2113, %v2562, %v2564
        %v2566 = vrot.slane %v2541, 2
        %v2567 = vsel %vm2113, %v2564, %v2566
        %v2568 = vrot.slane %v2542, 2
        %v2569 = vsel %vm2113, %v2566, %v2568
        %v2570 = vrot.slane %v2543, 2
        %v2571 = vsel %vm2113, %v2568, %v2570
        %v2572 = vrot.slane %v2544, 2
        %v2573 = vsel %vm2113, %v2570, %v2572
        %v2574 = vrot.slane %v2545, 2
        %v2575 = vsel %vm2113, %v2572, %v2574
        %v2576 = vrot.slane %v2546, 2
        %v2577 = vsel %vm2113, %v2574, %v2576
        %v2578 = vrot.slane %v2547, 2
        %v2579 = vsel %vm2113, %v2576, %v2578
        %v2580 = vrot.slane %v2548, 2
        %v2581 = vsel %vm2113, %v2578, %v2580
        %v2582 = vrot.slane %v2549, 2
        %v2583 = vsel %vm2113, %v2580, %v2582
        %v2584 = vrot.slane %v2550, 2
        %v2585 = vsel %vm2113, %v2582, %v2584
        %v2586 = vrot.slane %v2551, 2
        %v2587 = vsel %vm2113, %v2584, %v2586
        %v2588 = vrot.slane %v2552, 2
        %v2589 = vsel %vm2113, %v2586, %v2588
        %v2591 = vsel %vm452, %v2555, 0
        %v2594 = vsel %vm452, %v2557, 0
        %v2597 = vsel %vm452, %v2559, 0
        %v2600 = vsel %vm452, %v2561, 0
        %v2603 = vsel %vm452, %v2563, 0
        %v2606 = vsel %vm452, %v2565, 0
        %v2609 = vsel %vm452, %v2567, 0
        %v2612 = vsel %vm452, %v2569, 0
        %v2615 = vsel %vm452, %v2571, 0
        %v2618 = vsel %vm452, %v2573, 0
        %v2621 = vsel %vm452, %v2575, 0
        %v2624 = vsel %vm452, %v2577, 0
        %v2627 = vsel %vm452, %v2579, 0
        %v2630 = vsel %vm452, %v2581, 0
        %v2633 = vsel %vm452, %v2583, 0
        %v2636 = vsel %vm452, %v2585, 0
        %v2639 = vsel %vm452, %v2587, 0
        %v2642 = vsel %vm452, %v2589, 0
        %v2645 = vand.u32 %v2459, %v510
        %2647 = vmatprep.subr.bf16.mxu0 0
        %2648 = vmatpush1.bf16.msra.mxu0 %v2645
        %2649 = vmatprep.subr.bf16.mxu0 0
        %2650 = vmatpush1.bf16.msra.mxu0 0
        %2651 = vmatprep.subr.bf16.mxu0 0
        %2652 = vmatpush1.bf16.msra.mxu0 0
        %2653 = vmatprep.subr.bf16.mxu0 0
        %2654 = vmatpush1.bf16.msra.mxu0 0
        %2655 = vmatprep.subr.bf16.mxu0 0
        %2656 = vmatpush1.bf16.msra.mxu0 0
        %2657 = vmatprep.subr.bf16.mxu0 0
        %2658 = vmatpush1.bf16.msra.mxu0 0
        %2659 = vmatprep.subr.bf16.mxu0 0
        %2660 = vmatpush1.bf16.msra.mxu0 0
        %2661 = vmatprep.subr.bf16.mxu0 0
        %2662 = vmatpush1.bf16.msra.mxu0 0
        %2663 = vmatprep.subr.bf16.mxu0 0
        %2664 = vmatpush1.bf16.msra.mxu0 0
        %2665 = vmatprep.subr.bf16.mxu0 0
        %2666 = vmatpush1.bf16.msra.mxu0 0
        %2667 = vmatprep.subr.bf16.mxu0 0
        %2668 = vmatpush1.bf16.msra.mxu0 0
        %2669 = vmatprep.subr.bf16.mxu0 0
        %2670 = vmatpush1.bf16.msra.mxu0 0
        %2671 = vmatprep.subr.bf16.mxu0 0
        %2672 = vmatpush1.bf16.msra.mxu0 0
        %2673 = vmatprep.subr.bf16.mxu0 0
        %2674 = vmatpush1.bf16.msra.mxu0 0
        %2675 = vmatprep.subr.bf16.mxu0 0
        %2676 = vmatpush1.bf16.msra.mxu0 0
        %2677 = vmatprep.subr.bf16.mxu0 0
        %2678 = vmatpush1.bf16.msra.mxu0 0
        %2679 = vmatprep.mubr.bf16.mxu0 0
        %2680 = vmatmul.mubr.bf16.gmra.mrb[0].mxu0 %v2591
        %v2681 = vpop.f32.mrb[0].mxu0
        %v2682 = vadd.f32 0.0, %v2681
        %v2683 = vpop.f32.mrb[0].mxu0
        %v2684 = vpop.f32.mrb[0].mxu0
        %v2685 = vadd.f32 0.0, %v2684
        %v2686 = vpop.f32.mrb[0].mxu0
        %2687 = vmatprep.mubr.bf16.mxu0 0
        %2688 = vmatmul.mubr.bf16.gmra.mrb[0].mxu0 %v2594
        %v2689 = vpop.f32.mrb[0].mxu0
        %v2690 = vadd.f32 0.0, %v2689
        %v2691 = vpop.f32.mrb[0].mxu0
        %v2692 = vpop.f32.mrb[0].mxu0
        %v2693 = vadd.f32 0.0, %v2692
        %v2694 = vpop.f32.mrb[0].mxu0
        %2695 = vmatprep.mubr.bf16.mxu0 0
        %2696 = vmatmul.mubr.bf16.gmra.mrb[0].mxu0 %v2597
        %v2697 = vpop.f32.mrb[0].mxu0
        %v2698 = vadd.f32 0.0, %v2697
        %v2699 = vpop.f32.mrb[0].mxu0
        %v2700 = vpop.f32.mrb[0].mxu0
        %v2701 = vadd.f32 0.0, %v2700
        %v2702 = vpop.f32.mrb[0].mxu0
        %2703 = vmatprep.mubr.bf16.mxu0 0
        %2704 = vmatmul.mubr.bf16.gmra.mrb[0].mxu0 %v2600
        %v2705 = vpop.f32.mrb[0].mxu0
        %v2706 = vadd.f32 0.0, %v2705
        %v2707 = vpop.f32.mrb[0].mxu0
        %v2708 = vpop.f32.mrb[0].mxu0
        %v2709 = vadd.f32 0.0, %v2708
        %v2710 = vpop.f32.mrb[0].mxu0
        %2711 = vmatprep.mubr.bf16.mxu0 0
        %2712 = vmatmul.mubr.bf16.gmra.mrb[0].mxu0 %v2603
        %v2713 = vpop.f32.mrb[0].mxu0
        %v2714 = vadd.f32 0.0, %v2713
        %v2715 = vpop.f32.mrb[0].mxu0
        %v2716 = vpop.f32.mrb[0].mxu0
        %v2717 = vadd.f32 0.0, %v2716
        %v2718 = vpop.f32.mrb[0].mxu0
        %2719 = vmatprep.mubr.bf16.mxu0 0
        %2720 = vmatmul.mubr.bf16.gmra.mrb[0].mxu0 %v2606
        %v2721 = vpop.f32.mrb[0].mxu0
        %v2722 = vadd.f32 0.0, %v2721
        %v2723 = vpop.f32.mrb[0].mxu0
        %v2724 = vpop.f32.mrb[0].mxu0
        %v2725 = vadd.f32 0.0, %v2724
        %v2726 = vpop.f32.mrb[0].mxu0
        %2727 = vmatprep.mubr.bf16.mxu0 0
        %2728 = vmatmul.mubr.bf16.gmra.mrb[0].mxu0 %v2609
        %v2729 = vpop.f32.mrb[0].mxu0
        %v2730 = vadd.f32 0.0, %v2729
        %v2731 = vpop.f32.mrb[0].mxu0
        %v2732 = vpop.f32.mrb[0].mxu0
        %v2733 = vadd.f32 0.0, %v2732
        %v2734 = vpop.f32.mrb[0].mxu0
        %2735 = vmatprep.mubr.bf16.mxu0 0
        %2736 = vmatmul.mubr.bf16.gmra.mrb[0].mxu0 %v2612
        %v2737 = vpop.f32.mrb[0].mxu0
        %v2738 = vadd.f32 0.0, %v2737
        %v2739 = vpop.f32.mrb[0].mxu0
        %v2740 = vpop.f32.mrb[0].mxu0
        %v2741 = vadd.f32 0.0, %v2740
        %v2742 = vpop.f32.mrb[0].mxu0
        %2743 = vmatprep.mubr.bf16.mxu0 0
        %2744 = vmatmul.mubr.bf16.gmra.mrb[0].mxu0 %v2615
        %v2745 = vpop.f32.mrb[0].mxu0
        %v2746 = vadd.f32 0.0, %v2745
        %v2747 = vpop.f32.mrb[0].mxu0
        %v2748 = vpop.f32.mrb[0].mxu0
        %v2749 = vadd.f32 0.0, %v2748
        %v2750 = vpop.f32.mrb[0].mxu0
        %2751 = vmatprep.mubr.bf16.mxu0 0
        %2752 = vmatmul.mubr.bf16.gmra.mrb[0].mxu0 %v2618
        %v2753 = vpop.f32.mrb[0].mxu0
        %v2754 = vadd.f32 0.0, %v2753
        %v2755 = vpop.f32.mrb[0].mxu0
        %v2756 = vpop.f32.mrb[0].mxu0
        %v2757 = vadd.f32 0.0, %v2756
        %v2758 = vpop.f32.mrb[0].mxu0
        %2759 = vmatprep.mubr.bf16.mxu0 0
        %2760 = vmatmul.mubr.bf16.gmra.mrb[0].mxu0 %v2621
        %v2761 = vpop.f32.mrb[0].mxu0
        %v2762 = vadd.f32 0.0, %v2761
        %v2763 = vpop.f32.mrb[0].mxu0
        %v2764 = vpop.f32.mrb[0].mxu0
        %v2765 = vadd.f32 0.0, %v2764
        %v2766 = vpop.f32.mrb[0].mxu0
        %2767 = vmatprep.mubr.bf16.mxu0 0
        %2768 = vmatmul.mubr.bf16.gmra.mrb[0].mxu0 %v2624
        %v2769 = vpop.f32.mrb[0].mxu0
        %v2770 = vadd.f32 0.0, %v2769
        %v2771 = vpop.f32.mrb[0].mxu0
        %v2772 = vpop.f32.mrb[0].mxu0
        %v2773 = vadd.f32 0.0, %v2772
        %v2774 = vpop.f32.mrb[0].mxu0
        %2775 = vmatprep.mubr.bf16.mxu0 0
        %2776 = vmatmul.mubr.bf16.gmra.mrb[0].mxu0 %v2627
        %v2777 = vpop.f32.mrb[0].mxu0
        %v2778 = vadd.f32 0.0, %v2777
        %v2779 = vpop.f32.mrb[0].mxu0
        %v2780 = vpop.f32.mrb[0].mxu0
        %v2781 = vadd.f32 0.0, %v2780
        %v2782 = vpop.f32.mrb[0].mxu0
        %2783 = vmatprep.mubr.bf16.mxu0 0
        %2784 = vmatmul.mubr.bf16.gmra.mrb[0].mxu0 %v2630
        %v2785 = vpop.f32.mrb[0].mxu0
        %v2786 = vadd.f32 0.0, %v2785
        %v2787 = vpop.f32.mrb[0].mxu0
        %v2788 = vpop.f32.mrb[0].mxu0
        %v2789 = vadd.f32 0.0, %v2788
        %v2790 = vpop.f32.mrb[0].mxu0
        %2791 = vmatprep.mubr.bf16.mxu0 0
        %2792 = vmatmul.mubr.bf16.gmra.mrb[0].mxu0 %v2633
        %v2793 = vpop.f32.mrb[0].mxu0
        %v2794 = vadd.f32 0.0, %v2793
        %v2795 = vpop.f32.mrb[0].mxu0
        %v2796 = vpop.f32.mrb[0].mxu0
        %v2797 = vadd.f32 0.0, %v2796
        %v2798 = vpop.f32.mrb[0].mxu0
        %2799 = vmatprep.mubr.bf16.mxu0 0
        %2800 = vmatmul.mubr.bf16.gmra.mrb[0].mxu0 %v2636
        %v2801 = vpop.f32.mrb[0].mxu0
        %v2802 = vadd.f32 0.0, %v2801
        %v2803 = vpop.f32.mrb[0].mxu0
        %v2804 = vpop.f32.mrb[0].mxu0
        %v2805 = vadd.f32 0.0, %v2804
        %v2806 = vpop.f32.mrb[0].mxu0
        %2807 = vmatprep.mubr.bf16.mxu0 0
        %2808 = vmatmul.mubr.bf16.gmra.mrb[0].mxu0 %v2639
        %v2809 = vpop.f32.mrb[0].mxu0
        %v2810 = vadd.f32 0.0, %v2809
        %v2811 = vpop.f32.mrb[0].mxu0
        %v2812 = vpop.f32.mrb[0].mxu0
        %v2813 = vadd.f32 0.0, %v2812
        %v2814 = vpop.f32.mrb[0].mxu0
        %2815 = vmatprep.mubr.bf16.mxu0 0
        %2816 = vmatmul.mubr.bf16.gmra.mrb[0].mxu0 %v2642
        %v2817 = vpop.f32.mrb[0].mxu0
        %v2818 = vadd.f32 0.0, %v2817
        %v2819 = vpop.f32.mrb[0].mxu0
        %v2820 = vpop.f32.mrb[0].mxu0
        %v2821 = vadd.f32 0.0, %v2820
        %v2822 = vpop.f32.mrb[0].mxu0
        %2823 = vdwg.mxu0
        %v2824 = vadd.f32 %v2385, %v2682
        %v2825 = vadd.f32 %v2386, %v2685
        %v2826 = vadd.f32 %v2387, %v2690
        %v2827 = vadd.f32 %v2388, %v2693
        %v2828 = vadd.f32 %v2389, %v2698
        %v2829 = vadd.f32 %v2390, %v2701
        %v2830 = vadd.f32 %v2391, %v2706
        %v2831 = vadd.f32 %v2392, %v2709
        %v2832 = vadd.f32 %v2393, %v2714
        %v2833 = vadd.f32 %v2394, %v2717
        %v2834 = vadd.f32 %v2395, %v2722
        %v2835 = vadd.f32 %v2396, %v2725
        %v2836 = vadd.f32 %v2397, %v2730
        %v2837 = vadd.f32 %v2398, %v2733
        %v2838 = vadd.f32 %v2399, %v2738
        %v2839 = vadd.f32 %v2400, %v2741
        %v2840 = vadd.f32 %v2401, %v2746
        %v2841 = vadd.f32 %v2402, %v2749
        %v2842 = vadd.f32 %v2403, %v2754
        %v2843 = vadd.f32 %v2404, %v2757
        %v2844 = vadd.f32 %v2405, %v2762
        %v2845 = vadd.f32 %v2406, %v2765
        %v2846 = vadd.f32 %v2407, %v2770
        %v2847 = vadd.f32 %v2408, %v2773
        %v2848 = vadd.f32 %v2409, %v2778
        %v2849 = vadd.f32 %v2410, %v2781
        %v2850 = vadd.f32 %v2411, %v2786
        %v2851 = vadd.f32 %v2412, %v2789
        %v2852 = vadd.f32 %v2413, %v2794
        %v2853 = vadd.f32 %v2414, %v2797
        %v2854 = vadd.f32 %v2415, %v2802
        %v2855 = vadd.f32 %v2416, %v2805
        %v2856 = vadd.f32 %v2417, %v2810
        %v2857 = vadd.f32 %v2418, %v2813
        %v2858 = vadd.f32 %v2419, %v2818
        %v2859 = vadd.f32 %v2420, %v2821
        %v2860 = vld [vmem:[%s168 + $0xa0] sm:$0x7]
        %s2861 = scalar_lea.vmem %s1, 14
        %v2862 = vld [vmem:[%s2861] sm:$0x3]
        %v2864 = vunpack.c.l.b16 %v2860
        %v2865 = vpack.c.b16 %v2864, %v2864
        %vm2866 = vsmask.f32 5376
        %v2868 = vshrl.u32 %v2534, 16
        %v2870 = vrot.slane %v2868, 2
        %v2871 = vshll.u32 %v2534, 16
        %v2873 = vrot.slane %v2871, 3
        %v2874 = vor.u32 %v2870, %v2873
        %v2876 = vshrl.u32 %v2535, 16
        %v2878 = vrot.slane %v2876, 2
        %v2879 = vshll.u32 %v2535, 16
        %v2881 = vrot.slane %v2879, 3
        %v2882 = vor.u32 %v2878, %v2881
        %v2883 = vsel %vm2866, %v2874, %v2882
        %v2885 = vshrl.u32 %v2536, 16
        %v2887 = vrot.slane %v2885, 2
        %v2888 = vshll.u32 %v2536, 16
        %v2890 = vrot.slane %v2888, 3
        %v2891 = vor.u32 %v2887, %v2890
        %v2892 = vsel %vm2866, %v2882, %v2891
        %v2894 = vshrl.u32 %v2537, 16
        %v2896 = vrot.slane %v2894, 2
        %v2897 = vshll.u32 %v2537, 16
        %v2899 = vrot.slane %v2897, 3
        %v2900 = vor.u32 %v2896, %v2899
        %v2901 = vsel %vm2866, %v2891, %v2900
        %v2903 = vshrl.u32 %v2538, 16
        %v2905 = vrot.slane %v2903, 2
        %v2906 = vshll.u32 %v2538, 16
        %v2908 = vrot.slane %v2906, 3
        %v2909 = vor.u32 %v2905, %v2908
        %v2910 = vsel %vm2866, %v2900, %v2909
        %v2912 = vshrl.u32 %v2539, 16
        %v2914 = vrot.slane %v2912, 2
        %v2915 = vshll.u32 %v2539, 16
        %v2917 = vrot.slane %v2915, 3
        %v2918 = vor.u32 %v2914, %v2917
        %v2919 = vsel %vm2866, %v2909, %v2918
        %v2921 = vshrl.u32 %v2540, 16
        %v2923 = vrot.slane %v2921, 2
        %v2924 = vshll.u32 %v2540, 16
        %v2926 = vrot.slane %v2924, 3
        %v2927 = vor.u32 %v2923, %v2926
        %v2928 = vsel %vm2866, %v2918, %v2927
        %v2930 = vshrl.u32 %v2541, 16
        %v2932 = vrot.slane %v2930, 2
        %v2933 = vshll.u32 %v2541, 16
        %v2935 = vrot.slane %v2933, 3
        %v2936 = vor.u32 %v2932, %v2935
        %v2937 = vsel %vm2866, %v2927, %v2936
        %v2939 = vshrl.u32 %v2542, 16
        %v2941 = vrot.slane %v2939, 2
        %v2942 = vshll.u32 %v2542, 16
        %v2944 = vrot.slane %v2942, 3
        %v2945 = vor.u32 %v2941, %v2944
        %v2946 = vsel %vm2866, %v2936, %v2945
        %v2948 = vshrl.u32 %v2543, 16
        %v2950 = vrot.slane %v2948, 2
        %v2951 = vshll.u32 %v2543, 16
        %v2953 = vrot.slane %v2951, 3
        %v2954 = vor.u32 %v2950, %v2953
        %v2955 = vsel %vm2866, %v2945, %v2954
        %v2957 = vshrl.u32 %v2544, 16
        %v2959 = vrot.slane %v2957, 2
        %v2960 = vshll.u32 %v2544, 16
        %v2962 = vrot.slane %v2960, 3
        %v2963 = vor.u32 %v2959, %v2962
        %v2964 = vsel %vm2866, %v2954, %v2963
        %v2966 = vshrl.u32 %v2545, 16
        %v2968 = vrot.slane %v2966, 2
        %v2969 = vshll.u32 %v2545, 16
        %v2971 = vrot.slane %v2969, 3
        %v2972 = vor.u32 %v2968, %v2971
        %v2973 = vsel %vm2866, %v2963, %v2972
        %v2975 = vshrl.u32 %v2546, 16
        %v2977 = vrot.slane %v2975, 2
        %v2978 = vshll.u32 %v2546, 16
        %v2980 = vrot.slane %v2978, 3
        %v2981 = vor.u32 %v2977, %v2980
        %v2982 = vsel %vm2866, %v2972, %v2981
        %v2984 = vshrl.u32 %v2547, 16
        %v2986 = vrot.slane %v2984, 2
        %v2987 = vshll.u32 %v2547, 16
        %v2989 = vrot.slane %v2987, 3
        %v2990 = vor.u32 %v2986, %v2989
        %v2991 = vsel %vm2866, %v2981, %v2990
        %v2993 = vshrl.u32 %v2548, 16
        %v2995 = vrot.slane %v2993, 2
        %v2996 = vshll.u32 %v2548, 16
        %v2998 = vrot.slane %v2996, 3
        %v2999 = vor.u32 %v2995, %v2998
        %v3000 = vsel %vm2866, %v2990, %v2999
        %v3002 = vshrl.u32 %v2549, 16
        %v3004 = vrot.slane %v3002, 2
        %v3005 = vshll.u32 %v2549, 16
        %v3007 = vrot.slane %v3005, 3
        %v3008 = vor.u32 %v3004, %v3007
        %v3009 = vsel %vm2866, %v2999, %v3008
        %v3011 = vshrl.u32 %v2550, 16
        %v3013 = vrot.slane %v3011, 2
        %v3014 = vshll.u32 %v2550, 16
        %v3016 = vrot.slane %v3014, 3
        %v3017 = vor.u32 %v3013, %v3016
        %v3018 = vsel %vm2866, %v3008, %v3017
        %v3020 = vshrl.u32 %v2551, 16
        %v3022 = vrot.slane %v3020, 2
        %v3023 = vshll.u32 %v2551, 16
        %v3025 = vrot.slane %v3023, 3
        %v3026 = vor.u32 %v3022, %v3025
        %v3027 = vsel %vm2866, %v3017, %v3026
        %v3029 = vshrl.u32 %v2865, 16
        %v3031 = vrot.slane %v3029, 2
        %v3032 = vshll.u32 %v2865, 16
        %v3034 = vrot.slane %v3032, 3
        %v3035 = vor.u32 %v3031, %v3034
        %v3036 = vsel %vm2866, %v3026, %v3035
        %v3038 = vsel %vm452, %v2883, 0
        %v3041 = vsel %vm452, %v2892, 0
        %v3044 = vsel %vm452, %v2901, 0
        %v3047 = vsel %vm452, %v2910, 0
        %v3050 = vsel %vm452, %v2919, 0
        %v3053 = vsel %vm452, %v2928, 0
        %v3056 = vsel %vm452, %v2937, 0
        %v3059 = vsel %vm452, %v2946, 0
        %v3062 = vsel %vm452, %v2955, 0
        %v3065 = vsel %vm452, %v2964, 0
        %v3068 = vsel %vm452, %v2973, 0
        %v3071 = vsel %vm452, %v2982, 0
        %v3074 = vsel %vm452, %v2991, 0
        %v3077 = vsel %vm452, %v3000, 0
        %v3080 = vsel %vm452, %v3009, 0
        %v3083 = vsel %vm452, %v3018, 0
        %v3086 = vsel %vm452, %v3027, 0
        %v3089 = vsel %vm452, %v3036, 0
        %v3092 = vand.u32 %v2862, %v510
        %3094 = vmatprep.subr.bf16.mxu0 0
        %3095 = vmatpush1.bf16.msra.mxu0 %v3092
        %3096 = vmatprep.subr.bf16.mxu0 0
        %3097 = vmatpush1.bf16.msra.mxu0 0
        %3098 = vmatprep.subr.bf16.mxu0 0
        %3099 = vmatpush1.bf16.msra.mxu0 0
        %3100 = vmatprep.subr.bf16.mxu0 0
        %3101 = vmatpush1.bf16.msra.mxu0 0
        %3102 = vmatprep.subr.bf16.mxu0 0
        %3103 = vmatpush1.bf16.msra.mxu0 0
        %3104 = vmatprep.subr.bf16.mxu0 0
        %3105 = vmatpush1.bf16.msra.mxu0 0
        %3106 = vmatprep.subr.bf16.mxu0 0
        %3107 = vmatpush1.bf16.msra.mxu0 0
        %3108 = vmatprep.subr.bf16.mxu0 0
        %3109 = vmatpush1.bf16.msra.mxu0 0
        %3110 = vmatprep.subr.bf16.mxu0 0
        %3111 = vmatpush1.bf16.msra.mxu0 0
        %3112 = vmatprep.subr.bf16.mxu0 0
        %3113 = vmatpush1.bf16.msra.mxu0 0
        %3114 = vmatprep.subr.bf16.mxu0 0
        %3115 = vmatpush1.bf16.msra.mxu0 0
        %3116 = vmatprep.subr.bf16.mxu0 0
        %3117 = vmatpush1.bf16.msra.mxu0 0
        %3118 = vmatprep.subr.bf16.mxu0 0
        %3119 = vmatpush1.bf16.msra.mxu0 0
        %3120 = vmatprep.subr.bf16.mxu0 0
        %3121 = vmatpush1.bf16.msra.mxu0 0
        %3122 = vmatprep.subr.bf16.mxu0 0
        %3123 = vmatpush1.bf16.msra.mxu0 0
        %3124 = vmatprep.subr.bf16.mxu0 0
        %3125 = vmatpush1.bf16.msra.mxu0 0
        %3126 = vmatprep.mubr.bf16.mxu0 0
        %3127 = vmatmul.mubr.bf16.gmra.mrb[0].mxu0 %v3038
        %v3128 = vpop.f32.mrb[0].mxu0
        %v3129 = vadd.f32 0.0, %v3128
        %v3130 = vpop.f32.mrb[0].mxu0
        %v3131 = vpop.f32.mrb[0].mxu0
        %v3132 = vadd.f32 0.0, %v3131
        %v3133 = vpop.f32.mrb[0].mxu0
        %3134 = vmatprep.mubr.bf16.mxu0 0
        %3135 = vmatmul.mubr.bf16.gmra.mrb[0].mxu0 %v3041
        %v3136 = vpop.f32.mrb[0].mxu0
        %v3137 = vadd.f32 0.0, %v3136
        %v3138 = vpop.f32.mrb[0].mxu0
        %v3139 = vpop.f32.mrb[0].mxu0
        %v3140 = vadd.f32 0.0, %v3139
        %v3141 = vpop.f32.mrb[0].mxu0
        %3142 = vmatprep.mubr.bf16.mxu0 0
        %3143 = vmatmul.mubr.bf16.gmra.mrb[0].mxu0 %v3044
        %v3144 = vpop.f32.mrb[0].mxu0
        %v3145 = vadd.f32 0.0, %v3144
        %v3146 = vpop.f32.mrb[0].mxu0
        %v3147 = vpop.f32.mrb[0].mxu0
        %v3148 = vadd.f32 0.0, %v3147
        %v3149 = vpop.f32.mrb[0].mxu0
        %3150 = vmatprep.mubr.bf16.mxu0 0
        %3151 = vmatmul.mubr.bf16.gmra.mrb[0].mxu0 %v3047
        %v3152 = vpop.f32.mrb[0].mxu0
        %v3153 = vadd.f32 0.0, %v3152
        %v3154 = vpop.f32.mrb[0].mxu0
        %v3155 = vpop.f32.mrb[0].mxu0
        %v3156 = vadd.f32 0.0, %v3155
        %v3157 = vpop.f32.mrb[0].mxu0
        %3158 = vmatprep.mubr.bf16.mxu0 0
        %3159 = vmatmul.mubr.bf16.gmra.mrb[0].mxu0 %v3050
        %v3160 = vpop.f32.mrb[0].mxu0
        %v3161 = vadd.f32 0.0, %v3160
        %v3162 = vpop.f32.mrb[0].mxu0
        %v3163 = vpop.f32.mrb[0].mxu0
        %v3164 = vadd.f32 0.0, %v3163
        %v3165 = vpop.f32.mrb[0].mxu0
        %3166 = vmatprep.mubr.bf16.mxu0 0
        %3167 = vmatmul.mubr.bf16.gmra.mrb[0].mxu0 %v3053
        %v3168 = vpop.f32.mrb[0].mxu0
        %v3169 = vadd.f32 0.0, %v3168
        %v3170 = vpop.f32.mrb[0].mxu0
        %v3171 = vpop.f32.mrb[0].mxu0
        %v3172 = vadd.f32 0.0, %v3171
        %v3173 = vpop.f32.mrb[0].mxu0
        %3174 = vmatprep.mubr.bf16.mxu0 0
        %3175 = vmatmul.mubr.bf16.gmra.mrb[0].mxu0 %v3056
        %v3176 = vpop.f32.mrb[0].mxu0
        %v3177 = vadd.f32 0.0, %v3176
        %v3178 = vpop.f32.mrb[0].mxu0
        %v3179 = vpop.f32.mrb[0].mxu0
        %v3180 = vadd.f32 0.0, %v3179
        %v3181 = vpop.f32.mrb[0].mxu0
        %3182 = vmatprep.mubr.bf16.mxu0 0
        %3183 = vmatmul.mubr.bf16.gmra.mrb[0].mxu0 %v3059
        %v3184 = vpop.f32.mrb[0].mxu0
        %v3185 = vadd.f32 0.0, %v3184
        %v3186 = vpop.f32.mrb[0].mxu0
        %v3187 = vpop.f32.mrb[0].mxu0
        %v3188 = vadd.f32 0.0, %v3187
        %v3189 = vpop.f32.mrb[0].mxu0
        %3190 = vmatprep.mubr.bf16.mxu0 0
        %3191 = vmatmul.mubr.bf16.gmra.mrb[0].mxu0 %v3062
        %v3192 = vpop.f32.mrb[0].mxu0
        %v3193 = vadd.f32 0.0, %v3192
        %v3194 = vpop.f32.mrb[0].mxu0
        %v3195 = vpop.f32.mrb[0].mxu0
        %v3196 = vadd.f32 0.0, %v3195
        %v3197 = vpop.f32.mrb[0].mxu0
        %3198 = vmatprep.mubr.bf16.mxu0 0
        %3199 = vmatmul.mubr.bf16.gmra.mrb[0].mxu0 %v3065
        %v3200 = vpop.f32.mrb[0].mxu0
        %v3201 = vadd.f32 0.0, %v3200
        %v3202 = vpop.f32.mrb[0].mxu0
        %v3203 = vpop.f32.mrb[0].mxu0
        %v3204 = vadd.f32 0.0, %v3203
        %v3205 = vpop.f32.mrb[0].mxu0
        %3206 = vmatprep.mubr.bf16.mxu0 0
        %3207 = vmatmul.mubr.bf16.gmra.mrb[0].mxu0 %v3068
        %v3208 = vpop.f32.mrb[0].mxu0
        %v3209 = vadd.f32 0.0, %v3208
        %v3210 = vpop.f32.mrb[0].mxu0
        %v3211 = vpop.f32.mrb[0].mxu0
        %v3212 = vadd.f32 0.0, %v3211
        %v3213 = vpop.f32.mrb[0].mxu0
        %3214 = vmatprep.mubr.bf16.mxu0 0
        %3215 = vmatmul.mubr.bf16.gmra.mrb[0].mxu0 %v3071
        %v3216 = vpop.f32.mrb[0].mxu0
        %v3217 = vadd.f32 0.0, %v3216
        %v3218 = vpop.f32.mrb[0].mxu0
        %v3219 = vpop.f32.mrb[0].mxu0
        %v3220 = vadd.f32 0.0, %v3219
        %v3221 = vpop.f32.mrb[0].mxu0
        %3222 = vmatprep.mubr.bf16.mxu0 0
        %3223 = vmatmul.mubr.bf16.gmra.mrb[0].mxu0 %v3074
        %v3224 = vpop.f32.mrb[0].mxu0
        %v3225 = vadd.f32 0.0, %v3224
        %v3226 = vpop.f32.mrb[0].mxu0
        %v3227 = vpop.f32.mrb[0].mxu0
        %v3228 = vadd.f32 0.0, %v3227
        %v3229 = vpop.f32.mrb[0].mxu0
        %3230 = vmatprep.mubr.bf16.mxu0 0
        %3231 = vmatmul.mubr.bf16.gmra.mrb[0].mxu0 %v3077
        %v3232 = vpop.f32.mrb[0].mxu0
        %v3233 = vadd.f32 0.0, %v3232
        %v3234 = vpop.f32.mrb[0].mxu0
        %v3235 = vpop.f32.mrb[0].mxu0
        %v3236 = vadd.f32 0.0, %v3235
        %v3237 = vpop.f32.mrb[0].mxu0
        %3238 = vmatprep.mubr.bf16.mxu0 0
        %3239 = vmatmul.mubr.bf16.gmra.mrb[0].mxu0 %v3080
        %v3240 = vpop.f32.mrb[0].mxu0
        %v3241 = vadd.f32 0.0, %v3240
        %v3242 = vpop.f32.mrb[0].mxu0
        %v3243 = vpop.f32.mrb[0].mxu0
        %v3244 = vadd.f32 0.0, %v3243
        %v3245 = vpop.f32.mrb[0].mxu0
        %3246 = vmatprep.mubr.bf16.mxu0 0
        %3247 = vmatmul.mubr.bf16.gmra.mrb[0].mxu0 %v3083
        %v3248 = vpop.f32.mrb[0].mxu0
        %v3249 = vadd.f32 0.0, %v3248
        %v3250 = vpop.f32.mrb[0].mxu0
        %v3251 = vpop.f32.mrb[0].mxu0
        %v3252 = vadd.f32 0.0, %v3251
        %v3253 = vpop.f32.mrb[0].mxu0
        %3254 = vmatprep.mubr.bf16.mxu0 0
        %3255 = vmatmul.mubr.bf16.gmra.mrb[0].mxu0 %v3086
        %v3256 = vpop.f32.mrb[0].mxu0
        %v3257 = vadd.f32 0.0, %v3256
        %v3258 = vpop.f32.mrb[0].mxu0
        %v3259 = vpop.f32.mrb[0].mxu0
        %v3260 = vadd.f32 0.0, %v3259
        %v3261 = vpop.f32.mrb[0].mxu0
        %3262 = vmatprep.mubr.bf16.mxu0 0
        %3263 = vmatmul.mubr.bf16.gmra.mrb[0].mxu0 %v3089
        %v3264 = vpop.f32.mrb[0].mxu0
        %v3265 = vadd.f32 0.0, %v3264
        %v3266 = vpop.f32.mrb[0].mxu0
        %v3267 = vpop.f32.mrb[0].mxu0
        %v3268 = vadd.f32 0.0, %v3267
        %v3269 = vpop.f32.mrb[0].mxu0
        %3270 = vdwg.mxu0
        %v3271 = vadd.f32 %v2824, %v3129
        %v3272 = vadd.f32 %v2825, %v3132
        %v3273 = vadd.f32 %v2826, %v3137
        %v3274 = vadd.f32 %v2827, %v3140
        %v3275 = vadd.f32 %v2828, %v3145
        %v3276 = vadd.f32 %v2829, %v3148
        %v3277 = vadd.f32 %v2830, %v3153
        %v3278 = vadd.f32 %v2831, %v3156
        %v3279 = vadd.f32 %v2832, %v3161
        %v3280 = vadd.f32 %v2833, %v3164
        %v3281 = vadd.f32 %v2834, %v3169
        %v3282 = vadd.f32 %v2835, %v3172
        %v3283 = vadd.f32 %v2836, %v3177
        %v3284 = vadd.f32 %v2837, %v3180
        %v3285 = vadd.f32 %v2838, %v3185
        %v3286 = vadd.f32 %v2839, %v3188
        %v3287 = vadd.f32 %v2840, %v3193
        %v3288 = vadd.f32 %v2841, %v3196
        %v3289 = vadd.f32 %v2842, %v3201
        %v3290 = vadd.f32 %v2843, %v3204
        %v3291 = vadd.f32 %v2844, %v3209
        %v3292 = vadd.f32 %v2845, %v3212
        %v3293 = vadd.f32 %v2846, %v3217
        %v3294 = vadd.f32 %v2847, %v3220
        %v3295 = vadd.f32 %v2848, %v3225
        %v3296 = vadd.f32 %v2849, %v3228
        %v3297 = vadd.f32 %v2850, %v3233
        %v3298 = vadd.f32 %v2851, %v3236
        %v3299 = vadd.f32 %v2852, %v3241
        %v3300 = vadd.f32 %v2853, %v3244
        %v3301 = vadd.f32 %v2854, %v3249
        %v3302 = vadd.f32 %v2855, %v3252
        %v3303 = vadd.f32 %v2856, %v3257
        %v3304 = vadd.f32 %v2857, %v3260
        %v3305 = vadd.f32 %v2858, %v3265
        %v3306 = vadd.f32 %v2859, %v3268
        %v3307 = vld [vmem:[%s168 + $0x10] sm:$0x8]
        %s3308 = scalar_lea.vmem %s1, 16
        %v3309 = vld [vmem:[%s3308] sm:$0x3]
        %v3311 = vunpack.c.l.b16 %v3307
        %v3312 = vpack.c.b16 %v2498, %v3311
        %vm3313 = vcmask 1044480
        %v3314 = vrot.slane %v3312, 3
        %v3315 = vrot.slane %v2535, 3
        %v3316 = vsel %vm3313, %v3314, %v3315
        %v3317 = vrot.slane %v2536, 3
        %v3318 = vsel %vm3313, %v3315, %v3317
        %v3319 = vrot.slane %v2537, 3
        %v3320 = vsel %vm3313, %v3317, %v3319
        %v3321 = vrot.slane %v2538, 3
        %v3322 = vsel %vm3313, %v3319, %v3321
        %v3323 = vrot.slane %v2539, 3
        %v3324 = vsel %vm3313, %v3321, %v3323
        %v3325 = vrot.slane %v2540, 3
        %v3326 = vsel %vm3313, %v3323, %v3325
        %v3327 = vrot.slane %v2541, 3
        %v3328 = vsel %vm3313, %v3325, %v3327
        %v3329 = vrot.slane %v2542, 3
        %v3330 = vsel %vm3313, %v3327, %v3329
        %v3331 = vrot.slane %v2543, 3
        %v3332 = vsel %vm3313, %v3329, %v3331
        %v3333 = vrot.slane %v2544, 3
        %v3334 = vsel %vm3313, %v3331, %v3333
        %v3335 = vrot.slane %v2545, 3
        %v3336 = vsel %vm3313, %v3333, %v3335
        %v3337 = vrot.slane %v2546, 3
        %v3338 = vsel %vm3313, %v3335, %v3337
        %v3339 = vrot.slane %v2547, 3
        %v3340 = vsel %vm3313, %v3337, %v3339
        %v3341 = vrot.slane %v2548, 3
        %v3342 = vsel %vm3313, %v3339, %v3341
        %v3343 = vrot.slane %v2549, 3
        %v3344 = vsel %vm3313, %v3341, %v3343
        %v3345 = vrot.slane %v2550, 3
        %v3346 = vsel %vm3313, %v3343, %v3345
        %v3347 = vrot.slane %v2551, 3
        %v3348 = vsel %vm3313, %v3345, %v3347
        %v3349 = vrot.slane %v2865, 3
        %v3350 = vsel %vm3313, %v3347, %v3349
        %v3352 = vsel %vm452, %v3316, 0
        %v3355 = vsel %vm452, %v3318, 0
        %v3358 = vsel %vm452, %v3320, 0
        %v3361 = vsel %vm452, %v3322, 0
        %v3364 = vsel %vm452, %v3324, 0
        %v3367 = vsel %vm452, %v3326, 0
        %v3370 = vsel %vm452, %v3328, 0
        %v3373 = vsel %vm452, %v3330, 0
        %v3376 = vsel %vm452, %v3332, 0
        %v3379 = vsel %vm452, %v3334, 0
        %v3382 = vsel %vm452, %v3336, 0
        %v3385 = vsel %vm452, %v3338, 0
        %v3388 = vsel %vm452, %v3340, 0
        %v3391 = vsel %vm452, %v3342, 0
        %v3394 = vsel %vm452, %v3344, 0
        %v3397 = vsel %vm452, %v3346, 0
        %v3400 = vsel %vm452, %v3348, 0
        %v3403 = vsel %vm452, %v3350, 0
        %v3406 = vand.u32 %v3309, %v510
        %3408 = vmatprep.subr.bf16.mxu0 0
        %3409 = vmatpush1.bf16.msra.mxu0 %v3406
        %3410 = vmatprep.subr.bf16.mxu0 0
        %3411 = vmatpush1.bf16.msra.mxu0 0
        %3412 = vmatprep.subr.bf16.mxu0 0
        %3413 = vmatpush1.bf16.msra.mxu0 0
        %3414 = vmatprep.subr.bf16.mxu0 0
        %3415 = vmatpush1.bf16.msra.mxu0 0
        %3416 = vmatprep.subr.bf16.mxu0 0
        %3417 = vmatpush1.bf16.msra.mxu0 0
        %3418 = vmatprep.subr.bf16.mxu0 0
        %3419 = vmatpush1.bf16.msra.mxu0 0
        %3420 = vmatprep.subr.bf16.mxu0 0
        %3421 = vmatpush1.bf16.msra.mxu0 0
        %3422 = vmatprep.subr.bf16.mxu0 0
        %3423 = vmatpush1.bf16.msra.mxu0 0
        %3424 = vmatprep.subr.bf16.mxu0 0
        %3425 = vmatpush1.bf16.msra.mxu0 0
        %3426 = vmatprep.subr.bf16.mxu0 0
        %3427 = vmatpush1.bf16.msra.mxu0 0
        %3428 = vmatprep.subr.bf16.mxu0 0
        %3429 = vmatpush1.bf16.msra.mxu0 0
        %3430 = vmatprep.subr.bf16.mxu0 0
        %3431 = vmatpush1.bf16.msra.mxu0 0
        %3432 = vmatprep.subr.bf16.mxu0 0
        %3433 = vmatpush1.bf16.msra.mxu0 0
        %3434 = vmatprep.subr.bf16.mxu0 0
        %3435 = vmatpush1.bf16.msra.mxu0 0
        %3436 = vmatprep.subr.bf16.mxu0 0
        %3437 = vmatpush1.bf16.msra.mxu0 0
        %3438 = vmatprep.subr.bf16.mxu0 0
        %3439 = vmatpush1.bf16.msra.mxu0 0
        %3440 = vmatprep.mubr.bf16.mxu0 0
        %3441 = vmatmul.mubr.bf16.gmra.mrb[0].mxu0 %v3352
        %v3442 = vpop.f32.mrb[0].mxu0
        %v3443 = vadd.f32 0.0, %v3442
        %v3444 = vpop.f32.mrb[0].mxu0
        %v3445 = vpop.f32.mrb[0].mxu0
        %v3446 = vadd.f32 0.0, %v3445
        %v3447 = vpop.f32.mrb[0].mxu0
        %3448 = vmatprep.mubr.bf16.mxu0 0
        %3449 = vmatmul.mubr.bf16.gmra.mrb[0].mxu0 %v3355
        %v3450 = vpop.f32.mrb[0].mxu0
        %v3451 = vadd.f32 0.0, %v3450
        %v3452 = vpop.f32.mrb[0].mxu0
        %v3453 = vpop.f32.mrb[0].mxu0
        %v3454 = vadd.f32 0.0, %v3453
        %v3455 = vpop.f32.mrb[0].mxu0
        %3456 = vmatprep.mubr.bf16.mxu0 0
        %3457 = vmatmul.mubr.bf16.gmra.mrb[0].mxu0 %v3358
        %v3458 = vpop.f32.mrb[0].mxu0
        %v3459 = vadd.f32 0.0, %v3458
        %v3460 = vpop.f32.mrb[0].mxu0
        %v3461 = vpop.f32.mrb[0].mxu0
        %v3462 = vadd.f32 0.0, %v3461
        %v3463 = vpop.f32.mrb[0].mxu0
        %3464 = vmatprep.mubr.bf16.mxu0 0
        %3465 = vmatmul.mubr.bf16.gmra.mrb[0].mxu0 %v3361
        %v3466 = vpop.f32.mrb[0].mxu0
        %v3467 = vadd.f32 0.0, %v3466
        %v3468 = vpop.f32.mrb[0].mxu0
        %v3469 = vpop.f32.mrb[0].mxu0
        %v3470 = vadd.f32 0.0, %v3469
        %v3471 = vpop.f32.mrb[0].mxu0
        %3472 = vmatprep.mubr.bf16.mxu0 0
        %3473 = vmatmul.mubr.bf16.gmra.mrb[0].mxu0 %v3364
        %v3474 = vpop.f32.mrb[0].mxu0
        %v3475 = vadd.f32 0.0, %v3474
        %v3476 = vpop.f32.mrb[0].mxu0
        %v3477 = vpop.f32.mrb[0].mxu0
        %v3478 = vadd.f32 0.0, %v3477
        %v3479 = vpop.f32.mrb[0].mxu0
        %3480 = vmatprep.mubr.bf16.mxu0 0
        %3481 = vmatmul.mubr.bf16.gmra.mrb[0].mxu0 %v3367
        %v3482 = vpop.f32.mrb[0].mxu0
        %v3483 = vadd.f32 0.0, %v3482
        %v3484 = vpop.f32.mrb[0].mxu0
        %v3485 = vpop.f32.mrb[0].mxu0
        %v3486 = vadd.f32 0.0, %v3485
        %v3487 = vpop.f32.mrb[0].mxu0
        %3488 = vmatprep.mubr.bf16.mxu0 0
        %3489 = vmatmul.mubr.bf16.gmra.mrb[0].mxu0 %v3370
        %v3490 = vpop.f32.mrb[0].mxu0
        %v3491 = vadd.f32 0.0, %v3490
        %v3492 = vpop.f32.mrb[0].mxu0
        %v3493 = vpop.f32.mrb[0].mxu0
        %v3494 = vadd.f32 0.0, %v3493
        %v3495 = vpop.f32.mrb[0].mxu0
        %3496 = vmatprep.mubr.bf16.mxu0 0
        %3497 = vmatmul.mubr.bf16.gmra.mrb[0].mxu0 %v3373
        %v3498 = vpop.f32.mrb[0].mxu0
        %v3499 = vadd.f32 0.0, %v3498
        %v3500 = vpop.f32.mrb[0].mxu0
        %v3501 = vpop.f32.mrb[0].mxu0
        %v3502 = vadd.f32 0.0, %v3501
        %v3503 = vpop.f32.mrb[0].mxu0
        %3504 = vmatprep.mubr.bf16.mxu0 0
        %3505 = vmatmul.mubr.bf16.gmra.mrb[0].mxu0 %v3376
        %v3506 = vpop.f32.mrb[0].mxu0
        %v3507 = vadd.f32 0.0, %v3506
        %v3508 = vpop.f32.mrb[0].mxu0
        %v3509 = vpop.f32.mrb[0].mxu0
        %v3510 = vadd.f32 0.0, %v3509
        %v3511 = vpop.f32.mrb[0].mxu0
        %3512 = vmatprep.mubr.bf16.mxu0 0
        %3513 = vmatmul.mubr.bf16.gmra.mrb[0].mxu0 %v3379
        %v3514 = vpop.f32.mrb[0].mxu0
        %v3515 = vadd.f32 0.0, %v3514
        %v3516 = vpop.f32.mrb[0].mxu0
        %v3517 = vpop.f32.mrb[0].mxu0
        %v3518 = vadd.f32 0.0, %v3517
        %v3519 = vpop.f32.mrb[0].mxu0
        %3520 = vmatprep.mubr.bf16.mxu0 0
        %3521 = vmatmul.mubr.bf16.gmra.mrb[0].mxu0 %v3382
        %v3522 = vpop.f32.mrb[0].mxu0
        %v3523 = vadd.f32 0.0, %v3522
        %v3524 = vpop.f32.mrb[0].mxu0
        %v3525 = vpop.f32.mrb[0].mxu0
        %v3526 = vadd.f32 0.0, %v3525
        %v3527 = vpop.f32.mrb[0].mxu0
        %3528 = vmatprep.mubr.bf16.mxu0 0
        %3529 = vmatmul.mubr.bf16.gmra.mrb[0].mxu0 %v3385
        %v3530 = vpop.f32.mrb[0].mxu0
        %v3531 = vadd.f32 0.0, %v3530
        %v3532 = vpop.f32.mrb[0].mxu0
        %v3533 = vpop.f32.mrb[0].mxu0
        %v3534 = vadd.f32 0.0, %v3533
        %v3535 = vpop.f32.mrb[0].mxu0
        %3536 = vmatprep.mubr.bf16.mxu0 0
        %3537 = vmatmul.mubr.bf16.gmra.mrb[0].mxu0 %v3388
        %v3538 = vpop.f32.mrb[0].mxu0
        %v3539 = vadd.f32 0.0, %v3538
        %v3540 = vpop.f32.mrb[0].mxu0
        %v3541 = vpop.f32.mrb[0].mxu0
        %v3542 = vadd.f32 0.0, %v3541
        %v3543 = vpop.f32.mrb[0].mxu0
        %3544 = vmatprep.mubr.bf16.mxu0 0
        %3545 = vmatmul.mubr.bf16.gmra.mrb[0].mxu0 %v3391
        %v3546 = vpop.f32.mrb[0].mxu0
        %v3547 = vadd.f32 0.0, %v3546
        %v3548 = vpop.f32.mrb[0].mxu0
        %v3549 = vpop.f32.mrb[0].mxu0
        %v3550 = vadd.f32 0.0, %v3549
        %v3551 = vpop.f32.mrb[0].mxu0
        %3552 = vmatprep.mubr.bf16.mxu0 0
        %3553 = vmatmul.mubr.bf16.gmra.mrb[0].mxu0 %v3394
        %v3554 = vpop.f32.mrb[0].mxu0
        %v3555 = vadd.f32 0.0, %v3554
        %v3556 = vpop.f32.mrb[0].mxu0
        %v3557 = vpop.f32.mrb[0].mxu0
        %v3558 = vadd.f32 0.0, %v3557
        %v3559 = vpop.f32.mrb[0].mxu0
        %3560 = vmatprep.mubr.bf16.mxu0 0
        %3561 = vmatmul.mubr.bf16.gmra.mrb[0].mxu0 %v3397
        %v3562 = vpop.f32.mrb[0].mxu0
        %v3563 = vadd.f32 0.0, %v3562
        %v3564 = vpop.f32.mrb[0].mxu0
        %v3565 = vpop.f32.mrb[0].mxu0
        %v3566 = vadd.f32 0.0, %v3565
        %v3567 = vpop.f32.mrb[0].mxu0
        %3568 = vmatprep.mubr.bf16.mxu0 0
        %3569 = vmatmul.mubr.bf16.gmra.mrb[0].mxu0 %v3400
        %v3570 = vpop.f32.mrb[0].mxu0
        %v3571 = vadd.f32 0.0, %v3570
        %v3572 = vpop.f32.mrb[0].mxu0
        %v3573 = vpop.f32.mrb[0].mxu0
        %v3574 = vadd.f32 0.0, %v3573
        %v3575 = vpop.f32.mrb[0].mxu0
        %3576 = vmatprep.mubr.bf16.mxu0 0
        %3577 = vmatmul.mubr.bf16.gmra.mrb[0].mxu0 %v3403
        %v3578 = vpop.f32.mrb[0].mxu0
        %v3579 = vadd.f32 0.0, %v3578
        %v3580 = vpop.f32.mrb[0].mxu0
        %v3581 = vpop.f32.mrb[0].mxu0
        %v3582 = vadd.f32 0.0, %v3581
        %v3583 = vpop.f32.mrb[0].mxu0
        %3584 = vdwg.mxu0
        %v3585 = vadd.f32 %v3271, %v3443
        %v3586 = vadd.f32 %v3272, %v3446
        %v3587 = vadd.f32 %v3273, %v3451
        %v3588 = vadd.f32 %v3274, %v3454
        %v3589 = vadd.f32 %v3275, %v3459
        %v3590 = vadd.f32 %v3276, %v3462
        %v3591 = vadd.f32 %v3277, %v3467
        %v3592 = vadd.f32 %v3278, %v3470
        %v3593 = vadd.f32 %v3279, %v3475
        %v3594 = vadd.f32 %v3280, %v3478
        %v3595 = vadd.f32 %v3281, %v3483
        %v3596 = vadd.f32 %v3282, %v3486
        %v3597 = vadd.f32 %v3283, %v3491
        %v3598 = vadd.f32 %v3284, %v3494
        %v3599 = vadd.f32 %v3285, %v3499
        %v3600 = vadd.f32 %v3286, %v3502
        %v3601 = vadd.f32 %v3287, %v3507
        %v3602 = vadd.f32 %v3288, %v3510
        %v3603 = vadd.f32 %v3289, %v3515
        %v3604 = vadd.f32 %v3290, %v3518
        %v3605 = vadd.f32 %v3291, %v3523
        %v3606 = vadd.f32 %v3292, %v3526
        %v3607 = vadd.f32 %v3293, %v3531
        %v3608 = vadd.f32 %v3294, %v3534
        %v3609 = vadd.f32 %v3295, %v3539
        %v3610 = vadd.f32 %v3296, %v3542
        %v3611 = vadd.f32 %v3297, %v3547
        %v3612 = vadd.f32 %v3298, %v3550
        %v3613 = vadd.f32 %v3299, %v3555
        %v3614 = vadd.f32 %v3300, %v3558
        %v3615 = vadd.f32 %v3301, %v3563
        %v3616 = vadd.f32 %v3302, %v3566
        %v3617 = vadd.f32 %v3303, %v3571
        %v3618 = vadd.f32 %v3304, %v3574
        %v3619 = vadd.f32 %v3305, %v3579
        %v3620 = vadd.f32 %v3306, %v3582
        %v3621 = vld [vmem:[%s2] sm:$0x1]
        %v3623 = vlaneseq
        %v3624 = vshrl.u32 %v3623, 7
        %v3625 = vsub.s32 0, %v3624
        %v3626 = vrot.slane %v3621, %v3625
        %v3628 = vadd.f32 %v3585, %v3626
        %v3629 = vadd.f32 %v3586, %v3626
        %v3630 = vadd.f32 %v3587, %v3626
        %v3631 = vadd.f32 %v3588, %v3626
        %v3632 = vadd.f32 %v3589, %v3626
        %v3633 = vadd.f32 %v3590, %v3626
        %v3634 = vadd.f32 %v3591, %v3626
        %v3635 = vadd.f32 %v3592, %v3626
        %v3636 = vadd.f32 %v3593, %v3626
        %v3637 = vadd.f32 %v3594, %v3626
        %v3638 = vadd.f32 %v3595, %v3626
        %v3639 = vadd.f32 %v3596, %v3626
        %v3640 = vadd.f32 %v3597, %v3626
        %v3641 = vadd.f32 %v3598, %v3626
        %v3642 = vadd.f32 %v3599, %v3626
        %v3643 = vadd.f32 %v3600, %v3626
        %v3644 = vadd.f32 %v3601, %v3626
        %v3645 = vadd.f32 %v3602, %v3626
        %v3646 = vadd.f32 %v3603, %v3626
        %v3647 = vadd.f32 %v3604, %v3626
        %v3648 = vadd.f32 %v3605, %v3626
        %v3649 = vadd.f32 %v3606, %v3626
        %v3650 = vadd.f32 %v3607, %v3626
        %v3651 = vadd.f32 %v3608, %v3626
        %v3652 = vadd.f32 %v3609, %v3626
        %v3653 = vadd.f32 %v3610, %v3626
        %v3654 = vadd.f32 %v3611, %v3626
        %v3655 = vadd.f32 %v3612, %v3626
        %v3656 = vadd.f32 %v3613, %v3626
        %v3657 = vadd.f32 %v3614, %v3626
        %v3658 = vadd.f32 %v3615, %v3626
        %v3659 = vadd.f32 %v3616, %v3626
        %v3660 = vadd.f32 %v3617, %v3626
        %v3661 = vadd.f32 %v3618, %v3626
        %v3662 = vadd.f32 %v3619, %v3626
        %v3663 = vadd.f32 %v3620, %v3626
        %v3664 = vmax.f32 %v3628, 0.0
        %v3665 = vmax.f32 %v3629, 0.0
        %v3666 = vmax.f32 %v3630, 0.0
        %v3667 = vmax.f32 %v3631, 0.0
        %v3668 = vmax.f32 %v3632, 0.0
        %v3669 = vmax.f32 %v3633, 0.0
        %v3670 = vmax.f32 %v3634, 0.0
        %v3671 = vmax.f32 %v3635, 0.0
        %v3672 = vmax.f32 %v3636, 0.0
        %v3673 = vmax.f32 %v3637, 0.0
        %v3674 = vmax.f32 %v3638, 0.0
        %v3675 = vmax.f32 %v3639, 0.0
        %v3676 = vmax.f32 %v3640, 0.0
        %v3677 = vmax.f32 %v3641, 0.0
        %v3678 = vmax.f32 %v3642, 0.0
        %v3679 = vmax.f32 %v3643, 0.0
        %v3680 = vmax.f32 %v3644, 0.0
        %v3681 = vmax.f32 %v3645, 0.0
        %v3682 = vmax.f32 %v3646, 0.0
        %v3683 = vmax.f32 %v3647, 0.0
        %v3684 = vmax.f32 %v3648, 0.0
        %v3685 = vmax.f32 %v3649, 0.0
        %v3686 = vmax.f32 %v3650, 0.0
        %v3687 = vmax.f32 %v3651, 0.0
        %v3688 = vmax.f32 %v3652, 0.0
        %v3689 = vmax.f32 %v3653, 0.0
        %v3690 = vmax.f32 %v3654, 0.0
        %v3691 = vmax.f32 %v3655, 0.0
        %v3692 = vmax.f32 %v3656, 0.0
        %v3693 = vmax.f32 %v3657, 0.0
        %v3694 = vmax.f32 %v3658, 0.0
        %v3695 = vmax.f32 %v3659, 0.0
        %v3696 = vmax.f32 %v3660, 0.0
        %v3697 = vmax.f32 %v3661, 0.0
        %v3698 = vmax.f32 %v3662, 0.0
        %v3699 = vmax.f32 %v3663, 0.0
        %vm3700 = vcmask 523264
        %3701 = vst.msk [vmem:[#allocation2] sm:$0xff] %vm3700, %v3664
        %3702 = vst.msk [vmem:[#allocation2 + $0x8] sm:$0xff] %vm3700, %v3665
        %3703 = vst.msk [vmem:[#allocation2 + $0x10] sm:$0xff] %vm3700, %v3666
        %3704 = vst.msk [vmem:[#allocation2 + $0x18] sm:$0xff] %vm3700, %v3667
        %3705 = vst.msk [vmem:[#allocation2 + $0x20] sm:$0xff] %vm3700, %v3668
        %3706 = vst.msk [vmem:[#allocation2 + $0x28] sm:$0xff] %vm3700, %v3669
        %3707 = vst.msk [vmem:[#allocation2 + $0x30] sm:$0xff] %vm3700, %v3670
        %3708 = vst.msk [vmem:[#allocation2 + $0x38] sm:$0xff] %vm3700, %v3671
        %3709 = vst.msk [vmem:[#allocation2 + $0x40] sm:$0xff] %vm3700, %v3672
        %3710 = vst.msk [vmem:[#allocation2 + $0x48] sm:$0xff] %vm3700, %v3673
        %3711 = vst.msk [vmem:[#allocation2 + $0x50] sm:$0xff] %vm3700, %v3674
        %3712 = vst.msk [vmem:[#allocation2 + $0x58] sm:$0xff] %vm3700, %v3675
        %3713 = vst.msk [vmem:[#allocation2 + $0x60] sm:$0xff] %vm3700, %v3676
        %3714 = vst.msk [vmem:[#allocation2 + $0x68] sm:$0xff] %vm3700, %v3677
        %3715 = vst.msk [vmem:[#allocation2 + $0x70] sm:$0xff] %vm3700, %v3678
        %3716 = vst.msk [vmem:[#allocation2 + $0x78] sm:$0xff] %vm3700, %v3679
        %3717 = vst.msk [vmem:[#allocation2 + $0x80] sm:$0xff] %vm3700, %v3680
        %3718 = vst.msk [vmem:[#allocation2 + $0x88] sm:$0xff] %vm3700, %v3681
        %3719 = vst.msk [vmem:[#allocation2 + $0x90] sm:$0xff] %vm3700, %v3682
        %3720 = vst.msk [vmem:[#allocation2 + $0x98] sm:$0xff] %vm3700, %v3683
        %3721 = vst.msk [vmem:[#allocation2 + $0xa0] sm:$0xff] %vm3700, %v3684
        %3722 = vst.msk [vmem:[#allocation2 + $0xa8] sm:$0xff] %vm3700, %v3685
        %3723 = vst.msk [vmem:[#allocation2 + $0xb0] sm:$0xff] %vm3700, %v3686
        %3724 = vst.msk [vmem:[#allocation2 + $0xb8] sm:$0xff] %vm3700, %v3687
        %3725 = vst.msk [vmem:[#allocation2 + $0xc0] sm:$0xff] %vm3700, %v3688
        %3726 = vst.msk [vmem:[#allocation2 + $0xc8] sm:$0xff] %vm3700, %v3689
        %3727 = vst.msk [vmem:[#allocation2 + $0xd0] sm:$0xff] %vm3700, %v3690
        %3728 = vst.msk [vmem:[#allocation2 + $0xd8] sm:$0xff] %vm3700, %v3691
        %3729 = vst.msk [vmem:[#allocation2 + $0xe0] sm:$0xff] %vm3700, %v3692
        %3730 = vst.msk [vmem:[#allocation2 + $0xe8] sm:$0xff] %vm3700, %v3693
        %3731 = vst.msk [vmem:[#allocation2 + $0xf0] sm:$0xff] %vm3700, %v3694
        %3732 = vst.msk [vmem:[#allocation2 + $0xf8] sm:$0xff] %vm3700, %v3695
        %3733 = vst.msk [vmem:[#allocation2 + $0x100] sm:$0xff] %vm3700, %v3696
        %3734 = vst.msk [vmem:[#allocation2 + $0x108] sm:$0xff] %vm3700, %v3697
        %3735 = vst.msk [vmem:[#allocation2 + $0x110] sm:$0xff] %vm3700, %v3698
        %3736 = vst.msk [vmem:[#allocation2 + $0x118] sm:$0xff] %vm3700, %v3699
        %v3737 = vld [vmem:[#allocation2] sm:$0xff]
        %v3738 = vld [vmem:[#allocation2 + $0x8] sm:$0xff]
        %v3739 = vpack.c.bf16 %v3738, %v3737
        %v3741 = vunpack.c.l.b16 %v3739
        %v3742 = vunpack.c.h.b16 %v3739
        %v3743 = vpack.c.b16 %v3741, %v3741
        %v3744 = vpack.c.b16 %v3742, %v3742
        %vm3747 = vcmask 519168
        %3748 = vst.msk [vmem:[%s163] sm:$0xf] %vm3747, %v3743
        %3749 = vst.msk [vmem:[%s163 + $0x4] sm:$0xf] %vm3747, %v3744
        %v3750 = vld [vmem:[#allocation2 + $0x12] sm:$0xff]
        %v3751 = vld [vmem:[#allocation2 + $0x1a] sm:$0xff]
        %v3752 = vpack.c.bf16 %v3751, %v3750
        %v3754 = vunpack.c.l.b16 %v3752
        %v3755 = vunpack.c.h.b16 %v3752
        %v3756 = vpack.c.b16 %v3754, %v3754
        %v3757 = vpack.c.b16 %v3755, %v3755
        %s3760 = scalar_lea.vmem %s163, 8 [#allocation3]
        %3761 = vst.msk [vmem:[%s3760] sm:$0xf] %vm3747, %v3756
        %3762 = vst.msk [vmem:[%s3760 + $0x4] sm:$0xf] %vm3747, %v3757
        %v3763 = vld [vmem:[#allocation2 + $0x24] sm:$0xff]
        %v3764 = vld [vmem:[#allocation2 + $0x2c] sm:$0xff]
        %v3765 = vpack.c.bf16 %v3764, %v3763
        %v3767 = vunpack.c.l.b16 %v3765
        %v3768 = vunpack.c.h.b16 %v3765
        %v3769 = vpack.c.b16 %v3767, %v3767
        %v3770 = vpack.c.b16 %v3768, %v3768
        %s3773 = scalar_lea.vmem %s163, 16 [#allocation3]
        %3774 = vst.msk [vmem:[%s3773] sm:$0xf] %vm3747, %v3769
        %3775 = vst.msk [vmem:[%s3773 + $0x4] sm:$0xf] %vm3747, %v3770
        %v3776 = vld [vmem:[#allocation2 + $0x36] sm:$0xff]
        %v3777 = vld [vmem:[#allocation2 + $0x3e] sm:$0xff]
        %v3778 = vpack.c.bf16 %v3777, %v3776
        %v3780 = vunpack.c.l.b16 %v3778
        %v3781 = vunpack.c.h.b16 %v3778
        %v3782 = vpack.c.b16 %v3780, %v3780
        %v3783 = vpack.c.b16 %v3781, %v3781
        %s3786 = scalar_lea.vmem %s163, 24 [#allocation3]
        %3787 = vst.msk [vmem:[%s3786] sm:$0xf] %vm3747, %v3782
        %3788 = vst.msk [vmem:[%s3786 + $0x4] sm:$0xf] %vm3747, %v3783
        %v3789 = vld [vmem:[#allocation2 + $0x48] sm:$0xff]
        %v3790 = vld [vmem:[#allocation2 + $0x50] sm:$0xff]
        %v3791 = vpack.c.bf16 %v3790, %v3789
        %v3793 = vunpack.c.l.b16 %v3791
        %v3794 = vunpack.c.h.b16 %v3791
        %v3795 = vpack.c.b16 %v3793, %v3793
        %v3796 = vpack.c.b16 %v3794, %v3794
        %s3799 = scalar_lea.vmem %s163, 32 [#allocation3]
        %3800 = vst.msk [vmem:[%s3799] sm:$0xf] %vm3747, %v3795
        %3801 = vst.msk [vmem:[%s3799 + $0x4] sm:$0xf] %vm3747, %v3796
        %v3802 = vld [vmem:[#allocation2 + $0x5a] sm:$0xff]
        %v3803 = vld [vmem:[#allocation2 + $0x62] sm:$0xff]
        %v3804 = vpack.c.bf16 %v3803, %v3802
        %v3806 = vunpack.c.l.b16 %v3804
        %v3807 = vunpack.c.h.b16 %v3804
        %v3808 = vpack.c.b16 %v3806, %v3806
        %v3809 = vpack.c.b16 %v3807, %v3807
        %s3812 = scalar_lea.vmem %s163, 40 [#allocation3]
        %3813 = vst.msk [vmem:[%s3812] sm:$0xf] %vm3747, %v3808
        %3814 = vst.msk [vmem:[%s3812 + $0x4] sm:$0xf] %vm3747, %v3809
        %v3815 = vld [vmem:[#allocation2 + $0x6c] sm:$0xff]
        %v3816 = vld [vmem:[#allocation2 + $0x74] sm:$0xff]
        %v3817 = vpack.c.bf16 %v3816, %v3815
        %v3819 = vunpack.c.l.b16 %v3817
        %v3820 = vunpack.c.h.b16 %v3817
        %v3821 = vpack.c.b16 %v3819, %v3819
        %v3822 = vpack.c.b16 %v3820, %v3820
        %s3825 = scalar_lea.vmem %s163, 48 [#allocation3]
        %3826 = vst.msk [vmem:[%s3825] sm:$0xf] %vm3747, %v3821
        %3827 = vst.msk [vmem:[%s3825 + $0x4] sm:$0xf] %vm3747, %v3822
        %v3828 = vld [vmem:[#allocation2 + $0x7e] sm:$0xff]
        %v3829 = vld [vmem:[#allocation2 + $0x86] sm:$0xff]
        %v3830 = vpack.c.bf16 %v3829, %v3828
        %v3832 = vunpack.c.l.b16 %v3830
        %v3833 = vunpack.c.h.b16 %v3830
        %v3834 = vpack.c.b16 %v3832, %v3832
        %v3835 = vpack.c.b16 %v3833, %v3833
        %s3838 = scalar_lea.vmem %s163, 56 [#allocation3]
        %3839 = vst.msk [vmem:[%s3838] sm:$0xf] %vm3747, %v3834
        %3840 = vst.msk [vmem:[%s3838 + $0x4] sm:$0xf] %vm3747, %v3835
        %v3841 = vld [vmem:[#allocation2 + $0x90] sm:$0xff]
        %v3842 = vld [vmem:[#allocation2 + $0x98] sm:$0xff]
        %v3843 = vpack.c.bf16 %v3842, %v3841
        %v3845 = vunpack.c.l.b16 %v3843
        %v3846 = vunpack.c.h.b16 %v3843
        %v3847 = vpack.c.b16 %v3845, %v3845
        %v3848 = vpack.c.b16 %v3846, %v3846
        %s3851 = scalar_lea.vmem %s163, 64 [#allocation3]
        %3852 = vst.msk [vmem:[%s3851] sm:$0xf] %vm3747, %v3847
        %3853 = vst.msk [vmem:[%s3851 + $0x4] sm:$0xf] %vm3747, %v3848
        %v3854 = vld [vmem:[#allocation2 + $0xa2] sm:$0xff]
        %v3855 = vld [vmem:[#allocation2 + $0xaa] sm:$0xff]
        %v3856 = vpack.c.bf16 %v3855, %v3854
        %v3858 = vunpack.c.l.b16 %v3856
        %v3859 = vunpack.c.h.b16 %v3856
        %v3860 = vpack.c.b16 %v3858, %v3858
        %v3861 = vpack.c.b16 %v3859, %v3859
        %s3864 = scalar_lea.vmem %s163, 72 [#allocation3]
        %3865 = vst.msk [vmem:[%s3864] sm:$0xf] %vm3747, %v3860
        %3866 = vst.msk [vmem:[%s3864 + $0x4] sm:$0xf] %vm3747, %v3861
        %v3867 = vld [vmem:[#allocation2 + $0xb4] sm:$0xff]
        %v3868 = vld [vmem:[#allocation2 + $0xbc] sm:$0xff]
        %v3869 = vpack.c.bf16 %v3868, %v3867
        %v3871 = vunpack.c.l.b16 %v3869
        %v3872 = vunpack.c.h.b16 %v3869
        %v3873 = vpack.c.b16 %v3871, %v3871
        %v3874 = vpack.c.b16 %v3872, %v3872
        %s3877 = scalar_lea.vmem %s163, 80 [#allocation3]
        %3878 = vst.msk [vmem:[%s3877] sm:$0xf] %vm3747, %v3873
        %3879 = vst.msk [vmem:[%s3877 + $0x4] sm:$0xf] %vm3747, %v3874
        %v3880 = vld [vmem:[#allocation2 + $0xc6] sm:$0xff]
        %v3881 = vld [vmem:[#allocation2 + $0xce] sm:$0xff]
        %v3882 = vpack.c.bf16 %v3881, %v3880
        %v3884 = vunpack.c.l.b16 %v3882
        %v3885 = vunpack.c.h.b16 %v3882
        %v3886 = vpack.c.b16 %v3884, %v3884
        %v3887 = vpack.c.b16 %v3885, %v3885
        %s3890 = scalar_lea.vmem %s163, 88 [#allocation3]
        %3891 = vst.msk [vmem:[%s3890] sm:$0xf] %vm3747, %v3886
        %3892 = vst.msk [vmem:[%s3890 + $0x4] sm:$0xf] %vm3747, %v3887
        %v3893 = vld [vmem:[#allocation2 + $0xd8] sm:$0xff]
        %v3894 = vld [vmem:[#allocation2 + $0xe0] sm:$0xff]
        %v3895 = vpack.c.bf16 %v3894, %v3893
        %v3897 = vunpack.c.l.b16 %v3895
        %v3898 = vunpack.c.h.b16 %v3895
        %v3899 = vpack.c.b16 %v3897, %v3897
        %v3900 = vpack.c.b16 %v3898, %v3898
        %s3903 = scalar_lea.vmem %s163, 96 [#allocation3]
        %3904 = vst.msk [vmem:[%s3903] sm:$0xf] %vm3747, %v3899
        %3905 = vst.msk [vmem:[%s3903 + $0x4] sm:$0xf] %vm3747, %v3900
        %v3906 = vld [vmem:[#allocation2 + $0xea] sm:$0xff]
        %v3907 = vld [vmem:[#allocation2 + $0xf2] sm:$0xff]
        %v3908 = vpack.c.bf16 %v3907, %v3906
        %v3910 = vunpack.c.l.b16 %v3908
        %v3911 = vunpack.c.h.b16 %v3908
        %v3912 = vpack.c.b16 %v3910, %v3910
        %v3913 = vpack.c.b16 %v3911, %v3911
        %s3916 = scalar_lea.vmem %s163, 104 [#allocation3]
        %3917 = vst.msk [vmem:[%s3916] sm:$0xf] %vm3747, %v3912
        %3918 = vst.msk [vmem:[%s3916 + $0x4] sm:$0xf] %vm3747, %v3913
        %v3919 = vld [vmem:[#allocation2 + $0xfc] sm:$0xff]
        %v3920 = vld [vmem:[#allocation2 + $0x104] sm:$0xff]
        %v3921 = vpack.c.bf16 %v3920, %v3919
        %v3923 = vunpack.c.l.b16 %v3921
        %v3924 = vunpack.c.h.b16 %v3921
        %v3925 = vpack.c.b16 %v3923, %v3923
        %v3926 = vpack.c.b16 %v3924, %v3924
        %s3929 = scalar_lea.vmem %s163, 112 [#allocation3]
        %3930 = vst.msk [vmem:[%s3929] sm:$0xf] %vm3747, %v3925
        %3931 = vst.msk [vmem:[%s3929 + $0x4] sm:$0xf] %vm3747, %v3926
        %v3932 = vld [vmem:[#allocation2 + $0x10e] sm:$0xff]
        %v3933 = vld [vmem:[#allocation2 + $0x116] sm:$0xff]
        %v3934 = vpack.c.bf16 %v3933, %v3932
        %v3936 = vunpack.c.l.b16 %v3934
        %v3937 = vunpack.c.h.b16 %v3934
        %v3938 = vpack.c.b16 %v3936, %v3936
        %v3939 = vpack.c.b16 %v3937, %v3937
        %s3942 = scalar_lea.vmem %s163, 120 [#allocation3]
        %3943 = vst.msk [vmem:[%s3942] sm:$0xf] %vm3747, %v3938
        %3944 = vst.msk [vmem:[%s3942 + $0x4] sm:$0xf] %vm3747, %v3939
        %s3945 = sand.u32 %s93, 1
        %s3946 = scalar_lea.sflag [#allocation4], %s3945
        %s3947 = sand.u32 %s93, 1
        %s3948 = smul.addr %s3947, 128
        %s3949 = scalar_lea.vmem [#allocation3], %s3948
        // Predicated region
        $region33: #{tpu_custom_call.1} parent=31 // pred_check
          %p3950 = pneg %p103
        $region34: #{tpu_custom_call.1} parent=31 // pred_check_branch
          %3952 = sbr.rel (%p3950) target = $region36
        $region35: #{tpu_custom_call.1} parent=31 // pred_region
          %s3954 = ssub.s32 2048, 2048
          %3955 = vsyncadd %s3946, %s3954
          %s3956 = smul.addr %s17, 32
          %s3957 = smul.addr %s3956, 64
          %s3958 = scalar_lea.hbm %s3, %s3957
          %s3959 = sshll.u32 %s3949, 4
          %s3960 = int_to_ptr.vmem [resolvable:$true] %s3959
          %3965 = dma.vmem_to_hbm [thread:$0]  %s3960, 2048, %s3958, %s3946, 64, 64, 4
        $region36: #{tpu_custom_call.1} parent=31 // pred_fallthru
          _
      $region32: #{tpu_custom_call.1} parent=5 // pred_fallthru
        _
      %p3966 = scmp.le.s32.totalorder 2, %s12
      // Predicated region
      $region37: #{tpu_custom_call.1} parent=5 // pred_check
        %p3967 = pneg %p3966
      $region38: #{tpu_custom_call.1} parent=5 // pred_check_branch
        %3969 = sbr.rel (%p3967) target = $region40
      $region39: #{tpu_custom_call.1} parent=5 // pred_region
        %s3970 = ssub.s32 %s12, 2
        // Predicated region
        $region41: #{tpu_custom_call.1} parent=39 // pred_check
          %p3971 = pneg %p109
        $region42: #{tpu_custom_call.1} parent=39 // pred_check_branch
          %3973 = sbr.rel (%p3971) target = $region44
        $region43: #{tpu_custom_call.1} parent=39 // pred_region
          %s3974 = sand.u32 %s94, 1
          %s3975 = scalar_lea.sflag [#allocation4], %s3974
          %s3976 = sand.u32 %s94, 1
          %s3977 = smul.addr %s3976, 128
          %s3978 = scalar_lea.vmem [#allocation3], %s3977
          %3979 = dma.done %s3975, 2048
        $region44: #{tpu_custom_call.1} parent=39 // pred_fallthru
          _
      $region40: #{tpu_custom_call.1} parent=5 // pred_fallthru
        _
    $region6: #{tpu_custom_call.1} parent=1 // loop_footer
      %s16 = sadd.s32 1, %s12
    $region7: #{tpu_custom_call.1} parent=1 // loop_footer_branch
      %11 = sbr.rel target = $region3
    $region8: #{tpu_custom_call.1} parent=1 // loop_exit
      _
    %3980 = vsyncpa [#allocation4], 1
    %s3981 = scalar_lea.sflag [#allocation4], 1
    %3982 = vsyncpa %s3981, 1

// kernel: tpu_custom_call.1
$region0: #{tpu_custom_call.1}
  #allocation0 [shape = 'u32[]', space=smem, size = 0x4, offset = 0x4, fixed_abs, tag = 'smem constant byte address 0x4 - core index']
  #allocation1 [shape = 'u32[144,128]{1,0:T(1,128)}', space=vmem, size = 0x12000, scoped, tag = 'internal scratch']
  #allocation2 [shape = 'f32[288,64]{1,0:T(8,128)}', space=vmem, size = 0x24000, scoped, tag = 'scratch operand']
  %s0 = inlined_call_operand.vmem [shape: bf16[2,342,3], index: 0, kind: input, shape index: {}]
  %s1 = inlined_call_operand.vmem [shape: bf16[9,3,64], index: 1, kind: input, shape index: {}]
  %s2 = inlined_call_operand.vmem [shape: f32[1,64], index: 2, kind: input, shape index: {}]
  %s3 = inlined_call_operand.hbm [shape: bf16[2,16,16,64], index: 3, kind: output, shape index: {}]
  %s4 = sld [smem:[#allocation0]]
  $region45: #{tpu_custom_call.1} parent=0
    _
  %s6 = ssub.s32 1, %s4
  %s7 = scalar_select 0, %s6, %s4
  $region1: #{tpu_custom_call.1} parent=0
    #allocation3 [shape = 'u8[131072]{0}', space=vmem, size = 0x20000, scoped, tag = 'output window, operand 0']
    #allocation4 [shape = 's32[2]{0}', space=sflag, size = 0x8, scoped, tag = 'scoped memory for tpu_custom_call.1']
    %8 = vsyncpa [#allocation4], 0
    %s9 = scalar_lea.sflag [#allocation4], 1
    %10 = vsyncpa %s9, 0
    loop: start=0, step=1, limit=4
    $region2: #{tpu_custom_call.1} parent=1 // loop_pre_header
      _
    $region3: #{tpu_custom_call.1} parent=1 // loop_header
      %s12 = sphi 0, %s16
      %p13 = scmp.ge.s32.totalorder %s12, 4
      %s22 = sphi 0, %s24
      %s25 = sphi 0, %s22
      %s26 = sphi 0, %s25
      %s42 = sphi 0, %s26
      %s46 = sphi 0, %s46
      %s48 = sphi 0, %s46
      %s49 = sphi 0, %s48
      %s63 = sphi 0, %s49
      %s67 = sphi 0, %s67
      %s69 = sphi 0, %s67
      %s70 = sphi 0, %s69
      %s84 = sphi 0, %s70
      %s90 = sphi 0, %s92
      %s93 = sphi 0, %s90
      %s94 = sphi 0, %s93
      %s110 = sphi 0, %s94
    $region4: #{tpu_custom_call.1} parent=1 // loop_header_branch
      %15 = sbr.rel (%p13) target = $region8
    $region5: #{tpu_custom_call.1} parent=1 // loop_body
      %s17 = ssub.s32 %s12, 1
      %s18 = ssub.s32 %s12, 2
      %s19 = sadd.s32 %s12, 1
      %s20 = ssub.s32 %s12, %s19
      %p21 = scmp.eq.s32.totalorder %s20, 0
      %s23 = sadd.s32 %s22, 1
      %s24 = scalar_select %p21, %s22, %s23
      %p27 = pneg %p21
      %p28 = scmp.eq.s32.totalorder %s12, 1
      %p29 = por %p27, %p28
      %p30 = scmp.ne.s32.totalorder %s22, %s25
      %p31 = scmp.eq.s32.totalorder %s12, 0
      %p32 = por %p30, %p31
      %p33 = scmp.ne.s32.totalorder %s22, %s25
      %p34 = scmp.eq.s32.totalorder %s17, 1
      %p35 = por %p33, %p34
      %p36 = scmp.ne.s32.totalorder %s25, %s26
      %p37 = scmp.eq.s32.totalorder %s17, 0
      %p38 = por %p36, %p37
      %p39 = scmp.ne.s32.totalorder %s25, %s26
      %p40 = scmp.eq.s32.totalorder %s18, 1
      %p41 = por %p39, %p40
      %p43 = scmp.ne.s32.totalorder %s26, %s42
      %p44 = scmp.eq.s32.totalorder %s18, 0
      %p45 = por %p43, %p44
      %s47 = sadd.s32 %s46, 1
      %p50 = scmp.eq.s32.totalorder %s12, 1
      %p51 = scmp.ne.s32.totalorder %s46, %s48
      %p52 = scmp.eq.s32.totalorder %s12, 0
      %p53 = por %p51, %p52
      %p54 = scmp.ne.s32.totalorder %s46, %s48
      %p55 = scmp.eq.s32.totalorder %s17, 1
      %p56 = por %p54, %p55
      %p57 = scmp.ne.s32.totalorder %s48, %s49
      %p58 = scmp.eq.s32.totalorder %s17, 0
      %p59 = por %p57, %p58
      %p60 = scmp.ne.s32.totalorder %s48, %s49
      %p61 = scmp.eq.s32.totalorder %s18, 1
      %p62 = por %p60, %p61
      %p64 = scmp.ne.s32.totalorder %s49, %s63
      %p65 = scmp.eq.s32.totalorder %s18, 0
      %p66 = por %p64, %p65
      %s68 = sadd.s32 %s67, 1
      %p71 = scmp.eq.s32.totalorder %s12, 1
      %p72 = scmp.ne.s32.totalorder %s67, %s69
      %p73 = scmp.eq.s32.totalorder %s12, 0
      %p74 = por %p72, %p73
      %p75 = scmp.ne.s32.totalorder %s67, %s69
      %p76 = scmp.eq.s32.totalorder %s17, 1
      %p77 = por %p75, %p76
      %p78 = scmp.ne.s32.totalorder %s69, %s70
      %p79 = scmp.eq.s32.totalorder %s17, 0
      %p80 = por %p78, %p79
      %p81 = scmp.ne.s32.totalorder %s69, %s70
      %p82 = scmp.eq.s32.totalorder %s18, 1
      %p83 = por %p81, %p82
      %p85 = scmp.ne.s32.totalorder %s70, %s84
      %p86 = scmp.eq.s32.totalorder %s18, 0
      %p87 = por %p85, %p86
      %s88 = ssub.s32 %s12, %s19
      %p89 = scmp.eq.s32.totalorder %s88, 0
      %s91 = sadd.s32 %s90, 1
      %s92 = scalar_select %p89, %s90, %s91
      %p95 = pneg %p89
      %p96 = scmp.eq.s32.totalorder %s12, 1
      %p97 = por %p95, %p96
      %p98 = scmp.ne.s32.totalorder %s90, %s93
      %p99 = scmp.eq.s32.totalorder %s12, 0
      %p100 = por %p98, %p99
      %p101 = scmp.ne.s32.totalorder %s90, %s93
      %p102 = scmp.eq.s32.totalorder %s17, 1
      %p103 = por %p101, %p102
      %p104 = scmp.ne.s32.totalorder %s93, %s94
      %p105 = scmp.eq.s32.totalorder %s17, 0
      %p106 = por %p104, %p105
      %p107 = scmp.ne.s32.totalorder %s93, %s94
      %p108 = scmp.eq.s32.totalorder %s18, 1
      %p109 = por %p107, %p108
      %p111 = scmp.ne.s32.totalorder %s94, %s110
      %p112 = scmp.eq.s32.totalorder %s18, 0
      %p113 = por %p111, %p112
      %p114 = scmp.le.s32.totalorder 1, %s12
      %p115 = scmp.lt.s32.totalorder %s12, 3
      %p116 = pnand %p114, %p115
      %p117 = pneg %p116
      // Predicated region
      $region9: #{tpu_custom_call.1} parent=5 // pred_check
        _
      $region10: #{tpu_custom_call.1} parent=5 // pred_check_branch
        %119 = sbr.rel (%p116) target = $region12
      $region11: #{tpu_custom_call.1} parent=5 // pred_region
        %s120 = ssub.s32 %s12, 1
        // Predicated region
        $region13: #{tpu_custom_call.1} parent=11 // pred_check
          %p121 = pneg %p59
        $region14: #{tpu_custom_call.1} parent=11 // pred_check_branch
          %123 = sbr.rel (%p121) target = $region16
        $region15: #{tpu_custom_call.1} parent=11 // pred_region
          _
        $region16: #{tpu_custom_call.1} parent=11 // pred_fallthru
          _
        // Predicated region
        $region17: #{tpu_custom_call.1} parent=11 // pred_check
          %p124 = pneg %p80
        $region18: #{tpu_custom_call.1} parent=11 // pred_check_branch
          %126 = sbr.rel (%p124) target = $region20
        $region19: #{tpu_custom_call.1} parent=11 // pred_region
          _
        $region20: #{tpu_custom_call.1} parent=11 // pred_fallthru
          _
      $region12: #{tpu_custom_call.1} parent=5 // pred_fallthru
        _
      %p127 = scmp.lt.s32.totalorder %s12, 2
      // Predicated region
      $region21: #{tpu_custom_call.1} parent=5 // pred_check
        %p128 = pneg %p127
      $region22: #{tpu_custom_call.1} parent=5 // pred_check_branch
        %130 = sbr.rel (%p128) target = $region24
      $region23: #{tpu_custom_call.1} parent=5 // pred_region
        // Predicated region
        $region25: #{tpu_custom_call.1} parent=23 // pred_check
          %p131 = pneg %p32
        $region26: #{tpu_custom_call.1} parent=23 // pred_check_branch
          %133 = sbr.rel (%p131) target = $region28
        $region27: #{tpu_custom_call.1} parent=23 // pred_region
          %p134 = scmp.lt.s32.totalorder %s12, 1
          %s135 = scalar_select %p134, %s12, 1
          %s136 = smul.addr %s135, 43
          %s137 = smul.addr %s136, 4
          %s138 = scalar_lea.vmem %s0, %s137
        $region28: #{tpu_custom_call.1} parent=23 // pred_fallthru
          _
      $region24: #{tpu_custom_call.1} parent=5 // pred_fallthru
        _
      %p139 = scmp.le.s32.totalorder 1, %s12
      %p140 = scmp.lt.s32.totalorder %s12, 3
      %p141 = pnand %p139, %p140
      %p142 = pneg %p141
      // Predicated region
      $region29: #{tpu_custom_call.1} parent=5 // pred_check
        _
      $region30: #{tpu_custom_call.1} parent=5 // pred_check_branch
        %144 = sbr.rel (%p141) target = $region32
      $region31: #{tpu_custom_call.1} parent=5 // pred_region
        %s145 = ssub.s32 %s12, 1
        %p146 = scmp.lt.s32.totalorder %s17, 1
        %s147 = scalar_select %p146, %s17, 1
        %s148 = smul.addr %s147, 43
        %s149 = smul.addr %s148, 4
        %s150 = scalar_lea.vmem %s0, %s149
        %p151 = pneg %p38
        %p152 = pneg %p35
        %p153 = pneg %p59
        %p154 = pneg %p56
        %p155 = pneg %p80
        %p156 = pneg %p77
        %p157 = pneg %p106
        %p158 = pneg %p103
        %s159 = sand.u32 %s93, 1
        %s160 = scalar_lea.sflag [#allocation4], %s159
        %s161 = sand.u32 %s93, 1
        %s162 = smul.addr %s161, 128
        %s163 = scalar_lea.vmem [#allocation3], %s162
        %p164 = scmp.lt.s32.totalorder %s17, 1
        %s165 = scalar_select %p164, %s17, 1
        %s166 = smul.addr %s165, 43
        %s167 = smul.addr %s166, 4
        %s168 = scalar_lea.vmem %s0, %s167
        %v170 = vld [vmem:[%s168] sm:$0xf]
        %v171 = vld [vmem:[%s168 + $0x4] sm:$0xf]
        %v172 = vld [vmem:[%s168 + $0x8] sm:$0xf]
        %v173 = vld [vmem:[%s168 + $0xc] sm:$0xf]
        %v174 = vld [vmem:[%s168 + $0x10] sm:$0xf]
        %v175 = vld [vmem:[%s168 + $0x14] sm:$0xf]
        %v176 = vld [vmem:[%s168 + $0x18] sm:$0xf]
        %v177 = vld [vmem:[%s168 + $0x1c] sm:$0xf]
        %v178 = vld [vmem:[%s168 + $0x20] sm:$0xf]
        %v179 = vld [vmem:[%s168 + $0x24] sm:$0xf]
        %v180 = vld [vmem:[%s168 + $0x28] sm:$0xf]
        %v181 = vld [vmem:[%s168 + $0x2c] sm:$0xf]
        %v182 = vld [vmem:[%s168 + $0x30] sm:$0xf]
        %v183 = vld [vmem:[%s168 + $0x34] sm:$0xf]
        %v184 = vld [vmem:[%s168 + $0x38] sm:$0xf]
        %v185 = vld [vmem:[%s168 + $0x3c] sm:$0xf]
        %v186 = vld [vmem:[%s168 + $0x40] sm:$0xf]
        %v187 = vld [vmem:[%s168 + $0x44] sm:$0xf]
        %v188 = vld [vmem:[%s168 + $0x48] sm:$0xf]
        %v189 = vld [vmem:[%s168 + $0x4c] sm:$0xf]
        %v190 = vld [vmem:[%s168 + $0x50] sm:$0xf]
        %v191 = vld [vmem:[%s168 + $0x54] sm:$0xf]
        %v192 = vld [vmem:[%s168 + $0x58] sm:$0xf]
        %v193 = vld [vmem:[%s168 + $0x5c] sm:$0xf]
        %v194 = vld [vmem:[%s168 + $0x60] sm:$0xf]
        %v195 = vld [vmem:[%s168 + $0x64] sm:$0xf]
        %v196 = vld [vmem:[%s168 + $0x68] sm:$0xf]
        %v197 = vld [vmem:[%s168 + $0x6c] sm:$0xf]
        %v198 = vld [vmem:[%s168 + $0x70] sm:$0xf]
        %v199 = vld [vmem:[%s168 + $0x74] sm:$0xf]
        %v200 = vld [vmem:[%s168 + $0x78] sm:$0xf]
        %v201 = vld [vmem:[%s168 + $0x7c] sm:$0xf]
        %v202 = vld [vmem:[%s168 + $0x80] sm:$0xf]
        %v203 = vld [vmem:[%s168 + $0x84] sm:$0xf]
        %v204 = vld [vmem:[%s168 + $0x88] sm:$0xf]
        %v205 = vld [vmem:[%s168 + $0x8c] sm:$0xf]
        %v206 = vld [vmem:[%s1] sm:$0x3]
        %v207 = vld [vmem:[%s168 + $0x90] sm:$0x1]
        %s208 = scalar_lea.vmem %s1, 2
        %v209 = vld [vmem:[%s208] sm:$0x3]
        %v247 = vunpack.c.l.b16 %v170
        %v248 = vunpack.c.l.b16 %v171
        %v249 = vunpack.c.l.b16 %v172
        %v250 = vunpack.c.l.b16 %v173
        %v251 = vunpack.c.l.b16 %v174
        %v252 = vunpack.c.l.b16 %v175
        %v253 = vunpack.c.l.b16 %v176
        %v254 = vunpack.c.l.b16 %v177
        %v255 = vunpack.c.l.b16 %v178
        %v256 = vunpack.c.l.b16 %v179
        %v257 = vunpack.c.l.b16 %v180
        %v258 = vunpack.c.l.b16 %v181
        %v259 = vunpack.c.l.b16 %v182
        %v260 = vunpack.c.l.b16 %v183
        %v261 = vunpack.c.l.b16 %v184
        %v262 = vunpack.c.l.b16 %v185
        %v263 = vunpack.c.l.b16 %v186
        %v264 = vunpack.c.l.b16 %v187
        %v265 = vunpack.c.l.b16 %v188
        %v266 = vunpack.c.l.b16 %v189
        %v267 = vunpack.c.l.b16 %v190
        %v268 = vunpack.c.l.b16 %v191
        %v269 = vunpack.c.l.b16 %v192
        %v270 = vunpack.c.l.b16 %v193
        %v271 = vunpack.c.l.b16 %v194
        %v272 = vunpack.c.l.b16 %v195
        %v273 = vunpack.c.l.b16 %v196
        %v274 = vunpack.c.l.b16 %v197
        %v275 = vunpack.c.l.b16 %v198
        %v276 = vunpack.c.l.b16 %v199
        %v277 = vunpack.c.l.b16 %v200
        %v278 = vunpack.c.l.b16 %v201
        %v279 = vunpack.c.l.b16 %v202
        %v280 = vunpack.c.l.b16 %v203
        %v281 = vunpack.c.l.b16 %v204
        %v282 = vunpack.c.l.b16 %v205
        %v283 = vunpack.c.l.b16 %v207
        %v284 = vpack.c.b16 %v248, %v247
        %v285 = vpack.c.b16 %v250, %v249
        %v286 = vpack.c.b16 %v252, %v251
        %v287 = vpack.c.b16 %v254, %v253
        %v288 = vpack.c.b16 %v256, %v255
        %v289 = vpack.c.b16 %v258, %v257
        %v290 = vpack.c.b16 %v260, %v259
        %v291 = vpack.c.b16 %v262, %v261
        %v292 = vpack.c.b16 %v264, %v263
        %v293 = vpack.c.b16 %v266, %v265
        %v294 = vpack.c.b16 %v268, %v267
        %v295 = vpack.c.b16 %v270, %v269
        %v296 = vpack.c.b16 %v272, %v271
        %v297 = vpack.c.b16 %v274, %v273
        %v298 = vpack.c.b16 %v276, %v275
        %v299 = vpack.c.b16 %v278, %v277
        %v300 = vpack.c.b16 %v280, %v279
        %v301 = vpack.c.b16 %v282, %v281
        %v302 = vpack.c.b16 %v283, %v283
        %vm303 = vsmask.f32 7424
        %v305 = vshrl.u32 %v284, 16
        %v307 = vshll.u32 %v284, 16
        %v309 = vrot.slane %v307, 1
        %v310 = vor.u32 %v305, %v309
        %v312 = vshll.u32 %v285, 16
        %v314 = vrot.slane %v312, 1
        %v315 = vsel %vm303, %v310, %v314
        %v316 = vshrl.u32 %v285, 16
        %v318 = vor.u32 %v316, %v314
        %v320 = vshll.u32 %v286, 16
        %v322 = vrot.slane %v320, 1
        %v323 = vsel %vm303, %v318, %v322
        %v324 = vshrl.u32 %v286, 16
        %v326 = vor.u32 %v324, %v322
        %v328 = vshll.u32 %v287, 16
        %v330 = vrot.slane %v328, 1
        %v331 = vsel %vm303, %v326, %v330
        %v332 = vshrl.u32 %v287, 16
        %v334 = vor.u32 %v332, %v330
        %v336 = vshll.u32 %v288, 16
        %v338 = vrot.slane %v336, 1
        %v339 = vsel %vm303, %v334, %v338
        %v340 = vshrl.u32 %v288, 16
        %v342 = vor.u32 %v340, %v338
        %v344 = vshll.u32 %v289, 16
        %v346 = vrot.slane %v344, 1
        %v347 = vsel %vm303, %v342, %v346
        %v348 = vshrl.u32 %v289, 16
        %v350 = vor.u32 %v348, %v346
        %v352 = vshll.u32 %v290, 16
        %v354 = vrot.slane %v352, 1
        %v355 = vsel %vm303, %v350, %v354
        %v356 = vshrl.u32 %v290, 16
        %v358 = vor.u32 %v356, %v354
        %v360 = vshll.u32 %v291, 16
        %v362 = vrot.slane %v360, 1
        %v363 = vsel %vm303, %v358, %v362
        %v364 = vshrl.u32 %v291, 16
        %v366 = vor.u32 %v364, %v362
        %v368 = vshll.u32 %v292, 16
        %v370 = vrot.slane %v368, 1
        %v371 = vsel %vm303, %v366, %v370
        %v372 = vshrl.u32 %v292, 16
        %v374 = vor.u32 %v372, %v370
        %v376 = vshll.u32 %v293, 16
        %v378 = vrot.slane %v376, 1
        %v379 = vsel %vm303, %v374, %v378
        %v380 = vshrl.u32 %v293, 16
        %v382 = vor.u32 %v380, %v378
        %v384 = vshll.u32 %v294, 16
        %v386 = vrot.slane %v384, 1
        %v387 = vsel %vm303, %v382, %v386
        %v388 = vshrl.u32 %v294, 16
        %v390 = vor.u32 %v388, %v386
        %v392 = vshll.u32 %v295, 16
        %v394 = vrot.slane %v392, 1
        %v395 = vsel %vm303, %v390, %v394
        %v396 = vshrl.u32 %v295, 16
        %v398 = vor.u32 %v396, %v394
        %v400 = vshll.u32 %v296, 16
        %v402 = vrot.slane %v400, 1
        %v403 = vsel %vm303, %v398, %v402
        %v404 = vshrl.u32 %v296, 16
        %v406 = vor.u32 %v404, %v402
        %v408 = vshll.u32 %v297, 16
        %v410 = vrot.slane %v408, 1
        %v411 = vsel %vm303, %v406, %v410
        %v412 = vshrl.u32 %v297, 16
        %v414 = vor.u32 %v412, %v410
        %v416 = vshll.u32 %v298, 16
        %v418 = vrot.slane %v416, 1
        %v419 = vsel %vm303, %v414, %v418
        %v420 = vshrl.u32 %v298, 16
        %v422 = vor.u32 %v420, %v418
        %v424 = vshll.u32 %v299, 16
        %v426 = vrot.slane %v424, 1
        %v427 = vsel %vm303, %v422, %v426
        %v428 = vshrl.u32 %v299, 16
        %v430 = vor.u32 %v428, %v426
        %v432 = vshll.u32 %v300, 16
        %v434 = vrot.slane %v432, 1
        %v435 = vsel %vm303, %v430, %v434
        %v436 = vshrl.u32 %v300, 16
        %v438 = vor.u32 %v436, %v434
        %v440 = vshll.u32 %v301, 16
        %v442 = vrot.slane %v440, 1
        %v443 = vsel %vm303, %v438, %v442
        %v444 = vshrl.u32 %v301, 16
        %v446 = vor.u32 %v444, %v442
        %v448 = vshll.u32 %v302, 16
        %v450 = vrot.slane %v448, 1
        %v451 = vsel %vm303, %v446, %v450
        %vm452 = vcmask 23552
        %v454 = vsel %vm452, %v315, 0
        %v457 = vsel %vm452, %v323, 0
        %v460 = vsel %vm452, %v331, 0
        %v463 = vsel %vm452, %v339, 0
        %v466 = vsel %vm452, %v347, 0
        %v469 = vsel %vm452, %v355, 0
        %v472 = vsel %vm452, %v363, 0
        %v475 = vsel %vm452, %v371, 0
        %v478 = vsel %vm452, %v379, 0
        %v481 = vsel %vm452, %v387, 0
        %v484 = vsel %vm452, %v395, 0
        %v487 = vsel %vm452, %v403, 0
        %v490 = vsel %vm452, %v411, 0
        %v493 = vsel %vm452, %v419, 0
        %v496 = vsel %vm452, %v427, 0
        %v499 = vsel %vm452, %v435, 0
        %v502 = vsel %vm452, %v443, 0
        %v505 = vsel %vm452, %v451, 0
        %vm507 = vcmask 1040384
        %vm508 = vcmask 1041408
        %v509 = vsel %vm507, 4294967295, 65535
        %v510 = vsel %vm508, %v509, 0
        %v512 = vand.u32 %v209, %v510
        %514 = vmatprep.subr.bf16.mxu0 0
        %515 = vmatpush1.bf16.msra.mxu0 %v512
        %516 = vmatprep.subr.bf16.mxu0 0
        %517 = vmatpush1.bf16.msra.mxu0 0
        %518 = vmatprep.subr.bf16.mxu0 0
        %519 = vmatpush1.bf16.msra.mxu0 0
        %520 = vmatprep.subr.bf16.mxu0 0
        %521 = vmatpush1.bf16.msra.mxu0 0
        %522 = vmatprep.subr.bf16.mxu0 0
        %523 = vmatpush1.bf16.msra.mxu0 0
        %524 = vmatprep.subr.bf16.mxu0 0
        %525 = vmatpush1.bf16.msra.mxu0 0
        %526 = vmatprep.subr.bf16.mxu0 0
        %527 = vmatpush1.bf16.msra.mxu0 0
        %528 = vmatprep.subr.bf16.mxu0 0
        %529 = vmatpush1.bf16.msra.mxu0 0
        %530 = vmatprep.subr.bf16.mxu0 0
        %531 = vmatpush1.bf16.msra.mxu0 0
        %532 = vmatprep.subr.bf16.mxu0 0
        %533 = vmatpush1.bf16.msra.mxu0 0
        %534 = vmatprep.subr.bf16.mxu0 0
        %535 = vmatpush1.bf16.msra.mxu0 0
        %536 = vmatprep.subr.bf16.mxu0 0
        %537 = vmatpush1.bf16.msra.mxu0 0
        %538 = vmatprep.subr.bf16.mxu0 0
        %539 = vmatpush1.bf16.msra.mxu0 0
        %540 = vmatprep.subr.bf16.mxu0 0
        %541 = vmatpush1.bf16.msra.mxu0 0
        %542 = vmatprep.subr.bf16.mxu0 0
        %543 = vmatpush1.bf16.msra.mxu0 0
        %544 = vmatprep.subr.bf16.mxu0 0
        %545 = vmatpush1.bf16.msra.mxu0 0
        %546 = vmatprep.mubr.bf16.mxu0 0
        %547 = vmatmul.mubr.bf16.gmra.mrb[0].mxu0 %v454
        %v548 = vpop.f32.mrb[0].mxu0
        %v549 = vadd.f32 0.0, %v548
        %v550 = vpop.f32.mrb[0].mxu0
        %v551 = vpop.f32.mrb[0].mxu0
        %v552 = vadd.f32 0.0, %v551
        %v553 = vpop.f32.mrb[0].mxu0
        %554 = vmatprep.mubr.bf16.mxu0 0
        %555 = vmatmul.mubr.bf16.gmra.mrb[0].mxu0 %v457
        %v556 = vpop.f32.mrb[0].mxu0
        %v557 = vadd.f32 0.0, %v556
        %v558 = vpop.f32.mrb[0].mxu0
        %v559 = vpop.f32.mrb[0].mxu0
        %v560 = vadd.f32 0.0, %v559
        %v561 = vpop.f32.mrb[0].mxu0
        %562 = vmatprep.mubr.bf16.mxu0 0
        %563 = vmatmul.mubr.bf16.gmra.mrb[0].mxu0 %v460
        %v564 = vpop.f32.mrb[0].mxu0
        %v565 = vadd.f32 0.0, %v564
        %v566 = vpop.f32.mrb[0].mxu0
        %v567 = vpop.f32.mrb[0].mxu0
        %v568 = vadd.f32 0.0, %v567
        %v569 = vpop.f32.mrb[0].mxu0
        %570 = vmatprep.mubr.bf16.mxu0 0
        %571 = vmatmul.mubr.bf16.gmra.mrb[0].mxu0 %v463
        %v572 = vpop.f32.mrb[0].mxu0
        %v573 = vadd.f32 0.0, %v572
        %v574 = vpop.f32.mrb[0].mxu0
        %v575 = vpop.f32.mrb[0].mxu0
        %v576 = vadd.f32 0.0, %v575
        %v577 = vpop.f32.mrb[0].mxu0
        %578 = vmatprep.mubr.bf16.mxu0 0
        %579 = vmatmul.mubr.bf16.gmra.mrb[0].mxu0 %v466
        %v580 = vpop.f32.mrb[0].mxu0
        %v581 = vadd.f32 0.0, %v580
        %v582 = vpop.f32.mrb[0].mxu0
        %v583 = vpop.f32.mrb[0].mxu0
        %v584 = vadd.f32 0.0, %v583
        %v585 = vpop.f32.mrb[0].mxu0
        %586 = vmatprep.mubr.bf16.mxu0 0
        %587 = vmatmul.mubr.bf16.gmra.mrb[0].mxu0 %v469
        %v588 = vpop.f32.mrb[0].mxu0
        %v589 = vadd.f32 0.0, %v588
        %v590 = vpop.f32.mrb[0].mxu0
        %v591 = vpop.f32.mrb[0].mxu0
        %v592 = vadd.f32 0.0, %v591
        %v593 = vpop.f32.mrb[0].mxu0
        %594 = vmatprep.mubr.bf16.mxu0 0
        %595 = vmatmul.mubr.bf16.gmra.mrb[0].mxu0 %v472
        %v596 = vpop.f32.mrb[0].mxu0
        %v597 = vadd.f32 0.0, %v596
        %v598 = vpop.f32.mrb[0].mxu0
        %v599 = vpop.f32.mrb[0].mxu0
        %v600 = vadd.f32 0.0, %v599
        %v601 = vpop.f32.mrb[0].mxu0
        %602 = vmatprep.mubr.bf16.mxu0 0
        %603 = vmatmul.mubr.bf16.gmra.mrb[0].mxu0 %v475
        %v604 = vpop.f32.mrb[0].mxu0
        %v605 = vadd.f32 0.0, %v604
        %v606 = vpop.f32.mrb[0].mxu0
        %v607 = vpop.f32.mrb[0].mxu0
        %v608 = vadd.f32 0.0, %v607
        %v609 = vpop.f32.mrb[0].mxu0
        %610 = vmatprep.mubr.bf16.mxu0 0
        %611 = vmatmul.mubr.bf16.gmra.mrb[0].mxu0 %v478
        %v612 = vpop.f32.mrb[0].mxu0
        %v613 = vadd.f32 0.0, %v612
        %v614 = vpop.f32.mrb[0].mxu0
        %v615 = vpop.f32.mrb[0].mxu0
        %v616 = vadd.f32 0.0, %v615
        %v617 = vpop.f32.mrb[0].mxu0
        %618 = vmatprep.mubr.bf16.mxu0 0
        %619 = vmatmul.mubr.bf16.gmra.mrb[0].mxu0 %v481
        %v620 = vpop.f32.mrb[0].mxu0
        %v621 = vadd.f32 0.0, %v620
        %v622 = vpop.f32.mrb[0].mxu0
        %v623 = vpop.f32.mrb[0].mxu0
        %v624 = vadd.f32 0.0, %v623
        %v625 = vpop.f32.mrb[0].mxu0
        %626 = vmatprep.mubr.bf16.mxu0 0
        %627 = vmatmul.mubr.bf16.gmra.mrb[0].mxu0 %v484
        %v628 = vpop.f32.mrb[0].mxu0
        %v629 = vadd.f32 0.0, %v628
        %v630 = vpop.f32.mrb[0].mxu0
        %v631 = vpop.f32.mrb[0].mxu0
        %v632 = vadd.f32 0.0, %v631
        %v633 = vpop.f32.mrb[0].mxu0
        %634 = vmatprep.mubr.bf16.mxu0 0
        %635 = vmatmul.mubr.bf16.gmra.mrb[0].mxu0 %v487
        %v636 = vpop.f32.mrb[0].mxu0
        %v637 = vadd.f32 0.0, %v636
        %v638 = vpop.f32.mrb[0].mxu0
        %v639 = vpop.f32.mrb[0].mxu0
        %v640 = vadd.f32 0.0, %v639
        %v641 = vpop.f32.mrb[0].mxu0
        %642 = vmatprep.mubr.bf16.mxu0 0
        %643 = vmatmul.mubr.bf16.gmra.mrb[0].mxu0 %v490
        %v644 = vpop.f32.mrb[0].mxu0
        %v645 = vadd.f32 0.0, %v644
        %v646 = vpop.f32.mrb[0].mxu0
        %v647 = vpop.f32.mrb[0].mxu0
        %v648 = vadd.f32 0.0, %v647
        %v649 = vpop.f32.mrb[0].mxu0
        %650 = vmatprep.mubr.bf16.mxu0 0
        %651 = vmatmul.mubr.bf16.gmra.mrb[0].mxu0 %v493
        %v652 = vpop.f32.mrb[0].mxu0
        %v653 = vadd.f32 0.0, %v652
        %v654 = vpop.f32.mrb[0].mxu0
        %v655 = vpop.f32.mrb[0].mxu0
        %v656 = vadd.f32 0.0, %v655
        %v657 = vpop.f32.mrb[0].mxu0
        %658 = vmatprep.mubr.bf16.mxu0 0
        %659 = vmatmul.mubr.bf16.gmra.mrb[0].mxu0 %v496
        %v660 = vpop.f32.mrb[0].mxu0
        %v661 = vadd.f32 0.0, %v660
        %v662 = vpop.f32.mrb[0].mxu0
        %v663 = vpop.f32.mrb[0].mxu0
        %v664 = vadd.f32 0.0, %v663
        %v665 = vpop.f32.mrb[0].mxu0
        %666 = vmatprep.mubr.bf16.mxu0 0
        %667 = vmatmul.mubr.bf16.gmra.mrb[0].mxu0 %v499
        %v668 = vpop.f32.mrb[0].mxu0
        %v669 = vadd.f32 0.0, %v668
        %v670 = vpop.f32.mrb[0].mxu0
        %v671 = vpop.f32.mrb[0].mxu0
        %v672 = vadd.f32 0.0, %v671
        %v673 = vpop.f32.mrb[0].mxu0
        %674 = vmatprep.mubr.bf16.mxu0 0
        %675 = vmatmul.mubr.bf16.gmra.mrb[0].mxu0 %v502
        %v676 = vpop.f32.mrb[0].mxu0
        %v677 = vadd.f32 0.0, %v676
        %v678 = vpop.f32.mrb[0].mxu0
        %v679 = vpop.f32.mrb[0].mxu0
        %v680 = vadd.f32 0.0, %v679
        %v681 = vpop.f32.mrb[0].mxu0
        %682 = vmatprep.mubr.bf16.mxu0 0
        %683 = vmatmul.mubr.bf16.gmra.mrb[0].mxu0 %v505
        %v684 = vpop.f32.mrb[0].mxu0
        %v685 = vadd.f32 0.0, %v684
        %v686 = vpop.f32.mrb[0].mxu0
        %v687 = vpop.f32.mrb[0].mxu0
        %v688 = vadd.f32 0.0, %v687
        %v689 = vpop.f32.mrb[0].mxu0
        %690 = vdwg.mxu0
        %v691 = vsel %vm452, %v284, 0
        %v693 = vsel %vm452, %v285, 0
        %v695 = vsel %vm452, %v286, 0
        %v697 = vsel %vm452, %v287, 0
        %v699 = vsel %vm452, %v288, 0
        %v701 = vsel %vm452, %v289, 0
        %v703 = vsel %vm452, %v290, 0
        %v705 = vsel %vm452, %v291, 0
        %v707 = vsel %vm452, %v292, 0
        %v709 = vsel %vm452, %v293, 0
        %v711 = vsel %vm452, %v294, 0
        %v713 = vsel %vm452, %v295, 0
        %v715 = vsel %vm452, %v296, 0
        %v717 = vsel %vm452, %v297, 0
        %v719 = vsel %vm452, %v298, 0
        %v721 = vsel %vm452, %v299, 0
        %v723 = vsel %vm452, %v300, 0
        %v725 = vsel %vm452, %v301, 0
        %v728 = vand.u32 %v206, %v510
        %730 = vmatprep.subr.bf16.mxu0 0
        %731 = vmatpush1.bf16.msra.mxu0 %v728
        %732 = vmatprep.subr.bf16.mxu0 0
        %733 = vmatpush1.bf16.msra.mxu0 0
        %734 = vmatprep.subr.bf16.mxu0 0
        %735 = vmatpush1.bf16.msra.mxu0 0
        %736 = vmatprep.subr.bf16.mxu0 0
        %737 = vmatpush1.bf16.msra.mxu0 0
        %738 = vmatprep.subr.bf16.mxu0 0
        %739 = vmatpush1.bf16.msra.mxu0 0
        %740 = vmatprep.subr.bf16.mxu0 0
        %741 = vmatpush1.bf16.msra.mxu0 0
        %742 = vmatprep.subr.bf16.mxu0 0
        %743 = vmatpush1.bf16.msra.mxu0 0
        %744 = vmatprep.subr.bf16.mxu0 0
        %745 = vmatpush1.bf16.msra.mxu0 0
        %746 = vmatprep.subr.bf16.mxu0 0
        %747 = vmatpush1.bf16.msra.mxu0 0
        %748 = vmatprep.subr.bf16.mxu0 0
        %749 = vmatpush1.bf16.msra.mxu0 0
        %750 = vmatprep.subr.bf16.mxu0 0
        %751 = vmatpush1.bf16.msra.mxu0 0
        %752 = vmatprep.subr.bf16.mxu0 0
        %753 = vmatpush1.bf16.msra.mxu0 0
        %754 = vmatprep.subr.bf16.mxu0 0
        %755 = vmatpush1.bf16.msra.mxu0 0
        %756 = vmatprep.subr.bf16.mxu0 0
        %757 = vmatpush1.bf16.msra.mxu0 0
        %758 = vmatprep.subr.bf16.mxu0 0
        %759 = vmatpush1.bf16.msra.mxu0 0
        %760 = vmatprep.subr.bf16.mxu0 0
        %761 = vmatpush1.bf16.msra.mxu0 0
        %762 = vmatprep.mubr.bf16.mxu0 0
        %763 = vmatmul.mubr.bf16.gmra.mrb[0].mxu0 %v691
        %v764 = vpop.f32.mrb[0].mxu0
        %v765 = vadd.f32 %v549, %v764
        %v766 = vpop.f32.mrb[0].mxu0
        %v767 = vpop.f32.mrb[0].mxu0
        %v768 = vadd.f32 %v552, %v767
        %v769 = vpop.f32.mrb[0].mxu0
        %770 = vmatprep.mubr.bf16.mxu0 0
        %771 = vmatmul.mubr.bf16.gmra.mrb[0].mxu0 %v693
        %v772 = vpop.f32.mrb[0].mxu0
        %v773 = vadd.f32 %v557, %v772
        %v774 = vpop.f32.mrb[0].mxu0
        %v775 = vpop.f32.mrb[0].mxu0
        %v776 = vadd.f32 %v560, %v775
        %v777 = vpop.f32.mrb[0].mxu0
        %778 = vmatprep.mubr.bf16.mxu0 0
        %779 = vmatmul.mubr.bf16.gmra.mrb[0].mxu0 %v695
        %v780 = vpop.f32.mrb[0].mxu0
        %v781 = vadd.f32 %v565, %v780
        %v782 = vpop.f32.mrb[0].mxu0
        %v783 = vpop.f32.mrb[0].mxu0
        %v784 = vadd.f32 %v568, %v783
        %v785 = vpop.f32.mrb[0].mxu0
        %786 = vmatprep.mubr.bf16.mxu0 0
        %787 = vmatmul.mubr.bf16.gmra.mrb[0].mxu0 %v697
        %v788 = vpop.f32.mrb[0].mxu0
        %v789 = vadd.f32 %v573, %v788
        %v790 = vpop.f32.mrb[0].mxu0
        %v791 = vpop.f32.mrb[0].mxu0
        %v792 = vadd.f32 %v576, %v791
        %v793 = vpop.f32.mrb[0].mxu0
        %794 = vmatprep.mubr.bf16.mxu0 0
        %795 = vmatmul.mubr.bf16.gmra.mrb[0].mxu0 %v699
        %v796 = vpop.f32.mrb[0].mxu0
        %v797 = vadd.f32 %v581, %v796
        %v798 = vpop.f32.mrb[0].mxu0
        %v799 = vpop.f32.mrb[0].mxu0
        %v800 = vadd.f32 %v584, %v799
        %v801 = vpop.f32.mrb[0].mxu0
        %802 = vmatprep.mubr.bf16.mxu0 0
        %803 = vmatmul.mubr.bf16.gmra.mrb[0].mxu0 %v701
        %v804 = vpop.f32.mrb[0].mxu0
        %v805 = vadd.f32 %v589, %v804
        %v806 = vpop.f32.mrb[0].mxu0
        %v807 = vpop.f32.mrb[0].mxu0
        %v808 = vadd.f32 %v592, %v807
        %v809 = vpop.f32.mrb[0].mxu0
        %810 = vmatprep.mubr.bf16.mxu0 0
        %811 = vmatmul.mubr.bf16.gmra.mrb[0].mxu0 %v703
        %v812 = vpop.f32.mrb[0].mxu0
        %v813 = vadd.f32 %v597, %v812
        %v814 = vpop.f32.mrb[0].mxu0
        %v815 = vpop.f32.mrb[0].mxu0
        %v816 = vadd.f32 %v600, %v815
        %v817 = vpop.f32.mrb[0].mxu0
        %818 = vmatprep.mubr.bf16.mxu0 0
        %819 = vmatmul.mubr.bf16.gmra.mrb[0].mxu0 %v705
        %v820 = vpop.f32.mrb[0].mxu0
        %v821 = vadd.f32 %v605, %v820
        %v822 = vpop.f32.mrb[0].mxu0
        %v823 = vpop.f32.mrb[0].mxu0
        %v824 = vadd.f32 %v608, %v823
        %v825 = vpop.f32.mrb[0].mxu0
        %826 = vmatprep.mubr.bf16.mxu0 0
        %827 = vmatmul.mubr.bf16.gmra.mrb[0].mxu0 %v707
        %v828 = vpop.f32.mrb[0].mxu0
        %v829 = vadd.f32 %v613, %v828
        %v830 = vpop.f32.mrb[0].mxu0
        %v831 = vpop.f32.mrb[0].mxu0
        %v832 = vadd.f32 %v616, %v831
        %v833 = vpop.f32.mrb[0].mxu0
        %834 = vmatprep.mubr.bf16.mxu0 0
        %835 = vmatmul.mubr.bf16.gmra.mrb[0].mxu0 %v709
        %v836 = vpop.f32.mrb[0].mxu0
        %v837 = vadd.f32 %v621, %v836
        %v838 = vpop.f32.mrb[0].mxu0
        %v839 = vpop.f32.mrb[0].mxu0
        %v840 = vadd.f32 %v624, %v839
        %v841 = vpop.f32.mrb[0].mxu0
        %842 = vmatprep.mubr.bf16.mxu0 0
        %843 = vmatmul.mubr.bf16.gmra.mrb[0].mxu0 %v711
        %v844 = vpop.f32.mrb[0].mxu0
        %v845 = vadd.f32 %v629, %v844
        %v846 = vpop.f32.mrb[0].mxu0
        %v847 = vpop.f32.mrb[0].mxu0
        %v848 = vadd.f32 %v632, %v847
        %v849 = vpop.f32.mrb[0].mxu0
        %850 = vmatprep.mubr.bf16.mxu0 0
        %851 = vmatmul.mubr.bf16.gmra.mrb[0].mxu0 %v713
        %v852 = vpop.f32.mrb[0].mxu0
        %v853 = vadd.f32 %v637, %v852
        %v854 = vpop.f32.mrb[0].mxu0
        %v855 = vpop.f32.mrb[0].mxu0
        %v856 = vadd.f32 %v640, %v855
        %v857 = vpop.f32.mrb[0].mxu0
        %858 = vmatprep.mubr.bf16.mxu0 0
        %859 = vmatmul.mubr.bf16.gmra.mrb[0].mxu0 %v715
        %v860 = vpop.f32.mrb[0].mxu0
        %v861 = vadd.f32 %v645, %v860
        %v862 = vpop.f32.mrb[0].mxu0
        %v863 = vpop.f32.mrb[0].mxu0
        %v864 = vadd.f32 %v648, %v863
        %v865 = vpop.f32.mrb[0].mxu0
        %866 = vmatprep.mubr.bf16.mxu0 0
        %867 = vmatmul.mubr.bf16.gmra.mrb[0].mxu0 %v717
        %v868 = vpop.f32.mrb[0].mxu0
        %v869 = vadd.f32 %v653, %v868
        %v870 = vpop.f32.mrb[0].mxu0
        %v871 = vpop.f32.mrb[0].mxu0
        %v872 = vadd.f32 %v656, %v871
        %v873 = vpop.f32.mrb[0].mxu0
        %874 = vmatprep.mubr.bf16.mxu0 0
        %875 = vmatmul.mubr.bf16.gmra.mrb[0].mxu0 %v719
        %v876 = vpop.f32.mrb[0].mxu0
        %v877 = vadd.f32 %v661, %v876
        %v878 = vpop.f32.mrb[0].mxu0
        %v879 = vpop.f32.mrb[0].mxu0
        %v880 = vadd.f32 %v664, %v879
        %v881 = vpop.f32.mrb[0].mxu0
        %882 = vmatprep.mubr.bf16.mxu0 0
        %883 = vmatmul.mubr.bf16.gmra.mrb[0].mxu0 %v721
        %v884 = vpop.f32.mrb[0].mxu0
        %v885 = vadd.f32 %v669, %v884
        %v886 = vpop.f32.mrb[0].mxu0
        %v887 = vpop.f32.mrb[0].mxu0
        %v888 = vadd.f32 %v672, %v887
        %v889 = vpop.f32.mrb[0].mxu0
        %890 = vmatprep.mubr.bf16.mxu0 0
        %891 = vmatmul.mubr.bf16.gmra.mrb[0].mxu0 %v723
        %v892 = vpop.f32.mrb[0].mxu0
        %v893 = vadd.f32 %v677, %v892
        %v894 = vpop.f32.mrb[0].mxu0
        %v895 = vpop.f32.mrb[0].mxu0
        %v896 = vadd.f32 %v680, %v895
        %v897 = vpop.f32.mrb[0].mxu0
        %898 = vmatprep.mubr.bf16.mxu0 0
        %899 = vmatmul.mubr.bf16.gmra.mrb[0].mxu0 %v725
        %v900 = vpop.f32.mrb[0].mxu0
        %v901 = vadd.f32 %v685, %v900
        %v902 = vpop.f32.mrb[0].mxu0
        %v903 = vpop.f32.mrb[0].mxu0
        %v904 = vadd.f32 %v688, %v903
        %v905 = vpop.f32.mrb[0].mxu0
        %906 = vdwg.mxu0
        %v907 = vld [vmem:[%s168] sm:$0xe]
        %s908 = scalar_lea.vmem %s1, 4
        %v909 = vld [vmem:[%s908] sm:$0x3]
        %v911 = vunpack.c.l.b16 %v907
        %v912 = vpack.c.b16 %v248, %v911
        %vm913 = vcmask 1046528
        %v914 = vrot.slane %v912, 1
        %v915 = vrot.slane %v285, 1
        %v916 = vsel %vm913, %v914, %v915
        %v917 = vrot.slane %v286, 1
        %v918 = vsel %vm913, %v915, %v917
        %v919 = vrot.slane %v287, 1
        %v920 = vsel %vm913, %v917, %v919
        %v921 = vrot.slane %v288, 1
        %v922 = vsel %vm913, %v919, %v921
        %v923 = vrot.slane %v289, 1
        %v924 = vsel %vm913, %v921, %v923
        %v925 = vrot.slane %v290, 1
        %v926 = vsel %vm913, %v923, %v925
        %v927 = vrot.slane %v291, 1
        %v928 = vsel %vm913, %v925, %v927
        %v929 = vrot.slane %v292, 1
        %v930 = vsel %vm913, %v927, %v929
        %v931 = vrot.slane %v293, 1
        %v932 = vsel %vm913, %v929, %v931
        %v933 = vrot.slane %v294, 1
        %v934 = vsel %vm913, %v931, %v933
        %v935 = vrot.slane %v295, 1
        %v936 = vsel %vm913, %v933, %v935
        %v937 = vrot.slane %v296, 1
        %v938 = vsel %vm913, %v935, %v937
        %v939 = vrot.slane %v297, 1
        %v940 = vsel %vm913, %v937, %v939
        %v941 = vrot.slane %v298, 1
        %v942 = vsel %vm913, %v939, %v941
        %v943 = vrot.slane %v299, 1
        %v944 = vsel %vm913, %v941, %v943
        %v945 = vrot.slane %v300, 1
        %v946 = vsel %vm913, %v943, %v945
        %v947 = vrot.slane %v301, 1
        %v948 = vsel %vm913, %v945, %v947
        %v949 = vrot.slane %v302, 1
        %v950 = vsel %vm913, %v947, %v949
        %v952 = vsel %vm452, %v916, 0
        %v955 = vsel %vm452, %v918, 0
        %v958 = vsel %vm452, %v920, 0
        %v961 = vsel %vm452, %v922, 0
        %v964 = vsel %vm452, %v924, 0
        %v967 = vsel %vm452, %v926, 0
        %v970 = vsel %vm452, %v928, 0
        %v973 = vsel %vm452, %v930, 0
        %v976 = vsel %vm452, %v932, 0
        %v979 = vsel %vm452, %v934, 0
        %v982 = vsel %vm452, %v936, 0
        %v985 = vsel %vm452, %v938, 0
        %v988 = vsel %vm452, %v940, 0
        %v991 = vsel %vm452, %v942, 0
        %v994 = vsel %vm452, %v944, 0
        %v997 = vsel %vm452, %v946, 0
        %v1000 = vsel %vm452, %v948, 0
        %v1003 = vsel %vm452, %v950, 0
        %v1006 = vand.u32 %v909, %v510
        %1008 = vmatprep.subr.bf16.mxu0 0
        %1009 = vmatpush1.bf16.msra.mxu0 %v1006
        %1010 = vmatprep.subr.bf16.mxu0 0
        %1011 = vmatpush1.bf16.msra.mxu0 0
        %1012 = vmatprep.subr.bf16.mxu0 0
        %1013 = vmatpush1.bf16.msra.mxu0 0
        %1014 = vmatprep.subr.bf16.mxu0 0
        %1015 = vmatpush1.bf16.msra.mxu0 0
        %1016 = vmatprep.subr.bf16.mxu0 0
        %1017 = vmatpush1.bf16.msra.mxu0 0
        %1018 = vmatprep.subr.bf16.mxu0 0
        %1019 = vmatpush1.bf16.msra.mxu0 0
        %1020 = vmatprep.subr.bf16.mxu0 0
        %1021 = vmatpush1.bf16.msra.mxu0 0
        %1022 = vmatprep.subr.bf16.mxu0 0
        %1023 = vmatpush1.bf16.msra.mxu0 0
        %1024 = vmatprep.subr.bf16.mxu0 0
        %1025 = vmatpush1.bf16.msra.mxu0 0
        %1026 = vmatprep.subr.bf16.mxu0 0
        %1027 = vmatpush1.bf16.msra.mxu0 0
        %1028 = vmatprep.subr.bf16.mxu0 0
        %1029 = vmatpush1.bf16.msra.mxu0 0
        %1030 = vmatprep.subr.bf16.mxu0 0
        %1031 = vmatpush1.bf16.msra.mxu0 0
        %1032 = vmatprep.subr.bf16.mxu0 0
        %1033 = vmatpush1.bf16.msra.mxu0 0
        %1034 = vmatprep.subr.bf16.mxu0 0
        %1035 = vmatpush1.bf16.msra.mxu0 0
        %1036 = vmatprep.subr.bf16.mxu0 0
        %1037 = vmatpush1.bf16.msra.mxu0 0
        %1038 = vmatprep.subr.bf16.mxu0 0
        %1039 = vmatpush1.bf16.msra.mxu0 0
        %1040 = vmatprep.mubr.bf16.mxu0 0
        %1041 = vmatmul.mubr.bf16.gmra.mrb[0].mxu0 %v952
        %v1042 = vpop.f32.mrb[0].mxu0
        %v1043 = vadd.f32 0.0, %v1042
        %v1044 = vpop.f32.mrb[0].mxu0
        %v1045 = vpop.f32.mrb[0].mxu0
        %v1046 = vadd.f32 0.0, %v1045
        %v1047 = vpop.f32.mrb[0].mxu0
        %1048 = vmatprep.mubr.bf16.mxu0 0
        %1049 = vmatmul.mubr.bf16.gmra.mrb[0].mxu0 %v955
        %v1050 = vpop.f32.mrb[0].mxu0
        %v1051 = vadd.f32 0.0, %v1050
        %v1052 = vpop.f32.mrb[0].mxu0
        %v1053 = vpop.f32.mrb[0].mxu0
        %v1054 = vadd.f32 0.0, %v1053
        %v1055 = vpop.f32.mrb[0].mxu0
        %1056 = vmatprep.mubr.bf16.mxu0 0
        %1057 = vmatmul.mubr.bf16.gmra.mrb[0].mxu0 %v958
        %v1058 = vpop.f32.mrb[0].mxu0
        %v1059 = vadd.f32 0.0, %v1058
        %v1060 = vpop.f32.mrb[0].mxu0
        %v1061 = vpop.f32.mrb[0].mxu0
        %v1062 = vadd.f32 0.0, %v1061
        %v1063 = vpop.f32.mrb[0].mxu0
        %1064 = vmatprep.mubr.bf16.mxu0 0
        %1065 = vmatmul.mubr.bf16.gmra.mrb[0].mxu0 %v961
        %v1066 = vpop.f32.mrb[0].mxu0
        %v1067 = vadd.f32 0.0, %v1066
        %v1068 = vpop.f32.mrb[0].mxu0
        %v1069 = vpop.f32.mrb[0].mxu0
        %v1070 = vadd.f32 0.0, %v1069
        %v1071 = vpop.f32.mrb[0].mxu0
        %1072 = vmatprep.mubr.bf16.mxu0 0
        %1073 = vmatmul.mubr.bf16.gmra.mrb[0].mxu0 %v964
        %v1074 = vpop.f32.mrb[0].mxu0
        %v1075 = vadd.f32 0.0, %v1074
        %v1076 = vpop.f32.mrb[0].mxu0
        %v1077 = vpop.f32.mrb[0].mxu0
        %v1078 = vadd.f32 0.0, %v1077
        %v1079 = vpop.f32.mrb[0].mxu0
        %1080 = vmatprep.mubr.bf16.mxu0 0
        %1081 = vmatmul.mubr.bf16.gmra.mrb[0].mxu0 %v967
        %v1082 = vpop.f32.mrb[0].mxu0
        %v1083 = vadd.f32 0.0, %v1082
        %v1084 = vpop.f32.mrb[0].mxu0
        %v1085 = vpop.f32.mrb[0].mxu0
        %v1086 = vadd.f32 0.0, %v1085
        %v1087 = vpop.f32.mrb[0].mxu0
        %1088 = vmatprep.mubr.bf16.mxu0 0
        %1089 = vmatmul.mubr.bf16.gmra.mrb[0].mxu0 %v970
        %v1090 = vpop.f32.mrb[0].mxu0
        %v1091 = vadd.f32 0.0, %v1090
        %v1092 = vpop.f32.mrb[0].mxu0
        %v1093 = vpop.f32.mrb[0].mxu0
        %v1094 = vadd.f32 0.0, %v1093
        %v1095 = vpop.f32.mrb[0].mxu0
        %1096 = vmatprep.mubr.bf16.mxu0 0
        %1097 = vmatmul.mubr.bf16.gmra.mrb[0].mxu0 %v973
        %v1098 = vpop.f32.mrb[0].mxu0
        %v1099 = vadd.f32 0.0, %v1098
        %v1100 = vpop.f32.mrb[0].mxu0
        %v1101 = vpop.f32.mrb[0].mxu0
        %v1102 = vadd.f32 0.0, %v1101
        %v1103 = vpop.f32.mrb[0].mxu0
        %1104 = vmatprep.mubr.bf16.mxu0 0
        %1105 = vmatmul.mubr.bf16.gmra.mrb[0].mxu0 %v976
        %v1106 = vpop.f32.mrb[0].mxu0
        %v1107 = vadd.f32 0.0, %v1106
        %v1108 = vpop.f32.mrb[0].mxu0
        %v1109 = vpop.f32.mrb[0].mxu0
        %v1110 = vadd.f32 0.0, %v1109
        %v1111 = vpop.f32.mrb[0].mxu0
        %1112 = vmatprep.mubr.bf16.mxu0 0
        %1113 = vmatmul.mubr.bf16.gmra.mrb[0].mxu0 %v979
        %v1114 = vpop.f32.mrb[0].mxu0
        %v1115 = vadd.f32 0.0, %v1114
        %v1116 = vpop.f32.mrb[0].mxu0
        %v1117 = vpop.f32.mrb[0].mxu0
        %v1118 = vadd.f32 0.0, %v1117
        %v1119 = vpop.f32.mrb[0].mxu0
        %1120 = vmatprep.mubr.bf16.mxu0 0
        %1121 = vmatmul.mubr.bf16.gmra.mrb[0].mxu0 %v982
        %v1122 = vpop.f32.mrb[0].mxu0
        %v1123 = vadd.f32 0.0, %v1122
        %v1124 = vpop.f32.mrb[0].mxu0
        %v1125 = vpop.f32.mrb[0].mxu0
        %v1126 = vadd.f32 0.0, %v1125
        %v1127 = vpop.f32.mrb[0].mxu0
        %1128 = vmatprep.mubr.bf16.mxu0 0
        %1129 = vmatmul.mubr.bf16.gmra.mrb[0].mxu0 %v985
        %v1130 = vpop.f32.mrb[0].mxu0
        %v1131 = vadd.f32 0.0, %v1130
        %v1132 = vpop.f32.mrb[0].mxu0
        %v1133 = vpop.f32.mrb[0].mxu0
        %v1134 = vadd.f32 0.0, %v1133
        %v1135 = vpop.f32.mrb[0].mxu0
        %1136 = vmatprep.mubr.bf16.mxu0 0
        %1137 = vmatmul.mubr.bf16.gmra.mrb[0].mxu0 %v988
        %v1138 = vpop.f32.mrb[0].mxu0
        %v1139 = vadd.f32 0.0, %v1138
        %v1140 = vpop.f32.mrb[0].mxu0
        %v1141 = vpop.f32.mrb[0].mxu0
        %v1142 = vadd.f32 0.0, %v1141
        %v1143 = vpop.f32.mrb[0].mxu0
        %1144 = vmatprep.mubr.bf16.mxu0 0
        %1145 = vmatmul.mubr.bf16.gmra.mrb[0].mxu0 %v991
        %v1146 = vpop.f32.mrb[0].mxu0
        %v1147 = vadd.f32 0.0, %v1146
        %v1148 = vpop.f32.mrb[0].mxu0
        %v1149 = vpop.f32.mrb[0].mxu0
        %v1150 = vadd.f32 0.0, %v1149
        %v1151 = vpop.f32.mrb[0].mxu0
        %1152 = vmatprep.mubr.bf16.mxu0 0
        %1153 = vmatmul.mubr.bf16.gmra.mrb[0].mxu0 %v994
        %v1154 = vpop.f32.mrb[0].mxu0
        %v1155 = vadd.f32 0.0, %v1154
        %v1156 = vpop.f32.mrb[0].mxu0
        %v1157 = vpop.f32.mrb[0].mxu0
        %v1158 = vadd.f32 0.0, %v1157
        %v1159 = vpop.f32.mrb[0].mxu0
        %1160 = vmatprep.mubr.bf16.mxu0 0
        %1161 = vmatmul.mubr.bf16.gmra.mrb[0].mxu0 %v997
        %v1162 = vpop.f32.mrb[0].mxu0
        %v1163 = vadd.f32 0.0, %v1162
        %v1164 = vpop.f32.mrb[0].mxu0
        %v1165 = vpop.f32.mrb[0].mxu0
        %v1166 = vadd.f32 0.0, %v1165
        %v1167 = vpop.f32.mrb[0].mxu0
        %1168 = vmatprep.mubr.bf16.mxu0 0
        %1169 = vmatmul.mubr.bf16.gmra.mrb[0].mxu0 %v1000
        %v1170 = vpop.f32.mrb[0].mxu0
        %v1171 = vadd.f32 0.0, %v1170
        %v1172 = vpop.f32.mrb[0].mxu0
        %v1173 = vpop.f32.mrb[0].mxu0
        %v1174 = vadd.f32 0.0, %v1173
        %v1175 = vpop.f32.mrb[0].mxu0
        %1176 = vmatprep.mubr.bf16.mxu0 0
        %1177 = vmatmul.mubr.bf16.gmra.mrb[0].mxu0 %v1003
        %v1178 = vpop.f32.mrb[0].mxu0
        %v1179 = vadd.f32 0.0, %v1178
        %v1180 = vpop.f32.mrb[0].mxu0
        %v1181 = vpop.f32.mrb[0].mxu0
        %v1182 = vadd.f32 0.0, %v1181
        %v1183 = vpop.f32.mrb[0].mxu0
        %1184 = vdwg.mxu0
        %v1185 = vadd.f32 %v765, %v1043
        %v1186 = vadd.f32 %v768, %v1046
        %v1187 = vadd.f32 %v773, %v1051
        %v1188 = vadd.f32 %v776, %v1054
        %v1189 = vadd.f32 %v781, %v1059
        %v1190 = vadd.f32 %v784, %v1062
        %v1191 = vadd.f32 %v789, %v1067
        %v1192 = vadd.f32 %v792, %v1070
        %v1193 = vadd.f32 %v797, %v1075
        %v1194 = vadd.f32 %v800, %v1078
        %v1195 = vadd.f32 %v805, %v1083
        %v1196 = vadd.f32 %v808, %v1086
        %v1197 = vadd.f32 %v813, %v1091
        %v1198 = vadd.f32 %v816, %v1094
        %v1199 = vadd.f32 %v821, %v1099
        %v1200 = vadd.f32 %v824, %v1102
        %v1201 = vadd.f32 %v829, %v1107
        %v1202 = vadd.f32 %v832, %v1110
        %v1203 = vadd.f32 %v837, %v1115
        %v1204 = vadd.f32 %v840, %v1118
        %v1205 = vadd.f32 %v845, %v1123
        %v1206 = vadd.f32 %v848, %v1126
        %v1207 = vadd.f32 %v853, %v1131
        %v1208 = vadd.f32 %v856, %v1134
        %v1209 = vadd.f32 %v861, %v1139
        %v1210 = vadd.f32 %v864, %v1142
        %v1211 = vadd.f32 %v869, %v1147
        %v1212 = vadd.f32 %v872, %v1150
        %v1213 = vadd.f32 %v877, %v1155
        %v1214 = vadd.f32 %v880, %v1158
        %v1215 = vadd.f32 %v885, %v1163
        %v1216 = vadd.f32 %v888, %v1166
        %v1217 = vadd.f32 %v893, %v1171
        %v1218 = vadd.f32 %v896, %v1174
        %v1219 = vadd.f32 %v901, %v1179
        %v1220 = vadd.f32 %v904, %v1182
        %v1221 = vld [vmem:[%s168 + $0x8] sm:$0xe]
        %v1222 = vld [vmem:[%s168 + $0xc] sm:$0xf]
        %v1223 = vld [vmem:[%s168 + $0x10] sm:$0xf]
        %v1224 = vld [vmem:[%s168 + $0x14] sm:$0xf]
        %v1225 = vld [vmem:[%s168 + $0x18] sm:$0xf]
        %v1226 = vld [vmem:[%s168 + $0x1c] sm:$0xf]
        %v1227 = vld [vmem:[%s168 + $0x20] sm:$0xf]
        %v1228 = vld [vmem:[%s168 + $0x24] sm:$0xf]
        %v1229 = vld [vmem:[%s168 + $0x28] sm:$0xf]
        %v1230 = vld [vmem:[%s168 + $0x2c] sm:$0xf]
        %v1231 = vld [vmem:[%s168 + $0x30] sm:$0xf]
        %v1232 = vld [vmem:[%s168 + $0x34] sm:$0xf]
        %v1233 = vld [vmem:[%s168 + $0x38] sm:$0xf]
        %v1234 = vld [vmem:[%s168 + $0x3c] sm:$0xf]
        %v1235 = vld [vmem:[%s168 + $0x40] sm:$0xf]
        %v1236 = vld [vmem:[%s168 + $0x44] sm:$0xf]
        %v1237 = vld [vmem:[%s168 + $0x48] sm:$0xf]
        %v1238 = vld [vmem:[%s168 + $0x4c] sm:$0xf]
        %v1239 = vld [vmem:[%s168 + $0x50] sm:$0xf]
        %v1240 = vld [vmem:[%s168 + $0x54] sm:$0xf]
        %v1241 = vld [vmem:[%s168 + $0x58] sm:$0xf]
        %v1242 = vld [vmem:[%s168 + $0x5c] sm:$0xf]
        %v1243 = vld [vmem:[%s168 + $0x60] sm:$0xf]
        %v1244 = vld [vmem:[%s168 + $0x64] sm:$0xf]
        %v1245 = vld [vmem:[%s168 + $0x68] sm:$0xf]
        %v1246 = vld [vmem:[%s168 + $0x6c] sm:$0xf]
        %v1247 = vld [vmem:[%s168 + $0x70] sm:$0xf]
        %v1248 = vld [vmem:[%s168 + $0x74] sm:$0xf]
        %v1249 = vld [vmem:[%s168 + $0x78] sm:$0xf]
        %v1250 = vld [vmem:[%s168 + $0x7c] sm:$0xf]
        %v1251 = vld [vmem:[%s168 + $0x80] sm:$0xf]
        %v1252 = vld [vmem:[%s168 + $0x84] sm:$0xf]
        %v1253 = vld [vmem:[%s168 + $0x88] sm:$0xf]
        %v1254 = vld [vmem:[%s168 + $0x8c] sm:$0xf]
        %v1255 = vld [vmem:[%s168 + $0x90] sm:$0xf]
        %v1256 = vld [vmem:[%s168 + $0x94] sm:$0xf]
        %v1257 = vld [vmem:[%s168 + $0x98] sm:$0x1]
        %s1258 = scalar_lea.vmem %s1, 6
        %v1259 = vld [vmem:[%s1258] sm:$0x3]
        %v1297 = vunpack.c.l.b16 %v1221
        %v1298 = vunpack.c.l.b16 %v1222
        %v1299 = vunpack.c.l.b16 %v1223
        %v1300 = vunpack.c.l.b16 %v1224
        %v1301 = vunpack.c.l.b16 %v1225
        %v1302 = vunpack.c.l.b16 %v1226
        %v1303 = vunpack.c.l.b16 %v1227
        %v1304 = vunpack.c.l.b16 %v1228
        %v1305 = vunpack.c.l.b16 %v1229
        %v1306 = vunpack.c.l.b16 %v1230
        %v1307 = vunpack.c.l.b16 %v1231
        %v1308 = vunpack.c.l.b16 %v1232
        %v1309 = vunpack.c.l.b16 %v1233
        %v1310 = vunpack.c.l.b16 %v1234
        %v1311 = vunpack.c.l.b16 %v1235
        %v1312 = vunpack.c.l.b16 %v1236
        %v1313 = vunpack.c.l.b16 %v1237
        %v1314 = vunpack.c.l.b16 %v1238
        %v1315 = vunpack.c.l.b16 %v1239
        %v1316 = vunpack.c.l.b16 %v1240
        %v1317 = vunpack.c.l.b16 %v1241
        %v1318 = vunpack.c.l.b16 %v1242
        %v1319 = vunpack.c.l.b16 %v1243
        %v1320 = vunpack.c.l.b16 %v1244
        %v1321 = vunpack.c.l.b16 %v1245
        %v1322 = vunpack.c.l.b16 %v1246
        %v1323 = vunpack.c.l.b16 %v1247
        %v1324 = vunpack.c.l.b16 %v1248
        %v1325 = vunpack.c.l.b16 %v1249
        %v1326 = vunpack.c.l.b16 %v1250
        %v1327 = vunpack.c.l.b16 %v1251
        %v1328 = vunpack.c.l.b16 %v1252
        %v1329 = vunpack.c.l.b16 %v1253
        %v1330 = vunpack.c.l.b16 %v1254
        %v1331 = vunpack.c.l.b16 %v1255
        %v1332 = vunpack.c.l.b16 %v1256
        %v1333 = vunpack.c.l.b16 %v1257
        %v1334 = vpack.c.b16 %v1298, %v1297
        %v1335 = vpack.c.b16 %v1300, %v1299
        %v1336 = vpack.c.b16 %v1302, %v1301
        %v1337 = vpack.c.b16 %v1304, %v1303
        %v1338 = vpack.c.b16 %v1306, %v1305
        %v1339 = vpack.c.b16 %v1308, %v1307
        %v1340 = vpack.c.b16 %v1310, %v1309
        %v1341 = vpack.c.b16 %v1312, %v1311
        %v1342 = vpack.c.b16 %v1314, %v1313
        %v1343 = vpack.c.b16 %v1316, %v1315
        %v1344 = vpack.c.b16 %v1318, %v1317
        %v1345 = vpack.c.b16 %v1320, %v1319
        %v1346 = vpack.c.b16 %v1322, %v1321
        %v1347 = vpack.c.b16 %v1324, %v1323
        %v1348 = vpack.c.b16 %v1326, %v1325
        %v1349 = vpack.c.b16 %v1328, %v1327
        %v1350 = vpack.c.b16 %v1330, %v1329
        %v1351 = vpack.c.b16 %v1332, %v1331
        %v1352 = vpack.c.b16 %v1333, %v1333
        %v1353 = vrot.slane %v1334, 1
        %v1354 = vrot.slane %v1335, 1
        %v1355 = vsel %vm913, %v1353, %v1354
        %v1356 = vrot.slane %v1336, 1
        %v1357 = vsel %vm913, %v1354, %v1356
        %v1358 = vrot.slane %v1337, 1
        %v1359 = vsel %vm913, %v1356, %v1358
        %v1360 = vrot.slane %v1338, 1
        %v1361 = vsel %vm913, %v1358, %v1360
        %v1362 = vrot.slane %v1339, 1
        %v1363 = vsel %vm913, %v1360, %v1362
        %v1364 = vrot.slane %v1340, 1
        %v1365 = vsel %vm913, %v1362, %v1364
        %v1366 = vrot.slane %v1341, 1
        %v1367 = vsel %vm913, %v1364, %v1366
        %v1368 = vrot.slane %v1342, 1
        %v1369 = vsel %vm913, %v1366, %v1368
        %v1370 = vrot.slane %v1343, 1
        %v1371 = vsel %vm913, %v1368, %v1370
        %v1372 = vrot.slane %v1344, 1
        %v1373 = vsel %vm913, %v1370, %v1372
        %v1374 = vrot.slane %v1345, 1
        %v1375 = vsel %vm913, %v1372, %v1374
        %v1376 = vrot.slane %v1346, 1
        %v1377 = vsel %vm913, %v1374, %v1376
        %v1378 = vrot.slane %v1347, 1
        %v1379 = vsel %vm913, %v1376, %v1378
        %v1380 = vrot.slane %v1348, 1
        %v1381 = vsel %vm913, %v1378, %v1380
        %v1382 = vrot.slane %v1349, 1
        %v1383 = vsel %vm913, %v1380, %v1382
        %v1384 = vrot.slane %v1350, 1
        %v1385 = vsel %vm913, %v1382, %v1384
        %v1386 = vrot.slane %v1351, 1
        %v1387 = vsel %vm913, %v1384, %v1386
        %v1388 = vrot.slane %v1352, 1
        %v1389 = vsel %vm913, %v1386, %v1388
        %v1391 = vsel %vm452, %v1355, 0
        %v1394 = vsel %vm452, %v1357, 0
        %v1397 = vsel %vm452, %v1359, 0
        %v1400 = vsel %vm452, %v1361, 0
        %v1403 = vsel %vm452, %v1363, 0
        %v1406 = vsel %vm452, %v1365, 0
        %v1409 = vsel %vm452, %v1367, 0
        %v1412 = vsel %vm452, %v1369, 0
        %v1415 = vsel %vm452, %v1371, 0
        %v1418 = vsel %vm452, %v1373, 0
        %v1421 = vsel %vm452, %v1375, 0
        %v1424 = vsel %vm452, %v1377, 0
        %v1427 = vsel %vm452, %v1379, 0
        %v1430 = vsel %vm452, %v1381, 0
        %v1433 = vsel %vm452, %v1383, 0
        %v1436 = vsel %vm452, %v1385, 0
        %v1439 = vsel %vm452, %v1387, 0
        %v1442 = vsel %vm452, %v1389, 0
        %v1445 = vand.u32 %v1259, %v510
        %1447 = vmatprep.subr.bf16.mxu0 0
        %1448 = vmatpush1.bf16.msra.mxu0 %v1445
        %1449 = vmatprep.subr.bf16.mxu0 0
        %1450 = vmatpush1.bf16.msra.mxu0 0
        %1451 = vmatprep.subr.bf16.mxu0 0
        %1452 = vmatpush1.bf16.msra.mxu0 0
        %1453 = vmatprep.subr.bf16.mxu0 0
        %1454 = vmatpush1.bf16.msra.mxu0 0
        %1455 = vmatprep.subr.bf16.mxu0 0
        %1456 = vmatpush1.bf16.msra.mxu0 0
        %1457 = vmatprep.subr.bf16.mxu0 0
        %1458 = vmatpush1.bf16.msra.mxu0 0
        %1459 = vmatprep.subr.bf16.mxu0 0
        %1460 = vmatpush1.bf16.msra.mxu0 0
        %1461 = vmatprep.subr.bf16.mxu0 0
        %1462 = vmatpush1.bf16.msra.mxu0 0
        %1463 = vmatprep.subr.bf16.mxu0 0
        %1464 = vmatpush1.bf16.msra.mxu0 0
        %1465 = vmatprep.subr.bf16.mxu0 0
        %1466 = vmatpush1.bf16.msra.mxu0 0
        %1467 = vmatprep.subr.bf16.mxu0 0
        %1468 = vmatpush1.bf16.msra.mxu0 0
        %1469 = vmatprep.subr.bf16.mxu0 0
        %1470 = vmatpush1.bf16.msra.mxu0 0
        %1471 = vmatprep.subr.bf16.mxu0 0
        %1472 = vmatpush1.bf16.msra.mxu0 0
        %1473 = vmatprep.subr.bf16.mxu0 0
        %1474 = vmatpush1.bf16.msra.mxu0 0
        %1475 = vmatprep.subr.bf16.mxu0 0
        %1476 = vmatpush1.bf16.msra.mxu0 0
        %1477 = vmatprep.subr.bf16.mxu0 0
        %1478 = vmatpush1.bf16.msra.mxu0 0
        %1479 = vmatprep.mubr.bf16.mxu0 0
        %1480 = vmatmul.mubr.bf16.gmra.mrb[0].mxu0 %v1391
        %v1481 = vpop.f32.mrb[0].mxu0
        %v1482 = vadd.f32 0.0, %v1481
        %v1483 = vpop.f32.mrb[0].mxu0
        %v1484 = vpop.f32.mrb[0].mxu0
        %v1485 = vadd.f32 0.0, %v1484
        %v1486 = vpop.f32.mrb[0].mxu0
        %1487 = vmatprep.mubr.bf16.mxu0 0
        %1488 = vmatmul.mubr.bf16.gmra.mrb[0].mxu0 %v1394
        %v1489 = vpop.f32.mrb[0].mxu0
        %v1490 = vadd.f32 0.0, %v1489
        %v1491 = vpop.f32.mrb[0].mxu0
        %v1492 = vpop.f32.mrb[0].mxu0
        %v1493 = vadd.f32 0.0, %v1492
        %v1494 = vpop.f32.mrb[0].mxu0
        %1495 = vmatprep.mubr.bf16.mxu0 0
        %1496 = vmatmul.mubr.bf16.gmra.mrb[0].mxu0 %v1397
        %v1497 = vpop.f32.mrb[0].mxu0
        %v1498 = vadd.f32 0.0, %v1497
        %v1499 = vpop.f32.mrb[0].mxu0
        %v1500 = vpop.f32.mrb[0].mxu0
        %v1501 = vadd.f32 0.0, %v1500
        %v1502 = vpop.f32.mrb[0].mxu0
        %1503 = vmatprep.mubr.bf16.mxu0 0
        %1504 = vmatmul.mubr.bf16.gmra.mrb[0].mxu0 %v1400
        %v1505 = vpop.f32.mrb[0].mxu0
        %v1506 = vadd.f32 0.0, %v1505
        %v1507 = vpop.f32.mrb[0].mxu0
        %v1508 = vpop.f32.mrb[0].mxu0
        %v1509 = vadd.f32 0.0, %v1508
        %v1510 = vpop.f32.mrb[0].mxu0
        %1511 = vmatprep.mubr.bf16.mxu0 0
        %1512 = vmatmul.mubr.bf16.gmra.mrb[0].mxu0 %v1403
        %v1513 = vpop.f32.mrb[0].mxu0
        %v1514 = vadd.f32 0.0, %v1513
        %v1515 = vpop.f32.mrb[0].mxu0
        %v1516 = vpop.f32.mrb[0].mxu0
        %v1517 = vadd.f32 0.0, %v1516
        %v1518 = vpop.f32.mrb[0].mxu0
        %1519 = vmatprep.mubr.bf16.mxu0 0
        %1520 = vmatmul.mubr.bf16.gmra.mrb[0].mxu0 %v1406
        %v1521 = vpop.f32.mrb[0].mxu0
        %v1522 = vadd.f32 0.0, %v1521
        %v1523 = vpop.f32.mrb[0].mxu0
        %v1524 = vpop.f32.mrb[0].mxu0
        %v1525 = vadd.f32 0.0, %v1524
        %v1526 = vpop.f32.mrb[0].mxu0
        %1527 = vmatprep.mubr.bf16.mxu0 0
        %1528 = vmatmul.mubr.bf16.gmra.mrb[0].mxu0 %v1409
        %v1529 = vpop.f32.mrb[0].mxu0
        %v1530 = vadd.f32 0.0, %v1529
        %v1531 = vpop.f32.mrb[0].mxu0
        %v1532 = vpop.f32.mrb[0].mxu0
        %v1533 = vadd.f32 0.0, %v1532
        %v1534 = vpop.f32.mrb[0].mxu0
        %1535 = vmatprep.mubr.bf16.mxu0 0
        %1536 = vmatmul.mubr.bf16.gmra.mrb[0].mxu0 %v1412
        %v1537 = vpop.f32.mrb[0].mxu0
        %v1538 = vadd.f32 0.0, %v1537
        %v1539 = vpop.f32.mrb[0].mxu0
        %v1540 = vpop.f32.mrb[0].mxu0
        %v1541 = vadd.f32 0.0, %v1540
        %v1542 = vpop.f32.mrb[0].mxu0
        %1543 = vmatprep.mubr.bf16.mxu0 0
        %1544 = vmatmul.mubr.bf16.gmra.mrb[0].mxu0 %v1415
        %v1545 = vpop.f32.mrb[0].mxu0
        %v1546 = vadd.f32 0.0, %v1545
        %v1547 = vpop.f32.mrb[0].mxu0
        %v1548 = vpop.f32.mrb[0].mxu0
        %v1549 = vadd.f32 0.0, %v1548
        %v1550 = vpop.f32.mrb[0].mxu0
        %1551 = vmatprep.mubr.bf16.mxu0 0
        %1552 = vmatmul.mubr.bf16.gmra.mrb[0].mxu0 %v1418
        %v1553 = vpop.f32.mrb[0].mxu0
        %v1554 = vadd.f32 0.0, %v1553
        %v1555 = vpop.f32.mrb[0].mxu0
        %v1556 = vpop.f32.mrb[0].mxu0
        %v1557 = vadd.f32 0.0, %v1556
        %v1558 = vpop.f32.mrb[0].mxu0
        %1559 = vmatprep.mubr.bf16.mxu0 0
        %1560 = vmatmul.mubr.bf16.gmra.mrb[0].mxu0 %v1421
        %v1561 = vpop.f32.mrb[0].mxu0
        %v1562 = vadd.f32 0.0, %v1561
        %v1563 = vpop.f32.mrb[0].mxu0
        %v1564 = vpop.f32.mrb[0].mxu0
        %v1565 = vadd.f32 0.0, %v1564
        %v1566 = vpop.f32.mrb[0].mxu0
        %1567 = vmatprep.mubr.bf16.mxu0 0
        %1568 = vmatmul.mubr.bf16.gmra.mrb[0].mxu0 %v1424
        %v1569 = vpop.f32.mrb[0].mxu0
        %v1570 = vadd.f32 0.0, %v1569
        %v1571 = vpop.f32.mrb[0].mxu0
        %v1572 = vpop.f32.mrb[0].mxu0
        %v1573 = vadd.f32 0.0, %v1572
        %v1574 = vpop.f32.mrb[0].mxu0
        %1575 = vmatprep.mubr.bf16.mxu0 0
        %1576 = vmatmul.mubr.bf16.gmra.mrb[0].mxu0 %v1427
        %v1577 = vpop.f32.mrb[0].mxu0
        %v1578 = vadd.f32 0.0, %v1577
        %v1579 = vpop.f32.mrb[0].mxu0
        %v1580 = vpop.f32.mrb[0].mxu0
        %v1581 = vadd.f32 0.0, %v1580
        %v1582 = vpop.f32.mrb[0].mxu0
        %1583 = vmatprep.mubr.bf16.mxu0 0
        %1584 = vmatmul.mubr.bf16.gmra.mrb[0].mxu0 %v1430
        %v1585 = vpop.f32.mrb[0].mxu0
        %v1586 = vadd.f32 0.0, %v1585
        %v1587 = vpop.f32.mrb[0].mxu0
        %v1588 = vpop.f32.mrb[0].mxu0
        %v1589 = vadd.f32 0.0, %v1588
        %v1590 = vpop.f32.mrb[0].mxu0
        %1591 = vmatprep.mubr.bf16.mxu0 0
        %1592 = vmatmul.mubr.bf16.gmra.mrb[0].mxu0 %v1433
        %v1593 = vpop.f32.mrb[0].mxu0
        %v1594 = vadd.f32 0.0, %v1593
        %v1595 = vpop.f32.mrb[0].mxu0
        %v1596 = vpop.f32.mrb[0].mxu0
        %v1597 = vadd.f32 0.0, %v1596
        %v1598 = vpop.f32.mrb[0].mxu0
        %1599 = vmatprep.mubr.bf16.mxu0 0
        %1600 = vmatmul.mubr.bf16.gmra.mrb[0].mxu0 %v1436
        %v1601 = vpop.f32.mrb[0].mxu0
        %v1602 = vadd.f32 0.0, %v1601
        %v1603 = vpop.f32.mrb[0].mxu0
        %v1604 = vpop.f32.mrb[0].mxu0
        %v1605 = vadd.f32 0.0, %v1604
        %v1606 = vpop.f32.mrb[0].mxu0
        %1607 = vmatprep.mubr.bf16.mxu0 0
        %1608 = vmatmul.mubr.bf16.gmra.mrb[0].mxu0 %v1439
        %v1609 = vpop.f32.mrb[0].mxu0
        %v1610 = vadd.f32 0.0, %v1609
        %v1611 = vpop.f32.mrb[0].mxu0
        %v1612 = vpop.f32.mrb[0].mxu0
        %v1613 = vadd.f32 0.0, %v1612
        %v1614 = vpop.f32.mrb[0].mxu0
        %1615 = vmatprep.mubr.bf16.mxu0 0
        %1616 = vmatmul.mubr.bf16.gmra.mrb[0].mxu0 %v1442
        %v1617 = vpop.f32.mrb[0].mxu0
        %v1618 = vadd.f32 0.0, %v1617
        %v1619 = vpop.f32.mrb[0].mxu0
        %v1620 = vpop.f32.mrb[0].mxu0
        %v1621 = vadd.f32 0.0, %v1620
        %v1622 = vpop.f32.mrb[0].mxu0
        %1623 = vdwg.mxu0
        %v1624 = vadd.f32 %v1185, %v1482
        %v1625 = vadd.f32 %v1186, %v1485
        %v1626 = vadd.f32 %v1187, %v1490
        %v1627 = vadd.f32 %v1188, %v1493
        %v1628 = vadd.f32 %v1189, %v1498
        %v1629 = vadd.f32 %v1190, %v1501
        %v1630 = vadd.f32 %v1191, %v1506
        %v1631 = vadd.f32 %v1192, %v1509
        %v1632 = vadd.f32 %v1193, %v1514
        %v1633 = vadd.f32 %v1194, %v1517
        %v1634 = vadd.f32 %v1195, %v1522
        %v1635 = vadd.f32 %v1196, %v1525
        %v1636 = vadd.f32 %v1197, %v1530
        %v1637 = vadd.f32 %v1198, %v1533
        %v1638 = vadd.f32 %v1199, %v1538
        %v1639 = vadd.f32 %v1200, %v1541
        %v1640 = vadd.f32 %v1201, %v1546
        %v1641 = vadd.f32 %v1202, %v1549
        %v1642 = vadd.f32 %v1203, %v1554
        %v1643 = vadd.f32 %v1204, %v1557
        %v1644 = vadd.f32 %v1205, %v1562
        %v1645 = vadd.f32 %v1206, %v1565
        %v1646 = vadd.f32 %v1207, %v1570
        %v1647 = vadd.f32 %v1208, %v1573
        %v1648 = vadd.f32 %v1209, %v1578
        %v1649 = vadd.f32 %v1210, %v1581
        %v1650 = vadd.f32 %v1211, %v1586
        %v1651 = vadd.f32 %v1212, %v1589
        %v1652 = vadd.f32 %v1213, %v1594
        %v1653 = vadd.f32 %v1214, %v1597
        %v1654 = vadd.f32 %v1215, %v1602
        %v1655 = vadd.f32 %v1216, %v1605
        %v1656 = vadd.f32 %v1217, %v1610
        %v1657 = vadd.f32 %v1218, %v1613
        %v1658 = vadd.f32 %v1219, %v1618
        %v1659 = vadd.f32 %v1220, %v1621
        %v1660 = vld [vmem:[%s168 + $0x98] sm:$0x3]
        %s1661 = scalar_lea.vmem %s1, 8
        %v1662 = vld [vmem:[%s1661] sm:$0x3]
        %v1664 = vunpack.c.l.b16 %v1660
        %v1665 = vpack.c.b16 %v1664, %v1664
        %vm1666 = vsmask.f32 6400
        %v1668 = vshrl.u32 %v1334, 16
        %v1670 = vrot.slane %v1668, 1
        %v1671 = vshll.u32 %v1334, 16
        %v1673 = vrot.slane %v1671, 2
        %v1674 = vor.u32 %v1670, %v1673
        %v1676 = vshrl.u32 %v1335, 16
        %v1678 = vrot.slane %v1676, 1
        %v1679 = vshll.u32 %v1335, 16
        %v1681 = vrot.slane %v1679, 2
        %v1682 = vor.u32 %v1678, %v1681
        %v1683 = vsel %vm1666, %v1674, %v1682
        %v1685 = vshrl.u32 %v1336, 16
        %v1687 = vrot.slane %v1685, 1
        %v1688 = vshll.u32 %v1336, 16
        %v1690 = vrot.slane %v1688, 2
        %v1691 = vor.u32 %v1687, %v1690
        %v1692 = vsel %vm1666, %v1682, %v1691
        %v1694 = vshrl.u32 %v1337, 16
        %v1696 = vrot.slane %v1694, 1
        %v1697 = vshll.u32 %v1337, 16
        %v1699 = vrot.slane %v1697, 2
        %v1700 = vor.u32 %v1696, %v1699
        %v1701 = vsel %vm1666, %v1691, %v1700
        %v1703 = vshrl.u32 %v1338, 16
        %v1705 = vrot.slane %v1703, 1
        %v1706 = vshll.u32 %v1338, 16
        %v1708 = vrot.slane %v1706, 2
        %v1709 = vor.u32 %v1705, %v1708
        %v1710 = vsel %vm1666, %v1700, %v1709
        %v1712 = vshrl.u32 %v1339, 16
        %v1714 = vrot.slane %v1712, 1
        %v1715 = vshll.u32 %v1339, 16
        %v1717 = vrot.slane %v1715, 2
        %v1718 = vor.u32 %v1714, %v1717
        %v1719 = vsel %vm1666, %v1709, %v1718
        %v1721 = vshrl.u32 %v1340, 16
        %v1723 = vrot.slane %v1721, 1
        %v1724 = vshll.u32 %v1340, 16
        %v1726 = vrot.slane %v1724, 2
        %v1727 = vor.u32 %v1723, %v1726
        %v1728 = vsel %vm1666, %v1718, %v1727
        %v1730 = vshrl.u32 %v1341, 16
        %v1732 = vrot.slane %v1730, 1
        %v1733 = vshll.u32 %v1341, 16
        %v1735 = vrot.slane %v1733, 2
        %v1736 = vor.u32 %v1732, %v1735
        %v1737 = vsel %vm1666, %v1727, %v1736
        %v1739 = vshrl.u32 %v1342, 16
        %v1741 = vrot.slane %v1739, 1
        %v1742 = vshll.u32 %v1342, 16
        %v1744 = vrot.slane %v1742, 2
        %v1745 = vor.u32 %v1741, %v1744
        %v1746 = vsel %vm1666, %v1736, %v1745
        %v1748 = vshrl.u32 %v1343, 16
        %v1750 = vrot.slane %v1748, 1
        %v1751 = vshll.u32 %v1343, 16
        %v1753 = vrot.slane %v1751, 2
        %v1754 = vor.u32 %v1750, %v1753
        %v1755 = vsel %vm1666, %v1745, %v1754
        %v1757 = vshrl.u32 %v1344, 16
        %v1759 = vrot.slane %v1757, 1
        %v1760 = vshll.u32 %v1344, 16
        %v1762 = vrot.slane %v1760, 2
        %v1763 = vor.u32 %v1759, %v1762
        %v1764 = vsel %vm1666, %v1754, %v1763
        %v1766 = vshrl.u32 %v1345, 16
        %v1768 = vrot.slane %v1766, 1
        %v1769 = vshll.u32 %v1345, 16
        %v1771 = vrot.slane %v1769, 2
        %v1772 = vor.u32 %v1768, %v1771
        %v1773 = vsel %vm1666, %v1763, %v1772
        %v1775 = vshrl.u32 %v1346, 16
        %v1777 = vrot.slane %v1775, 1
        %v1778 = vshll.u32 %v1346, 16
        %v1780 = vrot.slane %v1778, 2
        %v1781 = vor.u32 %v1777, %v1780
        %v1782 = vsel %vm1666, %v1772, %v1781
        %v1784 = vshrl.u32 %v1347, 16
        %v1786 = vrot.slane %v1784, 1
        %v1787 = vshll.u32 %v1347, 16
        %v1789 = vrot.slane %v1787, 2
        %v1790 = vor.u32 %v1786, %v1789
        %v1791 = vsel %vm1666, %v1781, %v1790
        %v1793 = vshrl.u32 %v1348, 16
        %v1795 = vrot.slane %v1793, 1
        %v1796 = vshll.u32 %v1348, 16
        %v1798 = vrot.slane %v1796, 2
        %v1799 = vor.u32 %v1795, %v1798
        %v1800 = vsel %vm1666, %v1790, %v1799
        %v1802 = vshrl.u32 %v1349, 16
        %v1804 = vrot.slane %v1802, 1
        %v1805 = vshll.u32 %v1349, 16
        %v1807 = vrot.slane %v1805, 2
        %v1808 = vor.u32 %v1804, %v1807
        %v1809 = vsel %vm1666, %v1799, %v1808
        %v1811 = vshrl.u32 %v1350, 16
        %v1813 = vrot.slane %v1811, 1
        %v1814 = vshll.u32 %v1350, 16
        %v1816 = vrot.slane %v1814, 2
        %v1817 = vor.u32 %v1813, %v1816
        %v1818 = vsel %vm1666, %v1808, %v1817
        %v1820 = vshrl.u32 %v1351, 16
        %v1822 = vrot.slane %v1820, 1
        %v1823 = vshll.u32 %v1351, 16
        %v1825 = vrot.slane %v1823, 2
        %v1826 = vor.u32 %v1822, %v1825
        %v1827 = vsel %vm1666, %v1817, %v1826
        %v1829 = vshrl.u32 %v1665, 16
        %v1831 = vrot.slane %v1829, 1
        %v1832 = vshll.u32 %v1665, 16
        %v1834 = vrot.slane %v1832, 2
        %v1835 = vor.u32 %v1831, %v1834
        %v1836 = vsel %vm1666, %v1826, %v1835
        %v1838 = vsel %vm452, %v1683, 0
        %v1841 = vsel %vm452, %v1692, 0
        %v1844 = vsel %vm452, %v1701, 0
        %v1847 = vsel %vm452, %v1710, 0
        %v1850 = vsel %vm452, %v1719, 0
        %v1853 = vsel %vm452, %v1728, 0
        %v1856 = vsel %vm452, %v1737, 0
        %v1859 = vsel %vm452, %v1746, 0
        %v1862 = vsel %vm452, %v1755, 0
        %v1865 = vsel %vm452, %v1764, 0
        %v1868 = vsel %vm452, %v1773, 0
        %v1871 = vsel %vm452, %v1782, 0
        %v1874 = vsel %vm452, %v1791, 0
        %v1877 = vsel %vm452, %v1800, 0
        %v1880 = vsel %vm452, %v1809, 0
        %v1883 = vsel %vm452, %v1818, 0
        %v1886 = vsel %vm452, %v1827, 0
        %v1889 = vsel %vm452, %v1836, 0
        %v1892 = vand.u32 %v1662, %v510
        %1894 = vmatprep.subr.bf16.mxu0 0
        %1895 = vmatpush1.bf16.msra.mxu0 %v1892
        %1896 = vmatprep.subr.bf16.mxu0 0
        %1897 = vmatpush1.bf16.msra.mxu0 0
        %1898 = vmatprep.subr.bf16.mxu0 0
        %1899 = vmatpush1.bf16.msra.mxu0 0
        %1900 = vmatprep.subr.bf16.mxu0 0
        %1901 = vmatpush1.bf16.msra.mxu0 0
        %1902 = vmatprep.subr.bf16.mxu0 0
        %1903 = vmatpush1.bf16.msra.mxu0 0
        %1904 = vmatprep.subr.bf16.mxu0 0
        %1905 = vmatpush1.bf16.msra.mxu0 0
        %1906 = vmatprep.subr.bf16.mxu0 0
        %1907 = vmatpush1.bf16.msra.mxu0 0
        %1908 = vmatprep.subr.bf16.mxu0 0
        %1909 = vmatpush1.bf16.msra.mxu0 0
        %1910 = vmatprep.subr.bf16.mxu0 0
        %1911 = vmatpush1.bf16.msra.mxu0 0
        %1912 = vmatprep.subr.bf16.mxu0 0
        %1913 = vmatpush1.bf16.msra.mxu0 0
        %1914 = vmatprep.subr.bf16.mxu0 0
        %1915 = vmatpush1.bf16.msra.mxu0 0
        %1916 = vmatprep.subr.bf16.mxu0 0
        %1917 = vmatpush1.bf16.msra.mxu0 0
        %1918 = vmatprep.subr.bf16.mxu0 0
        %1919 = vmatpush1.bf16.msra.mxu0 0
        %1920 = vmatprep.subr.bf16.mxu0 0
        %1921 = vmatpush1.bf16.msra.mxu0 0
        %1922 = vmatprep.subr.bf16.mxu0 0
        %1923 = vmatpush1.bf16.msra.mxu0 0
        %1924 = vmatprep.subr.bf16.mxu0 0
        %1925 = vmatpush1.bf16.msra.mxu0 0
        %1926 = vmatprep.mubr.bf16.mxu0 0
        %1927 = vmatmul.mubr.bf16.gmra.mrb[0].mxu0 %v1838
        %v1928 = vpop.f32.mrb[0].mxu0
        %v1929 = vadd.f32 0.0, %v1928
        %v1930 = vpop.f32.mrb[0].mxu0
        %v1931 = vpop.f32.mrb[0].mxu0
        %v1932 = vadd.f32 0.0, %v1931
        %v1933 = vpop.f32.mrb[0].mxu0
        %1934 = vmatprep.mubr.bf16.mxu0 0
        %1935 = vmatmul.mubr.bf16.gmra.mrb[0].mxu0 %v1841
        %v1936 = vpop.f32.mrb[0].mxu0
        %v1937 = vadd.f32 0.0, %v1936
        %v1938 = vpop.f32.mrb[0].mxu0
        %v1939 = vpop.f32.mrb[0].mxu0
        %v1940 = vadd.f32 0.0, %v1939
        %v1941 = vpop.f32.mrb[0].mxu0
        %1942 = vmatprep.mubr.bf16.mxu0 0
        %1943 = vmatmul.mubr.bf16.gmra.mrb[0].mxu0 %v1844
        %v1944 = vpop.f32.mrb[0].mxu0
        %v1945 = vadd.f32 0.0, %v1944
        %v1946 = vpop.f32.mrb[0].mxu0
        %v1947 = vpop.f32.mrb[0].mxu0
        %v1948 = vadd.f32 0.0, %v1947
        %v1949 = vpop.f32.mrb[0].mxu0
        %1950 = vmatprep.mubr.bf16.mxu0 0
        %1951 = vmatmul.mubr.bf16.gmra.mrb[0].mxu0 %v1847
        %v1952 = vpop.f32.mrb[0].mxu0
        %v1953 = vadd.f32 0.0, %v1952
        %v1954 = vpop.f32.mrb[0].mxu0
        %v1955 = vpop.f32.mrb[0].mxu0
        %v1956 = vadd.f32 0.0, %v1955
        %v1957 = vpop.f32.mrb[0].mxu0
        %1958 = vmatprep.mubr.bf16.mxu0 0
        %1959 = vmatmul.mubr.bf16.gmra.mrb[0].mxu0 %v1850
        %v1960 = vpop.f32.mrb[0].mxu0
        %v1961 = vadd.f32 0.0, %v1960
        %v1962 = vpop.f32.mrb[0].mxu0
        %v1963 = vpop.f32.mrb[0].mxu0
        %v1964 = vadd.f32 0.0, %v1963
        %v1965 = vpop.f32.mrb[0].mxu0
        %1966 = vmatprep.mubr.bf16.mxu0 0
        %1967 = vmatmul.mubr.bf16.gmra.mrb[0].mxu0 %v1853
        %v1968 = vpop.f32.mrb[0].mxu0
        %v1969 = vadd.f32 0.0, %v1968
        %v1970 = vpop.f32.mrb[0].mxu0
        %v1971 = vpop.f32.mrb[0].mxu0
        %v1972 = vadd.f32 0.0, %v1971
        %v1973 = vpop.f32.mrb[0].mxu0
        %1974 = vmatprep.mubr.bf16.mxu0 0
        %1975 = vmatmul.mubr.bf16.gmra.mrb[0].mxu0 %v1856
        %v1976 = vpop.f32.mrb[0].mxu0
        %v1977 = vadd.f32 0.0, %v1976
        %v1978 = vpop.f32.mrb[0].mxu0
        %v1979 = vpop.f32.mrb[0].mxu0
        %v1980 = vadd.f32 0.0, %v1979
        %v1981 = vpop.f32.mrb[0].mxu0
        %1982 = vmatprep.mubr.bf16.mxu0 0
        %1983 = vmatmul.mubr.bf16.gmra.mrb[0].mxu0 %v1859
        %v1984 = vpop.f32.mrb[0].mxu0
        %v1985 = vadd.f32 0.0, %v1984
        %v1986 = vpop.f32.mrb[0].mxu0
        %v1987 = vpop.f32.mrb[0].mxu0
        %v1988 = vadd.f32 0.0, %v1987
        %v1989 = vpop.f32.mrb[0].mxu0
        %1990 = vmatprep.mubr.bf16.mxu0 0
        %1991 = vmatmul.mubr.bf16.gmra.mrb[0].mxu0 %v1862
        %v1992 = vpop.f32.mrb[0].mxu0
        %v1993 = vadd.f32 0.0, %v1992
        %v1994 = vpop.f32.mrb[0].mxu0
        %v1995 = vpop.f32.mrb[0].mxu0
        %v1996 = vadd.f32 0.0, %v1995
        %v1997 = vpop.f32.mrb[0].mxu0
        %1998 = vmatprep.mubr.bf16.mxu0 0
        %1999 = vmatmul.mubr.bf16.gmra.mrb[0].mxu0 %v1865
        %v2000 = vpop.f32.mrb[0].mxu0
        %v2001 = vadd.f32 0.0, %v2000
        %v2002 = vpop.f32.mrb[0].mxu0
        %v2003 = vpop.f32.mrb[0].mxu0
        %v2004 = vadd.f32 0.0, %v2003
        %v2005 = vpop.f32.mrb[0].mxu0
        %2006 = vmatprep.mubr.bf16.mxu0 0
        %2007 = vmatmul.mubr.bf16.gmra.mrb[0].mxu0 %v1868
        %v2008 = vpop.f32.mrb[0].mxu0
        %v2009 = vadd.f32 0.0, %v2008
        %v2010 = vpop.f32.mrb[0].mxu0
        %v2011 = vpop.f32.mrb[0].mxu0
        %v2012 = vadd.f32 0.0, %v2011
        %v2013 = vpop.f32.mrb[0].mxu0
        %2014 = vmatprep.mubr.bf16.mxu0 0
        %2015 = vmatmul.mubr.bf16.gmra.mrb[0].mxu0 %v1871
        %v2016 = vpop.f32.mrb[0].mxu0
        %v2017 = vadd.f32 0.0, %v2016
        %v2018 = vpop.f32.mrb[0].mxu0
        %v2019 = vpop.f32.mrb[0].mxu0
        %v2020 = vadd.f32 0.0, %v2019
        %v2021 = vpop.f32.mrb[0].mxu0
        %2022 = vmatprep.mubr.bf16.mxu0 0
        %2023 = vmatmul.mubr.bf16.gmra.mrb[0].mxu0 %v1874
        %v2024 = vpop.f32.mrb[0].mxu0
        %v2025 = vadd.f32 0.0, %v2024
        %v2026 = vpop.f32.mrb[0].mxu0
        %v2027 = vpop.f32.mrb[0].mxu0
        %v2028 = vadd.f32 0.0, %v2027
        %v2029 = vpop.f32.mrb[0].mxu0
        %2030 = vmatprep.mubr.bf16.mxu0 0
        %2031 = vmatmul.mubr.bf16.gmra.mrb[0].mxu0 %v1877
        %v2032 = vpop.f32.mrb[0].mxu0
        %v2033 = vadd.f32 0.0, %v2032
        %v2034 = vpop.f32.mrb[0].mxu0
        %v2035 = vpop.f32.mrb[0].mxu0
        %v2036 = vadd.f32 0.0, %v2035
        %v2037 = vpop.f32.mrb[0].mxu0
        %2038 = vmatprep.mubr.bf16.mxu0 0
        %2039 = vmatmul.mubr.bf16.gmra.mrb[0].mxu0 %v1880
        %v2040 = vpop.f32.mrb[0].mxu0
        %v2041 = vadd.f32 0.0, %v2040
        %v2042 = vpop.f32.mrb[0].mxu0
        %v2043 = vpop.f32.mrb[0].mxu0
        %v2044 = vadd.f32 0.0, %v2043
        %v2045 = vpop.f32.mrb[0].mxu0
        %2046 = vmatprep.mubr.bf16.mxu0 0
        %2047 = vmatmul.mubr.bf16.gmra.mrb[0].mxu0 %v1883
        %v2048 = vpop.f32.mrb[0].mxu0
        %v2049 = vadd.f32 0.0, %v2048
        %v2050 = vpop.f32.mrb[0].mxu0
        %v2051 = vpop.f32.mrb[0].mxu0
        %v2052 = vadd.f32 0.0, %v2051
        %v2053 = vpop.f32.mrb[0].mxu0
        %2054 = vmatprep.mubr.bf16.mxu0 0
        %2055 = vmatmul.mubr.bf16.gmra.mrb[0].mxu0 %v1886
        %v2056 = vpop.f32.mrb[0].mxu0
        %v2057 = vadd.f32 0.0, %v2056
        %v2058 = vpop.f32.mrb[0].mxu0
        %v2059 = vpop.f32.mrb[0].mxu0
        %v2060 = vadd.f32 0.0, %v2059
        %v2061 = vpop.f32.mrb[0].mxu0
        %2062 = vmatprep.mubr.bf16.mxu0 0
        %2063 = vmatmul.mubr.bf16.gmra.mrb[0].mxu0 %v1889
        %v2064 = vpop.f32.mrb[0].mxu0
        %v2065 = vadd.f32 0.0, %v2064
        %v2066 = vpop.f32.mrb[0].mxu0
        %v2067 = vpop.f32.mrb[0].mxu0
        %v2068 = vadd.f32 0.0, %v2067
        %v2069 = vpop.f32.mrb[0].mxu0
        %2070 = vdwg.mxu0
        %v2071 = vadd.f32 %v1624, %v1929
        %v2072 = vadd.f32 %v1625, %v1932
        %v2073 = vadd.f32 %v1626, %v1937
        %v2074 = vadd.f32 %v1627, %v1940
        %v2075 = vadd.f32 %v1628, %v1945
        %v2076 = vadd.f32 %v1629, %v1948
        %v2077 = vadd.f32 %v1630, %v1953
        %v2078 = vadd.f32 %v1631, %v1956
        %v2079 = vadd.f32 %v1632, %v1961
        %v2080 = vadd.f32 %v1633, %v1964
        %v2081 = vadd.f32 %v1634, %v1969
        %v2082 = vadd.f32 %v1635, %v1972
        %v2083 = vadd.f32 %v1636, %v1977
        %v2084 = vadd.f32 %v1637, %v1980
        %v2085 = vadd.f32 %v1638, %v1985
        %v2086 = vadd.f32 %v1639, %v1988
        %v2087 = vadd.f32 %v1640, %v1993
        %v2088 = vadd.f32 %v1641, %v1996
        %v2089 = vadd.f32 %v1642, %v2001
        %v2090 = vadd.f32 %v1643, %v2004
        %v2091 = vadd.f32 %v1644, %v2009
        %v2092 = vadd.f32 %v1645, %v2012
        %v2093 = vadd.f32 %v1646, %v2017
        %v2094 = vadd.f32 %v1647, %v2020
        %v2095 = vadd.f32 %v1648, %v2025
        %v2096 = vadd.f32 %v1649, %v2028
        %v2097 = vadd.f32 %v1650, %v2033
        %v2098 = vadd.f32 %v1651, %v2036
        %v2099 = vadd.f32 %v1652, %v2041
        %v2100 = vadd.f32 %v1653, %v2044
        %v2101 = vadd.f32 %v1654, %v2049
        %v2102 = vadd.f32 %v1655, %v2052
        %v2103 = vadd.f32 %v1656, %v2057
        %v2104 = vadd.f32 %v1657, %v2060
        %v2105 = vadd.f32 %v1658, %v2065
        %v2106 = vadd.f32 %v1659, %v2068
        %v2107 = vld [vmem:[%s168 + $0x8] sm:$0xc]
        %s2108 = scalar_lea.vmem %s1, 10
        %v2109 = vld [vmem:[%s2108] sm:$0x3]
        %v2111 = vunpack.c.l.b16 %v2107
        %v2112 = vpack.c.b16 %v1298, %v2111
        %vm2113 = vcmask 1045504
        %v2114 = vrot.slane %v2112, 2
        %v2115 = vrot.slane %v1335, 2
        %v2116 = vsel %vm2113, %v2114, %v2115
        %v2117 = vrot.slane %v1336, 2
        %v2118 = vsel %vm2113, %v2115, %v2117
        %v2119 = vrot.slane %v1337, 2
        %v2120 = vsel %vm2113, %v2117, %v2119
        %v2121 = vrot.slane %v1338, 2
        %v2122 = vsel %vm2113, %v2119, %v2121
        %v2123 = vrot.slane %v1339, 2
        %v2124 = vsel %vm2113, %v2121, %v2123
        %v2125 = vrot.slane %v1340, 2
        %v2126 = vsel %vm2113, %v2123, %v2125
        %v2127 = vrot.slane %v1341, 2
        %v2128 = vsel %vm2113, %v2125, %v2127
        %v2129 = vrot.slane %v1342, 2
        %v2130 = vsel %vm2113, %v2127, %v2129
        %v2131 = vrot.slane %v1343, 2
        %v2132 = vsel %vm2113, %v2129, %v2131
        %v2133 = vrot.slane %v1344, 2
        %v2134 = vsel %vm2113, %v2131, %v2133
        %v2135 = vrot.slane %v1345, 2
        %v2136 = vsel %vm2113, %v2133, %v2135
        %v2137 = vrot.slane %v1346, 2
        %v2138 = vsel %vm2113, %v2135, %v2137
        %v2139 = vrot.slane %v1347, 2
        %v2140 = vsel %vm2113, %v2137, %v2139
        %v2141 = vrot.slane %v1348, 2
        %v2142 = vsel %vm2113, %v2139, %v2141
        %v2143 = vrot.slane %v1349, 2
        %v2144 = vsel %vm2113, %v2141, %v2143
        %v2145 = vrot.slane %v1350, 2
        %v2146 = vsel %vm2113, %v2143, %v2145
        %v2147 = vrot.slane %v1351, 2
        %v2148 = vsel %vm2113, %v2145, %v2147
        %v2149 = vrot.slane %v1665, 2
        %v2150 = vsel %vm2113, %v2147, %v2149
        %v2152 = vsel %vm452, %v2116, 0
        %v2155 = vsel %vm452, %v2118, 0
        %v2158 = vsel %vm452, %v2120, 0
        %v2161 = vsel %vm452, %v2122, 0
        %v2164 = vsel %vm452, %v2124, 0
        %v2167 = vsel %vm452, %v2126, 0
        %v2170 = vsel %vm452, %v2128, 0
        %v2173 = vsel %vm452, %v2130, 0
        %v2176 = vsel %vm452, %v2132, 0
        %v2179 = vsel %vm452, %v2134, 0
        %v2182 = vsel %vm452, %v2136, 0
        %v2185 = vsel %vm452, %v2138, 0
        %v2188 = vsel %vm452, %v2140, 0
        %v2191 = vsel %vm452, %v2142, 0
        %v2194 = vsel %vm452, %v2144, 0
        %v2197 = vsel %vm452, %v2146, 0
        %v2200 = vsel %vm452, %v2148, 0
        %v2203 = vsel %vm452, %v2150, 0
        %v2206 = vand.u32 %v2109, %v510
        %2208 = vmatprep.subr.bf16.mxu0 0
        %2209 = vmatpush1.bf16.msra.mxu0 %v2206
        %2210 = vmatprep.subr.bf16.mxu0 0
        %2211 = vmatpush1.bf16.msra.mxu0 0
        %2212 = vmatprep.subr.bf16.mxu0 0
        %2213 = vmatpush1.bf16.msra.mxu0 0
        %2214 = vmatprep.subr.bf16.mxu0 0
        %2215 = vmatpush1.bf16.msra.mxu0 0
        %2216 = vmatprep.subr.bf16.mxu0 0
        %2217 = vmatpush1.bf16.msra.mxu0 0
        %2218 = vmatprep.subr.bf16.mxu0 0
        %2219 = vmatpush1.bf16.msra.mxu0 0
        %2220 = vmatprep.subr.bf16.mxu0 0
        %2221 = vmatpush1.bf16.msra.mxu0 0
        %2222 = vmatprep.subr.bf16.mxu0 0
        %2223 = vmatpush1.bf16.msra.mxu0 0
        %2224 = vmatprep.subr.bf16.mxu0 0
        %2225 = vmatpush1.bf16.msra.mxu0 0
        %2226 = vmatprep.subr.bf16.mxu0 0
        %2227 = vmatpush1.bf16.msra.mxu0 0
        %2228 = vmatprep.subr.bf16.mxu0 0
        %2229 = vmatpush1.bf16.msra.mxu0 0
        %2230 = vmatprep.subr.bf16.mxu0 0
        %2231 = vmatpush1.bf16.msra.mxu0 0
        %2232 = vmatprep.subr.bf16.mxu0 0
        %2233 = vmatpush1.bf16.msra.mxu0 0
        %2234 = vmatprep.subr.bf16.mxu0 0
        %2235 = vmatpush1.bf16.msra.mxu0 0
        %2236 = vmatprep.subr.bf16.mxu0 0
        %2237 = vmatpush1.bf16.msra.mxu0 0
        %2238 = vmatprep.subr.bf16.mxu0 0
        %2239 = vmatpush1.bf16.msra.mxu0 0
        %2240 = vmatprep.mubr.bf16.mxu0 0
        %2241 = vmatmul.mubr.bf16.gmra.mrb[0].mxu0 %v2152
        %v2242 = vpop.f32.mrb[0].mxu0
        %v2243 = vadd.f32 0.0, %v2242
        %v2244 = vpop.f32.mrb[0].mxu0
        %v2245 = vpop.f32.mrb[0].mxu0
        %v2246 = vadd.f32 0.0, %v2245
        %v2247 = vpop.f32.mrb[0].mxu0
        %2248 = vmatprep.mubr.bf16.mxu0 0
        %2249 = vmatmul.mubr.bf16.gmra.mrb[0].mxu0 %v2155
        %v2250 = vpop.f32.mrb[0].mxu0
        %v2251 = vadd.f32 0.0, %v2250
        %v2252 = vpop.f32.mrb[0].mxu0
        %v2253 = vpop.f32.mrb[0].mxu0
        %v2254 = vadd.f32 0.0, %v2253
        %v2255 = vpop.f32.mrb[0].mxu0
        %2256 = vmatprep.mubr.bf16.mxu0 0
        %2257 = vmatmul.mubr.bf16.gmra.mrb[0].mxu0 %v2158
        %v2258 = vpop.f32.mrb[0].mxu0
        %v2259 = vadd.f32 0.0, %v2258
        %v2260 = vpop.f32.mrb[0].mxu0
        %v2261 = vpop.f32.mrb[0].mxu0
        %v2262 = vadd.f32 0.0, %v2261
        %v2263 = vpop.f32.mrb[0].mxu0
        %2264 = vmatprep.mubr.bf16.mxu0 0
        %2265 = vmatmul.mubr.bf16.gmra.mrb[0].mxu0 %v2161
        %v2266 = vpop.f32.mrb[0].mxu0
        %v2267 = vadd.f32 0.0, %v2266
        %v2268 = vpop.f32.mrb[0].mxu0
        %v2269 = vpop.f32.mrb[0].mxu0
        %v2270 = vadd.f32 0.0, %v2269
        %v2271 = vpop.f32.mrb[0].mxu0
        %2272 = vmatprep.mubr.bf16.mxu0 0
        %2273 = vmatmul.mubr.bf16.gmra.mrb[0].mxu0 %v2164
        %v2274 = vpop.f32.mrb[0].mxu0
        %v2275 = vadd.f32 0.0, %v2274
        %v2276 = vpop.f32.mrb[0].mxu0
        %v2277 = vpop.f32.mrb[0].mxu0
        %v2278 = vadd.f32 0.0, %v2277
        %v2279 = vpop.f32.mrb[0].mxu0
        %2280 = vmatprep.mubr.bf16.mxu0 0
        %2281 = vmatmul.mubr.bf16.gmra.mrb[0].mxu0 %v2167
        %v2282 = vpop.f32.mrb[0].mxu0
        %v2283 = vadd.f32 0.0, %v2282
        %v2284 = vpop.f32.mrb[0].mxu0
        %v2285 = vpop.f32.mrb[0].mxu0
        %v2286 = vadd.f32 0.0, %v2285
        %v2287 = vpop.f32.mrb[0].mxu0
        %2288 = vmatprep.mubr.bf16.mxu0 0
        %2289 = vmatmul.mubr.bf16.gmra.mrb[0].mxu0 %v2170
        %v2290 = vpop.f32.mrb[0].mxu0
        %v2291 = vadd.f32 0.0, %v2290
        %v2292 = vpop.f32.mrb[0].mxu0
        %v2293 = vpop.f32.mrb[0].mxu0
        %v2294 = vadd.f32 0.0, %v2293
        %v2295 = vpop.f32.mrb[0].mxu0
        %2296 = vmatprep.mubr.bf16.mxu0 0
        %2297 = vmatmul.mubr.bf16.gmra.mrb[0].mxu0 %v2173
        %v2298 = vpop.f32.mrb[0].mxu0
        %v2299 = vadd.f32 0.0, %v2298
        %v2300 = vpop.f32.mrb[0].mxu0
        %v2301 = vpop.f32.mrb[0].mxu0
        %v2302 = vadd.f32 0.0, %v2301
        %v2303 = vpop.f32.mrb[0].mxu0
        %2304 = vmatprep.mubr.bf16.mxu0 0
        %2305 = vmatmul.mubr.bf16.gmra.mrb[0].mxu0 %v2176
        %v2306 = vpop.f32.mrb[0].mxu0
        %v2307 = vadd.f32 0.0, %v2306
        %v2308 = vpop.f32.mrb[0].mxu0
        %v2309 = vpop.f32.mrb[0].mxu0
        %v2310 = vadd.f32 0.0, %v2309
        %v2311 = vpop.f32.mrb[0].mxu0
        %2312 = vmatprep.mubr.bf16.mxu0 0
        %2313 = vmatmul.mubr.bf16.gmra.mrb[0].mxu0 %v2179
        %v2314 = vpop.f32.mrb[0].mxu0
        %v2315 = vadd.f32 0.0, %v2314
        %v2316 = vpop.f32.mrb[0].mxu0
        %v2317 = vpop.f32.mrb[0].mxu0
        %v2318 = vadd.f32 0.0, %v2317
        %v2319 = vpop.f32.mrb[0].mxu0
        %2320 = vmatprep.mubr.bf16.mxu0 0
        %2321 = vmatmul.mubr.bf16.gmra.mrb[0].mxu0 %v2182
        %v2322 = vpop.f32.mrb[0].mxu0
        %v2323 = vadd.f32 0.0, %v2322
        %v2324 = vpop.f32.mrb[0].mxu0
        %v2325 = vpop.f32.mrb[0].mxu0
        %v2326 = vadd.f32 0.0, %v2325
        %v2327 = vpop.f32.mrb[0].mxu0
        %2328 = vmatprep.mubr.bf16.mxu0 0
        %2329 = vmatmul.mubr.bf16.gmra.mrb[0].mxu0 %v2185
        %v2330 = vpop.f32.mrb[0].mxu0
        %v2331 = vadd.f32 0.0, %v2330
        %v2332 = vpop.f32.mrb[0].mxu0
        %v2333 = vpop.f32.mrb[0].mxu0
        %v2334 = vadd.f32 0.0, %v2333
        %v2335 = vpop.f32.mrb[0].mxu0
        %2336 = vmatprep.mubr.bf16.mxu0 0
        %2337 = vmatmul.mubr.bf16.gmra.mrb[0].mxu0 %v2188
        %v2338 = vpop.f32.mrb[0].mxu0
        %v2339 = vadd.f32 0.0, %v2338
        %v2340 = vpop.f32.mrb[0].mxu0
        %v2341 = vpop.f32.mrb[0].mxu0
        %v2342 = vadd.f32 0.0, %v2341
        %v2343 = vpop.f32.mrb[0].mxu0
        %2344 = vmatprep.mubr.bf16.mxu0 0
        %2345 = vmatmul.mubr.bf16.gmra.mrb[0].mxu0 %v2191
        %v2346 = vpop.f32.mrb[0].mxu0
        %v2347 = vadd.f32 0.0, %v2346
        %v2348 = vpop.f32.mrb[0].mxu0
        %v2349 = vpop.f32.mrb[0].mxu0
        %v2350 = vadd.f32 0.0, %v2349
        %v2351 = vpop.f32.mrb[0].mxu0
        %2352 = vmatprep.mubr.bf16.mxu0 0
        %2353 = vmatmul.mubr.bf16.gmra.mrb[0].mxu0 %v2194
        %v2354 = vpop.f32.mrb[0].mxu0
        %v2355 = vadd.f32 0.0, %v2354
        %v2356 = vpop.f32.mrb[0].mxu0
        %v2357 = vpop.f32.mrb[0].mxu0
        %v2358 = vadd.f32 0.0, %v2357
        %v2359 = vpop.f32.mrb[0].mxu0
        %2360 = vmatprep.mubr.bf16.mxu0 0
        %2361 = vmatmul.mubr.bf16.gmra.mrb[0].mxu0 %v2197
        %v2362 = vpop.f32.mrb[0].mxu0
        %v2363 = vadd.f32 0.0, %v2362
        %v2364 = vpop.f32.mrb[0].mxu0
        %v2365 = vpop.f32.mrb[0].mxu0
        %v2366 = vadd.f32 0.0, %v2365
        %v2367 = vpop.f32.mrb[0].mxu0
        %2368 = vmatprep.mubr.bf16.mxu0 0
        %2369 = vmatmul.mubr.bf16.gmra.mrb[0].mxu0 %v2200
        %v2370 = vpop.f32.mrb[0].mxu0
        %v2371 = vadd.f32 0.0, %v2370
        %v2372 = vpop.f32.mrb[0].mxu0
        %v2373 = vpop.f32.mrb[0].mxu0
        %v2374 = vadd.f32 0.0, %v2373
        %v2375 = vpop.f32.mrb[0].mxu0
        %2376 = vmatprep.mubr.bf16.mxu0 0
        %2377 = vmatmul.mubr.bf16.gmra.mrb[0].mxu0 %v2203
        %v2378 = vpop.f32.mrb[0].mxu0
        %v2379 = vadd.f32 0.0, %v2378
        %v2380 = vpop.f32.mrb[0].mxu0
        %v2381 = vpop.f32.mrb[0].mxu0
        %v2382 = vadd.f32 0.0, %v2381
        %v2383 = vpop.f32.mrb[0].mxu0
        %2384 = vdwg.mxu0
        %v2385 = vadd.f32 %v2071, %v2243
        %v2386 = vadd.f32 %v2072, %v2246
        %v2387 = vadd.f32 %v2073, %v2251
        %v2388 = vadd.f32 %v2074, %v2254
        %v2389 = vadd.f32 %v2075, %v2259
        %v2390 = vadd.f32 %v2076, %v2262
        %v2391 = vadd.f32 %v2077, %v2267
        %v2392 = vadd.f32 %v2078, %v2270
        %v2393 = vadd.f32 %v2079, %v2275
        %v2394 = vadd.f32 %v2080, %v2278
        %v2395 = vadd.f32 %v2081, %v2283
        %v2396 = vadd.f32 %v2082, %v2286
        %v2397 = vadd.f32 %v2083, %v2291
        %v2398 = vadd.f32 %v2084, %v2294
        %v2399 = vadd.f32 %v2085, %v2299
        %v2400 = vadd.f32 %v2086, %v2302
        %v2401 = vadd.f32 %v2087, %v2307
        %v2402 = vadd.f32 %v2088, %v2310
        %v2403 = vadd.f32 %v2089, %v2315
        %v2404 = vadd.f32 %v2090, %v2318
        %v2405 = vadd.f32 %v2091, %v2323
        %v2406 = vadd.f32 %v2092, %v2326
        %v2407 = vadd.f32 %v2093, %v2331
        %v2408 = vadd.f32 %v2094, %v2334
        %v2409 = vadd.f32 %v2095, %v2339
        %v2410 = vadd.f32 %v2096, %v2342
        %v2411 = vadd.f32 %v2097, %v2347
        %v2412 = vadd.f32 %v2098, %v2350
        %v2413 = vadd.f32 %v2099, %v2355
        %v2414 = vadd.f32 %v2100, %v2358
        %v2415 = vadd.f32 %v2101, %v2363
        %v2416 = vadd.f32 %v2102, %v2366
        %v2417 = vadd.f32 %v2103, %v2371
        %v2418 = vadd.f32 %v2104, %v2374
        %v2419 = vadd.f32 %v2105, %v2379
        %v2420 = vadd.f32 %v2106, %v2382
        %v2421 = vld [vmem:[%s168 + $0x10] sm:$0xc]
        %v2422 = vld [vmem:[%s168 + $0x14] sm:$0xf]
        %v2423 = vld [vmem:[%s168 + $0x18] sm:$0xf]
        %v2424 = vld [vmem:[%s168 + $0x1c] sm:$0xf]
        %v2425 = vld [vmem:[%s168 + $0x20] sm:$0xf]
        %v2426 = vld [vmem:[%s168 + $0x24] sm:$0xf]
        %v2427 = vld [vmem:[%s168 + $0x28] sm:$0xf]
        %v2428 = vld [vmem:[%s168 + $0x2c] sm:$0xf]
        %v2429 = vld [vmem:[%s168 + $0x30] sm:$0xf]
        %v2430 = vld [vmem:[%s168 + $0x34] sm:$0xf]
        %v2431 = vld [vmem:[%s168 + $0x38] sm:$0xf]
        %v2432 = vld [vmem:[%s168 + $0x3c] sm:$0xf]
        %v2433 = vld [vmem:[%s168 + $0x40] sm:$0xf]
        %v2434 = vld [vmem:[%s168 + $0x44] sm:$0xf]
        %v2435 = vld [vmem:[%s168 + $0x48] sm:$0xf]
        %v2436 = vld [vmem:[%s168 + $0x4c] sm:$0xf]
        %v2437 = vld [vmem:[%s168 + $0x50] sm:$0xf]
        %v2438 = vld [vmem:[%s168 + $0x54] sm:$0xf]
        %v2439 = vld [vmem:[%s168 + $0x58] sm:$0xf]
        %v2440 = vld [vmem:[%s168 + $0x5c] sm:$0xf]
        %v2441 = vld [vmem:[%s168 + $0x60] sm:$0xf]
        %v2442 = vld [vmem:[%s168 + $0x64] sm:$0xf]
        %v2443 = vld [vmem:[%s168 + $0x68] sm:$0xf]
        %v2444 = vld [vmem:[%s168 + $0x6c] sm:$0xf]
        %v2445 = vld [vmem:[%s168 + $0x70] sm:$0xf]
        %v2446 = vld [vmem:[%s168 + $0x74] sm:$0xf]
        %v2447 = vld [vmem:[%s168 + $0x78] sm:$0xf]
        %v2448 = vld [vmem:[%s168 + $0x7c] sm:$0xf]
        %v2449 = vld [vmem:[%s168 + $0x80] sm:$0xf]
        %v2450 = vld [vmem:[%s168 + $0x84] sm:$0xf]
        %v2451 = vld [vmem:[%s168 + $0x88] sm:$0xf]
        %v2452 = vld [vmem:[%s168 + $0x8c] sm:$0xf]
        %v2453 = vld [vmem:[%s168 + $0x90] sm:$0xf]
        %v2454 = vld [vmem:[%s168 + $0x94] sm:$0xf]
        %v2455 = vld [vmem:[%s168 + $0x98] sm:$0xf]
        %v2456 = vld [vmem:[%s168 + $0x9c] sm:$0xf]
        %v2457 = vld [vmem:[%s168 + $0xa0] sm:$0x3]
        %s2458 = scalar_lea.vmem %s1, 12
        %v2459 = vld [vmem:[%s2458] sm:$0x3]
        %v2497 = vunpack.c.l.b16 %v2421
        %v2498 = vunpack.c.l.b16 %v2422
        %v2499 = vunpack.c.l.b16 %v2423
        %v2500 = vunpack.c.l.b16 %v2424
        %v2501 = vunpack.c.l.b16 %v2425
        %v2502 = vunpack.c.l.b16 %v2426
        %v2503 = vunpack.c.l.b16 %v2427
        %v2504 = vunpack.c.l.b16 %v2428
        %v2505 = vunpack.c.l.b16 %v2429
        %v2506 = vunpack.c.l.b16 %v2430
        %v2507 = vunpack.c.l.b16 %v2431
        %v2508 = vunpack.c.l.b16 %v2432
        %v2509 = vunpack.c.l.b16 %v2433
        %v2510 = vunpack.c.l.b16 %v2434
        %v2511 = vunpack.c.l.b16 %v2435
        %v2512 = vunpack.c.l.b16 %v2436
        %v2513 = vunpack.c.l.b16 %v2437
        %v2514 = vunpack.c.l.b16 %v2438
        %v2515 = vunpack.c.l.b16 %v2439
        %v2516 = vunpack.c.l.b16 %v2440
        %v2517 = vunpack.c.l.b16 %v2441
        %v2518 = vunpack.c.l.b16 %v2442
        %v2519 = vunpack.c.l.b16 %v2443
        %v2520 = vunpack.c.l.b16 %v2444
        %v2521 = vunpack.c.l.b16 %v2445
        %v2522 = vunpack.c.l.b16 %v2446
        %v2523 = vunpack.c.l.b16 %v2447
        %v2524 = vunpack.c.l.b16 %v2448
        %v2525 = vunpack.c.l.b16 %v2449
        %v2526 = vunpack.c.l.b16 %v2450
        %v2527 = vunpack.c.l.b16 %v2451
        %v2528 = vunpack.c.l.b16 %v2452
        %v2529 = vunpack.c.l.b16 %v2453
        %v2530 = vunpack.c.l.b16 %v2454
        %v2531 = vunpack.c.l.b16 %v2455
        %v2532 = vunpack.c.l.b16 %v2456
        %v2533 = vunpack.c.l.b16 %v2457
        %v2534 = vpack.c.b16 %v2498, %v2497
        %v2535 = vpack.c.b16 %v2500, %v2499
        %v2536 = vpack.c.b16 %v2502, %v2501
        %v2537 = vpack.c.b16 %v2504, %v2503
        %v2538 = vpack.c.b16 %v2506, %v2505
        %v2539 = vpack.c.b16 %v2508, %v2507
        %v2540 = vpack.c.b16 %v2510, %v2509
        %v2541 = vpack.c.b16 %v2512, %v2511
        %v2542 = vpack.c.b16 %v2514, %v2513
        %v2543 = vpack.c.b16 %v2516, %v2515
        %v2544 = vpack.c.b16 %v2518, %v2517
        %v2545 = vpack.c.b16 %v2520, %v2519
        %v2546 = vpack.c.b16 %v2522, %v2521
        %v2547 = vpack.c.b16 %v2524, %v2523
        %v2548 = vpack.c.b16 %v2526, %v2525
        %v2549 = vpack.c.b16 %v2528, %v2527
        %v2550 = vpack.c.b16 %v2530, %v2529
        %v2551 = vpack.c.b16 %v2532, %v2531
        %v2552 = vpack.c.b16 %v2533, %v2533
        %v2553 = vrot.slane %v2534, 2
        %v2554 = vrot.slane %v2535, 2
        %v2555 = vsel %vm2113, %v2553, %v2554
        %v2556 = vrot.slane %v2536, 2
        %v2557 = vsel %vm2113, %v2554, %v2556
        %v2558 = vrot.slane %v2537, 2
        %v2559 = vsel %vm2113, %v2556, %v2558
        %v2560 = vrot.slane %v2538, 2
        %v2561 = vsel %vm2113, %v2558, %v2560
        %v2562 = vrot.slane %v2539, 2
        %v2563 = vsel %vm2113, %v2560, %v2562
        %v2564 = vrot.slane %v2540, 2
        %v2565 = vsel %vm2113, %v2562, %v2564
        %v2566 = vrot.slane %v2541, 2
        %v2567 = vsel %vm2113, %v2564, %v2566
        %v2568 = vrot.slane %v2542, 2
        %v2569 = vsel %vm2113, %v2566, %v2568
        %v2570 = vrot.slane %v2543, 2
        %v2571 = vsel %vm2113, %v2568, %v2570
        %v2572 = vrot.slane %v2544, 2
        %v2573 = vsel %vm2113, %v2570, %v2572
        %v2574 = vrot.slane %v2545, 2
        %v2575 = vsel %vm2113, %v2572, %v2574
        %v2576 = vrot.slane %v2546, 2
        %v2577 = vsel %vm2113, %v2574, %v2576
        %v2578 = vrot.slane %v2547, 2
        %v2579 = vsel %vm2113, %v2576, %v2578
        %v2580 = vrot.slane %v2548, 2
        %v2581 = vsel %vm2113, %v2578, %v2580
        %v2582 = vrot.slane %v2549, 2
        %v2583 = vsel %vm2113, %v2580, %v2582
        %v2584 = vrot.slane %v2550, 2
        %v2585 = vsel %vm2113, %v2582, %v2584
        %v2586 = vrot.slane %v2551, 2
        %v2587 = vsel %vm2113, %v2584, %v2586
        %v2588 = vrot.slane %v2552, 2
        %v2589 = vsel %vm2113, %v2586, %v2588
        %v2591 = vsel %vm452, %v2555, 0
        %v2594 = vsel %vm452, %v2557, 0
        %v2597 = vsel %vm452, %v2559, 0
        %v2600 = vsel %vm452, %v2561, 0
        %v2603 = vsel %vm452, %v2563, 0
        %v2606 = vsel %vm452, %v2565, 0
        %v2609 = vsel %vm452, %v2567, 0
        %v2612 = vsel %vm452, %v2569, 0
        %v2615 = vsel %vm452, %v2571, 0
        %v2618 = vsel %vm452, %v2573, 0
        %v2621 = vsel %vm452, %v2575, 0
        %v2624 = vsel %vm452, %v2577, 0
        %v2627 = vsel %vm452, %v2579, 0
        %v2630 = vsel %vm452, %v2581, 0
        %v2633 = vsel %vm452, %v2583, 0
        %v2636 = vsel %vm452, %v2585, 0
        %v2639 = vsel %vm452, %v2587, 0
        %v2642 = vsel %vm452, %v2589, 0
        %v2645 = vand.u32 %v2459, %v510
        %2647 = vmatprep.subr.bf16.mxu0 0
        %2648 = vmatpush1.bf16.msra.mxu0 %v2645
        %2649 = vmatprep.subr.bf16.mxu0 0
        %2650 = vmatpush1.bf16.msra.mxu0 0
        %2651 = vmatprep.subr.bf16.mxu0 0
        %2652 = vmatpush1.bf16.msra.mxu0 0
        %2653 = vmatprep.subr.bf16.mxu0 0
        %2654 = vmatpush1.bf16.msra.mxu0 0
        %2655 = vmatprep.subr.bf16.mxu0 0
        %2656 = vmatpush1.bf16.msra.mxu0 0
        %2657 = vmatprep.subr.bf16.mxu0 0
        %2658 = vmatpush1.bf16.msra.mxu0 0
        %2659 = vmatprep.subr.bf16.mxu0 0
        %2660 = vmatpush1.bf16.msra.mxu0 0
        %2661 = vmatprep.subr.bf16.mxu0 0
        %2662 = vmatpush1.bf16.msra.mxu0 0
        %2663 = vmatprep.subr.bf16.mxu0 0
        %2664 = vmatpush1.bf16.msra.mxu0 0
        %2665 = vmatprep.subr.bf16.mxu0 0
        %2666 = vmatpush1.bf16.msra.mxu0 0
        %2667 = vmatprep.subr.bf16.mxu0 0
        %2668 = vmatpush1.bf16.msra.mxu0 0
        %2669 = vmatprep.subr.bf16.mxu0 0
        %2670 = vmatpush1.bf16.msra.mxu0 0
        %2671 = vmatprep.subr.bf16.mxu0 0
        %2672 = vmatpush1.bf16.msra.mxu0 0
        %2673 = vmatprep.subr.bf16.mxu0 0
        %2674 = vmatpush1.bf16.msra.mxu0 0
        %2675 = vmatprep.subr.bf16.mxu0 0
        %2676 = vmatpush1.bf16.msra.mxu0 0
        %2677 = vmatprep.subr.bf16.mxu0 0
        %2678 = vmatpush1.bf16.msra.mxu0 0
        %2679 = vmatprep.mubr.bf16.mxu0 0
        %2680 = vmatmul.mubr.bf16.gmra.mrb[0].mxu0 %v2591
        %v2681 = vpop.f32.mrb[0].mxu0
        %v2682 = vadd.f32 0.0, %v2681
        %v2683 = vpop.f32.mrb[0].mxu0
        %v2684 = vpop.f32.mrb[0].mxu0
        %v2685 = vadd.f32 0.0, %v2684
        %v2686 = vpop.f32.mrb[0].mxu0
        %2687 = vmatprep.mubr.bf16.mxu0 0
        %2688 = vmatmul.mubr.bf16.gmra.mrb[0].mxu0 %v2594
        %v2689 = vpop.f32.mrb[0].mxu0
        %v2690 = vadd.f32 0.0, %v2689
        %v2691 = vpop.f32.mrb[0].mxu0
        %v2692 = vpop.f32.mrb[0].mxu0
        %v2693 = vadd.f32 0.0, %v2692
        %v2694 = vpop.f32.mrb[0].mxu0
        %2695 = vmatprep.mubr.bf16.mxu0 0
        %2696 = vmatmul.mubr.bf16.gmra.mrb[0].mxu0 %v2597
        %v2697 = vpop.f32.mrb[0].mxu0
        %v2698 = vadd.f32 0.0, %v2697
        %v2699 = vpop.f32.mrb[0].mxu0
        %v2700 = vpop.f32.mrb[0].mxu0
        %v2701 = vadd.f32 0.0, %v2700
        %v2702 = vpop.f32.mrb[0].mxu0
        %2703 = vmatprep.mubr.bf16.mxu0 0
        %2704 = vmatmul.mubr.bf16.gmra.mrb[0].mxu0 %v2600
        %v2705 = vpop.f32.mrb[0].mxu0
        %v2706 = vadd.f32 0.0, %v2705
        %v2707 = vpop.f32.mrb[0].mxu0
        %v2708 = vpop.f32.mrb[0].mxu0
        %v2709 = vadd.f32 0.0, %v2708
        %v2710 = vpop.f32.mrb[0].mxu0
        %2711 = vmatprep.mubr.bf16.mxu0 0
        %2712 = vmatmul.mubr.bf16.gmra.mrb[0].mxu0 %v2603
        %v2713 = vpop.f32.mrb[0].mxu0
        %v2714 = vadd.f32 0.0, %v2713
        %v2715 = vpop.f32.mrb[0].mxu0
        %v2716 = vpop.f32.mrb[0].mxu0
        %v2717 = vadd.f32 0.0, %v2716
        %v2718 = vpop.f32.mrb[0].mxu0
        %2719 = vmatprep.mubr.bf16.mxu0 0
        %2720 = vmatmul.mubr.bf16.gmra.mrb[0].mxu0 %v2606
        %v2721 = vpop.f32.mrb[0].mxu0
        %v2722 = vadd.f32 0.0, %v2721
        %v2723 = vpop.f32.mrb[0].mxu0
        %v2724 = vpop.f32.mrb[0].mxu0
        %v2725 = vadd.f32 0.0, %v2724
        %v2726 = vpop.f32.mrb[0].mxu0
        %2727 = vmatprep.mubr.bf16.mxu0 0
        %2728 = vmatmul.mubr.bf16.gmra.mrb[0].mxu0 %v2609
        %v2729 = vpop.f32.mrb[0].mxu0
        %v2730 = vadd.f32 0.0, %v2729
        %v2731 = vpop.f32.mrb[0].mxu0
        %v2732 = vpop.f32.mrb[0].mxu0
        %v2733 = vadd.f32 0.0, %v2732
        %v2734 = vpop.f32.mrb[0].mxu0
        %2735 = vmatprep.mubr.bf16.mxu0 0
        %2736 = vmatmul.mubr.bf16.gmra.mrb[0].mxu0 %v2612
        %v2737 = vpop.f32.mrb[0].mxu0
        %v2738 = vadd.f32 0.0, %v2737
        %v2739 = vpop.f32.mrb[0].mxu0
        %v2740 = vpop.f32.mrb[0].mxu0
        %v2741 = vadd.f32 0.0, %v2740
        %v2742 = vpop.f32.mrb[0].mxu0
        %2743 = vmatprep.mubr.bf16.mxu0 0
        %2744 = vmatmul.mubr.bf16.gmra.mrb[0].mxu0 %v2615
        %v2745 = vpop.f32.mrb[0].mxu0
        %v2746 = vadd.f32 0.0, %v2745
        %v2747 = vpop.f32.mrb[0].mxu0
        %v2748 = vpop.f32.mrb[0].mxu0
        %v2749 = vadd.f32 0.0, %v2748
        %v2750 = vpop.f32.mrb[0].mxu0
        %2751 = vmatprep.mubr.bf16.mxu0 0
        %2752 = vmatmul.mubr.bf16.gmra.mrb[0].mxu0 %v2618
        %v2753 = vpop.f32.mrb[0].mxu0
        %v2754 = vadd.f32 0.0, %v2753
        %v2755 = vpop.f32.mrb[0].mxu0
        %v2756 = vpop.f32.mrb[0].mxu0
        %v2757 = vadd.f32 0.0, %v2756
        %v2758 = vpop.f32.mrb[0].mxu0
        %2759 = vmatprep.mubr.bf16.mxu0 0
        %2760 = vmatmul.mubr.bf16.gmra.mrb[0].mxu0 %v2621
        %v2761 = vpop.f32.mrb[0].mxu0
        %v2762 = vadd.f32 0.0, %v2761
        %v2763 = vpop.f32.mrb[0].mxu0
        %v2764 = vpop.f32.mrb[0].mxu0
        %v2765 = vadd.f32 0.0, %v2764
        %v2766 = vpop.f32.mrb[0].mxu0
        %2767 = vmatprep.mubr.bf16.mxu0 0
        %2768 = vmatmul.mubr.bf16.gmra.mrb[0].mxu0 %v2624
        %v2769 = vpop.f32.mrb[0].mxu0
        %v2770 = vadd.f32 0.0, %v2769
        %v2771 = vpop.f32.mrb[0].mxu0
        %v2772 = vpop.f32.mrb[0].mxu0
        %v2773 = vadd.f32 0.0, %v2772
        %v2774 = vpop.f32.mrb[0].mxu0
        %2775 = vmatprep.mubr.bf16.mxu0 0
        %2776 = vmatmul.mubr.bf16.gmra.mrb[0].mxu0 %v2627
        %v2777 = vpop.f32.mrb[0].mxu0
        %v2778 = vadd.f32 0.0, %v2777
        %v2779 = vpop.f32.mrb[0].mxu0
        %v2780 = vpop.f32.mrb[0].mxu0
        %v2781 = vadd.f32 0.0, %v2780
        %v2782 = vpop.f32.mrb[0].mxu0
        %2783 = vmatprep.mubr.bf16.mxu0 0
        %2784 = vmatmul.mubr.bf16.gmra.mrb[0].mxu0 %v2630
        %v2785 = vpop.f32.mrb[0].mxu0
        %v2786 = vadd.f32 0.0, %v2785
        %v2787 = vpop.f32.mrb[0].mxu0
        %v2788 = vpop.f32.mrb[0].mxu0
        %v2789 = vadd.f32 0.0, %v2788
        %v2790 = vpop.f32.mrb[0].mxu0
        %2791 = vmatprep.mubr.bf16.mxu0 0
        %2792 = vmatmul.mubr.bf16.gmra.mrb[0].mxu0 %v2633
        %v2793 = vpop.f32.mrb[0].mxu0
        %v2794 = vadd.f32 0.0, %v2793
        %v2795 = vpop.f32.mrb[0].mxu0
        %v2796 = vpop.f32.mrb[0].mxu0
        %v2797 = vadd.f32 0.0, %v2796
        %v2798 = vpop.f32.mrb[0].mxu0
        %2799 = vmatprep.mubr.bf16.mxu0 0
        %2800 = vmatmul.mubr.bf16.gmra.mrb[0].mxu0 %v2636
        %v2801 = vpop.f32.mrb[0].mxu0
        %v2802 = vadd.f32 0.0, %v2801
        %v2803 = vpop.f32.mrb[0].mxu0
        %v2804 = vpop.f32.mrb[0].mxu0
        %v2805 = vadd.f32 0.0, %v2804
        %v2806 = vpop.f32.mrb[0].mxu0
        %2807 = vmatprep.mubr.bf16.mxu0 0
        %2808 = vmatmul.mubr.bf16.gmra.mrb[0].mxu0 %v2639
        %v2809 = vpop.f32.mrb[0].mxu0
        %v2810 = vadd.f32 0.0, %v2809
        %v2811 = vpop.f32.mrb[0].mxu0
        %v2812 = vpop.f32.mrb[0].mxu0
        %v2813 = vadd.f32 0.0, %v2812
        %v2814 = vpop.f32.mrb[0].mxu0
        %2815 = vmatprep.mubr.bf16.mxu0 0
        %2816 = vmatmul.mubr.bf16.gmra.mrb[0].mxu0 %v2642
        %v2817 = vpop.f32.mrb[0].mxu0
        %v2818 = vadd.f32 0.0, %v2817
        %v2819 = vpop.f32.mrb[0].mxu0
        %v2820 = vpop.f32.mrb[0].mxu0
        %v2821 = vadd.f32 0.0, %v2820
        %v2822 = vpop.f32.mrb[0].mxu0
        %2823 = vdwg.mxu0
        %v2824 = vadd.f32 %v2385, %v2682
        %v2825 = vadd.f32 %v2386, %v2685
        %v2826 = vadd.f32 %v2387, %v2690
        %v2827 = vadd.f32 %v2388, %v2693
        %v2828 = vadd.f32 %v2389, %v2698
        %v2829 = vadd.f32 %v2390, %v2701
        %v2830 = vadd.f32 %v2391, %v2706
        %v2831 = vadd.f32 %v2392, %v2709
        %v2832 = vadd.f32 %v2393, %v2714
        %v2833 = vadd.f32 %v2394, %v2717
        %v2834 = vadd.f32 %v2395, %v2722
        %v2835 = vadd.f32 %v2396, %v2725
        %v2836 = vadd.f32 %v2397, %v2730
        %v2837 = vadd.f32 %v2398, %v2733
        %v2838 = vadd.f32 %v2399, %v2738
        %v2839 = vadd.f32 %v2400, %v2741
        %v2840 = vadd.f32 %v2401, %v2746
        %v2841 = vadd.f32 %v2402, %v2749
        %v2842 = vadd.f32 %v2403, %v2754
        %v2843 = vadd.f32 %v2404, %v2757
        %v2844 = vadd.f32 %v2405, %v2762
        %v2845 = vadd.f32 %v2406, %v2765
        %v2846 = vadd.f32 %v2407, %v2770
        %v2847 = vadd.f32 %v2408, %v2773
        %v2848 = vadd.f32 %v2409, %v2778
        %v2849 = vadd.f32 %v2410, %v2781
        %v2850 = vadd.f32 %v2411, %v2786
        %v2851 = vadd.f32 %v2412, %v2789
        %v2852 = vadd.f32 %v2413, %v2794
        %v2853 = vadd.f32 %v2414, %v2797
        %v2854 = vadd.f32 %v2415, %v2802
        %v2855 = vadd.f32 %v2416, %v2805
        %v2856 = vadd.f32 %v2417, %v2810
        %v2857 = vadd.f32 %v2418, %v2813
        %v2858 = vadd.f32 %v2419, %v2818
        %v2859 = vadd.f32 %v2420, %v2821
        %v2860 = vld [vmem:[%s168 + $0xa0] sm:$0x7]
        %s2861 = scalar_lea.vmem %s1, 14
        %v2862 = vld [vmem:[%s2861] sm:$0x3]
        %v2864 = vunpack.c.l.b16 %v2860
        %v2865 = vpack.c.b16 %v2864, %v2864
        %vm2866 = vsmask.f32 5376
        %v2868 = vshrl.u32 %v2534, 16
        %v2870 = vrot.slane %v2868, 2
        %v2871 = vshll.u32 %v2534, 16
        %v2873 = vrot.slane %v2871, 3
        %v2874 = vor.u32 %v2870, %v2873
        %v2876 = vshrl.u32 %v2535, 16
        %v2878 = vrot.slane %v2876, 2
        %v2879 = vshll.u32 %v2535, 16
        %v2881 = vrot.slane %v2879, 3
        %v2882 = vor.u32 %v2878, %v2881
        %v2883 = vsel %vm2866, %v2874, %v2882
        %v2885 = vshrl.u32 %v2536, 16
        %v2887 = vrot.slane %v2885, 2
        %v2888 = vshll.u32 %v2536, 16
        %v2890 = vrot.slane %v2888, 3
        %v2891 = vor.u32 %v2887, %v2890
        %v2892 = vsel %vm2866, %v2882, %v2891
        %v2894 = vshrl.u32 %v2537, 16
        %v2896 = vrot.slane %v2894, 2
        %v2897 = vshll.u32 %v2537, 16
        %v2899 = vrot.slane %v2897, 3
        %v2900 = vor.u32 %v2896, %v2899
        %v2901 = vsel %vm2866, %v2891, %v2900
        %v2903 = vshrl.u32 %v2538, 16
        %v2905 = vrot.slane %v2903, 2
        %v2906 = vshll.u32 %v2538, 16
        %v2908 = vrot.slane %v2906, 3
        %v2909 = vor.u32 %v2905, %v2908
        %v2910 = vsel %vm2866, %v2900, %v2909
        %v2912 = vshrl.u32 %v2539, 16
        %v2914 = vrot.slane %v2912, 2
        %v2915 = vshll.u32 %v2539, 16
        %v2917 = vrot.slane %v2915, 3
        %v2918 = vor.u32 %v2914, %v2917
        %v2919 = vsel %vm2866, %v2909, %v2918
        %v2921 = vshrl.u32 %v2540, 16
        %v2923 = vrot.slane %v2921, 2
        %v2924 = vshll.u32 %v2540, 16
        %v2926 = vrot.slane %v2924, 3
        %v2927 = vor.u32 %v2923, %v2926
        %v2928 = vsel %vm2866, %v2918, %v2927
        %v2930 = vshrl.u32 %v2541, 16
        %v2932 = vrot.slane %v2930, 2
        %v2933 = vshll.u32 %v2541, 16
        %v2935 = vrot.slane %v2933, 3
        %v2936 = vor.u32 %v2932, %v2935
        %v2937 = vsel %vm2866, %v2927, %v2936
        %v2939 = vshrl.u32 %v2542, 16
        %v2941 = vrot.slane %v2939, 2
        %v2942 = vshll.u32 %v2542, 16
        %v2944 = vrot.slane %v2942, 3
        %v2945 = vor.u32 %v2941, %v2944
        %v2946 = vsel %vm2866, %v2936, %v2945
        %v2948 = vshrl.u32 %v2543, 16
        %v2950 = vrot.slane %v2948, 2
        %v2951 = vshll.u32 %v2543, 16
        %v2953 = vrot.slane %v2951, 3
        %v2954 = vor.u32 %v2950, %v2953
        %v2955 = vsel %vm2866, %v2945, %v2954
        %v2957 = vshrl.u32 %v2544, 16
        %v2959 = vrot.slane %v2957, 2
        %v2960 = vshll.u32 %v2544, 16
        %v2962 = vrot.slane %v2960, 3
        %v2963 = vor.u32 %v2959, %v2962
        %v2964 = vsel %vm2866, %v2954, %v2963
        %v2966 = vshrl.u32 %v2545, 16
        %v2968 = vrot.slane %v2966, 2
        %v2969 = vshll.u32 %v2545, 16
        %v2971 = vrot.slane %v2969, 3
        %v2972 = vor.u32 %v2968, %v2971
        %v2973 = vsel %vm2866, %v2963, %v2972
        %v2975 = vshrl.u32 %v2546, 16
        %v2977 = vrot.slane %v2975, 2
        %v2978 = vshll.u32 %v2546, 16
        %v2980 = vrot.slane %v2978, 3
        %v2981 = vor.u32 %v2977, %v2980
        %v2982 = vsel %vm2866, %v2972, %v2981
        %v2984 = vshrl.u32 %v2547, 16
        %v2986 = vrot.slane %v2984, 2
        %v2987 = vshll.u32 %v2547, 16
        %v2989 = vrot.slane %v2987, 3
        %v2990 = vor.u32 %v2986, %v2989
        %v2991 = vsel %vm2866, %v2981, %v2990
        %v2993 = vshrl.u32 %v2548, 16
        %v2995 = vrot.slane %v2993, 2
        %v2996 = vshll.u32 %v2548, 16
        %v2998 = vrot.slane %v2996, 3
        %v2999 = vor.u32 %v2995, %v2998
        %v3000 = vsel %vm2866, %v2990, %v2999
        %v3002 = vshrl.u32 %v2549, 16
        %v3004 = vrot.slane %v3002, 2
        %v3005 = vshll.u32 %v2549, 16
        %v3007 = vrot.slane %v3005, 3
        %v3008 = vor.u32 %v3004, %v3007
        %v3009 = vsel %vm2866, %v2999, %v3008
        %v3011 = vshrl.u32 %v2550, 16
        %v3013 = vrot.slane %v3011, 2
        %v3014 = vshll.u32 %v2550, 16
        %v3016 = vrot.slane %v3014, 3
        %v3017 = vor.u32 %v3013, %v3016
        %v3018 = vsel %vm2866, %v3008, %v3017
        %v3020 = vshrl.u32 %v2551, 16
        %v3022 = vrot.slane %v3020, 2
        %v3023 = vshll.u32 %v2551, 16
        %v3025 = vrot.slane %v3023, 3
        %v3026 = vor.u32 %v3022, %v3025
        %v3027 = vsel %vm2866, %v3017, %v3026
        %v3029 = vshrl.u32 %v2865, 16
        %v3031 = vrot.slane %v3029, 2
        %v3032 = vshll.u32 %v2865, 16
        %v3034 = vrot.slane %v3032, 3
        %v3035 = vor.u32 %v3031, %v3034
        %v3036 = vsel %vm2866, %v3026, %v3035
        %v3038 = vsel %vm452, %v2883, 0
        %v3041 = vsel %vm452, %v2892, 0
        %v3044 = vsel %vm452, %v2901, 0
        %v3047 = vsel %vm452, %v2910, 0
        %v3050 = vsel %vm452, %v2919, 0
        %v3053 = vsel %vm452, %v2928, 0
        %v3056 = vsel %vm452, %v2937, 0
        %v3059 = vsel %vm452, %v2946, 0
        %v3062 = vsel %vm452, %v2955, 0
        %v3065 = vsel %vm452, %v2964, 0
        %v3068 = vsel %vm452, %v2973, 0
        %v3071 = vsel %vm452, %v2982, 0
        %v3074 = vsel %vm452, %v2991, 0
        %v3077 = vsel %vm452, %v3000, 0
        %v3080 = vsel %vm452, %v3009, 0
        %v3083 = vsel %vm452, %v3018, 0
        %v3086 = vsel %vm452, %v3027, 0
        %v3089 = vsel %vm452, %v3036, 0
        %v3092 = vand.u32 %v2862, %v510
        %3094 = vmatprep.subr.bf16.mxu0 0
        %3095 = vmatpush1.bf16.msra.mxu0 %v3092
        %3096 = vmatprep.subr.bf16.mxu0 0
        %3097 = vmatpush1.bf16.msra.mxu0 0
        %3098 = vmatprep.subr.bf16.mxu0 0
        %3099 = vmatpush1.bf16.msra.mxu0 0
        %3100 = vmatprep.subr.bf16.mxu0 0
        %3101 = vmatpush1.bf16.msra.mxu0 0
        %3102 = vmatprep.subr.bf16.mxu0 0
        %3103 = vmatpush1.bf16.msra.mxu0 0
        %3104 = vmatprep.subr.bf16.mxu0 0
        %3105 = vmatpush1.bf16.msra.mxu0 0
        %3106 = vmatprep.subr.bf16.mxu0 0
        %3107 = vmatpush1.bf16.msra.mxu0 0
        %3108 = vmatprep.subr.bf16.mxu0 0
        %3109 = vmatpush1.bf16.msra.mxu0 0
        %3110 = vmatprep.subr.bf16.mxu0 0
        %3111 = vmatpush1.bf16.msra.mxu0 0
        %3112 = vmatprep.subr.bf16.mxu0 0
        %3113 = vmatpush1.bf16.msra.mxu0 0
        %3114 = vmatprep.subr.bf16.mxu0 0
        %3115 = vmatpush1.bf16.msra.mxu0 0
        %3116 = vmatprep.subr.bf16.mxu0 0
        %3117 = vmatpush1.bf16.msra.mxu0 0
        %3118 = vmatprep.subr.bf16.mxu0 0
        %3119 = vmatpush1.bf16.msra.mxu0 0
        %3120 = vmatprep.subr.bf16.mxu0 0
        %3121 = vmatpush1.bf16.msra.mxu0 0
        %3122 = vmatprep.subr.bf16.mxu0 0
        %3123 = vmatpush1.bf16.msra.mxu0 0
        %3124 = vmatprep.subr.bf16.mxu0 0
        %3125 = vmatpush1.bf16.msra.mxu0 0
        %3126 = vmatprep.mubr.bf16.mxu0 0
        %3127 = vmatmul.mubr.bf16.gmra.mrb[0].mxu0 %v3038
        %v3128 = vpop.f32.mrb[0].mxu0
        %v3129 = vadd.f32 0.0, %v3128
        %v3130 = vpop.f32.mrb[0].mxu0
        %v3131 = vpop.f32.mrb[0].mxu0
        %v3132 = vadd.f32 0.0, %v3131
        %v3133 = vpop.f32.mrb[0].mxu0
        %3134 = vmatprep.mubr.bf16.mxu0 0
        %3135 = vmatmul.mubr.bf16.gmra.mrb[0].mxu0 %v3041
        %v3136 = vpop.f32.mrb[0].mxu0
        %v3137 = vadd.f32 0.0, %v3136
        %v3138 = vpop.f32.mrb[0].mxu0
        %v3139 = vpop.f32.mrb[0].mxu0
        %v3140 = vadd.f32 0.0, %v3139
        %v3141 = vpop.f32.mrb[0].mxu0
        %3142 = vmatprep.mubr.bf16.mxu0 0
        %3143 = vmatmul.mubr.bf16.gmra.mrb[0].mxu0 %v3044
        %v3144 = vpop.f32.mrb[0].mxu0
        %v3145 = vadd.f32 0.0, %v3144
        %v3146 = vpop.f32.mrb[0].mxu0
        %v3147 = vpop.f32.mrb[0].mxu0
        %v3148 = vadd.f32 0.0, %v3147
        %v3149 = vpop.f32.mrb[0].mxu0
        %3150 = vmatprep.mubr.bf16.mxu0 0
        %3151 = vmatmul.mubr.bf16.gmra.mrb[0].mxu0 %v3047
        %v3152 = vpop.f32.mrb[0].mxu0
        %v3153 = vadd.f32 0.0, %v3152
        %v3154 = vpop.f32.mrb[0].mxu0
        %v3155 = vpop.f32.mrb[0].mxu0
        %v3156 = vadd.f32 0.0, %v3155
        %v3157 = vpop.f32.mrb[0].mxu0
        %3158 = vmatprep.mubr.bf16.mxu0 0
        %3159 = vmatmul.mubr.bf16.gmra.mrb[0].mxu0 %v3050
        %v3160 = vpop.f32.mrb[0].mxu0
        %v3161 = vadd.f32 0.0, %v3160
        %v3162 = vpop.f32.mrb[0].mxu0
        %v3163 = vpop.f32.mrb[0].mxu0
        %v3164 = vadd.f32 0.0, %v3163
        %v3165 = vpop.f32.mrb[0].mxu0
        %3166 = vmatprep.mubr.bf16.mxu0 0
        %3167 = vmatmul.mubr.bf16.gmra.mrb[0].mxu0 %v3053
        %v3168 = vpop.f32.mrb[0].mxu0
        %v3169 = vadd.f32 0.0, %v3168
        %v3170 = vpop.f32.mrb[0].mxu0
        %v3171 = vpop.f32.mrb[0].mxu0
        %v3172 = vadd.f32 0.0, %v3171
        %v3173 = vpop.f32.mrb[0].mxu0
        %3174 = vmatprep.mubr.bf16.mxu0 0
        %3175 = vmatmul.mubr.bf16.gmra.mrb[0].mxu0 %v3056
        %v3176 = vpop.f32.mrb[0].mxu0
        %v3177 = vadd.f32 0.0, %v3176
        %v3178 = vpop.f32.mrb[0].mxu0
        %v3179 = vpop.f32.mrb[0].mxu0
        %v3180 = vadd.f32 0.0, %v3179
        %v3181 = vpop.f32.mrb[0].mxu0
        %3182 = vmatprep.mubr.bf16.mxu0 0
        %3183 = vmatmul.mubr.bf16.gmra.mrb[0].mxu0 %v3059
        %v3184 = vpop.f32.mrb[0].mxu0
        %v3185 = vadd.f32 0.0, %v3184
        %v3186 = vpop.f32.mrb[0].mxu0
        %v3187 = vpop.f32.mrb[0].mxu0
        %v3188 = vadd.f32 0.0, %v3187
        %v3189 = vpop.f32.mrb[0].mxu0
        %3190 = vmatprep.mubr.bf16.mxu0 0
        %3191 = vmatmul.mubr.bf16.gmra.mrb[0].mxu0 %v3062
        %v3192 = vpop.f32.mrb[0].mxu0
        %v3193 = vadd.f32 0.0, %v3192
        %v3194 = vpop.f32.mrb[0].mxu0
        %v3195 = vpop.f32.mrb[0].mxu0
        %v3196 = vadd.f32 0.0, %v3195
        %v3197 = vpop.f32.mrb[0].mxu0
        %3198 = vmatprep.mubr.bf16.mxu0 0
        %3199 = vmatmul.mubr.bf16.gmra.mrb[0].mxu0 %v3065
        %v3200 = vpop.f32.mrb[0].mxu0
        %v3201 = vadd.f32 0.0, %v3200
        %v3202 = vpop.f32.mrb[0].mxu0
        %v3203 = vpop.f32.mrb[0].mxu0
        %v3204 = vadd.f32 0.0, %v3203
        %v3205 = vpop.f32.mrb[0].mxu0
        %3206 = vmatprep.mubr.bf16.mxu0 0
        %3207 = vmatmul.mubr.bf16.gmra.mrb[0].mxu0 %v3068
        %v3208 = vpop.f32.mrb[0].mxu0
        %v3209 = vadd.f32 0.0, %v3208
        %v3210 = vpop.f32.mrb[0].mxu0
        %v3211 = vpop.f32.mrb[0].mxu0
        %v3212 = vadd.f32 0.0, %v3211
        %v3213 = vpop.f32.mrb[0].mxu0
        %3214 = vmatprep.mubr.bf16.mxu0 0
        %3215 = vmatmul.mubr.bf16.gmra.mrb[0].mxu0 %v3071
        %v3216 = vpop.f32.mrb[0].mxu0
        %v3217 = vadd.f32 0.0, %v3216
        %v3218 = vpop.f32.mrb[0].mxu0
        %v3219 = vpop.f32.mrb[0].mxu0
        %v3220 = vadd.f32 0.0, %v3219
        %v3221 = vpop.f32.mrb[0].mxu0
        %3222 = vmatprep.mubr.bf16.mxu0 0
        %3223 = vmatmul.mubr.bf16.gmra.mrb[0].mxu0 %v3074
        %v3224 = vpop.f32.mrb[0].mxu0
        %v3225 = vadd.f32 0.0, %v3224
        %v3226 = vpop.f32.mrb[0].mxu0
        %v3227 = vpop.f32.mrb[0].mxu0
        %v3228 = vadd.f32 0.0, %v3227
        %v3229 = vpop.f32.mrb[0].mxu0
        %3230 = vmatprep.mubr.bf16.mxu0 0
        %3231 = vmatmul.mubr.bf16.gmra.mrb[0].mxu0 %v3077
        %v3232 = vpop.f32.mrb[0].mxu0
        %v3233 = vadd.f32 0.0, %v3232
        %v3234 = vpop.f32.mrb[0].mxu0
        %v3235 = vpop.f32.mrb[0].mxu0
        %v3236 = vadd.f32 0.0, %v3235
        %v3237 = vpop.f32.mrb[0].mxu0
        %3238 = vmatprep.mubr.bf16.mxu0 0
        %3239 = vmatmul.mubr.bf16.gmra.mrb[0].mxu0 %v3080
        %v3240 = vpop.f32.mrb[0].mxu0
        %v3241 = vadd.f32 0.0, %v3240
        %v3242 = vpop.f32.mrb[0].mxu0
        %v3243 = vpop.f32.mrb[0].mxu0
        %v3244 = vadd.f32 0.0, %v3243
        %v3245 = vpop.f32.mrb[0].mxu0
        %3246 = vmatprep.mubr.bf16.mxu0 0
        %3247 = vmatmul.mubr.bf16.gmra.mrb[0].mxu0 %v3083
        %v3248 = vpop.f32.mrb[0].mxu0
        %v3249 = vadd.f32 0.0, %v3248
        %v3250 = vpop.f32.mrb[0].mxu0
        %v3251 = vpop.f32.mrb[0].mxu0
        %v3252 = vadd.f32 0.0, %v3251
        %v3253 = vpop.f32.mrb[0].mxu0
        %3254 = vmatprep.mubr.bf16.mxu0 0
        %3255 = vmatmul.mubr.bf16.gmra.mrb[0].mxu0 %v3086
        %v3256 = vpop.f32.mrb[0].mxu0
        %v3257 = vadd.f32 0.0, %v3256
        %v3258 = vpop.f32.mrb[0].mxu0
        %v3259 = vpop.f32.mrb[0].mxu0
        %v3260 = vadd.f32 0.0, %v3259
        %v3261 = vpop.f32.mrb[0].mxu0
        %3262 = vmatprep.mubr.bf16.mxu0 0
        %3263 = vmatmul.mubr.bf16.gmra.mrb[0].mxu0 %v3089
        %v3264 = vpop.f32.mrb[0].mxu0
        %v3265 = vadd.f32 0.0, %v3264
        %v3266 = vpop.f32.mrb[0].mxu0
        %v3267 = vpop.f32.mrb[0].mxu0
        %v3268 = vadd.f32 0.0, %v3267
        %v3269 = vpop.f32.mrb[0].mxu0
        %3270 = vdwg.mxu0
        %v3271 = vadd.f32 %v2824, %v3129
        %v3272 = vadd.f32 %v2825, %v3132
        %v3273 = vadd.f32 %v2826, %v3137
        %v3274 = vadd.f32 %v2827, %v3140
        %v3275 = vadd.f32 %v2828, %v3145
        %v3276 = vadd.f32 %v2829, %v3148
        %v3277 = vadd.f32 %v2830, %v3153
        %v3278 = vadd.f32 %v2831, %v3156
        %v3279 = vadd.f32 %v2832, %v3161
        %v3280 = vadd.f32 %v2833, %v3164
        %v3281 = vadd.f32 %v2834, %v3169
        %v3282 = vadd.f32 %v2835, %v3172
        %v3283 = vadd.f32 %v2836, %v3177
        %v3284 = vadd.f32 %v2837, %v3180
        %v3285 = vadd.f32 %v2838, %v3185
        %v3286 = vadd.f32 %v2839, %v3188
        %v3287 = vadd.f32 %v2840, %v3193
        %v3288 = vadd.f32 %v2841, %v3196
        %v3289 = vadd.f32 %v2842, %v3201
        %v3290 = vadd.f32 %v2843, %v3204
        %v3291 = vadd.f32 %v2844, %v3209
        %v3292 = vadd.f32 %v2845, %v3212
        %v3293 = vadd.f32 %v2846, %v3217
        %v3294 = vadd.f32 %v2847, %v3220
        %v3295 = vadd.f32 %v2848, %v3225
        %v3296 = vadd.f32 %v2849, %v3228
        %v3297 = vadd.f32 %v2850, %v3233
        %v3298 = vadd.f32 %v2851, %v3236
        %v3299 = vadd.f32 %v2852, %v3241
        %v3300 = vadd.f32 %v2853, %v3244
        %v3301 = vadd.f32 %v2854, %v3249
        %v3302 = vadd.f32 %v2855, %v3252
        %v3303 = vadd.f32 %v2856, %v3257
        %v3304 = vadd.f32 %v2857, %v3260
        %v3305 = vadd.f32 %v2858, %v3265
        %v3306 = vadd.f32 %v2859, %v3268
        %v3307 = vld [vmem:[%s168 + $0x10] sm:$0x8]
        %s3308 = scalar_lea.vmem %s1, 16
        %v3309 = vld [vmem:[%s3308] sm:$0x3]
        %v3311 = vunpack.c.l.b16 %v3307
        %v3312 = vpack.c.b16 %v2498, %v3311
        %vm3313 = vcmask 1044480
        %v3314 = vrot.slane %v3312, 3
        %v3315 = vrot.slane %v2535, 3
        %v3316 = vsel %vm3313, %v3314, %v3315
        %v3317 = vrot.slane %v2536, 3
        %v3318 = vsel %vm3313, %v3315, %v3317
        %v3319 = vrot.slane %v2537, 3
        %v3320 = vsel %vm3313, %v3317, %v3319
        %v3321 = vrot.slane %v2538, 3
        %v3322 = vsel %vm3313, %v3319, %v3321
        %v3323 = vrot.slane %v2539, 3
        %v3324 = vsel %vm3313, %v3321, %v3323
        %v3325 = vrot.slane %v2540, 3
        %v3326 = vsel %vm3313, %v3323, %v3325
        %v3327 = vrot.slane %v2541, 3
        %v3328 = vsel %vm3313, %v3325, %v3327
        %v3329 = vrot.slane %v2542, 3
        %v3330 = vsel %vm3313, %v3327, %v3329
        %v3331 = vrot.slane %v2543, 3
        %v3332 = vsel %vm3313, %v3329, %v3331
        %v3333 = vrot.slane %v2544, 3
        %v3334 = vsel %vm3313, %v3331, %v3333
        %v3335 = vrot.slane %v2545, 3
        %v3336 = vsel %vm3313, %v3333, %v3335
        %v3337 = vrot.slane %v2546, 3
        %v3338 = vsel %vm3313, %v3335, %v3337
        %v3339 = vrot.slane %v2547, 3
        %v3340 = vsel %vm3313, %v3337, %v3339
        %v3341 = vrot.slane %v2548, 3
        %v3342 = vsel %vm3313, %v3339, %v3341
        %v3343 = vrot.slane %v2549, 3
        %v3344 = vsel %vm3313, %v3341, %v3343
        %v3345 = vrot.slane %v2550, 3
        %v3346 = vsel %vm3313, %v3343, %v3345
        %v3347 = vrot.slane %v2551, 3
        %v3348 = vsel %vm3313, %v3345, %v3347
        %v3349 = vrot.slane %v2865, 3
        %v3350 = vsel %vm3313, %v3347, %v3349
        %v3352 = vsel %vm452, %v3316, 0
        %v3355 = vsel %vm452, %v3318, 0
        %v3358 = vsel %vm452, %v3320, 0
        %v3361 = vsel %vm452, %v3322, 0
        %v3364 = vsel %vm452, %v3324, 0
        %v3367 = vsel %vm452, %v3326, 0
        %v3370 = vsel %vm452, %v3328, 0
        %v3373 = vsel %vm452, %v3330, 0
        %v3376 = vsel %vm452, %v3332, 0
        %v3379 = vsel %vm452, %v3334, 0
        %v3382 = vsel %vm452, %v3336, 0
        %v3385 = vsel %vm452, %v3338, 0
        %v3388 = vsel %vm452, %v3340, 0
        %v3391 = vsel %vm452, %v3342, 0
        %v3394 = vsel %vm452, %v3344, 0
        %v3397 = vsel %vm452, %v3346, 0
        %v3400 = vsel %vm452, %v3348, 0
        %v3403 = vsel %vm452, %v3350, 0
        %v3406 = vand.u32 %v3309, %v510
        %3408 = vmatprep.subr.bf16.mxu0 0
        %3409 = vmatpush1.bf16.msra.mxu0 %v3406
        %3410 = vmatprep.subr.bf16.mxu0 0
        %3411 = vmatpush1.bf16.msra.mxu0 0
        %3412 = vmatprep.subr.bf16.mxu0 0
        %3413 = vmatpush1.bf16.msra.mxu0 0
        %3414 = vmatprep.subr.bf16.mxu0 0
        %3415 = vmatpush1.bf16.msra.mxu0 0
        %3416 = vmatprep.subr.bf16.mxu0 0
        %3417 = vmatpush1.bf16.msra.mxu0 0
        %3418 = vmatprep.subr.bf16.mxu0 0
        %3419 = vmatpush1.bf16.msra.mxu0 0
        %3420 = vmatprep.subr.bf16.mxu0 0
        %3421 = vmatpush1.bf16.msra.mxu0 0
        %3422 = vmatprep.subr.bf16.mxu0 0
        %3423 = vmatpush1.bf16.msra.mxu0 0
        %3424 = vmatprep.subr.bf16.mxu0 0
        %3425 = vmatpush1.bf16.msra.mxu0 0
        %3426 = vmatprep.subr.bf16.mxu0 0
        %3427 = vmatpush1.bf16.msra.mxu0 0
        %3428 = vmatprep.subr.bf16.mxu0 0
        %3429 = vmatpush1.bf16.msra.mxu0 0
        %3430 = vmatprep.subr.bf16.mxu0 0
        %3431 = vmatpush1.bf16.msra.mxu0 0
        %3432 = vmatprep.subr.bf16.mxu0 0
        %3433 = vmatpush1.bf16.msra.mxu0 0
        %3434 = vmatprep.subr.bf16.mxu0 0
        %3435 = vmatpush1.bf16.msra.mxu0 0
        %3436 = vmatprep.subr.bf16.mxu0 0
        %3437 = vmatpush1.bf16.msra.mxu0 0
        %3438 = vmatprep.subr.bf16.mxu0 0
        %3439 = vmatpush1.bf16.msra.mxu0 0
        %3440 = vmatprep.mubr.bf16.mxu0 0
        %3441 = vmatmul.mubr.bf16.gmra.mrb[0].mxu0 %v3352
        %v3442 = vpop.f32.mrb[0].mxu0
        %v3443 = vadd.f32 0.0, %v3442
        %v3444 = vpop.f32.mrb[0].mxu0
        %v3445 = vpop.f32.mrb[0].mxu0
        %v3446 = vadd.f32 0.0, %v3445
        %v3447 = vpop.f32.mrb[0].mxu0
        %3448 = vmatprep.mubr.bf16.mxu0 0
        %3449 = vmatmul.mubr.bf16.gmra.mrb[0].mxu0 %v3355
        %v3450 = vpop.f32.mrb[0].mxu0
        %v3451 = vadd.f32 0.0, %v3450
        %v3452 = vpop.f32.mrb[0].mxu0
        %v3453 = vpop.f32.mrb[0].mxu0
        %v3454 = vadd.f32 0.0, %v3453
        %v3455 = vpop.f32.mrb[0].mxu0
        %3456 = vmatprep.mubr.bf16.mxu0 0
        %3457 = vmatmul.mubr.bf16.gmra.mrb[0].mxu0 %v3358
        %v3458 = vpop.f32.mrb[0].mxu0
        %v3459 = vadd.f32 0.0, %v3458
        %v3460 = vpop.f32.mrb[0].mxu0
        %v3461 = vpop.f32.mrb[0].mxu0
        %v3462 = vadd.f32 0.0, %v3461
        %v3463 = vpop.f32.mrb[0].mxu0
        %3464 = vmatprep.mubr.bf16.mxu0 0
        %3465 = vmatmul.mubr.bf16.gmra.mrb[0].mxu0 %v3361
        %v3466 = vpop.f32.mrb[0].mxu0
        %v3467 = vadd.f32 0.0, %v3466
        %v3468 = vpop.f32.mrb[0].mxu0
        %v3469 = vpop.f32.mrb[0].mxu0
        %v3470 = vadd.f32 0.0, %v3469
        %v3471 = vpop.f32.mrb[0].mxu0
        %3472 = vmatprep.mubr.bf16.mxu0 0
        %3473 = vmatmul.mubr.bf16.gmra.mrb[0].mxu0 %v3364
        %v3474 = vpop.f32.mrb[0].mxu0
        %v3475 = vadd.f32 0.0, %v3474
        %v3476 = vpop.f32.mrb[0].mxu0
        %v3477 = vpop.f32.mrb[0].mxu0
        %v3478 = vadd.f32 0.0, %v3477
        %v3479 = vpop.f32.mrb[0].mxu0
        %3480 = vmatprep.mubr.bf16.mxu0 0
        %3481 = vmatmul.mubr.bf16.gmra.mrb[0].mxu0 %v3367
        %v3482 = vpop.f32.mrb[0].mxu0
        %v3483 = vadd.f32 0.0, %v3482
        %v3484 = vpop.f32.mrb[0].mxu0
        %v3485 = vpop.f32.mrb[0].mxu0
        %v3486 = vadd.f32 0.0, %v3485
        %v3487 = vpop.f32.mrb[0].mxu0
        %3488 = vmatprep.mubr.bf16.mxu0 0
        %3489 = vmatmul.mubr.bf16.gmra.mrb[0].mxu0 %v3370
        %v3490 = vpop.f32.mrb[0].mxu0
        %v3491 = vadd.f32 0.0, %v3490
        %v3492 = vpop.f32.mrb[0].mxu0
        %v3493 = vpop.f32.mrb[0].mxu0
        %v3494 = vadd.f32 0.0, %v3493
        %v3495 = vpop.f32.mrb[0].mxu0
        %3496 = vmatprep.mubr.bf16.mxu0 0
        %3497 = vmatmul.mubr.bf16.gmra.mrb[0].mxu0 %v3373
        %v3498 = vpop.f32.mrb[0].mxu0
        %v3499 = vadd.f32 0.0, %v3498
        %v3500 = vpop.f32.mrb[0].mxu0
        %v3501 = vpop.f32.mrb[0].mxu0
        %v3502 = vadd.f32 0.0, %v3501
        %v3503 = vpop.f32.mrb[0].mxu0
        %3504 = vmatprep.mubr.bf16.mxu0 0
        %3505 = vmatmul.mubr.bf16.gmra.mrb[0].mxu0 %v3376
        %v3506 = vpop.f32.mrb[0].mxu0
        %v3507 = vadd.f32 0.0, %v3506
        %v3508 = vpop.f32.mrb[0].mxu0
        %v3509 = vpop.f32.mrb[0].mxu0
        %v3510 = vadd.f32 0.0, %v3509
        %v3511 = vpop.f32.mrb[0].mxu0
        %3512 = vmatprep.mubr.bf16.mxu0 0
        %3513 = vmatmul.mubr.bf16.gmra.mrb[0].mxu0 %v3379
        %v3514 = vpop.f32.mrb[0].mxu0
        %v3515 = vadd.f32 0.0, %v3514
        %v3516 = vpop.f32.mrb[0].mxu0
        %v3517 = vpop.f32.mrb[0].mxu0
        %v3518 = vadd.f32 0.0, %v3517
        %v3519 = vpop.f32.mrb[0].mxu0
        %3520 = vmatprep.mubr.bf16.mxu0 0
        %3521 = vmatmul.mubr.bf16.gmra.mrb[0].mxu0 %v3382
        %v3522 = vpop.f32.mrb[0].mxu0
        %v3523 = vadd.f32 0.0, %v3522
        %v3524 = vpop.f32.mrb[0].mxu0
        %v3525 = vpop.f32.mrb[0].mxu0
        %v3526 = vadd.f32 0.0, %v3525
        %v3527 = vpop.f32.mrb[0].mxu0
        %3528 = vmatprep.mubr.bf16.mxu0 0
        %3529 = vmatmul.mubr.bf16.gmra.mrb[0].mxu0 %v3385
        %v3530 = vpop.f32.mrb[0].mxu0
        %v3531 = vadd.f32 0.0, %v3530
        %v3532 = vpop.f32.mrb[0].mxu0
        %v3533 = vpop.f32.mrb[0].mxu0
        %v3534 = vadd.f32 0.0, %v3533
        %v3535 = vpop.f32.mrb[0].mxu0
        %3536 = vmatprep.mubr.bf16.mxu0 0
        %3537 = vmatmul.mubr.bf16.gmra.mrb[0].mxu0 %v3388
        %v3538 = vpop.f32.mrb[0].mxu0
        %v3539 = vadd.f32 0.0, %v3538
        %v3540 = vpop.f32.mrb[0].mxu0
        %v3541 = vpop.f32.mrb[0].mxu0
        %v3542 = vadd.f32 0.0, %v3541
        %v3543 = vpop.f32.mrb[0].mxu0
        %3544 = vmatprep.mubr.bf16.mxu0 0
        %3545 = vmatmul.mubr.bf16.gmra.mrb[0].mxu0 %v3391
        %v3546 = vpop.f32.mrb[0].mxu0
        %v3547 = vadd.f32 0.0, %v3546
        %v3548 = vpop.f32.mrb[0].mxu0
        %v3549 = vpop.f32.mrb[0].mxu0
        %v3550 = vadd.f32 0.0, %v3549
        %v3551 = vpop.f32.mrb[0].mxu0
        %3552 = vmatprep.mubr.bf16.mxu0 0
        %3553 = vmatmul.mubr.bf16.gmra.mrb[0].mxu0 %v3394
        %v3554 = vpop.f32.mrb[0].mxu0
        %v3555 = vadd.f32 0.0, %v3554
        %v3556 = vpop.f32.mrb[0].mxu0
        %v3557 = vpop.f32.mrb[0].mxu0
        %v3558 = vadd.f32 0.0, %v3557
        %v3559 = vpop.f32.mrb[0].mxu0
        %3560 = vmatprep.mubr.bf16.mxu0 0
        %3561 = vmatmul.mubr.bf16.gmra.mrb[0].mxu0 %v3397
        %v3562 = vpop.f32.mrb[0].mxu0
        %v3563 = vadd.f32 0.0, %v3562
        %v3564 = vpop.f32.mrb[0].mxu0
        %v3565 = vpop.f32.mrb[0].mxu0
        %v3566 = vadd.f32 0.0, %v3565
        %v3567 = vpop.f32.mrb[0].mxu0
        %3568 = vmatprep.mubr.bf16.mxu0 0
        %3569 = vmatmul.mubr.bf16.gmra.mrb[0].mxu0 %v3400
        %v3570 = vpop.f32.mrb[0].mxu0
        %v3571 = vadd.f32 0.0, %v3570
        %v3572 = vpop.f32.mrb[0].mxu0
        %v3573 = vpop.f32.mrb[0].mxu0
        %v3574 = vadd.f32 0.0, %v3573
        %v3575 = vpop.f32.mrb[0].mxu0
        %3576 = vmatprep.mubr.bf16.mxu0 0
        %3577 = vmatmul.mubr.bf16.gmra.mrb[0].mxu0 %v3403
        %v3578 = vpop.f32.mrb[0].mxu0
        %v3579 = vadd.f32 0.0, %v3578
        %v3580 = vpop.f32.mrb[0].mxu0
        %v3581 = vpop.f32.mrb[0].mxu0
        %v3582 = vadd.f32 0.0, %v3581
        %v3583 = vpop.f32.mrb[0].mxu0
        %3584 = vdwg.mxu0
        %v3585 = vadd.f32 %v3271, %v3443
        %v3586 = vadd.f32 %v3272, %v3446
        %v3587 = vadd.f32 %v3273, %v3451
        %v3588 = vadd.f32 %v3274, %v3454
        %v3589 = vadd.f32 %v3275, %v3459
        %v3590 = vadd.f32 %v3276, %v3462
        %v3591 = vadd.f32 %v3277, %v3467
        %v3592 = vadd.f32 %v3278, %v3470
        %v3593 = vadd.f32 %v3279, %v3475
        %v3594 = vadd.f32 %v3280, %v3478
        %v3595 = vadd.f32 %v3281, %v3483
        %v3596 = vadd.f32 %v3282, %v3486
        %v3597 = vadd.f32 %v3283, %v3491
        %v3598 = vadd.f32 %v3284, %v3494
        %v3599 = vadd.f32 %v3285, %v3499
        %v3600 = vadd.f32 %v3286, %v3502
        %v3601 = vadd.f32 %v3287, %v3507
        %v3602 = vadd.f32 %v3288, %v3510
        %v3603 = vadd.f32 %v3289, %v3515
        %v3604 = vadd.f32 %v3290, %v3518
        %v3605 = vadd.f32 %v3291, %v3523
        %v3606 = vadd.f32 %v3292, %v3526
        %v3607 = vadd.f32 %v3293, %v3531
        %v3608 = vadd.f32 %v3294, %v3534
        %v3609 = vadd.f32 %v3295, %v3539
        %v3610 = vadd.f32 %v3296, %v3542
        %v3611 = vadd.f32 %v3297, %v3547
        %v3612 = vadd.f32 %v3298, %v3550
        %v3613 = vadd.f32 %v3299, %v3555
        %v3614 = vadd.f32 %v3300, %v3558
        %v3615 = vadd.f32 %v3301, %v3563
        %v3616 = vadd.f32 %v3302, %v3566
        %v3617 = vadd.f32 %v3303, %v3571
        %v3618 = vadd.f32 %v3304, %v3574
        %v3619 = vadd.f32 %v3305, %v3579
        %v3620 = vadd.f32 %v3306, %v3582
        %v3621 = vld [vmem:[%s2] sm:$0x1]
        %v3623 = vlaneseq
        %v3624 = vshrl.u32 %v3623, 7
        %v3625 = vsub.s32 0, %v3624
        %v3626 = vrot.slane %v3621, %v3625
        %v3628 = vadd.f32 %v3585, %v3626
        %v3629 = vadd.f32 %v3586, %v3626
        %v3630 = vadd.f32 %v3587, %v3626
        %v3631 = vadd.f32 %v3588, %v3626
        %v3632 = vadd.f32 %v3589, %v3626
        %v3633 = vadd.f32 %v3590, %v3626
        %v3634 = vadd.f32 %v3591, %v3626
        %v3635 = vadd.f32 %v3592, %v3626
        %v3636 = vadd.f32 %v3593, %v3626
        %v3637 = vadd.f32 %v3594, %v3626
        %v3638 = vadd.f32 %v3595, %v3626
        %v3639 = vadd.f32 %v3596, %v3626
        %v3640 = vadd.f32 %v3597, %v3626
        %v3641 = vadd.f32 %v3598, %v3626
        %v3642 = vadd.f32 %v3599, %v3626
        %v3643 = vadd.f32 %v3600, %v3626
        %v3644 = vadd.f32 %v3601, %v3626
        %v3645 = vadd.f32 %v3602, %v3626
        %v3646 = vadd.f32 %v3603, %v3626
        %v3647 = vadd.f32 %v3604, %v3626
        %v3648 = vadd.f32 %v3605, %v3626
        %v3649 = vadd.f32 %v3606, %v3626
        %v3650 = vadd.f32 %v3607, %v3626
        %v3651 = vadd.f32 %v3608, %v3626
        %v3652 = vadd.f32 %v3609, %v3626
        %v3653 = vadd.f32 %v3610, %v3626
        %v3654 = vadd.f32 %v3611, %v3626
        %v3655 = vadd.f32 %v3612, %v3626
        %v3656 = vadd.f32 %v3613, %v3626
        %v3657 = vadd.f32 %v3614, %v3626
        %v3658 = vadd.f32 %v3615, %v3626
        %v3659 = vadd.f32 %v3616, %v3626
        %v3660 = vadd.f32 %v3617, %v3626
        %v3661 = vadd.f32 %v3618, %v3626
        %v3662 = vadd.f32 %v3619, %v3626
        %v3663 = vadd.f32 %v3620, %v3626
        %v3664 = vmax.f32 %v3628, 0.0
        %v3665 = vmax.f32 %v3629, 0.0
        %v3666 = vmax.f32 %v3630, 0.0
        %v3667 = vmax.f32 %v3631, 0.0
        %v3668 = vmax.f32 %v3632, 0.0
        %v3669 = vmax.f32 %v3633, 0.0
        %v3670 = vmax.f32 %v3634, 0.0
        %v3671 = vmax.f32 %v3635, 0.0
        %v3672 = vmax.f32 %v3636, 0.0
        %v3673 = vmax.f32 %v3637, 0.0
        %v3674 = vmax.f32 %v3638, 0.0
        %v3675 = vmax.f32 %v3639, 0.0
        %v3676 = vmax.f32 %v3640, 0.0
        %v3677 = vmax.f32 %v3641, 0.0
        %v3678 = vmax.f32 %v3642, 0.0
        %v3679 = vmax.f32 %v3643, 0.0
        %v3680 = vmax.f32 %v3644, 0.0
        %v3681 = vmax.f32 %v3645, 0.0
        %v3682 = vmax.f32 %v3646, 0.0
        %v3683 = vmax.f32 %v3647, 0.0
        %v3684 = vmax.f32 %v3648, 0.0
        %v3685 = vmax.f32 %v3649, 0.0
        %v3686 = vmax.f32 %v3650, 0.0
        %v3687 = vmax.f32 %v3651, 0.0
        %v3688 = vmax.f32 %v3652, 0.0
        %v3689 = vmax.f32 %v3653, 0.0
        %v3690 = vmax.f32 %v3654, 0.0
        %v3691 = vmax.f32 %v3655, 0.0
        %v3692 = vmax.f32 %v3656, 0.0
        %v3693 = vmax.f32 %v3657, 0.0
        %v3694 = vmax.f32 %v3658, 0.0
        %v3695 = vmax.f32 %v3659, 0.0
        %v3696 = vmax.f32 %v3660, 0.0
        %v3697 = vmax.f32 %v3661, 0.0
        %v3698 = vmax.f32 %v3662, 0.0
        %v3699 = vmax.f32 %v3663, 0.0
        %vm3700 = vcmask 523264
        %3701 = vst.msk [vmem:[#allocation2] sm:$0xff] %vm3700, %v3664
        %3702 = vst.msk [vmem:[#allocation2 + $0x8] sm:$0xff] %vm3700, %v3665
        %3703 = vst.msk [vmem:[#allocation2 + $0x10] sm:$0xff] %vm3700, %v3666
        %3704 = vst.msk [vmem:[#allocation2 + $0x18] sm:$0xff] %vm3700, %v3667
        %3705 = vst.msk [vmem:[#allocation2 + $0x20] sm:$0xff] %vm3700, %v3668
        %3706 = vst.msk [vmem:[#allocation2 + $0x28] sm:$0xff] %vm3700, %v3669
        %3707 = vst.msk [vmem:[#allocation2 + $0x30] sm:$0xff] %vm3700, %v3670
        %3708 = vst.msk [vmem:[#allocation2 + $0x38] sm:$0xff] %vm3700, %v3671
        %3709 = vst.msk [vmem:[#allocation2 + $0x40] sm:$0xff] %vm3700, %v3672
        %3710 = vst.msk [vmem:[#allocation2 + $0x48] sm:$0xff] %vm3700, %v3673
        %3711 = vst.msk [vmem:[#allocation2 + $0x50] sm:$0xff] %vm3700, %v3674
        %3712 = vst.msk [vmem:[#allocation2 + $0x58] sm:$0xff] %vm3700, %v3675
        %3713 = vst.msk [vmem:[#allocation2 + $0x60] sm:$0xff] %vm3700, %v3676
        %3714 = vst.msk [vmem:[#allocation2 + $0x68] sm:$0xff] %vm3700, %v3677
        %3715 = vst.msk [vmem:[#allocation2 + $0x70] sm:$0xff] %vm3700, %v3678
        %3716 = vst.msk [vmem:[#allocation2 + $0x78] sm:$0xff] %vm3700, %v3679
        %3717 = vst.msk [vmem:[#allocation2 + $0x80] sm:$0xff] %vm3700, %v3680
        %3718 = vst.msk [vmem:[#allocation2 + $0x88] sm:$0xff] %vm3700, %v3681
        %3719 = vst.msk [vmem:[#allocation2 + $0x90] sm:$0xff] %vm3700, %v3682
        %3720 = vst.msk [vmem:[#allocation2 + $0x98] sm:$0xff] %vm3700, %v3683
        %3721 = vst.msk [vmem:[#allocation2 + $0xa0] sm:$0xff] %vm3700, %v3684
        %3722 = vst.msk [vmem:[#allocation2 + $0xa8] sm:$0xff] %vm3700, %v3685
        %3723 = vst.msk [vmem:[#allocation2 + $0xb0] sm:$0xff] %vm3700, %v3686
        %3724 = vst.msk [vmem:[#allocation2 + $0xb8] sm:$0xff] %vm3700, %v3687
        %3725 = vst.msk [vmem:[#allocation2 + $0xc0] sm:$0xff] %vm3700, %v3688
        %3726 = vst.msk [vmem:[#allocation2 + $0xc8] sm:$0xff] %vm3700, %v3689
        %3727 = vst.msk [vmem:[#allocation2 + $0xd0] sm:$0xff] %vm3700, %v3690
        %3728 = vst.msk [vmem:[#allocation2 + $0xd8] sm:$0xff] %vm3700, %v3691
        %3729 = vst.msk [vmem:[#allocation2 + $0xe0] sm:$0xff] %vm3700, %v3692
        %3730 = vst.msk [vmem:[#allocation2 + $0xe8] sm:$0xff] %vm3700, %v3693
        %3731 = vst.msk [vmem:[#allocation2 + $0xf0] sm:$0xff] %vm3700, %v3694
        %3732 = vst.msk [vmem:[#allocation2 + $0xf8] sm:$0xff] %vm3700, %v3695
        %3733 = vst.msk [vmem:[#allocation2 + $0x100] sm:$0xff] %vm3700, %v3696
        %3734 = vst.msk [vmem:[#allocation2 + $0x108] sm:$0xff] %vm3700, %v3697
        %3735 = vst.msk [vmem:[#allocation2 + $0x110] sm:$0xff] %vm3700, %v3698
        %3736 = vst.msk [vmem:[#allocation2 + $0x118] sm:$0xff] %vm3700, %v3699
        %v3737 = vld [vmem:[#allocation2] sm:$0xff]
        %v3738 = vld [vmem:[#allocation2 + $0x8] sm:$0xff]
        %v3739 = vpack.c.bf16 %v3738, %v3737
        %v3741 = vunpack.c.l.b16 %v3739
        %v3742 = vunpack.c.h.b16 %v3739
        %v3743 = vpack.c.b16 %v3741, %v3741
        %v3744 = vpack.c.b16 %v3742, %v3742
        %vm3747 = vcmask 519168
        %3748 = vst.msk [vmem:[%s163] sm:$0xf] %vm3747, %v3743
        %3749 = vst.msk [vmem:[%s163 + $0x4] sm:$0xf] %vm3747, %v3744
        %v3750 = vld [vmem:[#allocation2 + $0x12] sm:$0xff]
        %v3751 = vld [vmem:[#allocation2 + $0x1a] sm:$0xff]
        %v3752 = vpack.c.bf16 %v3751, %v3750
        %v3754 = vunpack.c.l.b16 %v3752
        %v3755 = vunpack.c.h.b16 %v3752
        %v3756 = vpack.c.b16 %v3754, %v3754
        %v3757 = vpack.c.b16 %v3755, %v3755
        %s3760 = scalar_lea.vmem %s163, 8 [#allocation3]
        %3761 = vst.msk [vmem:[%s3760] sm:$0xf] %vm3747, %v3756
        %3762 = vst.msk [vmem:[%s3760 + $0x4] sm:$0xf] %vm3747, %v3757
        %v3763 = vld [vmem:[#allocation2 + $0x24] sm:$0xff]
        %v3764 = vld [vmem:[#allocation2 + $0x2c] sm:$0xff]
        %v3765 = vpack.c.bf16 %v3764, %v3763
        %v3767 = vunpack.c.l.b16 %v3765
        %v3768 = vunpack.c.h.b16 %v3765
        %v3769 = vpack.c.b16 %v3767, %v3767
        %v3770 = vpack.c.b16 %v3768, %v3768
        %s3773 = scalar_lea.vmem %s163, 16 [#allocation3]
        %3774 = vst.msk [vmem:[%s3773] sm:$0xf] %vm3747, %v3769
        %3775 = vst.msk [vmem:[%s3773 + $0x4] sm:$0xf] %vm3747, %v3770
        %v3776 = vld [vmem:[#allocation2 + $0x36] sm:$0xff]
        %v3777 = vld [vmem:[#allocation2 + $0x3e] sm:$0xff]
        %v3778 = vpack.c.bf16 %v3777, %v3776
        %v3780 = vunpack.c.l.b16 %v3778
        %v3781 = vunpack.c.h.b16 %v3778
        %v3782 = vpack.c.b16 %v3780, %v3780
        %v3783 = vpack.c.b16 %v3781, %v3781
        %s3786 = scalar_lea.vmem %s163, 24 [#allocation3]
        %3787 = vst.msk [vmem:[%s3786] sm:$0xf] %vm3747, %v3782
        %3788 = vst.msk [vmem:[%s3786 + $0x4] sm:$0xf] %vm3747, %v3783
        %v3789 = vld [vmem:[#allocation2 + $0x48] sm:$0xff]
        %v3790 = vld [vmem:[#allocation2 + $0x50] sm:$0xff]
        %v3791 = vpack.c.bf16 %v3790, %v3789
        %v3793 = vunpack.c.l.b16 %v3791
        %v3794 = vunpack.c.h.b16 %v3791
        %v3795 = vpack.c.b16 %v3793, %v3793
        %v3796 = vpack.c.b16 %v3794, %v3794
        %s3799 = scalar_lea.vmem %s163, 32 [#allocation3]
        %3800 = vst.msk [vmem:[%s3799] sm:$0xf] %vm3747, %v3795
        %3801 = vst.msk [vmem:[%s3799 + $0x4] sm:$0xf] %vm3747, %v3796
        %v3802 = vld [vmem:[#allocation2 + $0x5a] sm:$0xff]
        %v3803 = vld [vmem:[#allocation2 + $0x62] sm:$0xff]
        %v3804 = vpack.c.bf16 %v3803, %v3802
        %v3806 = vunpack.c.l.b16 %v3804
        %v3807 = vunpack.c.h.b16 %v3804
        %v3808 = vpack.c.b16 %v3806, %v3806
        %v3809 = vpack.c.b16 %v3807, %v3807
        %s3812 = scalar_lea.vmem %s163, 40 [#allocation3]
        %3813 = vst.msk [vmem:[%s3812] sm:$0xf] %vm3747, %v3808
        %3814 = vst.msk [vmem:[%s3812 + $0x4] sm:$0xf] %vm3747, %v3809
        %v3815 = vld [vmem:[#allocation2 + $0x6c] sm:$0xff]
        %v3816 = vld [vmem:[#allocation2 + $0x74] sm:$0xff]
        %v3817 = vpack.c.bf16 %v3816, %v3815
        %v3819 = vunpack.c.l.b16 %v3817
        %v3820 = vunpack.c.h.b16 %v3817
        %v3821 = vpack.c.b16 %v3819, %v3819
        %v3822 = vpack.c.b16 %v3820, %v3820
        %s3825 = scalar_lea.vmem %s163, 48 [#allocation3]
        %3826 = vst.msk [vmem:[%s3825] sm:$0xf] %vm3747, %v3821
        %3827 = vst.msk [vmem:[%s3825 + $0x4] sm:$0xf] %vm3747, %v3822
        %v3828 = vld [vmem:[#allocation2 + $0x7e] sm:$0xff]
        %v3829 = vld [vmem:[#allocation2 + $0x86] sm:$0xff]
        %v3830 = vpack.c.bf16 %v3829, %v3828
        %v3832 = vunpack.c.l.b16 %v3830
        %v3833 = vunpack.c.h.b16 %v3830
        %v3834 = vpack.c.b16 %v3832, %v3832
        %v3835 = vpack.c.b16 %v3833, %v3833
        %s3838 = scalar_lea.vmem %s163, 56 [#allocation3]
        %3839 = vst.msk [vmem:[%s3838] sm:$0xf] %vm3747, %v3834
        %3840 = vst.msk [vmem:[%s3838 + $0x4] sm:$0xf] %vm3747, %v3835
        %v3841 = vld [vmem:[#allocation2 + $0x90] sm:$0xff]
        %v3842 = vld [vmem:[#allocation2 + $0x98] sm:$0xff]
        %v3843 = vpack.c.bf16 %v3842, %v3841
        %v3845 = vunpack.c.l.b16 %v3843
        %v3846 = vunpack.c.h.b16 %v3843
        %v3847 = vpack.c.b16 %v3845, %v3845
        %v3848 = vpack.c.b16 %v3846, %v3846
        %s3851 = scalar_lea.vmem %s163, 64 [#allocation3]
        %3852 = vst.msk [vmem:[%s3851] sm:$0xf] %vm3747, %v3847
        %3853 = vst.msk [vmem:[%s3851 + $0x4] sm:$0xf] %vm3747, %v3848
        %v3854 = vld [vmem:[#allocation2 + $0xa2] sm:$0xff]
        %v3855 = vld [vmem:[#allocation2 + $0xaa] sm:$0xff]
        %v3856 = vpack.c.bf16 %v3855, %v3854
        %v3858 = vunpack.c.l.b16 %v3856
        %v3859 = vunpack.c.h.b16 %v3856
        %v3860 = vpack.c.b16 %v3858, %v3858
        %v3861 = vpack.c.b16 %v3859, %v3859
        %s3864 = scalar_lea.vmem %s163, 72 [#allocation3]
        %3865 = vst.msk [vmem:[%s3864] sm:$0xf] %vm3747, %v3860
        %3866 = vst.msk [vmem:[%s3864 + $0x4] sm:$0xf] %vm3747, %v3861
        %v3867 = vld [vmem:[#allocation2 + $0xb4] sm:$0xff]
        %v3868 = vld [vmem:[#allocation2 + $0xbc] sm:$0xff]
        %v3869 = vpack.c.bf16 %v3868, %v3867
        %v3871 = vunpack.c.l.b16 %v3869
        %v3872 = vunpack.c.h.b16 %v3869
        %v3873 = vpack.c.b16 %v3871, %v3871
        %v3874 = vpack.c.b16 %v3872, %v3872
        %s3877 = scalar_lea.vmem %s163, 80 [#allocation3]
        %3878 = vst.msk [vmem:[%s3877] sm:$0xf] %vm3747, %v3873
        %3879 = vst.msk [vmem:[%s3877 + $0x4] sm:$0xf] %vm3747, %v3874
        %v3880 = vld [vmem:[#allocation2 + $0xc6] sm:$0xff]
        %v3881 = vld [vmem:[#allocation2 + $0xce] sm:$0xff]
        %v3882 = vpack.c.bf16 %v3881, %v3880
        %v3884 = vunpack.c.l.b16 %v3882
        %v3885 = vunpack.c.h.b16 %v3882
        %v3886 = vpack.c.b16 %v3884, %v3884
        %v3887 = vpack.c.b16 %v3885, %v3885
        %s3890 = scalar_lea.vmem %s163, 88 [#allocation3]
        %3891 = vst.msk [vmem:[%s3890] sm:$0xf] %vm3747, %v3886
        %3892 = vst.msk [vmem:[%s3890 + $0x4] sm:$0xf] %vm3747, %v3887
        %v3893 = vld [vmem:[#allocation2 + $0xd8] sm:$0xff]
        %v3894 = vld [vmem:[#allocation2 + $0xe0] sm:$0xff]
        %v3895 = vpack.c.bf16 %v3894, %v3893
        %v3897 = vunpack.c.l.b16 %v3895
        %v3898 = vunpack.c.h.b16 %v3895
        %v3899 = vpack.c.b16 %v3897, %v3897
        %v3900 = vpack.c.b16 %v3898, %v3898
        %s3903 = scalar_lea.vmem %s163, 96 [#allocation3]
        %3904 = vst.msk [vmem:[%s3903] sm:$0xf] %vm3747, %v3899
        %3905 = vst.msk [vmem:[%s3903 + $0x4] sm:$0xf] %vm3747, %v3900
        %v3906 = vld [vmem:[#allocation2 + $0xea] sm:$0xff]
        %v3907 = vld [vmem:[#allocation2 + $0xf2] sm:$0xff]
        %v3908 = vpack.c.bf16 %v3907, %v3906
        %v3910 = vunpack.c.l.b16 %v3908
        %v3911 = vunpack.c.h.b16 %v3908
        %v3912 = vpack.c.b16 %v3910, %v3910
        %v3913 = vpack.c.b16 %v3911, %v3911
        %s3916 = scalar_lea.vmem %s163, 104 [#allocation3]
        %3917 = vst.msk [vmem:[%s3916] sm:$0xf] %vm3747, %v3912
        %3918 = vst.msk [vmem:[%s3916 + $0x4] sm:$0xf] %vm3747, %v3913
        %v3919 = vld [vmem:[#allocation2 + $0xfc] sm:$0xff]
        %v3920 = vld [vmem:[#allocation2 + $0x104] sm:$0xff]
        %v3921 = vpack.c.bf16 %v3920, %v3919
        %v3923 = vunpack.c.l.b16 %v3921
        %v3924 = vunpack.c.h.b16 %v3921
        %v3925 = vpack.c.b16 %v3923, %v3923
        %v3926 = vpack.c.b16 %v3924, %v3924
        %s3929 = scalar_lea.vmem %s163, 112 [#allocation3]
        %3930 = vst.msk [vmem:[%s3929] sm:$0xf] %vm3747, %v3925
        %3931 = vst.msk [vmem:[%s3929 + $0x4] sm:$0xf] %vm3747, %v3926
        %v3932 = vld [vmem:[#allocation2 + $0x10e] sm:$0xff]
        %v3933 = vld [vmem:[#allocation2 + $0x116] sm:$0xff]
        %v3934 = vpack.c.bf16 %v3933, %v3932
        %v3936 = vunpack.c.l.b16 %v3934
        %v3937 = vunpack.c.h.b16 %v3934
        %v3938 = vpack.c.b16 %v3936, %v3936
        %v3939 = vpack.c.b16 %v3937, %v3937
        %s3942 = scalar_lea.vmem %s163, 120 [#allocation3]
        %3943 = vst.msk [vmem:[%s3942] sm:$0xf] %vm3747, %v3938
        %3944 = vst.msk [vmem:[%s3942 + $0x4] sm:$0xf] %vm3747, %v3939
        %s3945 = sand.u32 %s93, 1
        %s3946 = scalar_lea.sflag [#allocation4], %s3945
        %s3947 = sand.u32 %s93, 1
        %s3948 = smul.addr %s3947, 128
        %s3949 = scalar_lea.vmem [#allocation3], %s3948
        // Predicated region
        $region33: #{tpu_custom_call.1} parent=31 // pred_check
          %p3950 = pneg %p103
        $region34: #{tpu_custom_call.1} parent=31 // pred_check_branch
          %3952 = sbr.rel (%p3950) target = $region36
        $region35: #{tpu_custom_call.1} parent=31 // pred_region
          %s3954 = ssub.s32 2048, 2048
          %3955 = vsyncadd %s3946, %s3954
          %s3956 = smul.addr %s17, 32
          %s3957 = smul.addr %s3956, 64
          %s3958 = scalar_lea.hbm %s3, %s3957
          %s3959 = sshll.u32 %s3949, 4
          %s3960 = int_to_ptr.vmem [resolvable:$true] %s3959
          %3965 = dma.vmem_to_hbm [thread:$0]  %s3960, 2048, %s3958, %s3946, 64, 64, 4
        $region36: #{tpu_custom_call.1} parent=31 // pred_fallthru
          _
      $region32: #{tpu_custom_call.1} parent=5 // pred_fallthru
        _
      %p3966 = scmp.le.s32.totalorder 2, %s12
      // Predicated region
      $region37: #{tpu_custom_call.1} parent=5 // pred_check
        %p3967 = pneg %p3966
      $region38: #{tpu_custom_call.1} parent=5 // pred_check_branch
        %3969 = sbr.rel (%p3967) target = $region40
      $region39: #{tpu_custom_call.1} parent=5 // pred_region
        %s3970 = ssub.s32 %s12, 2
        // Predicated region
        $region41: #{tpu_custom_call.1} parent=39 // pred_check
          %p3971 = pneg %p109
        $region42: #{tpu_custom_call.1} parent=39 // pred_check_branch
          %3973 = sbr.rel (%p3971) target = $region44
        $region43: #{tpu_custom_call.1} parent=39 // pred_region
          %s3974 = sand.u32 %s94, 1
          %s3975 = scalar_lea.sflag [#allocation4], %s3974
          %s3976 = sand.u32 %s94, 1
          %s3977 = smul.addr %s3976, 128
          %s3978 = scalar_lea.vmem [#allocation3], %s3977
          %3979 = dma.done %s3975, 2048
        $region44: #{tpu_custom_call.1} parent=39 // pred_fallthru
          _
      $region40: #{tpu_custom_call.1} parent=5 // pred_fallthru
        _
    $region6: #{tpu_custom_call.1} parent=1 // loop_footer
      %s16 = sadd.s32 1, %s12
    $region7: #{tpu_custom_call.1} parent=1 // loop_footer_branch
      %11 = sbr.rel target = $region3
    $region8: #{tpu_custom_call.1} parent=1 // loop_exit
      _
    %3980 = vsyncpa [#allocation4], 1
    %s3981 = scalar_lea.sflag [#allocation4], 1
    %3982 = vsyncpa %s3981, 1

</llo_original>
